<compile_context>
chip_gen: v7x
topology: tpu7x:2x2x1
jax: 0.10.0
libtpu: 0.0.40
codegen_flags: <defaults>
</compile_context>

<pallas_src>
import functools

import jax
import jax.numpy as jnp
from jax.experimental import pallas as pl
from jax.experimental.pallas import tpu as pltpu

ACTION_SIZE = 6  # ACTION_SIZE is not defined in the snippet; pick a small value.
BN_EPS = 1e-5

# Static conv configuration of ConvNet: (name, kernel_h, kernel_w, stride).
CONV_LAYERS = (("c1", 8, 8, 4), ("c2", 4, 4, 2), ("c3", 3, 3, 1))


# ----------------------------------------------------------------------------
# Pallas kernels
# ----------------------------------------------------------------------------
def _conv_bn_relu_kernel(x_ref, w_ref, shift_ref, o_ref, *, kch, kcw, oh, ow):
    """Fused stride-collapsed conv + folded-BN shift + ReLU for one batch row.

    x_ref:     (1, PH, PW, Ceff)    space-to-depth input (bf16)
    w_ref:     (kch*kcw, Ceff, OC)  per-tap weights, BN scale pre-folded (bf16)
    shift_ref: (1, OC)              folded BN shift (f32)
    o_ref:     (1, OH, OW, OC)      output (bf16)
    """
    oc = o_ref.shape[3]
    shift = shift_ref[...]                                   # (1, OC) f32
    # Hoist the per-tap weight loads out of the row loop (one VMEM read each).
    w_taps = [w_ref[t] for t in range(kch * kcw)]            # each (Ceff, OC)
    # Static (fully unrolled) loops; every slice below is 2-D and contiguous,
    # so no in-kernel reshapes/relayouts are needed.
    for oy in range(oh):
        acc = jnp.zeros((ow, oc), jnp.float32)
        for ci in range(kch):
            for cj in range(kcw):
                patch = x_ref[0, oy + ci, cj:cj + ow, :]      # (OW, Ceff) bf16
                acc = acc + jnp.dot(patch, w_taps[ci * kcw + cj],
                                    preferred_element_type=jnp.float32)
        o_ref[0, oy, :, :] = jnp.maximum(acc + shift, 0.0).astype(o_ref.dtype)


def _head_kernel(flat_ref, w1_ref, b1_ref, w2_ref, b2_ref, o_ref, h_acc,
                 *, n_actions):
    """Fused dueling head: [state|action] fc1 (K-tiled) -> ReLU -> packed fc2
    -> q = state + (action - mean(action))."""
    k = pl.program_id(0)

    @pl.when(k == 0)
    def _init():
        h_acc[...] = jnp.zeros_like(h_acc)

    h_acc[...] += jnp.dot(flat_ref[...], w1_ref[...],
                          preferred_element_type=jnp.float32)

    @pl.when(k == pl.num_programs(0) - 1)
    def _finalize():
        h = jnp.maximum(h_acc[...] + b1_ref[...], 0.0).astype(w2_ref.dtype)
        y = jnp.dot(h, w2_ref[...], preferred_element_type=jnp.float32)
        y = y + b2_ref[...]                                   # (B, 1 + A) f32
        state_q = y[:, 0:1]
        action_q = y[:, 1:1 + n_actions]
        q = state_q + (action_q - jnp.mean(action_q, axis=1, keepdims=True))
        o_ref[...] = q.astype(o_ref.dtype)


# ----------------------------------------------------------------------------
# Pallas wrappers
# ----------------------------------------------------------------------------
def _space_to_depth(x, s):
    """(N, H, W, C) -> (N, H//s, W//s, s*s*C); pure relayout, no duplication."""
    if s == 1:
        return x
    n, h, w, c = x.shape
    hs, ws = (h // s) * s, (w // s) * s
    x = x[:, :hs, :ws, :]
    x = x.reshape(n, hs // s, s, ws // s, s, c)
    x = x.transpose(0, 1, 3, 2, 4, 5)
    return x.reshape(n, hs // s, ws // s, s * s * c)


def conv_bn_relu(x_nhwc, w_taps, shift, *, stride, kch, kcw):
    xs = _space_to_depth(x_nhwc, stride).astype(jnp.bfloat16)
    n, ph, pw, ceff = xs.shape
    ntaps, ceff2, oc = w_taps.shape
    assert ntaps == kch * kcw and ceff2 == ceff
    oh, ow = ph - kch + 1, pw - kcw + 1
    kernel = functools.partial(_conv_bn_relu_kernel,
                               kch=kch, kcw=kcw, oh=oh, ow=ow)
    return pl.pallas_call(
        kernel,
        out_shape=jax.ShapeDtypeStruct((n, oh, ow, oc), jnp.bfloat16),
        grid=(n,),
        in_specs=[
            pl.BlockSpec((1, ph, pw, ceff), lambda i: (i, 0, 0, 0)),
            pl.BlockSpec((ntaps, ceff, oc), lambda i: (0, 0, 0)),
            pl.BlockSpec((1, oc), lambda i: (0, 0)),
        ],
        out_specs=pl.BlockSpec((1, oh, ow, oc), lambda i: (i, 0, 0, 0)),
        compiler_params=pltpu.CompilerParams(
            dimension_semantics=("parallel",)),
    )(xs, w_taps, shift)


def dueling_heads(flat, w1, b1, w2, b2, n_actions, *, tk=512):
    b, f = flat.shape
    h1 = w1.shape[1]
    if f % tk != 0:        # tiny/toy sizes: single K step over the whole width
        tk = f
    nk = f // tk
    kernel = functools.partial(_head_kernel, n_actions=n_actions)
    return pl.pallas_call(
        kernel,
        out_shape=jax.ShapeDtypeStruct((b, n_actions), jnp.float32),
        grid=(nk,),
        in_specs=[
            pl.BlockSpec((b, tk), lambda k: (0, k)),
            pl.BlockSpec((tk, h1), lambda k: (k, 0)),
            pl.BlockSpec((1, h1), lambda k: (0, 0)),
            pl.BlockSpec((h1, 1 + n_actions), lambda k: (0, 0)),
            pl.BlockSpec((1, 1 + n_actions), lambda k: (0, 0)),
        ],
        out_specs=pl.BlockSpec((b, n_actions), lambda k: (0, 0)),
        scratch_shapes=[pltpu.VMEM((b, h1), jnp.float32)],
        compiler_params=pltpu.CompilerParams(
            dimension_semantics=("arbitrary",)),   # K is a reduction axis
    )(flat.astype(jnp.bfloat16), w1, b1, w2, b2)


# ----------------------------------------------------------------------------
# Parameter construction (PyTorch layouts) and kernel-ready prep
# ----------------------------------------------------------------------------
def make_params(key, conv_out_shape, action_size):
    """Random parameters mirroring the PyTorch module's layouts.

    Conv weights: (KH, KW, IC, OC).  Linear weights: (in, out), with the `in`
    axis of the first head layers ordered NCHW-flat (C*H*W), exactly as
    `conv_out.view(N, -1)` produces in PyTorch.
    """
    oc3, oh3, ow3 = conv_out_shape
    flat_size = oc3 * oh3 * ow3

    def nrm(k, shape, fan_in):
        return jax.random.normal(k, shape, jnp.float32) * (1.0 / jnp.sqrt(fan_in))

    keys = jax.random.split(key, 24)
    p = {}
    ki = 0
    conv_cfgs = [("c1", 8, 8, 4, 32), ("c2", 4, 4, 32, 64), ("c3", 3, 3, 64, 64)]
    for name, kh, kw, ic, oc in conv_cfgs:
        p[f"{name}_w"] = nrm(keys[ki], (kh, kw, ic, oc), kh * kw * ic); ki += 1
        p[f"{name}_b"] = 0.01 * jax.random.normal(keys[ki], (oc,), jnp.float32); ki += 1
        p[f"{name}_gamma"] = 1.0 + 0.1 * jax.random.normal(keys[ki], (oc,), jnp.float32); ki += 1
        p[f"{name}_beta"] = 0.01 * jax.random.normal(keys[ki], (oc,), jnp.float32); ki += 1
        p[f"{name}_mean"] = 0.01 * jnp.arange(oc, dtype=jnp.float32) / oc
        p[f"{name}_var"] = 1.0 + 0.05 * jnp.arange(oc, dtype=jnp.float32) / oc

    lin_cfgs = [("s1", flat_size, 512), ("s2", 512, 1),
                ("a1", flat_size, 512), ("a2", 512, action_size)]
    for name, fin, fout in lin_cfgs:
        p[f"{name}_w"] = nrm(keys[ki], (fin, fout), fin); ki += 1
        p[f"{name}_b"] = 0.01 * jax.random.normal(keys[ki], (fout,), jnp.float32); ki += 1
    return p


def _fold_bn(w, b, gamma, beta, mean, var, eps=BN_EPS):
    scale = gamma / jnp.sqrt(var + eps)
    shift = beta + scale * (b - mean)
    return w * scale, shift     # scale folded into weights (per OC, last axis)


def prepare_conv(p, name, stride):
    """Fold BN scale into weights and rearrange into per-tap matrices matching
    the space-to-depth channel order (ri, rj, c)."""
    w, shift = _fold_bn(p[f"{name}_w"], p[f"{name}_b"], p[f"{name}_gamma"],
                        p[f"{name}_beta"], p[f"{name}_mean"], p[f"{name}_var"])
    kh, kw, ic, oc = w.shape
    s = stride
    assert kh % s == 0 and kw % s == 0, "kernel sizes in this model divide stride"
    kch, kcw = kh // s, kw // s
    w_taps = (w.reshape(kch, s, kcw, s, ic, oc)
                .transpose(0, 2, 1, 3, 4, 5)
                .reshape(kch * kcw, s * s * ic, oc))
    return {"w": w_taps.astype(jnp.bfloat16),
            "shift": shift.reshape(1, oc).astype(jnp.float32)}


def prepare_heads(p, conv_out_shape, action_size):
    oc3, oh3, ow3 = conv_out_shape
    # Permute fc1 rows from PyTorch NCHW-flat order to NHWC-flat order so the
    # heads consume the conv output without a runtime transpose.
    perm = jnp.transpose(jnp.arange(oc3 * oh3 * ow3).reshape(oc3, oh3, ow3),
                         (1, 2, 0)).reshape(-1)
    w1 = jnp.concatenate([p["s1_w"][perm], p["a1_w"][perm]], axis=1)   # (F, 1024)
    b1 = jnp.concatenate([p["s1_b"], p["a1_b"]]).reshape(1, -1)        # (1, 1024)
    h = p["s1_w"].shape[1]
    w2 = jnp.zeros((2 * h, 1 + action_size), jnp.float32)              # block-diag
    w2 = w2.at[:h, 0:1].set(p["s2_w"])
    w2 = w2.at[h:, 1:].set(p["a2_w"])
    b2 = jnp.concatenate([p["s2_b"], p["a2_b"]]).reshape(1, -1)        # (1, 1+A)
    return {"w1": w1.astype(jnp.bfloat16), "b1": b1.astype(jnp.float32),
            "w2": w2.astype(jnp.bfloat16), "b2": b2.astype(jnp.float32)}


# ----------------------------------------------------------------------------
# DDQN forward
# ----------------------------------------------------------------------------
def ddqn_forward(kparams, x_nchw, action_size):
    x = jnp.transpose(x_nchw, (0, 2, 3, 1))          # NCHW -> NHWC once
    for name, kh, kw, s in CONV_LAYERS:
        c = kparams[name]
        x = conv_bn_relu(x, c["w"], c["shift"], stride=s, kch=kh // s, kcw=kw // s)
    n, oh, ow, oc = x.shape
    flat = x.reshape(n, oh * ow * oc)                # NHWC flatten (weights pre-permuted)
    hp = kparams["head"]
    return dueling_heads(flat, hp["w1"], hp["b1"], hp["w2"], hp["b2"], action_size)


# ----------------------------------------------------------------------------
# Pure-JAX reference (PyTorch layouts/semantics, bf16 cast points mirrored)
# ----------------------------------------------------------------------------
def _im2col(x, kh, kw, stride):
    n, h, w, c = x.shape
    oh = (h - kh) // stride + 1
    ow = (w - kw) // stride + 1
    cols = []
    for i in range(kh):
        for j in range(kw):
            cols.append(x[:, i:i + stride * oh:stride, j:j + stride * ow:stride, :])
    patches = jnp.stack(cols, axis=3)                # (n, oh, ow, kh*kw, c)
    return patches.reshape(n * oh * ow, kh * kw * c), oh, ow


def ddqn_reference(p, x_nchw, action_size):
    x = jnp.transpose(x_nchw, (0, 2, 3, 1)).astype(jnp.bfloat16)
    for name, kh, kw, stride in CONV_LAYERS:
        w, shift = _fold_bn(p[f"{name}_w"], p[f"{name}_b"], p[f"{name}_gamma"],
                            p[f"{name}_beta"], p[f"{name}_mean"], p[f"{name}_var"])
        _, _, ic, oc = w.shape
        patches, oh, ow = _im2col(x, kh, kw, stride)
        out = jnp.dot(patches, w.reshape(kh * kw * ic, oc).astype(jnp.bfloat16),
                      preferred_element_type=jnp.float32) + shift
        x = jnp.maximum(out, 0.0).reshape(x.shape[0], oh, ow, oc).astype(jnp.bfloat16)
    n = x.shape[0]
    flat = jnp.transpose(x, (0, 3, 1, 2)).reshape(n, -1)   # PyTorch view(N, -1) order

    def linear(v, wname, bname):
        return jnp.dot(v, p[wname].astype(jnp.bfloat16),
                       preferred_element_type=jnp.float32) + p[bname]

    h_s = jnp.maximum(linear(flat, "s1_w", "s1_b"), 0.0).astype(jnp.bfloat16)
    h_a = jnp.maximum(linear(flat, "a1_w", "a1_b"), 0.0).astype(jnp.bfloat16)
    state_q = linear(h_s, "s2_w", "s2_b")
    action_q = linear(h_a, "a2_w", "a2_b")
    return state_q + (action_q - jnp.mean(action_q, axis=1, keepdims=True))


if __name__ == "__main__":
    key = jax.random.PRNGKey(0)
    k_x, k_p = jax.random.split(key)

    # Small input consistent with the conv stack (k8/s4 -> k4/s2 -> k3/s1):
    # (2, 4, 44, 60) -> conv out (2, 64, 2, 4) -> flat size 64*2*4 = 512.
    batch, in_ch, H, W = 2, 4, 44, 60
    x = jax.random.normal(k_x, (batch, in_ch, H, W), jnp.float32)

    oh1, ow1 = (H - 8) // 4 + 1, (W - 8) // 4 + 1
    oh2, ow2 = (oh1 - 4) // 2 + 1, (ow1 - 4) // 2 + 1
    oh3, ow3 = oh2 - 3 + 1, ow2 - 3 + 1
    conv_out_shape = (64, oh3, ow3)

    params = make_params(k_p, conv_out_shape, ACTION_SIZE)
    kparams = {
        "c1": prepare_conv(params, "c1", 4),
        "c2": prepare_conv(params, "c2", 2),
        "c3": prepare_conv(params, "c3", 1),
        "head": prepare_heads(params, conv_out_shape, ACTION_SIZE),
    }

    fwd = jax.jit(functools.partial(ddqn_forward, action_size=ACTION_SIZE))
    q = jax.block_until_ready(fwd(kparams, x))

    q_ref = ddqn_reference(params, x, ACTION_SIZE)
    assert q.shape == (batch, ACTION_SIZE), q.shape
    assert bool(jnp.all(jnp.isfinite(q)))
    assert jnp.allclose(q, q_ref, rtol=2e-2, atol=2e-2), (q, q_ref)

    print("KERNEL_OK")
</pallas_src>

<mosaic_0001>
module attributes {stable_mosaic.version = 11 : i64} {
  func.func @_conv_bn_relu_kernel(%arg0: i32, %arg1: memref<1x11x15x64xbf16, #tpu.memory_space<vmem>>, %arg2: memref<4x64x32xbf16, #tpu.memory_space<vmem>>, %arg3: memref<1x32xf32, #tpu.memory_space<vmem>>, %arg4: memref<1x10x14x32xbf16, #tpu.memory_space<vmem>>) attributes {dimension_semantics = [#tpu.dimension_semantics<parallel>], iteration_bounds = array<i64: 2>, scalar_prefetch = 0 : i64, scratch_operands = 0 : i64, tpu.core_type = #tpu.core_type<tc>, window_params = [{transform_indices = @transform_0, window_bounds = array<i64: 1, 11, 15, 64>}, {pipeline_mode = #tpu.pipeline_mode<synchronous>, transform_indices = @transform_1, window_bounds = array<i64: 4, 64, 32>}, {pipeline_mode = #tpu.pipeline_mode<synchronous>, transform_indices = @transform_2, window_bounds = array<i64: 1, 32>}, {transform_indices = @transform_3, window_bounds = array<i64: 1, 10, 14, 32>}]} {
    %c0 = arith.constant 0 : index
    %c0_0 = arith.constant 0 : index
    %0 = vector.load %arg3[%c0, %c0_0] : memref<1x32xf32, #tpu.memory_space<vmem>>, vector<1x32xf32>
    %c0_1 = arith.constant 0 : index
    %c0_2 = arith.constant 0 : index
    %c0_3 = arith.constant 0 : index
    %1 = vector.load %arg2[%c0_1, %c0_2, %c0_3] : memref<4x64x32xbf16, #tpu.memory_space<vmem>>, vector<1x64x32xbf16>
    %2 = vector.shape_cast %1 : vector<1x64x32xbf16> to vector<64x32xbf16>
    %c1 = arith.constant 1 : index
    %c0_4 = arith.constant 0 : index
    %c0_5 = arith.constant 0 : index
    %3 = vector.load %arg2[%c1, %c0_4, %c0_5] : memref<4x64x32xbf16, #tpu.memory_space<vmem>>, vector<1x64x32xbf16>
    %4 = vector.shape_cast %3 : vector<1x64x32xbf16> to vector<64x32xbf16>
    %c2 = arith.constant 2 : index
    %c0_6 = arith.constant 0 : index
    %c0_7 = arith.constant 0 : index
    %5 = vector.load %arg2[%c2, %c0_6, %c0_7] : memref<4x64x32xbf16, #tpu.memory_space<vmem>>, vector<1x64x32xbf16>
    %6 = vector.shape_cast %5 : vector<1x64x32xbf16> to vector<64x32xbf16>
    %c3 = arith.constant 3 : index
    %c0_8 = arith.constant 0 : index
    %c0_9 = arith.constant 0 : index
    %7 = vector.load %arg2[%c3, %c0_8, %c0_9] : memref<4x64x32xbf16, #tpu.memory_space<vmem>>, vector<1x64x32xbf16>
    %8 = vector.shape_cast %7 : vector<1x64x32xbf16> to vector<64x32xbf16>
    %cst = arith.constant 0.000000e+00 : f32
    %9 = vector.broadcast %cst : f32 to vector<14x32xf32>
    %c0_10 = arith.constant 0 : index
    %c0_11 = arith.constant 0 : index
    %c0_12 = arith.constant 0 : index
    %c0_13 = arith.constant 0 : index
    %10 = vector.load %arg1[%c0_10, %c0_11, %c0_12, %c0_13] : memref<1x11x15x64xbf16, #tpu.memory_space<vmem>>, vector<1x1x14x64xbf16>
    %11 = vector.shape_cast %10 : vector<1x1x14x64xbf16> to vector<14x64xbf16>
    %cst_14 = arith.constant dense<0.000000e+00> : vector<14x32xf32>
    %12 = tpu.matmul %11, %2, %cst_14 {dimension_numbers = #tpu.dot_dimension_numbers<[1], [0], [0], [1], [0, 0, 1, 1], [], []>} : vector<14x64xbf16>, vector<64x32xbf16>, vector<14x32xf32> -> vector<14x32xf32>
    %13 = arith.addf %9, %12 : vector<14x32xf32>
    %c0_15 = arith.constant 0 : index
    %c0_16 = arith.constant 0 : index
    %c1_17 = arith.constant 1 : index
    %c0_18 = arith.constant 0 : index
    %14 = vector.load %arg1[%c0_15, %c0_16, %c1_17, %c0_18] : memref<1x11x15x64xbf16, #tpu.memory_space<vmem>>, vector<1x1x14x64xbf16>
    %15 = vector.shape_cast %14 : vector<1x1x14x64xbf16> to vector<14x64xbf16>
    %cst_19 = arith.constant dense<0.000000e+00> : vector<14x32xf32>
    %16 = tpu.matmul %15, %4, %cst_19 {dimension_numbers = #tpu.dot_dimension_numbers<[1], [0], [0], [1], [0, 0, 1, 1], [], []>} : vector<14x64xbf16>, vector<64x32xbf16>, vector<14x32xf32> -> vector<14x32xf32>
    %17 = arith.addf %13, %16 : vector<14x32xf32>
    %c0_20 = arith.constant 0 : index
    %c1_21 = arith.constant 1 : index
    %c0_22 = arith.constant 0 : index
    %c0_23 = arith.constant 0 : index
    %18 = vector.load %arg1[%c0_20, %c1_21, %c0_22, %c0_23] : memref<1x11x15x64xbf16, #tpu.memory_space<vmem>>, vector<1x1x14x64xbf16>
    %19 = vector.shape_cast %18 : vector<1x1x14x64xbf16> to vector<14x64xbf16>
    %cst_24 = arith.constant dense<0.000000e+00> : vector<14x32xf32>
    %20 = tpu.matmul %19, %6, %cst_24 {dimension_numbers = #tpu.dot_dimension_numbers<[1], [0], [0], [1], [0, 0, 1, 1], [], []>} : vector<14x64xbf16>, vector<64x32xbf16>, vector<14x32xf32> -> vector<14x32xf32>
    %21 = arith.addf %17, %20 : vector<14x32xf32>
    %c0_25 = arith.constant 0 : index
    %c1_26 = arith.constant 1 : index
    %c1_27 = arith.constant 1 : index
    %c0_28 = arith.constant 0 : index
    %22 = vector.load %arg1[%c0_25, %c1_26, %c1_27, %c0_28] : memref<1x11x15x64xbf16, #tpu.memory_space<vmem>>, vector<1x1x14x64xbf16>
    %23 = vector.shape_cast %22 : vector<1x1x14x64xbf16> to vector<14x64xbf16>
    %cst_29 = arith.constant dense<0.000000e+00> : vector<14x32xf32>
    %24 = tpu.matmul %23, %8, %cst_29 {dimension_numbers = #tpu.dot_dimension_numbers<[1], [0], [0], [1], [0, 0, 1, 1], [], []>} : vector<14x64xbf16>, vector<64x32xbf16>, vector<14x32xf32> -> vector<14x32xf32>
    %25 = arith.addf %21, %24 : vector<14x32xf32>
    %26 = vector.broadcast %0 : vector<1x32xf32> to vector<14x32xf32>
    %27 = arith.addf %25, %26 : vector<14x32xf32>
    %cst_30 = arith.constant 0.000000e+00 : f32
    %28 = vector.broadcast %cst_30 : f32 to vector<14x32xf32>
    %29 = arith.maximumf %27, %28 : vector<14x32xf32>
    %30 = arith.truncf %29 : vector<14x32xf32> to vector<14x32xbf16>
    %c0_31 = arith.constant 0 : index
    %c0_32 = arith.constant 0 : index
    %c0_33 = arith.constant 0 : index
    %c0_34 = arith.constant 0 : index
    %31 = vector.load %arg4[%c0_31, %c0_32, %c0_33, %c0_34] : memref<1x10x14x32xbf16, #tpu.memory_space<vmem>>, vector<1x1x14x32xbf16>
    %32 = vector.shape_cast %31 : vector<1x1x14x32xbf16> to vector<14x32xbf16>
    %33 = vector.shape_cast %30 : vector<14x32xbf16> to vector<1x1x14x32xbf16>
    tpu.vector_store %arg4[%c0_31, %c0_32, %c0_33, %c0_34], %33 {strides = array<i32>} : memref<1x10x14x32xbf16, #tpu.memory_space<vmem>>, vector<1x1x14x32xbf16>,
    %cst_35 = arith.constant 0.000000e+00 : f32
    %34 = vector.broadcast %cst_35 : f32 to vector<14x32xf32>
    %c0_36 = arith.constant 0 : index
    %c1_37 = arith.constant 1 : index
    %c0_38 = arith.constant 0 : index
    %c0_39 = arith.constant 0 : index
    %35 = vector.load %arg1[%c0_36, %c1_37, %c0_38, %c0_39] : memref<1x11x15x64xbf16, #tpu.memory_space<vmem>>, vector<1x1x14x64xbf16>
    %36 = vector.shape_cast %35 : vector<1x1x14x64xbf16> to vector<14x64xbf16>
    %cst_40 = arith.constant dense<0.000000e+00> : vector<14x32xf32>
    %37 = tpu.matmul %36, %2, %cst_40 {dimension_numbers = #tpu.dot_dimension_numbers<[1], [0], [0], [1], [0, 0, 1, 1], [], []>} : vector<14x64xbf16>, vector<64x32xbf16>, vector<14x32xf32> -> vector<14x32xf32>
    %38 = arith.addf %34, %37 : vector<14x32xf32>
    %c0_41 = arith.constant 0 : index
    %c1_42 = arith.constant 1 : index
    %c1_43 = arith.constant 1 : index
    %c0_44 = arith.constant 0 : index
    %39 = vector.load %arg1[%c0_41, %c1_42, %c1_43, %c0_44] : memref<1x11x15x64xbf16, #tpu.memory_space<vmem>>, vector<1x1x14x64xbf16>
    %40 = vector.shape_cast %39 : vector<1x1x14x64xbf16> to vector<14x64xbf16>
    %cst_45 = arith.constant dense<0.000000e+00> : vector<14x32xf32>
    %41 = tpu.matmul %40, %4, %cst_45 {dimension_numbers = #tpu.dot_dimension_numbers<[1], [0], [0], [1], [0, 0, 1, 1], [], []>} : vector<14x64xbf16>, vector<64x32xbf16>, vector<14x32xf32> -> vector<14x32xf32>
    %42 = arith.addf %38, %41 : vector<14x32xf32>
    %c0_46 = arith.constant 0 : index
    %c2_47 = arith.constant 2 : index
    %c0_48 = arith.constant 0 : index
    %c0_49 = arith.constant 0 : index
    %43 = vector.load %arg1[%c0_46, %c2_47, %c0_48, %c0_49] : memref<1x11x15x64xbf16, #tpu.memory_space<vmem>>, vector<1x1x14x64xbf16>
    %44 = vector.shape_cast %43 : vector<1x1x14x64xbf16> to vector<14x64xbf16>
    %cst_50 = arith.constant dense<0.000000e+00> : vector<14x32xf32>
    %45 = tpu.matmul %44, %6, %cst_50 {dimension_numbers = #tpu.dot_dimension_numbers<[1], [0], [0], [1], [0, 0, 1, 1], [], []>} : vector<14x64xbf16>, vector<64x32xbf16>, vector<14x32xf32> -> vector<14x32xf32>
    %46 = arith.addf %42, %45 : vector<14x32xf32>
    %c0_51 = arith.constant 0 : index
    %c2_52 = arith.constant 2 : index
    %c1_53 = arith.constant 1 : index
    %c0_54 = arith.constant 0 : index
    %47 = vector.load %arg1[%c0_51, %c2_52, %c1_53, %c0_54] : memref<1x11x15x64xbf16, #tpu.memory_space<vmem>>, vector<1x1x14x64xbf16>
    %48 = vector.shape_cast %47 : vector<1x1x14x64xbf16> to vector<14x64xbf16>
    %cst_55 = arith.constant dense<0.000000e+00> : vector<14x32xf32>
    %49 = tpu.matmul %48, %8, %cst_55 {dimension_numbers = #tpu.dot_dimension_numbers<[1], [0], [0], [1], [0, 0, 1, 1], [], []>} : vector<14x64xbf16>, vector<64x32xbf16>, vector<14x32xf32> -> vector<14x32xf32>
    %50 = arith.addf %46, %49 : vector<14x32xf32>
    %51 = vector.broadcast %0 : vector<1x32xf32> to vector<14x32xf32>
    %52 = arith.addf %50, %51 : vector<14x32xf32>
    %cst_56 = arith.constant 0.000000e+00 : f32
    %53 = vector.broadcast %cst_56 : f32 to vector<14x32xf32>
    %54 = arith.maximumf %52, %53 : vector<14x32xf32>
    %55 = arith.truncf %54 : vector<14x32xf32> to vector<14x32xbf16>
    %c0_57 = arith.constant 0 : index
    %c1_58 = arith.constant 1 : index
    %c0_59 = arith.constant 0 : index
    %c0_60 = arith.constant 0 : index
    %56 = vector.load %arg4[%c0_57, %c1_58, %c0_59, %c0_60] : memref<1x10x14x32xbf16, #tpu.memory_space<vmem>>, vector<1x1x14x32xbf16>
    %57 = vector.shape_cast %56 : vector<1x1x14x32xbf16> to vector<14x32xbf16>
    %58 = vector.shape_cast %55 : vector<14x32xbf16> to vector<1x1x14x32xbf16>
    tpu.vector_store %arg4[%c0_57, %c1_58, %c0_59, %c0_60], %58 {strides = array<i32>} : memref<1x10x14x32xbf16, #tpu.memory_space<vmem>>, vector<1x1x14x32xbf16>,
    %cst_61 = arith.constant 0.000000e+00 : f32
    %59 = vector.broadcast %cst_61 : f32 to vector<14x32xf32>
    %c0_62 = arith.constant 0 : index
    %c2_63 = arith.constant 2 : index
    %c0_64 = arith.constant 0 : index
    %c0_65 = arith.constant 0 : index
    %60 = vector.load %arg1[%c0_62, %c2_63, %c0_64, %c0_65] : memref<1x11x15x64xbf16, #tpu.memory_space<vmem>>, vector<1x1x14x64xbf16>
    %61 = vector.shape_cast %60 : vector<1x1x14x64xbf16> to vector<14x64xbf16>
    %cst_66 = arith.constant dense<0.000000e+00> : vector<14x32xf32>
    %62 = tpu.matmul %61, %2, %cst_66 {dimension_numbers = #tpu.dot_dimension_numbers<[1], [0], [0], [1], [0, 0, 1, 1], [], []>} : vector<14x64xbf16>, vector<64x32xbf16>, vector<14x32xf32> -> vector<14x32xf32>
    %63 = arith.addf %59, %62 : vector<14x32xf32>
    %c0_67 = arith.constant 0 : index
    %c2_68 = arith.constant 2 : index
    %c1_69 = arith.constant 1 : index
    %c0_70 = arith.constant 0 : index
    %64 = vector.load %arg1[%c0_67, %c2_68, %c1_69, %c0_70] : memref<1x11x15x64xbf16, #tpu.memory_space<vmem>>, vector<1x1x14x64xbf16>
    %65 = vector.shape_cast %64 : vector<1x1x14x64xbf16> to vector<14x64xbf16>
    %cst_71 = arith.constant dense<0.000000e+00> : vector<14x32xf32>
    %66 = tpu.matmul %65, %4, %cst_71 {dimension_numbers = #tpu.dot_dimension_numbers<[1], [0], [0], [1], [0, 0, 1, 1], [], []>} : vector<14x64xbf16>, vector<64x32xbf16>, vector<14x32xf32> -> vector<14x32xf32>
    %67 = arith.addf %63, %66 : vector<14x32xf32>
    %c0_72 = arith.constant 0 : index
    %c3_73 = arith.constant 3 : index
    %c0_74 = arith.constant 0 : index
    %c0_75 = arith.constant 0 : index
    %68 = vector.load %arg1[%c0_72, %c3_73, %c0_74, %c0_75] : memref<1x11x15x64xbf16, #tpu.memory_space<vmem>>, vector<1x1x14x64xbf16>
    %69 = vector.shape_cast %68 : vector<1x1x14x64xbf16> to vector<14x64xbf16>
    %cst_76 = arith.constant dense<0.000000e+00> : vector<14x32xf32>
    %70 = tpu.matmul %69, %6, %cst_76 {dimension_numbers = #tpu.dot_dimension_numbers<[1], [0], [0], [1], [0, 0, 1, 1], [], []>} : vector<14x64xbf16>, vector<64x32xbf16>, vector<14x32xf32> -> vector<14x32xf32>
    %71 = arith.addf %67, %70 : vector<14x32xf32>
    %c0_77 = arith.constant 0 : index
    %c3_78 = arith.constant 3 : index
    %c1_79 = arith.constant 1 : index
    %c0_80 = arith.constant 0 : index
    %72 = vector.load %arg1[%c0_77, %c3_78, %c1_79, %c0_80] : memref<1x11x15x64xbf16, #tpu.memory_space<vmem>>, vector<1x1x14x64xbf16>
    %73 = vector.shape_cast %72 : vector<1x1x14x64xbf16> to vector<14x64xbf16>
    %cst_81 = arith.constant dense<0.000000e+00> : vector<14x32xf32>
    %74 = tpu.matmul %73, %8, %cst_81 {dimension_numbers = #tpu.dot_dimension_numbers<[1], [0], [0], [1], [0, 0, 1, 1], [], []>} : vector<14x64xbf16>, vector<64x32xbf16>, vector<14x32xf32> -> vector<14x32xf32>
    %75 = arith.addf %71, %74 : vector<14x32xf32>
    %76 = vector.broadcast %0 : vector<1x32xf32> to vector<14x32xf32>
    %77 = arith.addf %75, %76 : vector<14x32xf32>
    %cst_82 = arith.constant 0.000000e+00 : f32
    %78 = vector.broadcast %cst_82 : f32 to vector<14x32xf32>
    %79 = arith.maximumf %77, %78 : vector<14x32xf32>
    %80 = arith.truncf %79 : vector<14x32xf32> to vector<14x32xbf16>
    %c0_83 = arith.constant 0 : index
    %c2_84 = arith.constant 2 : index
    %c0_85 = arith.constant 0 : index
    %c0_86 = arith.constant 0 : index
    %81 = vector.load %arg4[%c0_83, %c2_84, %c0_85, %c0_86] : memref<1x10x14x32xbf16, #tpu.memory_space<vmem>>, vector<1x1x14x32xbf16>
    %82 = vector.shape_cast %81 : vector<1x1x14x32xbf16> to vector<14x32xbf16>
    %83 = vector.shape_cast %80 : vector<14x32xbf16> to vector<1x1x14x32xbf16>
    tpu.vector_store %arg4[%c0_83, %c2_84, %c0_85, %c0_86], %83 {strides = array<i32>} : memref<1x10x14x32xbf16, #tpu.memory_space<vmem>>, vector<1x1x14x32xbf16>,
    %cst_87 = arith.constant 0.000000e+00 : f32
    %84 = vector.broadcast %cst_87 : f32 to vector<14x32xf32>
    %c0_88 = arith.constant 0 : index
    %c3_89 = arith.constant 3 : index
    %c0_90 = arith.constant 0 : index
    %c0_91 = arith.constant 0 : index
    %85 = vector.load %arg1[%c0_88, %c3_89, %c0_90, %c0_91] : memref<1x11x15x64xbf16, #tpu.memory_space<vmem>>, vector<1x1x14x64xbf16>
    %86 = vector.shape_cast %85 : vector<1x1x14x64xbf16> to vector<14x64xbf16>
    %cst_92 = arith.constant dense<0.000000e+00> : vector<14x32xf32>
    %87 = tpu.matmul %86, %2, %cst_92 {dimension_numbers = #tpu.dot_dimension_numbers<[1], [0], [0], [1], [0, 0, 1, 1], [], []>} : vector<14x64xbf16>, vector<64x32xbf16>, vector<14x32xf32> -> vector<14x32xf32>
    %88 = arith.addf %84, %87 : vector<14x32xf32>
    %c0_93 = arith.constant 0 : index
    %c3_94 = arith.constant 3 : index
    %c1_95 = arith.constant 1 : index
    %c0_96 = arith.constant 0 : index
    %89 = vector.load %arg1[%c0_93, %c3_94, %c1_95, %c0_96] : memref<1x11x15x64xbf16, #tpu.memory_space<vmem>>, vector<1x1x14x64xbf16>
    %90 = vector.shape_cast %89 : vector<1x1x14x64xbf16> to vector<14x64xbf16>
    %cst_97 = arith.constant dense<0.000000e+00> : vector<14x32xf32>
    %91 = tpu.matmul %90, %4, %cst_97 {dimension_numbers = #tpu.dot_dimension_numbers<[1], [0], [0], [1], [0, 0, 1, 1], [], []>} : vector<14x64xbf16>, vector<64x32xbf16>, vector<14x32xf32> -> vector<14x32xf32>
    %92 = arith.addf %88, %91 : vector<14x32xf32>
    %c0_98 = arith.constant 0 : index
    %c4 = arith.constant 4 : index
    %c0_99 = arith.constant 0 : index
    %c0_100 = arith.constant 0 : index
    %93 = vector.load %arg1[%c0_98, %c4, %c0_99, %c0_100] : memref<1x11x15x64xbf16, #tpu.memory_space<vmem>>, vector<1x1x14x64xbf16>
    %94 = vector.shape_cast %93 : vector<1x1x14x64xbf16> to vector<14x64xbf16>
    %cst_101 = arith.constant dense<0.000000e+00> : vector<14x32xf32>
    %95 = tpu.matmul %94, %6, %cst_101 {dimension_numbers = #tpu.dot_dimension_numbers<[1], [0], [0], [1], [0, 0, 1, 1], [], []>} : vector<14x64xbf16>, vector<64x32xbf16>, vector<14x32xf32> -> vector<14x32xf32>
    %96 = arith.addf %92, %95 : vector<14x32xf32>
    %c0_102 = arith.constant 0 : index
    %c4_103 = arith.constant 4 : index
    %c1_104 = arith.constant 1 : index
    %c0_105 = arith.constant 0 : index
    %97 = vector.load %arg1[%c0_102, %c4_103, %c1_104, %c0_105] : memref<1x11x15x64xbf16, #tpu.memory_space<vmem>>, vector<1x1x14x64xbf16>
    %98 = vector.shape_cast %97 : vector<1x1x14x64xbf16> to vector<14x64xbf16>
    %cst_106 = arith.constant dense<0.000000e+00> : vector<14x32xf32>
    %99 = tpu.matmul %98, %8, %cst_106 {dimension_numbers = #tpu.dot_dimension_numbers<[1], [0], [0], [1], [0, 0, 1, 1], [], []>} : vector<14x64xbf16>, vector<64x32xbf16>, vector<14x32xf32> -> vector<14x32xf32>
    %100 = arith.addf %96, %99 : vector<14x32xf32>
    %101 = vector.broadcast %0 : vector<1x32xf32> to vector<14x32xf32>
    %102 = arith.addf %100, %101 : vector<14x32xf32>
    %cst_107 = arith.constant 0.000000e+00 : f32
    %103 = vector.broadcast %cst_107 : f32 to vector<14x32xf32>
    %104 = arith.maximumf %102, %103 : vector<14x32xf32>
    %105 = arith.truncf %104 : vector<14x32xf32> to vector<14x32xbf16>
    %c0_108 = arith.constant 0 : index
    %c3_109 = arith.constant 3 : index
    %c0_110 = arith.constant 0 : index
    %c0_111 = arith.constant 0 : index
    %106 = vector.load %arg4[%c0_108, %c3_109, %c0_110, %c0_111] : memref<1x10x14x32xbf16, #tpu.memory_space<vmem>>, vector<1x1x14x32xbf16>
    %107 = vector.shape_cast %106 : vector<1x1x14x32xbf16> to vector<14x32xbf16>
    %108 = vector.shape_cast %105 : vector<14x32xbf16> to vector<1x1x14x32xbf16>
    tpu.vector_store %arg4[%c0_108, %c3_109, %c0_110, %c0_111], %108 {strides = array<i32>} : memref<1x10x14x32xbf16, #tpu.memory_space<vmem>>, vector<1x1x14x32xbf16>,
    %cst_112 = arith.constant 0.000000e+00 : f32
    %109 = vector.broadcast %cst_112 : f32 to vector<14x32xf32>
    %c0_113 = arith.constant 0 : index
    %c4_114 = arith.constant 4 : index
    %c0_115 = arith.constant 0 : index
    %c0_116 = arith.constant 0 : index
    %110 = vector.load %arg1[%c0_113, %c4_114, %c0_115, %c0_116] : memref<1x11x15x64xbf16, #tpu.memory_space<vmem>>, vector<1x1x14x64xbf16>
    %111 = vector.shape_cast %110 : vector<1x1x14x64xbf16> to vector<14x64xbf16>
    %cst_117 = arith.constant dense<0.000000e+00> : vector<14x32xf32>
    %112 = tpu.matmul %111, %2, %cst_117 {dimension_numbers = #tpu.dot_dimension_numbers<[1], [0], [0], [1], [0, 0, 1, 1], [], []>} : vector<14x64xbf16>, vector<64x32xbf16>, vector<14x32xf32> -> vector<14x32xf32>
    %113 = arith.addf %109, %112 : vector<14x32xf32>
    %c0_118 = arith.constant 0 : index
    %c4_119 = arith.constant 4 : index
    %c1_120 = arith.constant 1 : index
    %c0_121 = arith.constant 0 : index
    %114 = vector.load %arg1[%c0_118, %c4_119, %c1_120, %c0_121] : memref<1x11x15x64xbf16, #tpu.memory_space<vmem>>, vector<1x1x14x64xbf16>
    %115 = vector.shape_cast %114 : vector<1x1x14x64xbf16> to vector<14x64xbf16>
    %cst_122 = arith.constant dense<0.000000e+00> : vector<14x32xf32>
    %116 = tpu.matmul %115, %4, %cst_122 {dimension_numbers = #tpu.dot_dimension_numbers<[1], [0], [0], [1], [0, 0, 1, 1], [], []>} : vector<14x64xbf16>, vector<64x32xbf16>, vector<14x32xf32> -> vector<14x32xf32>
    %117 = arith.addf %113, %116 : vector<14x32xf32>
    %c0_123 = arith.constant 0 : index
    %c5 = arith.constant 5 : index
    %c0_124 = arith.constant 0 : index
    %c0_125 = arith.constant 0 : index
    %118 = vector.load %arg1[%c0_123, %c5, %c0_124, %c0_125] : memref<1x11x15x64xbf16, #tpu.memory_space<vmem>>, vector<1x1x14x64xbf16>
    %119 = vector.shape_cast %118 : vector<1x1x14x64xbf16> to vector<14x64xbf16>
    %cst_126 = arith.constant dense<0.000000e+00> : vector<14x32xf32>
    %120 = tpu.matmul %119, %6, %cst_126 {dimension_numbers = #tpu.dot_dimension_numbers<[1], [0], [0], [1], [0, 0, 1, 1], [], []>} : vector<14x64xbf16>, vector<64x32xbf16>, vector<14x32xf32> -> vector<14x32xf32>
    %121 = arith.addf %117, %120 : vector<14x32xf32>
    %c0_127 = arith.constant 0 : index
    %c5_128 = arith.constant 5 : index
    %c1_129 = arith.constant 1 : index
    %c0_130 = arith.constant 0 : index
    %122 = vector.load %arg1[%c0_127, %c5_128, %c1_129, %c0_130] : memref<1x11x15x64xbf16, #tpu.memory_space<vmem>>, vector<1x1x14x64xbf16>
    %123 = vector.shape_cast %122 : vector<1x1x14x64xbf16> to vector<14x64xbf16>
    %cst_131 = arith.constant dense<0.000000e+00> : vector<14x32xf32>
    %124 = tpu.matmul %123, %8, %cst_131 {dimension_numbers = #tpu.dot_dimension_numbers<[1], [0], [0], [1], [0, 0, 1, 1], [], []>} : vector<14x64xbf16>, vector<64x32xbf16>, vector<14x32xf32> -> vector<14x32xf32>
    %125 = arith.addf %121, %124 : vector<14x32xf32>
    %126 = vector.broadcast %0 : vector<1x32xf32> to vector<14x32xf32>
    %127 = arith.addf %125, %126 : vector<14x32xf32>
    %cst_132 = arith.constant 0.000000e+00 : f32
    %128 = vector.broadcast %cst_132 : f32 to vector<14x32xf32>
    %129 = arith.maximumf %127, %128 : vector<14x32xf32>
    %130 = arith.truncf %129 : vector<14x32xf32> to vector<14x32xbf16>
    %c0_133 = arith.constant 0 : index
    %c4_134 = arith.constant 4 : index
    %c0_135 = arith.constant 0 : index
    %c0_136 = arith.constant 0 : index
    %131 = vector.load %arg4[%c0_133, %c4_134, %c0_135, %c0_136] : memref<1x10x14x32xbf16, #tpu.memory_space<vmem>>, vector<1x1x14x32xbf16>
    %132 = vector.shape_cast %131 : vector<1x1x14x32xbf16> to vector<14x32xbf16>
    %133 = vector.shape_cast %130 : vector<14x32xbf16> to vector<1x1x14x32xbf16>
    tpu.vector_store %arg4[%c0_133, %c4_134, %c0_135, %c0_136], %133 {strides = array<i32>} : memref<1x10x14x32xbf16, #tpu.memory_space<vmem>>, vector<1x1x14x32xbf16>,
    %cst_137 = arith.constant 0.000000e+00 : f32
    %134 = vector.broadcast %cst_137 : f32 to vector<14x32xf32>
    %c0_138 = arith.constant 0 : index
    %c5_139 = arith.constant 5 : index
    %c0_140 = arith.constant 0 : index
    %c0_141 = arith.constant 0 : index
    %135 = vector.load %arg1[%c0_138, %c5_139, %c0_140, %c0_141] : memref<1x11x15x64xbf16, #tpu.memory_space<vmem>>, vector<1x1x14x64xbf16>
    %136 = vector.shape_cast %135 : vector<1x1x14x64xbf16> to vector<14x64xbf16>
    %cst_142 = arith.constant dense<0.000000e+00> : vector<14x32xf32>
    %137 = tpu.matmul %136, %2, %cst_142 {dimension_numbers = #tpu.dot_dimension_numbers<[1], [0], [0], [1], [0, 0, 1, 1], [], []>} : vector<14x64xbf16>, vector<64x32xbf16>, vector<14x32xf32> -> vector<14x32xf32>
    %138 = arith.addf %134, %137 : vector<14x32xf32>
    %c0_143 = arith.constant 0 : index
    %c5_144 = arith.constant 5 : index
    %c1_145 = arith.constant 1 : index
    %c0_146 = arith.constant 0 : index
    %139 = vector.load %arg1[%c0_143, %c5_144, %c1_145, %c0_146] : memref<1x11x15x64xbf16, #tpu.memory_space<vmem>>, vector<1x1x14x64xbf16>
    %140 = vector.shape_cast %139 : vector<1x1x14x64xbf16> to vector<14x64xbf16>
    %cst_147 = arith.constant dense<0.000000e+00> : vector<14x32xf32>
    %141 = tpu.matmul %140, %4, %cst_147 {dimension_numbers = #tpu.dot_dimension_numbers<[1], [0], [0], [1], [0, 0, 1, 1], [], []>} : vector<14x64xbf16>, vector<64x32xbf16>, vector<14x32xf32> -> vector<14x32xf32>
    %142 = arith.addf %138, %141 : vector<14x32xf32>
    %c0_148 = arith.constant 0 : index
    %c6 = arith.constant 6 : index
    %c0_149 = arith.constant 0 : index
    %c0_150 = arith.constant 0 : index
    %143 = vector.load %arg1[%c0_148, %c6, %c0_149, %c0_150] : memref<1x11x15x64xbf16, #tpu.memory_space<vmem>>, vector<1x1x14x64xbf16>
    %144 = vector.shape_cast %143 : vector<1x1x14x64xbf16> to vector<14x64xbf16>
    %cst_151 = arith.constant dense<0.000000e+00> : vector<14x32xf32>
    %145 = tpu.matmul %144, %6, %cst_151 {dimension_numbers = #tpu.dot_dimension_numbers<[1], [0], [0], [1], [0, 0, 1, 1], [], []>} : vector<14x64xbf16>, vector<64x32xbf16>, vector<14x32xf32> -> vector<14x32xf32>
    %146 = arith.addf %142, %145 : vector<14x32xf32>
    %c0_152 = arith.constant 0 : index
    %c6_153 = arith.constant 6 : index
    %c1_154 = arith.constant 1 : index
    %c0_155 = arith.constant 0 : index
    %147 = vector.load %arg1[%c0_152, %c6_153, %c1_154, %c0_155] : memref<1x11x15x64xbf16, #tpu.memory_space<vmem>>, vector<1x1x14x64xbf16>
    %148 = vector.shape_cast %147 : vector<1x1x14x64xbf16> to vector<14x64xbf16>
    %cst_156 = arith.constant dense<0.000000e+00> : vector<14x32xf32>
    %149 = tpu.matmul %148, %8, %cst_156 {dimension_numbers = #tpu.dot_dimension_numbers<[1], [0], [0], [1], [0, 0, 1, 1], [], []>} : vector<14x64xbf16>, vector<64x32xbf16>, vector<14x32xf32> -> vector<14x32xf32>
    %150 = arith.addf %146, %149 : vector<14x32xf32>
    %151 = vector.broadcast %0 : vector<1x32xf32> to vector<14x32xf32>
    %152 = arith.addf %150, %151 : vector<14x32xf32>
    %cst_157 = arith.constant 0.000000e+00 : f32
    %153 = vector.broadcast %cst_157 : f32 to vector<14x32xf32>
    %154 = arith.maximumf %152, %153 : vector<14x32xf32>
    %155 = arith.truncf %154 : vector<14x32xf32> to vector<14x32xbf16>
    %c0_158 = arith.constant 0 : index
    %c5_159 = arith.constant 5 : index
    %c0_160 = arith.constant 0 : index
    %c0_161 = arith.constant 0 : index
    %156 = vector.load %arg4[%c0_158, %c5_159, %c0_160, %c0_161] : memref<1x10x14x32xbf16, #tpu.memory_space<vmem>>, vector<1x1x14x32xbf16>
    %157 = vector.shape_cast %156 : vector<1x1x14x32xbf16> to vector<14x32xbf16>
    %158 = vector.shape_cast %155 : vector<14x32xbf16> to vector<1x1x14x32xbf16>
    tpu.vector_store %arg4[%c0_158, %c5_159, %c0_160, %c0_161], %158 {strides = array<i32>} : memref<1x10x14x32xbf16, #tpu.memory_space<vmem>>, vector<1x1x14x32xbf16>,
    %cst_162 = arith.constant 0.000000e+00 : f32
    %159 = vector.broadcast %cst_162 : f32 to vector<14x32xf32>
    %c0_163 = arith.constant 0 : index
    %c6_164 = arith.constant 6 : index
    %c0_165 = arith.constant 0 : index
    %c0_166 = arith.constant 0 : index
    %160 = vector.load %arg1[%c0_163, %c6_164, %c0_165, %c0_166] : memref<1x11x15x64xbf16, #tpu.memory_space<vmem>>, vector<1x1x14x64xbf16>
    %161 = vector.shape_cast %160 : vector<1x1x14x64xbf16> to vector<14x64xbf16>
    %cst_167 = arith.constant dense<0.000000e+00> : vector<14x32xf32>
    %162 = tpu.matmul %161, %2, %cst_167 {dimension_numbers = #tpu.dot_dimension_numbers<[1], [0], [0], [1], [0, 0, 1, 1], [], []>} : vector<14x64xbf16>, vector<64x32xbf16>, vector<14x32xf32> -> vector<14x32xf32>
    %163 = arith.addf %159, %162 : vector<14x32xf32>
    %c0_168 = arith.constant 0 : index
    %c6_169 = arith.constant 6 : index
    %c1_170 = arith.constant 1 : index
    %c0_171 = arith.constant 0 : index
    %164 = vector.load %arg1[%c0_168, %c6_169, %c1_170, %c0_171] : memref<1x11x15x64xbf16, #tpu.memory_space<vmem>>, vector<1x1x14x64xbf16>
    %165 = vector.shape_cast %164 : vector<1x1x14x64xbf16> to vector<14x64xbf16>
    %cst_172 = arith.constant dense<0.000000e+00> : vector<14x32xf32>
    %166 = tpu.matmul %165, %4, %cst_172 {dimension_numbers = #tpu.dot_dimension_numbers<[1], [0], [0], [1], [0, 0, 1, 1], [], []>} : vector<14x64xbf16>, vector<64x32xbf16>, vector<14x32xf32> -> vector<14x32xf32>
    %167 = arith.addf %163, %166 : vector<14x32xf32>
    %c0_173 = arith.constant 0 : index
    %c7 = arith.constant 7 : index
    %c0_174 = arith.constant 0 : index
    %c0_175 = arith.constant 0 : index
    %168 = vector.load %arg1[%c0_173, %c7, %c0_174, %c0_175] : memref<1x11x15x64xbf16, #tpu.memory_space<vmem>>, vector<1x1x14x64xbf16>
    %169 = vector.shape_cast %168 : vector<1x1x14x64xbf16> to vector<14x64xbf16>
    %cst_176 = arith.constant dense<0.000000e+00> : vector<14x32xf32>
    %170 = tpu.matmul %169, %6, %cst_176 {dimension_numbers = #tpu.dot_dimension_numbers<[1], [0], [0], [1], [0, 0, 1, 1], [], []>} : vector<14x64xbf16>, vector<64x32xbf16>, vector<14x32xf32> -> vector<14x32xf32>
    %171 = arith.addf %167, %170 : vector<14x32xf32>
    %c0_177 = arith.constant 0 : index
    %c7_178 = arith.constant 7 : index
    %c1_179 = arith.constant 1 : index
    %c0_180 = arith.constant 0 : index
    %172 = vector.load %arg1[%c0_177, %c7_178, %c1_179, %c0_180] : memref<1x11x15x64xbf16, #tpu.memory_space<vmem>>, vector<1x1x14x64xbf16>
    %173 = vector.shape_cast %172 : vector<1x1x14x64xbf16> to vector<14x64xbf16>
    %cst_181 = arith.constant dense<0.000000e+00> : vector<14x32xf32>
    %174 = tpu.matmul %173, %8, %cst_181 {dimension_numbers = #tpu.dot_dimension_numbers<[1], [0], [0], [1], [0, 0, 1, 1], [], []>} : vector<14x64xbf16>, vector<64x32xbf16>, vector<14x32xf32> -> vector<14x32xf32>
    %175 = arith.addf %171, %174 : vector<14x32xf32>
    %176 = vector.broadcast %0 : vector<1x32xf32> to vector<14x32xf32>
    %177 = arith.addf %175, %176 : vector<14x32xf32>
    %cst_182 = arith.constant 0.000000e+00 : f32
    %178 = vector.broadcast %cst_182 : f32 to vector<14x32xf32>
    %179 = arith.maximumf %177, %178 : vector<14x32xf32>
    %180 = arith.truncf %179 : vector<14x32xf32> to vector<14x32xbf16>
    %c0_183 = arith.constant 0 : index
    %c6_184 = arith.constant 6 : index
    %c0_185 = arith.constant 0 : index
    %c0_186 = arith.constant 0 : index
    %181 = vector.load %arg4[%c0_183, %c6_184, %c0_185, %c0_186] : memref<1x10x14x32xbf16, #tpu.memory_space<vmem>>, vector<1x1x14x32xbf16>
    %182 = vector.shape_cast %181 : vector<1x1x14x32xbf16> to vector<14x32xbf16>
    %183 = vector.shape_cast %180 : vector<14x32xbf16> to vector<1x1x14x32xbf16>
    tpu.vector_store %arg4[%c0_183, %c6_184, %c0_185, %c0_186], %183 {strides = array<i32>} : memref<1x10x14x32xbf16, #tpu.memory_space<vmem>>, vector<1x1x14x32xbf16>,
    %cst_187 = arith.constant 0.000000e+00 : f32
    %184 = vector.broadcast %cst_187 : f32 to vector<14x32xf32>
    %c0_188 = arith.constant 0 : index
    %c7_189 = arith.constant 7 : index
    %c0_190 = arith.constant 0 : index
    %c0_191 = arith.constant 0 : index
    %185 = vector.load %arg1[%c0_188, %c7_189, %c0_190, %c0_191] : memref<1x11x15x64xbf16, #tpu.memory_space<vmem>>, vector<1x1x14x64xbf16>
    %186 = vector.shape_cast %185 : vector<1x1x14x64xbf16> to vector<14x64xbf16>
    %cst_192 = arith.constant dense<0.000000e+00> : vector<14x32xf32>
    %187 = tpu.matmul %186, %2, %cst_192 {dimension_numbers = #tpu.dot_dimension_numbers<[1], [0], [0], [1], [0, 0, 1, 1], [], []>} : vector<14x64xbf16>, vector<64x32xbf16>, vector<14x32xf32> -> vector<14x32xf32>
    %188 = arith.addf %184, %187 : vector<14x32xf32>
    %c0_193 = arith.constant 0 : index
    %c7_194 = arith.constant 7 : index
    %c1_195 = arith.constant 1 : index
    %c0_196 = arith.constant 0 : index
    %189 = vector.load %arg1[%c0_193, %c7_194, %c1_195, %c0_196] : memref<1x11x15x64xbf16, #tpu.memory_space<vmem>>, vector<1x1x14x64xbf16>
    %190 = vector.shape_cast %189 : vector<1x1x14x64xbf16> to vector<14x64xbf16>
    %cst_197 = arith.constant dense<0.000000e+00> : vector<14x32xf32>
    %191 = tpu.matmul %190, %4, %cst_197 {dimension_numbers = #tpu.dot_dimension_numbers<[1], [0], [0], [1], [0, 0, 1, 1], [], []>} : vector<14x64xbf16>, vector<64x32xbf16>, vector<14x32xf32> -> vector<14x32xf32>
    %192 = arith.addf %188, %191 : vector<14x32xf32>
    %c0_198 = arith.constant 0 : index
    %c8 = arith.constant 8 : index
    %c0_199 = arith.constant 0 : index
    %c0_200 = arith.constant 0 : index
    %193 = vector.load %arg1[%c0_198, %c8, %c0_199, %c0_200] : memref<1x11x15x64xbf16, #tpu.memory_space<vmem>>, vector<1x1x14x64xbf16>
    %194 = vector.shape_cast %193 : vector<1x1x14x64xbf16> to vector<14x64xbf16>
    %cst_201 = arith.constant dense<0.000000e+00> : vector<14x32xf32>
    %195 = tpu.matmul %194, %6, %cst_201 {dimension_numbers = #tpu.dot_dimension_numbers<[1], [0], [0], [1], [0, 0, 1, 1], [], []>} : vector<14x64xbf16>, vector<64x32xbf16>, vector<14x32xf32> -> vector<14x32xf32>
    %196 = arith.addf %192, %195 : vector<14x32xf32>
    %c0_202 = arith.constant 0 : index
    %c8_203 = arith.constant 8 : index
    %c1_204 = arith.constant 1 : index
    %c0_205 = arith.constant 0 : index
    %197 = vector.load %arg1[%c0_202, %c8_203, %c1_204, %c0_205] : memref<1x11x15x64xbf16, #tpu.memory_space<vmem>>, vector<1x1x14x64xbf16>
    %198 = vector.shape_cast %197 : vector<1x1x14x64xbf16> to vector<14x64xbf16>
    %cst_206 = arith.constant dense<0.000000e+00> : vector<14x32xf32>
    %199 = tpu.matmul %198, %8, %cst_206 {dimension_numbers = #tpu.dot_dimension_numbers<[1], [0], [0], [1], [0, 0, 1, 1], [], []>} : vector<14x64xbf16>, vector<64x32xbf16>, vector<14x32xf32> -> vector<14x32xf32>
    %200 = arith.addf %196, %199 : vector<14x32xf32>
    %201 = vector.broadcast %0 : vector<1x32xf32> to vector<14x32xf32>
    %202 = arith.addf %200, %201 : vector<14x32xf32>
    %cst_207 = arith.constant 0.000000e+00 : f32
    %203 = vector.broadcast %cst_207 : f32 to vector<14x32xf32>
    %204 = arith.maximumf %202, %203 : vector<14x32xf32>
    %205 = arith.truncf %204 : vector<14x32xf32> to vector<14x32xbf16>
    %c0_208 = arith.constant 0 : index
    %c7_209 = arith.constant 7 : index
    %c0_210 = arith.constant 0 : index
    %c0_211 = arith.constant 0 : index
    %206 = vector.load %arg4[%c0_208, %c7_209, %c0_210, %c0_211] : memref<1x10x14x32xbf16, #tpu.memory_space<vmem>>, vector<1x1x14x32xbf16>
    %207 = vector.shape_cast %206 : vector<1x1x14x32xbf16> to vector<14x32xbf16>
    %208 = vector.shape_cast %205 : vector<14x32xbf16> to vector<1x1x14x32xbf16>
    tpu.vector_store %arg4[%c0_208, %c7_209, %c0_210, %c0_211], %208 {strides = array<i32>} : memref<1x10x14x32xbf16, #tpu.memory_space<vmem>>, vector<1x1x14x32xbf16>,
    %cst_212 = arith.constant 0.000000e+00 : f32
    %209 = vector.broadcast %cst_212 : f32 to vector<14x32xf32>
    %c0_213 = arith.constant 0 : index
    %c8_214 = arith.constant 8 : index
    %c0_215 = arith.constant 0 : index
    %c0_216 = arith.constant 0 : index
    %210 = vector.load %arg1[%c0_213, %c8_214, %c0_215, %c0_216] : memref<1x11x15x64xbf16, #tpu.memory_space<vmem>>, vector<1x1x14x64xbf16>
    %211 = vector.shape_cast %210 : vector<1x1x14x64xbf16> to vector<14x64xbf16>
    %cst_217 = arith.constant dense<0.000000e+00> : vector<14x32xf32>
    %212 = tpu.matmul %211, %2, %cst_217 {dimension_numbers = #tpu.dot_dimension_numbers<[1], [0], [0], [1], [0, 0, 1, 1], [], []>} : vector<14x64xbf16>, vector<64x32xbf16>, vector<14x32xf32> -> vector<14x32xf32>
    %213 = arith.addf %209, %212 : vector<14x32xf32>
    %c0_218 = arith.constant 0 : index
    %c8_219 = arith.constant 8 : index
    %c1_220 = arith.constant 1 : index
    %c0_221 = arith.constant 0 : index
    %214 = vector.load %arg1[%c0_218, %c8_219, %c1_220, %c0_221] : memref<1x11x15x64xbf16, #tpu.memory_space<vmem>>, vector<1x1x14x64xbf16>
    %215 = vector.shape_cast %214 : vector<1x1x14x64xbf16> to vector<14x64xbf16>
    %cst_222 = arith.constant dense<0.000000e+00> : vector<14x32xf32>
    %216 = tpu.matmul %215, %4, %cst_222 {dimension_numbers = #tpu.dot_dimension_numbers<[1], [0], [0], [1], [0, 0, 1, 1], [], []>} : vector<14x64xbf16>, vector<64x32xbf16>, vector<14x32xf32> -> vector<14x32xf32>
    %217 = arith.addf %213, %216 : vector<14x32xf32>
    %c0_223 = arith.constant 0 : index
    %c9 = arith.constant 9 : index
    %c0_224 = arith.constant 0 : index
    %c0_225 = arith.constant 0 : index
    %218 = vector.load %arg1[%c0_223, %c9, %c0_224, %c0_225] : memref<1x11x15x64xbf16, #tpu.memory_space<vmem>>, vector<1x1x14x64xbf16>
    %219 = vector.shape_cast %218 : vector<1x1x14x64xbf16> to vector<14x64xbf16>
    %cst_226 = arith.constant dense<0.000000e+00> : vector<14x32xf32>
    %220 = tpu.matmul %219, %6, %cst_226 {dimension_numbers = #tpu.dot_dimension_numbers<[1], [0], [0], [1], [0, 0, 1, 1], [], []>} : vector<14x64xbf16>, vector<64x32xbf16>, vector<14x32xf32> -> vector<14x32xf32>
    %221 = arith.addf %217, %220 : vector<14x32xf32>
    %c0_227 = arith.constant 0 : index
    %c9_228 = arith.constant 9 : index
    %c1_229 = arith.constant 1 : index
    %c0_230 = arith.constant 0 : index
    %222 = vector.load %arg1[%c0_227, %c9_228, %c1_229, %c0_230] : memref<1x11x15x64xbf16, #tpu.memory_space<vmem>>, vector<1x1x14x64xbf16>
    %223 = vector.shape_cast %222 : vector<1x1x14x64xbf16> to vector<14x64xbf16>
    %cst_231 = arith.constant dense<0.000000e+00> : vector<14x32xf32>
    %224 = tpu.matmul %223, %8, %cst_231 {dimension_numbers = #tpu.dot_dimension_numbers<[1], [0], [0], [1], [0, 0, 1, 1], [], []>} : vector<14x64xbf16>, vector<64x32xbf16>, vector<14x32xf32> -> vector<14x32xf32>
    %225 = arith.addf %221, %224 : vector<14x32xf32>
    %226 = vector.broadcast %0 : vector<1x32xf32> to vector<14x32xf32>
    %227 = arith.addf %225, %226 : vector<14x32xf32>
    %cst_232 = arith.constant 0.000000e+00 : f32
    %228 = vector.broadcast %cst_232 : f32 to vector<14x32xf32>
    %229 = arith.maximumf %227, %228 : vector<14x32xf32>
    %230 = arith.truncf %229 : vector<14x32xf32> to vector<14x32xbf16>
    %c0_233 = arith.constant 0 : index
    %c8_234 = arith.constant 8 : index
    %c0_235 = arith.constant 0 : index
    %c0_236 = arith.constant 0 : index
    %231 = vector.load %arg4[%c0_233, %c8_234, %c0_235, %c0_236] : memref<1x10x14x32xbf16, #tpu.memory_space<vmem>>, vector<1x1x14x32xbf16>
    %232 = vector.shape_cast %231 : vector<1x1x14x32xbf16> to vector<14x32xbf16>
    %233 = vector.shape_cast %230 : vector<14x32xbf16> to vector<1x1x14x32xbf16>
    tpu.vector_store %arg4[%c0_233, %c8_234, %c0_235, %c0_236], %233 {strides = array<i32>} : memref<1x10x14x32xbf16, #tpu.memory_space<vmem>>, vector<1x1x14x32xbf16>,
    %cst_237 = arith.constant 0.000000e+00 : f32
    %234 = vector.broadcast %cst_237 : f32 to vector<14x32xf32>
    %c0_238 = arith.constant 0 : index
    %c9_239 = arith.constant 9 : index
    %c0_240 = arith.constant 0 : index
    %c0_241 = arith.constant 0 : index
    %235 = vector.load %arg1[%c0_238, %c9_239, %c0_240, %c0_241] : memref<1x11x15x64xbf16, #tpu.memory_space<vmem>>, vector<1x1x14x64xbf16>
    %236 = vector.shape_cast %235 : vector<1x1x14x64xbf16> to vector<14x64xbf16>
    %cst_242 = arith.constant dense<0.000000e+00> : vector<14x32xf32>
    %237 = tpu.matmul %236, %2, %cst_242 {dimension_numbers = #tpu.dot_dimension_numbers<[1], [0], [0], [1], [0, 0, 1, 1], [], []>} : vector<14x64xbf16>, vector<64x32xbf16>, vector<14x32xf32> -> vector<14x32xf32>
    %238 = arith.addf %234, %237 : vector<14x32xf32>
    %c0_243 = arith.constant 0 : index
    %c9_244 = arith.constant 9 : index
    %c1_245 = arith.constant 1 : index
    %c0_246 = arith.constant 0 : index
    %239 = vector.load %arg1[%c0_243, %c9_244, %c1_245, %c0_246] : memref<1x11x15x64xbf16, #tpu.memory_space<vmem>>, vector<1x1x14x64xbf16>
    %240 = vector.shape_cast %239 : vector<1x1x14x64xbf16> to vector<14x64xbf16>
    %cst_247 = arith.constant dense<0.000000e+00> : vector<14x32xf32>
    %241 = tpu.matmul %240, %4, %cst_247 {dimension_numbers = #tpu.dot_dimension_numbers<[1], [0], [0], [1], [0, 0, 1, 1], [], []>} : vector<14x64xbf16>, vector<64x32xbf16>, vector<14x32xf32> -> vector<14x32xf32>
    %242 = arith.addf %238, %241 : vector<14x32xf32>
    %c0_248 = arith.constant 0 : index
    %c10 = arith.constant 10 : index
    %c0_249 = arith.constant 0 : index
    %c0_250 = arith.constant 0 : index
    %243 = vector.load %arg1[%c0_248, %c10, %c0_249, %c0_250] : memref<1x11x15x64xbf16, #tpu.memory_space<vmem>>, vector<1x1x14x64xbf16>
    %244 = vector.shape_cast %243 : vector<1x1x14x64xbf16> to vector<14x64xbf16>
    %cst_251 = arith.constant dense<0.000000e+00> : vector<14x32xf32>
    %245 = tpu.matmul %244, %6, %cst_251 {dimension_numbers = #tpu.dot_dimension_numbers<[1], [0], [0], [1], [0, 0, 1, 1], [], []>} : vector<14x64xbf16>, vector<64x32xbf16>, vector<14x32xf32> -> vector<14x32xf32>
    %246 = arith.addf %242, %245 : vector<14x32xf32>
    %c0_252 = arith.constant 0 : index
    %c10_253 = arith.constant 10 : index
    %c1_254 = arith.constant 1 : index
    %c0_255 = arith.constant 0 : index
    %247 = vector.load %arg1[%c0_252, %c10_253, %c1_254, %c0_255] : memref<1x11x15x64xbf16, #tpu.memory_space<vmem>>, vector<1x1x14x64xbf16>
    %248 = vector.shape_cast %247 : vector<1x1x14x64xbf16> to vector<14x64xbf16>
    %cst_256 = arith.constant dense<0.000000e+00> : vector<14x32xf32>
    %249 = tpu.matmul %248, %8, %cst_256 {dimension_numbers = #tpu.dot_dimension_numbers<[1], [0], [0], [1], [0, 0, 1, 1], [], []>} : vector<14x64xbf16>, vector<64x32xbf16>, vector<14x32xf32> -> vector<14x32xf32>
    %250 = arith.addf %246, %249 : vector<14x32xf32>
    %251 = vector.broadcast %0 : vector<1x32xf32> to vector<14x32xf32>
    %252 = arith.addf %250, %251 : vector<14x32xf32>
    %cst_257 = arith.constant 0.000000e+00 : f32
    %253 = vector.broadcast %cst_257 : f32 to vector<14x32xf32>
    %254 = arith.maximumf %252, %253 : vector<14x32xf32>
    %255 = arith.truncf %254 : vector<14x32xf32> to vector<14x32xbf16>
    %c0_258 = arith.constant 0 : index
    %c9_259 = arith.constant 9 : index
    %c0_260 = arith.constant 0 : index
    %c0_261 = arith.constant 0 : index
    %256 = vector.load %arg4[%c0_258, %c9_259, %c0_260, %c0_261] : memref<1x10x14x32xbf16, #tpu.memory_space<vmem>>, vector<1x1x14x32xbf16>
    %257 = vector.shape_cast %256 : vector<1x1x14x32xbf16> to vector<14x32xbf16>
    %258 = vector.shape_cast %255 : vector<14x32xbf16> to vector<1x1x14x32xbf16>
    tpu.vector_store %arg4[%c0_258, %c9_259, %c0_260, %c0_261], %258 {strides = array<i32>} : memref<1x10x14x32xbf16, #tpu.memory_space<vmem>>, vector<1x1x14x32xbf16>,
    return
  }
  func.func @transform_0(%arg0: i32) -> (i32, i32, i32, i32) {
    %c0_i32 = arith.constant 0 : i32
    %c0_i32_0 = arith.constant 0 : i32
    %c0_i32_1 = arith.constant 0 : i32
    %c0_i32_2 = arith.constant 0 : i32
    return %arg0, %c0_i32, %c0_i32_0, %c0_i32_1 : i32, i32, i32, i32
  }
  func.func @transform_1(%arg0: i32) -> (i32, i32, i32) {
    %c0_i32 = arith.constant 0 : i32
    %c0_i32_0 = arith.constant 0 : i32
    %c0_i32_1 = arith.constant 0 : i32
    %c0_i32_2 = arith.constant 0 : i32
    return %c0_i32, %c0_i32_0, %c0_i32_1 : i32, i32, i32
  }
  func.func @transform_2(%arg0: i32) -> (i32, i32) {
    %c0_i32 = arith.constant 0 : i32
    %c0_i32_0 = arith.constant 0 : i32
    %c0_i32_1 = arith.constant 0 : i32
    return %c0_i32, %c0_i32_0 : i32, i32
  }
  func.func @transform_3(%arg0: i32) -> (i32, i32, i32, i32) {
    %c0_i32 = arith.constant 0 : i32
    %c0_i32_0 = arith.constant 0 : i32
    %c0_i32_1 = arith.constant 0 : i32
    %c0_i32_2 = arith.constant 0 : i32
    return %arg0, %c0_i32, %c0_i32_0, %c0_i32_1 : i32, i32, i32, i32
  }
}

module attributes {stable_mosaic.version = 11 : i64} {
  func.func @_conv_bn_relu_kernel(%arg0: i32, %arg1: memref<1x5x7x128xbf16, #tpu.memory_space<vmem>>, %arg2: memref<4x128x64xbf16, #tpu.memory_space<vmem>>, %arg3: memref<1x64xf32, #tpu.memory_space<vmem>>, %arg4: memref<1x4x6x64xbf16, #tpu.memory_space<vmem>>) attributes {dimension_semantics = [#tpu.dimension_semantics<parallel>], iteration_bounds = array<i64: 2>, scalar_prefetch = 0 : i64, scratch_operands = 0 : i64, tpu.core_type = #tpu.core_type<tc>, window_params = [{transform_indices = @transform_0, window_bounds = array<i64: 1, 5, 7, 128>}, {pipeline_mode = #tpu.pipeline_mode<synchronous>, transform_indices = @transform_1, window_bounds = array<i64: 4, 128, 64>}, {pipeline_mode = #tpu.pipeline_mode<synchronous>, transform_indices = @transform_2, window_bounds = array<i64: 1, 64>}, {transform_indices = @transform_3, window_bounds = array<i64: 1, 4, 6, 64>}]} {
    %c0 = arith.constant 0 : index
    %c0_0 = arith.constant 0 : index
    %0 = vector.load %arg3[%c0, %c0_0] : memref<1x64xf32, #tpu.memory_space<vmem>>, vector<1x64xf32>
    %c0_1 = arith.constant 0 : index
    %c0_2 = arith.constant 0 : index
    %c0_3 = arith.constant 0 : index
    %1 = vector.load %arg2[%c0_1, %c0_2, %c0_3] : memref<4x128x64xbf16, #tpu.memory_space<vmem>>, vector<1x128x64xbf16>
    %2 = vector.shape_cast %1 : vector<1x128x64xbf16> to vector<128x64xbf16>
    %c1 = arith.constant 1 : index
    %c0_4 = arith.constant 0 : index
    %c0_5 = arith.constant 0 : index
    %3 = vector.load %arg2[%c1, %c0_4, %c0_5] : memref<4x128x64xbf16, #tpu.memory_space<vmem>>, vector<1x128x64xbf16>
    %4 = vector.shape_cast %3 : vector<1x128x64xbf16> to vector<128x64xbf16>
    %c2 = arith.constant 2 : index
    %c0_6 = arith.constant 0 : index
    %c0_7 = arith.constant 0 : index
    %5 = vector.load %arg2[%c2, %c0_6, %c0_7] : memref<4x128x64xbf16, #tpu.memory_space<vmem>>, vector<1x128x64xbf16>
    %6 = vector.shape_cast %5 : vector<1x128x64xbf16> to vector<128x64xbf16>
    %c3 = arith.constant 3 : index
    %c0_8 = arith.constant 0 : index
    %c0_9 = arith.constant 0 : index
    %7 = vector.load %arg2[%c3, %c0_8, %c0_9] : memref<4x128x64xbf16, #tpu.memory_space<vmem>>, vector<1x128x64xbf16>
    %8 = vector.shape_cast %7 : vector<1x128x64xbf16> to vector<128x64xbf16>
    %cst = arith.constant 0.000000e+00 : f32
    %9 = vector.broadcast %cst : f32 to vector<6x64xf32>
    %c0_10 = arith.constant 0 : index
    %c0_11 = arith.constant 0 : index
    %c0_12 = arith.constant 0 : index
    %c0_13 = arith.constant 0 : index
    %10 = vector.load %arg1[%c0_10, %c0_11, %c0_12, %c0_13] : memref<1x5x7x128xbf16, #tpu.memory_space<vmem>>, vector<1x1x6x128xbf16>
    %11 = vector.shape_cast %10 : vector<1x1x6x128xbf16> to vector<6x128xbf16>
    %cst_14 = arith.constant dense<0.000000e+00> : vector<6x64xf32>
    %12 = tpu.matmul %11, %2, %cst_14 {dimension_numbers = #tpu.dot_dimension_numbers<[1], [0], [0], [1], [0, 0, 1, 1], [], []>} : vector<6x128xbf16>, vector<128x64xbf16>, vector<6x64xf32> -> vector<6x64xf32>
    %13 = arith.addf %9, %12 : vector<6x64xf32>
    %c0_15 = arith.constant 0 : index
    %c0_16 = arith.constant 0 : index
    %c1_17 = arith.constant 1 : index
    %c0_18 = arith.constant 0 : index
    %14 = vector.load %arg1[%c0_15, %c0_16, %c1_17, %c0_18] : memref<1x5x7x128xbf16, #tpu.memory_space<vmem>>, vector<1x1x6x128xbf16>
    %15 = vector.shape_cast %14 : vector<1x1x6x128xbf16> to vector<6x128xbf16>
    %cst_19 = arith.constant dense<0.000000e+00> : vector<6x64xf32>
    %16 = tpu.matmul %15, %4, %cst_19 {dimension_numbers = #tpu.dot_dimension_numbers<[1], [0], [0], [1], [0, 0, 1, 1], [], []>} : vector<6x128xbf16>, vector<128x64xbf16>, vector<6x64xf32> -> vector<6x64xf32>
    %17 = arith.addf %13, %16 : vector<6x64xf32>
    %c0_20 = arith.constant 0 : index
    %c1_21 = arith.constant 1 : index
    %c0_22 = arith.constant 0 : index
    %c0_23 = arith.constant 0 : index
    %18 = vector.load %arg1[%c0_20, %c1_21, %c0_22, %c0_23] : memref<1x5x7x128xbf16, #tpu.memory_space<vmem>>, vector<1x1x6x128xbf16>
    %19 = vector.shape_cast %18 : vector<1x1x6x128xbf16> to vector<6x128xbf16>
    %cst_24 = arith.constant dense<0.000000e+00> : vector<6x64xf32>
    %20 = tpu.matmul %19, %6, %cst_24 {dimension_numbers = #tpu.dot_dimension_numbers<[1], [0], [0], [1], [0, 0, 1, 1], [], []>} : vector<6x128xbf16>, vector<128x64xbf16>, vector<6x64xf32> -> vector<6x64xf32>
    %21 = arith.addf %17, %20 : vector<6x64xf32>
    %c0_25 = arith.constant 0 : index
    %c1_26 = arith.constant 1 : index
    %c1_27 = arith.constant 1 : index
    %c0_28 = arith.constant 0 : index
    %22 = vector.load %arg1[%c0_25, %c1_26, %c1_27, %c0_28] : memref<1x5x7x128xbf16, #tpu.memory_space<vmem>>, vector<1x1x6x128xbf16>
    %23 = vector.shape_cast %22 : vector<1x1x6x128xbf16> to vector<6x128xbf16>
    %cst_29 = arith.constant dense<0.000000e+00> : vector<6x64xf32>
    %24 = tpu.matmul %23, %8, %cst_29 {dimension_numbers = #tpu.dot_dimension_numbers<[1], [0], [0], [1], [0, 0, 1, 1], [], []>} : vector<6x128xbf16>, vector<128x64xbf16>, vector<6x64xf32> -> vector<6x64xf32>
    %25 = arith.addf %21, %24 : vector<6x64xf32>
    %26 = vector.broadcast %0 : vector<1x64xf32> to vector<6x64xf32>
    %27 = arith.addf %25, %26 : vector<6x64xf32>
    %cst_30 = arith.constant 0.000000e+00 : f32
    %28 = vector.broadcast %cst_30 : f32 to vector<6x64xf32>
    %29 = arith.maximumf %27, %28 : vector<6x64xf32>
    %30 = arith.truncf %29 : vector<6x64xf32> to vector<6x64xbf16>
    %c0_31 = arith.constant 0 : index
    %c0_32 = arith.constant 0 : index
    %c0_33 = arith.constant 0 : index
    %c0_34 = arith.constant 0 : index
    %31 = vector.load %arg4[%c0_31, %c0_32, %c0_33, %c0_34] : memref<1x4x6x64xbf16, #tpu.memory_space<vmem>>, vector<1x1x6x64xbf16>
    %32 = vector.shape_cast %31 : vector<1x1x6x64xbf16> to vector<6x64xbf16>
    %33 = vector.shape_cast %30 : vector<6x64xbf16> to vector<1x1x6x64xbf16>
    tpu.vector_store %arg4[%c0_31, %c0_32, %c0_33, %c0_34], %33 {strides = array<i32>} : memref<1x4x6x64xbf16, #tpu.memory_space<vmem>>, vector<1x1x6x64xbf16>,
    %cst_35 = arith.constant 0.000000e+00 : f32
    %34 = vector.broadcast %cst_35 : f32 to vector<6x64xf32>
    %c0_36 = arith.constant 0 : index
    %c1_37 = arith.constant 1 : index
    %c0_38 = arith.constant 0 : index
    %c0_39 = arith.constant 0 : index
    %35 = vector.load %arg1[%c0_36, %c1_37, %c0_38, %c0_39] : memref<1x5x7x128xbf16, #tpu.memory_space<vmem>>, vector<1x1x6x128xbf16>
    %36 = vector.shape_cast %35 : vector<1x1x6x128xbf16> to vector<6x128xbf16>
    %cst_40 = arith.constant dense<0.000000e+00> : vector<6x64xf32>
    %37 = tpu.matmul %36, %2, %cst_40 {dimension_numbers = #tpu.dot_dimension_numbers<[1], [0], [0], [1], [0, 0, 1, 1], [], []>} : vector<6x128xbf16>, vector<128x64xbf16>, vector<6x64xf32> -> vector<6x64xf32>
    %38 = arith.addf %34, %37 : vector<6x64xf32>
    %c0_41 = arith.constant 0 : index
    %c1_42 = arith.constant 1 : index
    %c1_43 = arith.constant 1 : index
    %c0_44 = arith.constant 0 : index
    %39 = vector.load %arg1[%c0_41, %c1_42, %c1_43, %c0_44] : memref<1x5x7x128xbf16, #tpu.memory_space<vmem>>, vector<1x1x6x128xbf16>
    %40 = vector.shape_cast %39 : vector<1x1x6x128xbf16> to vector<6x128xbf16>
    %cst_45 = arith.constant dense<0.000000e+00> : vector<6x64xf32>
    %41 = tpu.matmul %40, %4, %cst_45 {dimension_numbers = #tpu.dot_dimension_numbers<[1], [0], [0], [1], [0, 0, 1, 1], [], []>} : vector<6x128xbf16>, vector<128x64xbf16>, vector<6x64xf32> -> vector<6x64xf32>
    %42 = arith.addf %38, %41 : vector<6x64xf32>
    %c0_46 = arith.constant 0 : index
    %c2_47 = arith.constant 2 : index
    %c0_48 = arith.constant 0 : index
    %c0_49 = arith.constant 0 : index
    %43 = vector.load %arg1[%c0_46, %c2_47, %c0_48, %c0_49] : memref<1x5x7x128xbf16, #tpu.memory_space<vmem>>, vector<1x1x6x128xbf16>
    %44 = vector.shape_cast %43 : vector<1x1x6x128xbf16> to vector<6x128xbf16>
    %cst_50 = arith.constant dense<0.000000e+00> : vector<6x64xf32>
    %45 = tpu.matmul %44, %6, %cst_50 {dimension_numbers = #tpu.dot_dimension_numbers<[1], [0], [0], [1], [0, 0, 1, 1], [], []>} : vector<6x128xbf16>, vector<128x64xbf16>, vector<6x64xf32> -> vector<6x64xf32>
    %46 = arith.addf %42, %45 : vector<6x64xf32>
    %c0_51 = arith.constant 0 : index
    %c2_52 = arith.constant 2 : index
    %c1_53 = arith.constant 1 : index
    %c0_54 = arith.constant 0 : index
    %47 = vector.load %arg1[%c0_51, %c2_52, %c1_53, %c0_54] : memref<1x5x7x128xbf16, #tpu.memory_space<vmem>>, vector<1x1x6x128xbf16>
    %48 = vector.shape_cast %47 : vector<1x1x6x128xbf16> to vector<6x128xbf16>
    %cst_55 = arith.constant dense<0.000000e+00> : vector<6x64xf32>
    %49 = tpu.matmul %48, %8, %cst_55 {dimension_numbers = #tpu.dot_dimension_numbers<[1], [0], [0], [1], [0, 0, 1, 1], [], []>} : vector<6x128xbf16>, vector<128x64xbf16>, vector<6x64xf32> -> vector<6x64xf32>
    %50 = arith.addf %46, %49 : vector<6x64xf32>
    %51 = vector.broadcast %0 : vector<1x64xf32> to vector<6x64xf32>
    %52 = arith.addf %50, %51 : vector<6x64xf32>
    %cst_56 = arith.constant 0.000000e+00 : f32
    %53 = vector.broadcast %cst_56 : f32 to vector<6x64xf32>
    %54 = arith.maximumf %52, %53 : vector<6x64xf32>
    %55 = arith.truncf %54 : vector<6x64xf32> to vector<6x64xbf16>
    %c0_57 = arith.constant 0 : index
    %c1_58 = arith.constant 1 : index
    %c0_59 = arith.constant 0 : index
    %c0_60 = arith.constant 0 : index
    %56 = vector.load %arg4[%c0_57, %c1_58, %c0_59, %c0_60] : memref<1x4x6x64xbf16, #tpu.memory_space<vmem>>, vector<1x1x6x64xbf16>
    %57 = vector.shape_cast %56 : vector<1x1x6x64xbf16> to vector<6x64xbf16>
    %58 = vector.shape_cast %55 : vector<6x64xbf16> to vector<1x1x6x64xbf16>
    tpu.vector_store %arg4[%c0_57, %c1_58, %c0_59, %c0_60], %58 {strides = array<i32>} : memref<1x4x6x64xbf16, #tpu.memory_space<vmem>>, vector<1x1x6x64xbf16>,
    %cst_61 = arith.constant 0.000000e+00 : f32
    %59 = vector.broadcast %cst_61 : f32 to vector<6x64xf32>
    %c0_62 = arith.constant 0 : index
    %c2_63 = arith.constant 2 : index
    %c0_64 = arith.constant 0 : index
    %c0_65 = arith.constant 0 : index
    %60 = vector.load %arg1[%c0_62, %c2_63, %c0_64, %c0_65] : memref<1x5x7x128xbf16, #tpu.memory_space<vmem>>, vector<1x1x6x128xbf16>
    %61 = vector.shape_cast %60 : vector<1x1x6x128xbf16> to vector<6x128xbf16>
    %cst_66 = arith.constant dense<0.000000e+00> : vector<6x64xf32>
    %62 = tpu.matmul %61, %2, %cst_66 {dimension_numbers = #tpu.dot_dimension_numbers<[1], [0], [0], [1], [0, 0, 1, 1], [], []>} : vector<6x128xbf16>, vector<128x64xbf16>, vector<6x64xf32> -> vector<6x64xf32>
    %63 = arith.addf %59, %62 : vector<6x64xf32>
    %c0_67 = arith.constant 0 : index
    %c2_68 = arith.constant 2 : index
    %c1_69 = arith.constant 1 : index
    %c0_70 = arith.constant 0 : index
    %64 = vector.load %arg1[%c0_67, %c2_68, %c1_69, %c0_70] : memref<1x5x7x128xbf16, #tpu.memory_space<vmem>>, vector<1x1x6x128xbf16>
    %65 = vector.shape_cast %64 : vector<1x1x6x128xbf16> to vector<6x128xbf16>
    %cst_71 = arith.constant dense<0.000000e+00> : vector<6x64xf32>
    %66 = tpu.matmul %65, %4, %cst_71 {dimension_numbers = #tpu.dot_dimension_numbers<[1], [0], [0], [1], [0, 0, 1, 1], [], []>} : vector<6x128xbf16>, vector<128x64xbf16>, vector<6x64xf32> -> vector<6x64xf32>
    %67 = arith.addf %63, %66 : vector<6x64xf32>
    %c0_72 = arith.constant 0 : index
    %c3_73 = arith.constant 3 : index
    %c0_74 = arith.constant 0 : index
    %c0_75 = arith.constant 0 : index
    %68 = vector.load %arg1[%c0_72, %c3_73, %c0_74, %c0_75] : memref<1x5x7x128xbf16, #tpu.memory_space<vmem>>, vector<1x1x6x128xbf16>
    %69 = vector.shape_cast %68 : vector<1x1x6x128xbf16> to vector<6x128xbf16>
    %cst_76 = arith.constant dense<0.000000e+00> : vector<6x64xf32>
    %70 = tpu.matmul %69, %6, %cst_76 {dimension_numbers = #tpu.dot_dimension_numbers<[1], [0], [0], [1], [0, 0, 1, 1], [], []>} : vector<6x128xbf16>, vector<128x64xbf16>, vector<6x64xf32> -> vector<6x64xf32>
    %71 = arith.addf %67, %70 : vector<6x64xf32>
    %c0_77 = arith.constant 0 : index
    %c3_78 = arith.constant 3 : index
    %c1_79 = arith.constant 1 : index
    %c0_80 = arith.constant 0 : index
    %72 = vector.load %arg1[%c0_77, %c3_78, %c1_79, %c0_80] : memref<1x5x7x128xbf16, #tpu.memory_space<vmem>>, vector<1x1x6x128xbf16>
    %73 = vector.shape_cast %72 : vector<1x1x6x128xbf16> to vector<6x128xbf16>
    %cst_81 = arith.constant dense<0.000000e+00> : vector<6x64xf32>
    %74 = tpu.matmul %73, %8, %cst_81 {dimension_numbers = #tpu.dot_dimension_numbers<[1], [0], [0], [1], [0, 0, 1, 1], [], []>} : vector<6x128xbf16>, vector<128x64xbf16>, vector<6x64xf32> -> vector<6x64xf32>
    %75 = arith.addf %71, %74 : vector<6x64xf32>
    %76 = vector.broadcast %0 : vector<1x64xf32> to vector<6x64xf32>
    %77 = arith.addf %75, %76 : vector<6x64xf32>
    %cst_82 = arith.constant 0.000000e+00 : f32
    %78 = vector.broadcast %cst_82 : f32 to vector<6x64xf32>
    %79 = arith.maximumf %77, %78 : vector<6x64xf32>
    %80 = arith.truncf %79 : vector<6x64xf32> to vector<6x64xbf16>
    %c0_83 = arith.constant 0 : index
    %c2_84 = arith.constant 2 : index
    %c0_85 = arith.constant 0 : index
    %c0_86 = arith.constant 0 : index
    %81 = vector.load %arg4[%c0_83, %c2_84, %c0_85, %c0_86] : memref<1x4x6x64xbf16, #tpu.memory_space<vmem>>, vector<1x1x6x64xbf16>
    %82 = vector.shape_cast %81 : vector<1x1x6x64xbf16> to vector<6x64xbf16>
    %83 = vector.shape_cast %80 : vector<6x64xbf16> to vector<1x1x6x64xbf16>
    tpu.vector_store %arg4[%c0_83, %c2_84, %c0_85, %c0_86], %83 {strides = array<i32>} : memref<1x4x6x64xbf16, #tpu.memory_space<vmem>>, vector<1x1x6x64xbf16>,
    %cst_87 = arith.constant 0.000000e+00 : f32
    %84 = vector.broadcast %cst_87 : f32 to vector<6x64xf32>
    %c0_88 = arith.constant 0 : index
    %c3_89 = arith.constant 3 : index
    %c0_90 = arith.constant 0 : index
    %c0_91 = arith.constant 0 : index
    %85 = vector.load %arg1[%c0_88, %c3_89, %c0_90, %c0_91] : memref<1x5x7x128xbf16, #tpu.memory_space<vmem>>, vector<1x1x6x128xbf16>
    %86 = vector.shape_cast %85 : vector<1x1x6x128xbf16> to vector<6x128xbf16>
    %cst_92 = arith.constant dense<0.000000e+00> : vector<6x64xf32>
    %87 = tpu.matmul %86, %2, %cst_92 {dimension_numbers = #tpu.dot_dimension_numbers<[1], [0], [0], [1], [0, 0, 1, 1], [], []>} : vector<6x128xbf16>, vector<128x64xbf16>, vector<6x64xf32> -> vector<6x64xf32>
    %88 = arith.addf %84, %87 : vector<6x64xf32>
    %c0_93 = arith.constant 0 : index
    %c3_94 = arith.constant 3 : index
    %c1_95 = arith.constant 1 : index
    %c0_96 = arith.constant 0 : index
    %89 = vector.load %arg1[%c0_93, %c3_94, %c1_95, %c0_96] : memref<1x5x7x128xbf16, #tpu.memory_space<vmem>>, vector<1x1x6x128xbf16>
    %90 = vector.shape_cast %89 : vector<1x1x6x128xbf16> to vector<6x128xbf16>
    %cst_97 = arith.constant dense<0.000000e+00> : vector<6x64xf32>
    %91 = tpu.matmul %90, %4, %cst_97 {dimension_numbers = #tpu.dot_dimension_numbers<[1], [0], [0], [1], [0, 0, 1, 1], [], []>} : vector<6x128xbf16>, vector<128x64xbf16>, vector<6x64xf32> -> vector<6x64xf32>
    %92 = arith.addf %88, %91 : vector<6x64xf32>
    %c0_98 = arith.constant 0 : index
    %c4 = arith.constant 4 : index
    %c0_99 = arith.constant 0 : index
    %c0_100 = arith.constant 0 : index
    %93 = vector.load %arg1[%c0_98, %c4, %c0_99, %c0_100] : memref<1x5x7x128xbf16, #tpu.memory_space<vmem>>, vector<1x1x6x128xbf16>
    %94 = vector.shape_cast %93 : vector<1x1x6x128xbf16> to vector<6x128xbf16>
    %cst_101 = arith.constant dense<0.000000e+00> : vector<6x64xf32>
    %95 = tpu.matmul %94, %6, %cst_101 {dimension_numbers = #tpu.dot_dimension_numbers<[1], [0], [0], [1], [0, 0, 1, 1], [], []>} : vector<6x128xbf16>, vector<128x64xbf16>, vector<6x64xf32> -> vector<6x64xf32>
    %96 = arith.addf %92, %95 : vector<6x64xf32>
    %c0_102 = arith.constant 0 : index
    %c4_103 = arith.constant 4 : index
    %c1_104 = arith.constant 1 : index
    %c0_105 = arith.constant 0 : index
    %97 = vector.load %arg1[%c0_102, %c4_103, %c1_104, %c0_105] : memref<1x5x7x128xbf16, #tpu.memory_space<vmem>>, vector<1x1x6x128xbf16>
    %98 = vector.shape_cast %97 : vector<1x1x6x128xbf16> to vector<6x128xbf16>
    %cst_106 = arith.constant dense<0.000000e+00> : vector<6x64xf32>
    %99 = tpu.matmul %98, %8, %cst_106 {dimension_numbers = #tpu.dot_dimension_numbers<[1], [0], [0], [1], [0, 0, 1, 1], [], []>} : vector<6x128xbf16>, vector<128x64xbf16>, vector<6x64xf32> -> vector<6x64xf32>
    %100 = arith.addf %96, %99 : vector<6x64xf32>
    %101 = vector.broadcast %0 : vector<1x64xf32> to vector<6x64xf32>
    %102 = arith.addf %100, %101 : vector<6x64xf32>
    %cst_107 = arith.constant 0.000000e+00 : f32
    %103 = vector.broadcast %cst_107 : f32 to vector<6x64xf32>
    %104 = arith.maximumf %102, %103 : vector<6x64xf32>
    %105 = arith.truncf %104 : vector<6x64xf32> to vector<6x64xbf16>
    %c0_108 = arith.constant 0 : index
    %c3_109 = arith.constant 3 : index
    %c0_110 = arith.constant 0 : index
    %c0_111 = arith.constant 0 : index
    %106 = vector.load %arg4[%c0_108, %c3_109, %c0_110, %c0_111] : memref<1x4x6x64xbf16, #tpu.memory_space<vmem>>, vector<1x1x6x64xbf16>
    %107 = vector.shape_cast %106 : vector<1x1x6x64xbf16> to vector<6x64xbf16>
    %108 = vector.shape_cast %105 : vector<6x64xbf16> to vector<1x1x6x64xbf16>
    tpu.vector_store %arg4[%c0_108, %c3_109, %c0_110, %c0_111], %108 {strides = array<i32>} : memref<1x4x6x64xbf16, #tpu.memory_space<vmem>>, vector<1x1x6x64xbf16>,
    return
  }
  func.func @transform_0(%arg0: i32) -> (i32, i32, i32, i32) {
    %c0_i32 = arith.constant 0 : i32
    %c0_i32_0 = arith.constant 0 : i32
    %c0_i32_1 = arith.constant 0 : i32
    %c0_i32_2 = arith.constant 0 : i32
    return %arg0, %c0_i32, %c0_i32_0, %c0_i32_1 : i32, i32, i32, i32
  }
  func.func @transform_1(%arg0: i32) -> (i32, i32, i32) {
    %c0_i32 = arith.constant 0 : i32
    %c0_i32_0 = arith.constant 0 : i32
    %c0_i32_1 = arith.constant 0 : i32
    %c0_i32_2 = arith.constant 0 : i32
    return %c0_i32, %c0_i32_0, %c0_i32_1 : i32, i32, i32
  }
  func.func @transform_2(%arg0: i32) -> (i32, i32) {
    %c0_i32 = arith.constant 0 : i32
    %c0_i32_0 = arith.constant 0 : i32
    %c0_i32_1 = arith.constant 0 : i32
    return %c0_i32, %c0_i32_0 : i32, i32
  }
  func.func @transform_3(%arg0: i32) -> (i32, i32, i32, i32) {
    %c0_i32 = arith.constant 0 : i32
    %c0_i32_0 = arith.constant 0 : i32
    %c0_i32_1 = arith.constant 0 : i32
    %c0_i32_2 = arith.constant 0 : i32
    return %arg0, %c0_i32, %c0_i32_0, %c0_i32_1 : i32, i32, i32, i32
  }
}

module attributes {stable_mosaic.version = 11 : i64} {
  func.func @_conv_bn_relu_kernel(%arg0: i32, %arg1: memref<1x4x6x64xbf16, #tpu.memory_space<vmem>>, %arg2: memref<9x64x64xbf16, #tpu.memory_space<vmem>>, %arg3: memref<1x64xf32, #tpu.memory_space<vmem>>, %arg4: memref<1x2x4x64xbf16, #tpu.memory_space<vmem>>) attributes {dimension_semantics = [#tpu.dimension_semantics<parallel>], iteration_bounds = array<i64: 2>, scalar_prefetch = 0 : i64, scratch_operands = 0 : i64, tpu.core_type = #tpu.core_type<tc>, window_params = [{transform_indices = @transform_0, window_bounds = array<i64: 1, 4, 6, 64>}, {pipeline_mode = #tpu.pipeline_mode<synchronous>, transform_indices = @transform_1, window_bounds = array<i64: 9, 64, 64>}, {pipeline_mode = #tpu.pipeline_mode<synchronous>, transform_indices = @transform_2, window_bounds = array<i64: 1, 64>}, {transform_indices = @transform_3, window_bounds = array<i64: 1, 2, 4, 64>}]} {
    %c0 = arith.constant 0 : index
    %c0_0 = arith.constant 0 : index
    %0 = vector.load %arg3[%c0, %c0_0] : memref<1x64xf32, #tpu.memory_space<vmem>>, vector<1x64xf32>
    %c0_1 = arith.constant 0 : index
    %c0_2 = arith.constant 0 : index
    %c0_3 = arith.constant 0 : index
    %1 = vector.load %arg2[%c0_1, %c0_2, %c0_3] : memref<9x64x64xbf16, #tpu.memory_space<vmem>>, vector<1x64x64xbf16>
    %2 = vector.shape_cast %1 : vector<1x64x64xbf16> to vector<64x64xbf16>
    %c1 = arith.constant 1 : index
    %c0_4 = arith.constant 0 : index
    %c0_5 = arith.constant 0 : index
    %3 = vector.load %arg2[%c1, %c0_4, %c0_5] : memref<9x64x64xbf16, #tpu.memory_space<vmem>>, vector<1x64x64xbf16>
    %4 = vector.shape_cast %3 : vector<1x64x64xbf16> to vector<64x64xbf16>
    %c2 = arith.constant 2 : index
    %c0_6 = arith.constant 0 : index
    %c0_7 = arith.constant 0 : index
    %5 = vector.load %arg2[%c2, %c0_6, %c0_7] : memref<9x64x64xbf16, #tpu.memory_space<vmem>>, vector<1x64x64xbf16>
    %6 = vector.shape_cast %5 : vector<1x64x64xbf16> to vector<64x64xbf16>
    %c3 = arith.constant 3 : index
    %c0_8 = arith.constant 0 : index
    %c0_9 = arith.constant 0 : index
    %7 = vector.load %arg2[%c3, %c0_8, %c0_9] : memref<9x64x64xbf16, #tpu.memory_space<vmem>>, vector<1x64x64xbf16>
    %8 = vector.shape_cast %7 : vector<1x64x64xbf16> to vector<64x64xbf16>
    %c4 = arith.constant 4 : index
    %c0_10 = arith.constant 0 : index
    %c0_11 = arith.constant 0 : index
    %9 = vector.load %arg2[%c4, %c0_10, %c0_11] : memref<9x64x64xbf16, #tpu.memory_space<vmem>>, vector<1x64x64xbf16>
    %10 = vector.shape_cast %9 : vector<1x64x64xbf16> to vector<64x64xbf16>
    %c5 = arith.constant 5 : index
    %c0_12 = arith.constant 0 : index
    %c0_13 = arith.constant 0 : index
    %11 = vector.load %arg2[%c5, %c0_12, %c0_13] : memref<9x64x64xbf16, #tpu.memory_space<vmem>>, vector<1x64x64xbf16>
    %12 = vector.shape_cast %11 : vector<1x64x64xbf16> to vector<64x64xbf16>
    %c6 = arith.constant 6 : index
    %c0_14 = arith.constant 0 : index
    %c0_15 = arith.constant 0 : index
    %13 = vector.load %arg2[%c6, %c0_14, %c0_15] : memref<9x64x64xbf16, #tpu.memory_space<vmem>>, vector<1x64x64xbf16>
    %14 = vector.shape_cast %13 : vector<1x64x64xbf16> to vector<64x64xbf16>
    %c7 = arith.constant 7 : index
    %c0_16 = arith.constant 0 : index
    %c0_17 = arith.constant 0 : index
    %15 = vector.load %arg2[%c7, %c0_16, %c0_17] : memref<9x64x64xbf16, #tpu.memory_space<vmem>>, vector<1x64x64xbf16>
    %16 = vector.shape_cast %15 : vector<1x64x64xbf16> to vector<64x64xbf16>
    %c8 = arith.constant 8 : index
    %c0_18 = arith.constant 0 : index
    %c0_19 = arith.constant 0 : index
    %17 = vector.load %arg2[%c8, %c0_18, %c0_19] : memref<9x64x64xbf16, #tpu.memory_space<vmem>>, vector<1x64x64xbf16>
    %18 = vector.shape_cast %17 : vector<1x64x64xbf16> to vector<64x64xbf16>
    %cst = arith.constant 0.000000e+00 : f32
    %19 = vector.broadcast %cst : f32 to vector<4x64xf32>
    %c0_20 = arith.constant 0 : index
    %c0_21 = arith.constant 0 : index
    %c0_22 = arith.constant 0 : index
    %c0_23 = arith.constant 0 : index
    %20 = vector.load %arg1[%c0_20, %c0_21, %c0_22, %c0_23] : memref<1x4x6x64xbf16, #tpu.memory_space<vmem>>, vector<1x1x4x64xbf16>
    %21 = vector.shape_cast %20 : vector<1x1x4x64xbf16> to vector<4x64xbf16>
    %cst_24 = arith.constant dense<0.000000e+00> : vector<4x64xf32>
    %22 = tpu.matmul %21, %2, %cst_24 {dimension_numbers = #tpu.dot_dimension_numbers<[1], [0], [0], [1], [0, 0, 1, 1], [], []>} : vector<4x64xbf16>, vector<64x64xbf16>, vector<4x64xf32> -> vector<4x64xf32>
    %23 = arith.addf %19, %22 : vector<4x64xf32>
    %c0_25 = arith.constant 0 : index
    %c0_26 = arith.constant 0 : index
    %c1_27 = arith.constant 1 : index
    %c0_28 = arith.constant 0 : index
    %24 = vector.load %arg1[%c0_25, %c0_26, %c1_27, %c0_28] : memref<1x4x6x64xbf16, #tpu.memory_space<vmem>>, vector<1x1x4x64xbf16>
    %25 = vector.shape_cast %24 : vector<1x1x4x64xbf16> to vector<4x64xbf16>
    %cst_29 = arith.constant dense<0.000000e+00> : vector<4x64xf32>
    %26 = tpu.matmul %25, %4, %cst_29 {dimension_numbers = #tpu.dot_dimension_numbers<[1], [0], [0], [1], [0, 0, 1, 1], [], []>} : vector<4x64xbf16>, vector<64x64xbf16>, vector<4x64xf32> -> vector<4x64xf32>
    %27 = arith.addf %23, %26 : vector<4x64xf32>
    %c0_30 = arith.constant 0 : index
    %c0_31 = arith.constant 0 : index
    %c2_32 = arith.constant 2 : index
    %c0_33 = arith.constant 0 : index
    %28 = vector.load %arg1[%c0_30, %c0_31, %c2_32, %c0_33] : memref<1x4x6x64xbf16, #tpu.memory_space<vmem>>, vector<1x1x4x64xbf16>
    %29 = vector.shape_cast %28 : vector<1x1x4x64xbf16> to vector<4x64xbf16>
    %cst_34 = arith.constant dense<0.000000e+00> : vector<4x64xf32>
    %30 = tpu.matmul %29, %6, %cst_34 {dimension_numbers = #tpu.dot_dimension_numbers<[1], [0], [0], [1], [0, 0, 1, 1], [], []>} : vector<4x64xbf16>, vector<64x64xbf16>, vector<4x64xf32> -> vector<4x64xf32>
    %31 = arith.addf %27, %30 : vector<4x64xf32>
    %c0_35 = arith.constant 0 : index
    %c1_36 = arith.constant 1 : index
    %c0_37 = arith.constant 0 : index
    %c0_38 = arith.constant 0 : index
    %32 = vector.load %arg1[%c0_35, %c1_36, %c0_37, %c0_38] : memref<1x4x6x64xbf16, #tpu.memory_space<vmem>>, vector<1x1x4x64xbf16>
    %33 = vector.shape_cast %32 : vector<1x1x4x64xbf16> to vector<4x64xbf16>
    %cst_39 = arith.constant dense<0.000000e+00> : vector<4x64xf32>
    %34 = tpu.matmul %33, %8, %cst_39 {dimension_numbers = #tpu.dot_dimension_numbers<[1], [0], [0], [1], [0, 0, 1, 1], [], []>} : vector<4x64xbf16>, vector<64x64xbf16>, vector<4x64xf32> -> vector<4x64xf32>
    %35 = arith.addf %31, %34 : vector<4x64xf32>
    %c0_40 = arith.constant 0 : index
    %c1_41 = arith.constant 1 : index
    %c1_42 = arith.constant 1 : index
    %c0_43 = arith.constant 0 : index
    %36 = vector.load %arg1[%c0_40, %c1_41, %c1_42, %c0_43] : memref<1x4x6x64xbf16, #tpu.memory_space<vmem>>, vector<1x1x4x64xbf16>
    %37 = vector.shape_cast %36 : vector<1x1x4x64xbf16> to vector<4x64xbf16>
    %cst_44 = arith.constant dense<0.000000e+00> : vector<4x64xf32>
    %38 = tpu.matmul %37, %10, %cst_44 {dimension_numbers = #tpu.dot_dimension_numbers<[1], [0], [0], [1], [0, 0, 1, 1], [], []>} : vector<4x64xbf16>, vector<64x64xbf16>, vector<4x64xf32> -> vector<4x64xf32>
    %39 = arith.addf %35, %38 : vector<4x64xf32>
    %c0_45 = arith.constant 0 : index
    %c1_46 = arith.constant 1 : index
    %c2_47 = arith.constant 2 : index
    %c0_48 = arith.constant 0 : index
    %40 = vector.load %arg1[%c0_45, %c1_46, %c2_47, %c0_48] : memref<1x4x6x64xbf16, #tpu.memory_space<vmem>>, vector<1x1x4x64xbf16>
    %41 = vector.shape_cast %40 : vector<1x1x4x64xbf16> to vector<4x64xbf16>
    %cst_49 = arith.constant dense<0.000000e+00> : vector<4x64xf32>
    %42 = tpu.matmul %41, %12, %cst_49 {dimension_numbers = #tpu.dot_dimension_numbers<[1], [0], [0], [1], [0, 0, 1, 1], [], []>} : vector<4x64xbf16>, vector<64x64xbf16>, vector<4x64xf32> -> vector<4x64xf32>
    %43 = arith.addf %39, %42 : vector<4x64xf32>
    %c0_50 = arith.constant 0 : index
    %c2_51 = arith.constant 2 : index
    %c0_52 = arith.constant 0 : index
    %c0_53 = arith.constant 0 : index
    %44 = vector.load %arg1[%c0_50, %c2_51, %c0_52, %c0_53] : memref<1x4x6x64xbf16, #tpu.memory_space<vmem>>, vector<1x1x4x64xbf16>
    %45 = vector.shape_cast %44 : vector<1x1x4x64xbf16> to vector<4x64xbf16>
    %cst_54 = arith.constant dense<0.000000e+00> : vector<4x64xf32>
    %46 = tpu.matmul %45, %14, %cst_54 {dimension_numbers = #tpu.dot_dimension_numbers<[1], [0], [0], [1], [0, 0, 1, 1], [], []>} : vector<4x64xbf16>, vector<64x64xbf16>, vector<4x64xf32> -> vector<4x64xf32>
    %47 = arith.addf %43, %46 : vector<4x64xf32>
    %c0_55 = arith.constant 0 : index
    %c2_56 = arith.constant 2 : index
    %c1_57 = arith.constant 1 : index
    %c0_58 = arith.constant 0 : index
    %48 = vector.load %arg1[%c0_55, %c2_56, %c1_57, %c0_58] : memref<1x4x6x64xbf16, #tpu.memory_space<vmem>>, vector<1x1x4x64xbf16>
    %49 = vector.shape_cast %48 : vector<1x1x4x64xbf16> to vector<4x64xbf16>
    %cst_59 = arith.constant dense<0.000000e+00> : vector<4x64xf32>
    %50 = tpu.matmul %49, %16, %cst_59 {dimension_numbers = #tpu.dot_dimension_numbers<[1], [0], [0], [1], [0, 0, 1, 1], [], []>} : vector<4x64xbf16>, vector<64x64xbf16>, vector<4x64xf32> -> vector<4x64xf32>
    %51 = arith.addf %47, %50 : vector<4x64xf32>
    %c0_60 = arith.constant 0 : index
    %c2_61 = arith.constant 2 : index
    %c2_62 = arith.constant 2 : index
    %c0_63 = arith.constant 0 : index
    %52 = vector.load %arg1[%c0_60, %c2_61, %c2_62, %c0_63] : memref<1x4x6x64xbf16, #tpu.memory_space<vmem>>, vector<1x1x4x64xbf16>
    %53 = vector.shape_cast %52 : vector<1x1x4x64xbf16> to vector<4x64xbf16>
    %cst_64 = arith.constant dense<0.000000e+00> : vector<4x64xf32>
    %54 = tpu.matmul %53, %18, %cst_64 {dimension_numbers = #tpu.dot_dimension_numbers<[1], [0], [0], [1], [0, 0, 1, 1], [], []>} : vector<4x64xbf16>, vector<64x64xbf16>, vector<4x64xf32> -> vector<4x64xf32>
    %55 = arith.addf %51, %54 : vector<4x64xf32>
    %56 = vector.broadcast %0 : vector<1x64xf32> to vector<4x64xf32>
    %57 = arith.addf %55, %56 : vector<4x64xf32>
    %cst_65 = arith.constant 0.000000e+00 : f32
    %58 = vector.broadcast %cst_65 : f32 to vector<4x64xf32>
    %59 = arith.maximumf %57, %58 : vector<4x64xf32>
    %60 = arith.truncf %59 : vector<4x64xf32> to vector<4x64xbf16>
    %c0_66 = arith.constant 0 : index
    %c0_67 = arith.constant 0 : index
    %c0_68 = arith.constant 0 : index
    %c0_69 = arith.constant 0 : index
    %61 = vector.load %arg4[%c0_66, %c0_67, %c0_68, %c0_69] : memref<1x2x4x64xbf16, #tpu.memory_space<vmem>>, vector<1x1x4x64xbf16>
    %62 = vector.shape_cast %61 : vector<1x1x4x64xbf16> to vector<4x64xbf16>
    %63 = vector.shape_cast %60 : vector<4x64xbf16> to vector<1x1x4x64xbf16>
    tpu.vector_store %arg4[%c0_66, %c0_67, %c0_68, %c0_69], %63 {strides = array<i32>} : memref<1x2x4x64xbf16, #tpu.memory_space<vmem>>, vector<1x1x4x64xbf16>,
    %cst_70 = arith.constant 0.000000e+00 : f32
    %64 = vector.broadcast %cst_70 : f32 to vector<4x64xf32>
    %c0_71 = arith.constant 0 : index
    %c1_72 = arith.constant 1 : index
    %c0_73 = arith.constant 0 : index
    %c0_74 = arith.constant 0 : index
    %65 = vector.load %arg1[%c0_71, %c1_72, %c0_73, %c0_74] : memref<1x4x6x64xbf16, #tpu.memory_space<vmem>>, vector<1x1x4x64xbf16>
    %66 = vector.shape_cast %65 : vector<1x1x4x64xbf16> to vector<4x64xbf16>
    %cst_75 = arith.constant dense<0.000000e+00> : vector<4x64xf32>
    %67 = tpu.matmul %66, %2, %cst_75 {dimension_numbers = #tpu.dot_dimension_numbers<[1], [0], [0], [1], [0, 0, 1, 1], [], []>} : vector<4x64xbf16>, vector<64x64xbf16>, vector<4x64xf32> -> vector<4x64xf32>
    %68 = arith.addf %64, %67 : vector<4x64xf32>
    %c0_76 = arith.constant 0 : index
    %c1_77 = arith.constant 1 : index
    %c1_78 = arith.constant 1 : index
    %c0_79 = arith.constant 0 : index
    %69 = vector.load %arg1[%c0_76, %c1_77, %c1_78, %c0_79] : memref<1x4x6x64xbf16, #tpu.memory_space<vmem>>, vector<1x1x4x64xbf16>
    %70 = vector.shape_cast %69 : vector<1x1x4x64xbf16> to vector<4x64xbf16>
    %cst_80 = arith.constant dense<0.000000e+00> : vector<4x64xf32>
    %71 = tpu.matmul %70, %4, %cst_80 {dimension_numbers = #tpu.dot_dimension_numbers<[1], [0], [0], [1], [0, 0, 1, 1], [], []>} : vector<4x64xbf16>, vector<64x64xbf16>, vector<4x64xf32> -> vector<4x64xf32>
    %72 = arith.addf %68, %71 : vector<4x64xf32>
    %c0_81 = arith.constant 0 : index
    %c1_82 = arith.constant 1 : index
    %c2_83 = arith.constant 2 : index
    %c0_84 = arith.constant 0 : index
    %73 = vector.load %arg1[%c0_81, %c1_82, %c2_83, %c0_84] : memref<1x4x6x64xbf16, #tpu.memory_space<vmem>>, vector<1x1x4x64xbf16>
    %74 = vector.shape_cast %73 : vector<1x1x4x64xbf16> to vector<4x64xbf16>
    %cst_85 = arith.constant dense<0.000000e+00> : vector<4x64xf32>
    %75 = tpu.matmul %74, %6, %cst_85 {dimension_numbers = #tpu.dot_dimension_numbers<[1], [0], [0], [1], [0, 0, 1, 1], [], []>} : vector<4x64xbf16>, vector<64x64xbf16>, vector<4x64xf32> -> vector<4x64xf32>
    %76 = arith.addf %72, %75 : vector<4x64xf32>
    %c0_86 = arith.constant 0 : index
    %c2_87 = arith.constant 2 : index
    %c0_88 = arith.constant 0 : index
    %c0_89 = arith.constant 0 : index
    %77 = vector.load %arg1[%c0_86, %c2_87, %c0_88, %c0_89] : memref<1x4x6x64xbf16, #tpu.memory_space<vmem>>, vector<1x1x4x64xbf16>
    %78 = vector.shape_cast %77 : vector<1x1x4x64xbf16> to vector<4x64xbf16>
    %cst_90 = arith.constant dense<0.000000e+00> : vector<4x64xf32>
    %79 = tpu.matmul %78, %8, %cst_90 {dimension_numbers = #tpu.dot_dimension_numbers<[1], [0], [0], [1], [0, 0, 1, 1], [], []>} : vector<4x64xbf16>, vector<64x64xbf16>, vector<4x64xf32> -> vector<4x64xf32>
    %80 = arith.addf %76, %79 : vector<4x64xf32>
    %c0_91 = arith.constant 0 : index
    %c2_92 = arith.constant 2 : index
    %c1_93 = arith.constant 1 : index
    %c0_94 = arith.constant 0 : index
    %81 = vector.load %arg1[%c0_91, %c2_92, %c1_93, %c0_94] : memref<1x4x6x64xbf16, #tpu.memory_space<vmem>>, vector<1x1x4x64xbf16>
    %82 = vector.shape_cast %81 : vector<1x1x4x64xbf16> to vector<4x64xbf16>
    %cst_95 = arith.constant dense<0.000000e+00> : vector<4x64xf32>
    %83 = tpu.matmul %82, %10, %cst_95 {dimension_numbers = #tpu.dot_dimension_numbers<[1], [0], [0], [1], [0, 0, 1, 1], [], []>} : vector<4x64xbf16>, vector<64x64xbf16>, vector<4x64xf32> -> vector<4x64xf32>
    %84 = arith.addf %80, %83 : vector<4x64xf32>
    %c0_96 = arith.constant 0 : index
    %c2_97 = arith.constant 2 : index
    %c2_98 = arith.constant 2 : index
    %c0_99 = arith.constant 0 : index
    %85 = vector.load %arg1[%c0_96, %c2_97, %c2_98, %c0_99] : memref<1x4x6x64xbf16, #tpu.memory_space<vmem>>, vector<1x1x4x64xbf16>
    %86 = vector.shape_cast %85 : vector<1x1x4x64xbf16> to vector<4x64xbf16>
    %cst_100 = arith.constant dense<0.000000e+00> : vector<4x64xf32>
    %87 = tpu.matmul %86, %12, %cst_100 {dimension_numbers = #tpu.dot_dimension_numbers<[1], [0], [0], [1], [0, 0, 1, 1], [], []>} : vector<4x64xbf16>, vector<64x64xbf16>, vector<4x64xf32> -> vector<4x64xf32>
    %88 = arith.addf %84, %87 : vector<4x64xf32>
    %c0_101 = arith.constant 0 : index
    %c3_102 = arith.constant 3 : index
    %c0_103 = arith.constant 0 : index
    %c0_104 = arith.constant 0 : index
    %89 = vector.load %arg1[%c0_101, %c3_102, %c0_103, %c0_104] : memref<1x4x6x64xbf16, #tpu.memory_space<vmem>>, vector<1x1x4x64xbf16>
    %90 = vector.shape_cast %89 : vector<1x1x4x64xbf16> to vector<4x64xbf16>
    %cst_105 = arith.constant dense<0.000000e+00> : vector<4x64xf32>
    %91 = tpu.matmul %90, %14, %cst_105 {dimension_numbers = #tpu.dot_dimension_numbers<[1], [0], [0], [1], [0, 0, 1, 1], [], []>} : vector<4x64xbf16>, vector<64x64xbf16>, vector<4x64xf32> -> vector<4x64xf32>
    %92 = arith.addf %88, %91 : vector<4x64xf32>
    %c0_106 = arith.constant 0 : index
    %c3_107 = arith.constant 3 : index
    %c1_108 = arith.constant 1 : index
    %c0_109 = arith.constant 0 : index
    %93 = vector.load %arg1[%c0_106, %c3_107, %c1_108, %c0_109] : memref<1x4x6x64xbf16, #tpu.memory_space<vmem>>, vector<1x1x4x64xbf16>
    %94 = vector.shape_cast %93 : vector<1x1x4x64xbf16> to vector<4x64xbf16>
    %cst_110 = arith.constant dense<0.000000e+00> : vector<4x64xf32>
    %95 = tpu.matmul %94, %16, %cst_110 {dimension_numbers = #tpu.dot_dimension_numbers<[1], [0], [0], [1], [0, 0, 1, 1], [], []>} : vector<4x64xbf16>, vector<64x64xbf16>, vector<4x64xf32> -> vector<4x64xf32>
    %96 = arith.addf %92, %95 : vector<4x64xf32>
    %c0_111 = arith.constant 0 : index
    %c3_112 = arith.constant 3 : index
    %c2_113 = arith.constant 2 : index
    %c0_114 = arith.constant 0 : index
    %97 = vector.load %arg1[%c0_111, %c3_112, %c2_113, %c0_114] : memref<1x4x6x64xbf16, #tpu.memory_space<vmem>>, vector<1x1x4x64xbf16>
    %98 = vector.shape_cast %97 : vector<1x1x4x64xbf16> to vector<4x64xbf16>
    %cst_115 = arith.constant dense<0.000000e+00> : vector<4x64xf32>
    %99 = tpu.matmul %98, %18, %cst_115 {dimension_numbers = #tpu.dot_dimension_numbers<[1], [0], [0], [1], [0, 0, 1, 1], [], []>} : vector<4x64xbf16>, vector<64x64xbf16>, vector<4x64xf32> -> vector<4x64xf32>
    %100 = arith.addf %96, %99 : vector<4x64xf32>
    %101 = vector.broadcast %0 : vector<1x64xf32> to vector<4x64xf32>
    %102 = arith.addf %100, %101 : vector<4x64xf32>
    %cst_116 = arith.constant 0.000000e+00 : f32
    %103 = vector.broadcast %cst_116 : f32 to vector<4x64xf32>
    %104 = arith.maximumf %102, %103 : vector<4x64xf32>
    %105 = arith.truncf %104 : vector<4x64xf32> to vector<4x64xbf16>
    %c0_117 = arith.constant 0 : index
    %c1_118 = arith.constant 1 : index
    %c0_119 = arith.constant 0 : index
    %c0_120 = arith.constant 0 : index
    %106 = vector.load %arg4[%c0_117, %c1_118, %c0_119, %c0_120] : memref<1x2x4x64xbf16, #tpu.memory_space<vmem>>, vector<1x1x4x64xbf16>
    %107 = vector.shape_cast %106 : vector<1x1x4x64xbf16> to vector<4x64xbf16>
    %108 = vector.shape_cast %105 : vector<4x64xbf16> to vector<1x1x4x64xbf16>
    tpu.vector_store %arg4[%c0_117, %c1_118, %c0_119, %c0_120], %108 {strides = array<i32>} : memref<1x2x4x64xbf16, #tpu.memory_space<vmem>>, vector<1x1x4x64xbf16>,
    return
  }
  func.func @transform_0(%arg0: i32) -> (i32, i32, i32, i32) {
    %c0_i32 = arith.constant 0 : i32
    %c0_i32_0 = arith.constant 0 : i32
    %c0_i32_1 = arith.constant 0 : i32
    %c0_i32_2 = arith.constant 0 : i32
    return %arg0, %c0_i32, %c0_i32_0, %c0_i32_1 : i32, i32, i32, i32
  }
  func.func @transform_1(%arg0: i32) -> (i32, i32, i32) {
    %c0_i32 = arith.constant 0 : i32
    %c0_i32_0 = arith.constant 0 : i32
    %c0_i32_1 = arith.constant 0 : i32
    %c0_i32_2 = arith.constant 0 : i32
    return %c0_i32, %c0_i32_0, %c0_i32_1 : i32, i32, i32
  }
  func.func @transform_2(%arg0: i32) -> (i32, i32) {
    %c0_i32 = arith.constant 0 : i32
    %c0_i32_0 = arith.constant 0 : i32
    %c0_i32_1 = arith.constant 0 : i32
    return %c0_i32, %c0_i32_0 : i32, i32
  }
  func.func @transform_3(%arg0: i32) -> (i32, i32, i32, i32) {
    %c0_i32 = arith.constant 0 : i32
    %c0_i32_0 = arith.constant 0 : i32
    %c0_i32_1 = arith.constant 0 : i32
    %c0_i32_2 = arith.constant 0 : i32
    return %arg0, %c0_i32, %c0_i32_0, %c0_i32_1 : i32, i32, i32, i32
  }
}

module attributes {stable_mosaic.version = 11 : i64} {
  func.func @_head_kernel(%arg0: i32, %arg1: memref<2x512xbf16, #tpu.memory_space<vmem>>, %arg2: memref<512x1024xbf16, #tpu.memory_space<vmem>>, %arg3: memref<1x1024xf32, #tpu.memory_space<vmem>>, %arg4: memref<1024x7xbf16, #tpu.memory_space<vmem>>, %arg5: memref<1x7xf32, #tpu.memory_space<vmem>>, %arg6: memref<2x6xf32, #tpu.memory_space<vmem>>, %arg7: memref<2x1024xf32, #tpu.memory_space<vmem>>) attributes {dimension_semantics = [#tpu.dimension_semantics<arbitrary>], iteration_bounds = array<i64: 1>, scalar_prefetch = 0 : i64, scratch_operands = 1 : i64, tpu.core_type = #tpu.core_type<tc>, window_params = [{transform_indices = @transform_0, window_bounds = array<i64: 2, 512>}, {transform_indices = @transform_1, window_bounds = array<i64: 512, 1024>}, {pipeline_mode = #tpu.pipeline_mode<synchronous>, transform_indices = @transform_2, window_bounds = array<i64: 1, 1024>}, {pipeline_mode = #tpu.pipeline_mode<synchronous>, transform_indices = @transform_3, window_bounds = array<i64: 1024, 7>}, {pipeline_mode = #tpu.pipeline_mode<synchronous>, transform_indices = @transform_4, window_bounds = array<i64: 1, 7>}, {pipeline_mode = #tpu.pipeline_mode<synchronous>, transform_indices = @transform_5, window_bounds = array<i64: 2, 6>}]} {
    %c0_i32 = arith.constant 0 : i32
    %0 = arith.cmpi eq, %arg0, %c0_i32 : i32
    %1 = arith.extui %0 : i1 to i32
    %c0_i32_0 = arith.constant 0 : i32
    %2 = arith.cmpi ne, %1, %c0_i32_0 : i32
    scf.if %2 {
      %cst_10 = arith.constant 0.000000e+00 : f32
      %12 = vector.broadcast %cst_10 : f32 to vector<2x1024xf32>
      %c0_11 = arith.constant 0 : index
      %c0_12 = arith.constant 0 : index
      %13 = vector.load %arg7[%c0_11, %c0_12] : memref<2x1024xf32, #tpu.memory_space<vmem>>, vector<2x1024xf32>
      tpu.vector_store %arg7[%c0_11, %c0_12], %12 {strides = array<i32>} : memref<2x1024xf32, #tpu.memory_space<vmem>>, vector<2x1024xf32>,
    } else {
    }
    %c0 = arith.constant 0 : index
    %c0_1 = arith.constant 0 : index
    %3 = vector.load %arg7[%c0, %c0_1] : memref<2x1024xf32, #tpu.memory_space<vmem>>, vector<2x1024xf32>
    %c0_2 = arith.constant 0 : index
    %c0_3 = arith.constant 0 : index
    %4 = vector.load %arg1[%c0_2, %c0_3] : memref<2x512xbf16, #tpu.memory_space<vmem>>, vector<2x512xbf16>
    %c0_4 = arith.constant 0 : index
    %c0_5 = arith.constant 0 : index
    %5 = vector.load %arg2[%c0_4, %c0_5] : memref<512x1024xbf16, #tpu.memory_space<vmem>>, vector<512x1024xbf16>
    %cst = arith.constant dense<0.000000e+00> : vector<2x1024xf32>
    %6 = tpu.matmul %4, %5, %cst {dimension_numbers = #tpu.dot_dimension_numbers<[1], [0], [0], [1], [0, 0, 1, 1], [], []>} : vector<2x512xbf16>, vector<512x1024xbf16>, vector<2x1024xf32> -> vector<2x1024xf32>
    %7 = arith.addf %3, %6 : vector<2x1024xf32>
    %c0_6 = arith.constant 0 : index
    %c0_7 = arith.constant 0 : index
    %8 = vector.load %arg7[%c0_6, %c0_7] : memref<2x1024xf32, #tpu.memory_space<vmem>>, vector<2x1024xf32>
    tpu.vector_store %arg7[%c0_6, %c0_7], %7 {strides = array<i32>} : memref<2x1024xf32, #tpu.memory_space<vmem>>, vector<2x1024xf32>,
    %c0_i32_8 = arith.constant 0 : i32
    %9 = arith.cmpi eq, %arg0, %c0_i32_8 : i32
    %10 = arith.extui %9 : i1 to i32
    %c0_i32_9 = arith.constant 0 : i32
    %11 = arith.cmpi ne, %10, %c0_i32_9 : i32
    scf.if %11 {
      %c0_10 = arith.constant 0 : index
      %c0_11 = arith.constant 0 : index
      %12 = vector.load %arg7[%c0_10, %c0_11] : memref<2x1024xf32, #tpu.memory_space<vmem>>, vector<2x1024xf32>
      %c0_12 = arith.constant 0 : index
      %c0_13 = arith.constant 0 : index
      %13 = vector.load %arg3[%c0_12, %c0_13] : memref<1x1024xf32, #tpu.memory_space<vmem>>, vector<1x1024xf32>
      %14 = vector.broadcast %13 : vector<1x1024xf32> to vector<2x1024xf32>
      %15 = arith.addf %12, %14 : vector<2x1024xf32>
      %cst_14 = arith.constant 0.000000e+00 : f32
      %16 = vector.broadcast %cst_14 : f32 to vector<2x1024xf32>
      %17 = arith.maximumf %15, %16 : vector<2x1024xf32>
      %18 = arith.truncf %17 : vector<2x1024xf32> to vector<2x1024xbf16>
      %c0_15 = arith.constant 0 : index
      %c0_16 = arith.constant 0 : index
      %19 = vector.load %arg4[%c0_15, %c0_16] : memref<1024x7xbf16, #tpu.memory_space<vmem>>, vector<1024x7xbf16>
      %cst_17 = arith.constant dense<0.000000e+00> : vector<2x7xf32>
      %20 = tpu.matmul %18, %19, %cst_17 {dimension_numbers = #tpu.dot_dimension_numbers<[1], [0], [0], [1], [0, 0, 1, 1], [], []>} : vector<2x1024xbf16>, vector<1024x7xbf16>, vector<2x7xf32> -> vector<2x7xf32>
      %c0_18 = arith.constant 0 : index
      %c0_19 = arith.constant 0 : index
      %21 = vector.load %arg5[%c0_18, %c0_19] : memref<1x7xf32, #tpu.memory_space<vmem>>, vector<1x7xf32>
      %22 = vector.broadcast %21 : vector<1x7xf32> to vector<2x7xf32>
      %23 = arith.addf %20, %22 : vector<2x7xf32>
      %24 = vector.extract_strided_slice %23 {offsets = [0, 0], sizes = [2, 1], strides = [1, 1]} : vector<2x7xf32> to vector<2x1xf32>
      %25 = vector.extract_strided_slice %23 {offsets = [0, 1], sizes = [2, 6], strides = [1, 1]} : vector<2x7xf32> to vector<2x6xf32>
      %cst_20 = arith.constant dense<0.000000e+00> : vector<2xf32>
      %26 = vector.multi_reduction <add>, %25, %cst_20 [1] : vector<2x6xf32> to vector<2xf32>
      %27 = vector.shape_cast %26 : vector<2xf32> to vector<2x1xf32>
      %cst_21 = arith.constant 6.000000e+00 : f32
      %28 = vector.broadcast %cst_21 : f32 to vector<2x1xf32>
      %29 = arith.divf %27, %28 : vector<2x1xf32>
      %30 = vector.broadcast %29 : vector<2x1xf32> to vector<2x6xf32>
      %31 = arith.subf %25, %30 : vector<2x6xf32>
      %32 = vector.broadcast %24 : vector<2x1xf32> to vector<2x6xf32>
      %33 = arith.addf %32, %31 : vector<2x6xf32>
      %c0_22 = arith.constant 0 : index
      %c0_23 = arith.constant 0 : index
      %34 = vector.load %arg6[%c0_22, %c0_23] : memref<2x6xf32, #tpu.memory_space<vmem>>, vector<2x6xf32>
      tpu.vector_store %arg6[%c0_22, %c0_23], %33 {strides = array<i32>} : memref<2x6xf32, #tpu.memory_space<vmem>>, vector<2x6xf32>,
    } else {
    }
    return
  }
  func.func @transform_0(%arg0: i32) -> (i32, i32) {
    %c0_i32 = arith.constant 0 : i32
    %c0_i32_0 = arith.constant 0 : i32
    return %c0_i32, %arg0 : i32, i32
  }
  func.func @transform_1(%arg0: i32) -> (i32, i32) {
    %c0_i32 = arith.constant 0 : i32
    %c0_i32_0 = arith.constant 0 : i32
    return %arg0, %c0_i32 : i32, i32
  }
  func.func @transform_2(%arg0: i32) -> (i32, i32) {
    %c0_i32 = arith.constant 0 : i32
    %c0_i32_0 = arith.constant 0 : i32
    %c0_i32_1 = arith.constant 0 : i32
    return %c0_i32, %c0_i32_0 : i32, i32
  }
  func.func @transform_3(%arg0: i32) -> (i32, i32) {
    %c0_i32 = arith.constant 0 : i32
    %c0_i32_0 = arith.constant 0 : i32
    %c0_i32_1 = arith.constant 0 : i32
    return %c0_i32, %c0_i32_0 : i32, i32
  }
  func.func @transform_4(%arg0: i32) -> (i32, i32) {
    %c0_i32 = arith.constant 0 : i32
    %c0_i32_0 = arith.constant 0 : i32
    %c0_i32_1 = arith.constant 0 : i32
    return %c0_i32, %c0_i32_0 : i32, i32
  }
  func.func @transform_5(%arg0: i32) -> (i32, i32) {
    %c0_i32 = arith.constant 0 : i32
    %c0_i32_0 = arith.constant 0 : i32
    %c0_i32_1 = arith.constant 0 : i32
    return %c0_i32, %c0_i32_0 : i32, i32
  }
}

</mosaic_0001>

<llo_original>
// kernel: ddqn_forward.4
$region0: #{ddqn_forward.4}
  #allocation0 [shape = 'u32[]', space=smem, size = 0x4, offset = 0x4, fixed_abs, tag = 'smem constant byte address 0x4 - core index']
  #allocation1 [shape = 'u32[144,128]{1,0:T(1,128)}', space=vmem, size = 0x12000, scoped, tag = 'internal scratch']
  %s0 = inlined_call_operand.vmem [shape: bf16[2,11,15,64], index: 0, kind: input, shape index: {}]
  %s1 = inlined_call_operand.vmem [shape: bf16[4,64,32], index: 1, kind: input, shape index: {}]
  %s2 = inlined_call_operand.vmem [shape: f32[1,32], index: 2, kind: input, shape index: {}]
  %s3 = inlined_call_operand.vmem [shape: bf16[2,10,14,32], index: 3, kind: output, shape index: {}]
  %s4 = sld [smem:[#allocation0]]
  $region45: #{ddqn_forward.4} parent=0
    _
  %s6 = ssub.s32 1, %s4
  %s7 = scalar_select 0, %s6, %s4
  loop: start=0, step=1, limit=4
  $region2: #{ddqn_forward.4} parent=0 // loop_pre_header
    _
  $region3: #{ddqn_forward.4} parent=0 // loop_header
    %s9 = sphi 0, %s13
    %p10 = scmp.ge.s32.totalorder %s9, 4
    %s19 = sphi 0, %s21
    %s22 = sphi 0, %s19
    %s23 = sphi 0, %s22
    %s39 = sphi 0, %s23
    %s43 = sphi 0, %s43
    %s45 = sphi 0, %s43
    %s46 = sphi 0, %s45
    %s60 = sphi 0, %s46
    %s64 = sphi 0, %s64
    %s66 = sphi 0, %s64
    %s67 = sphi 0, %s66
    %s81 = sphi 0, %s67
    %s87 = sphi 0, %s89
    %s90 = sphi 0, %s87
    %s91 = sphi 0, %s90
    %s107 = sphi 0, %s91
  $region4: #{ddqn_forward.4} parent=0 // loop_header_branch
    %12 = sbr.rel (%p10) target = $region8
  $region5: #{ddqn_forward.4} parent=0 // loop_body
    %s14 = ssub.s32 %s9, 1
    %s15 = ssub.s32 %s9, 2
    %s16 = sadd.s32 %s9, 1
    %s17 = ssub.s32 %s9, %s16
    %p18 = scmp.eq.s32.totalorder %s17, 0
    %s20 = sadd.s32 %s19, 1
    %s21 = scalar_select %p18, %s19, %s20
    %p24 = pneg %p18
    %p25 = scmp.eq.s32.totalorder %s9, 1
    %p26 = por %p24, %p25
    %p27 = scmp.ne.s32.totalorder %s19, %s22
    %p28 = scmp.eq.s32.totalorder %s9, 0
    %p29 = por %p27, %p28
    %p30 = scmp.ne.s32.totalorder %s19, %s22
    %p31 = scmp.eq.s32.totalorder %s14, 1
    %p32 = por %p30, %p31
    %p33 = scmp.ne.s32.totalorder %s22, %s23
    %p34 = scmp.eq.s32.totalorder %s14, 0
    %p35 = por %p33, %p34
    %p36 = scmp.ne.s32.totalorder %s22, %s23
    %p37 = scmp.eq.s32.totalorder %s15, 1
    %p38 = por %p36, %p37
    %p40 = scmp.ne.s32.totalorder %s23, %s39
    %p41 = scmp.eq.s32.totalorder %s15, 0
    %p42 = por %p40, %p41
    %s44 = sadd.s32 %s43, 1
    %p47 = scmp.eq.s32.totalorder %s9, 1
    %p48 = scmp.ne.s32.totalorder %s43, %s45
    %p49 = scmp.eq.s32.totalorder %s9, 0
    %p50 = por %p48, %p49
    %p51 = scmp.ne.s32.totalorder %s43, %s45
    %p52 = scmp.eq.s32.totalorder %s14, 1
    %p53 = por %p51, %p52
    %p54 = scmp.ne.s32.totalorder %s45, %s46
    %p55 = scmp.eq.s32.totalorder %s14, 0
    %p56 = por %p54, %p55
    %p57 = scmp.ne.s32.totalorder %s45, %s46
    %p58 = scmp.eq.s32.totalorder %s15, 1
    %p59 = por %p57, %p58
    %p61 = scmp.ne.s32.totalorder %s46, %s60
    %p62 = scmp.eq.s32.totalorder %s15, 0
    %p63 = por %p61, %p62
    %s65 = sadd.s32 %s64, 1
    %p68 = scmp.eq.s32.totalorder %s9, 1
    %p69 = scmp.ne.s32.totalorder %s64, %s66
    %p70 = scmp.eq.s32.totalorder %s9, 0
    %p71 = por %p69, %p70
    %p72 = scmp.ne.s32.totalorder %s64, %s66
    %p73 = scmp.eq.s32.totalorder %s14, 1
    %p74 = por %p72, %p73
    %p75 = scmp.ne.s32.totalorder %s66, %s67
    %p76 = scmp.eq.s32.totalorder %s14, 0
    %p77 = por %p75, %p76
    %p78 = scmp.ne.s32.totalorder %s66, %s67
    %p79 = scmp.eq.s32.totalorder %s15, 1
    %p80 = por %p78, %p79
    %p82 = scmp.ne.s32.totalorder %s67, %s81
    %p83 = scmp.eq.s32.totalorder %s15, 0
    %p84 = por %p82, %p83
    %s85 = ssub.s32 %s9, %s16
    %p86 = scmp.eq.s32.totalorder %s85, 0
    %s88 = sadd.s32 %s87, 1
    %s89 = scalar_select %p86, %s87, %s88
    %p92 = pneg %p86
    %p93 = scmp.eq.s32.totalorder %s9, 1
    %p94 = por %p92, %p93
    %p95 = scmp.ne.s32.totalorder %s87, %s90
    %p96 = scmp.eq.s32.totalorder %s9, 0
    %p97 = por %p95, %p96
    %p98 = scmp.ne.s32.totalorder %s87, %s90
    %p99 = scmp.eq.s32.totalorder %s14, 1
    %p100 = por %p98, %p99
    %p101 = scmp.ne.s32.totalorder %s90, %s91
    %p102 = scmp.eq.s32.totalorder %s14, 0
    %p103 = por %p101, %p102
    %p104 = scmp.ne.s32.totalorder %s90, %s91
    %p105 = scmp.eq.s32.totalorder %s15, 1
    %p106 = por %p104, %p105
    %p108 = scmp.ne.s32.totalorder %s91, %s107
    %p109 = scmp.eq.s32.totalorder %s15, 0
    %p110 = por %p108, %p109
    %p111 = scmp.le.s32.totalorder 1, %s9
    %p112 = scmp.lt.s32.totalorder %s9, 3
    %p113 = pnand %p111, %p112
    %p114 = pneg %p113
    // Predicated region
    $region9: #{ddqn_forward.4} parent=5 // pred_check
      _
    $region10: #{ddqn_forward.4} parent=5 // pred_check_branch
      %116 = sbr.rel (%p113) target = $region12
    $region11: #{ddqn_forward.4} parent=5 // pred_region
      %s117 = ssub.s32 %s9, 1
      // Predicated region
      $region13: #{ddqn_forward.4} parent=11 // pred_check
        %p118 = pneg %p56
      $region14: #{ddqn_forward.4} parent=11 // pred_check_branch
        %120 = sbr.rel (%p118) target = $region16
      $region15: #{ddqn_forward.4} parent=11 // pred_region
        _
      $region16: #{ddqn_forward.4} parent=11 // pred_fallthru
        _
      // Predicated region
      $region17: #{ddqn_forward.4} parent=11 // pred_check
        %p121 = pneg %p77
      $region18: #{ddqn_forward.4} parent=11 // pred_check_branch
        %123 = sbr.rel (%p121) target = $region20
      $region19: #{ddqn_forward.4} parent=11 // pred_region
        _
      $region20: #{ddqn_forward.4} parent=11 // pred_fallthru
        _
    $region12: #{ddqn_forward.4} parent=5 // pred_fallthru
      _
    %p124 = scmp.lt.s32.totalorder %s9, 2
    // Predicated region
    $region21: #{ddqn_forward.4} parent=5 // pred_check
      %p125 = pneg %p124
    $region22: #{ddqn_forward.4} parent=5 // pred_check_branch
      %127 = sbr.rel (%p125) target = $region24
    $region23: #{ddqn_forward.4} parent=5 // pred_region
      // Predicated region
      $region25: #{ddqn_forward.4} parent=23 // pred_check
        %p128 = pneg %p29
      $region26: #{ddqn_forward.4} parent=23 // pred_check_branch
        %130 = sbr.rel (%p128) target = $region28
      $region27: #{ddqn_forward.4} parent=23 // pred_region
        %p131 = scmp.lt.s32.totalorder %s9, 1
        %s132 = scalar_select %p131, %s9, 1
        %s133 = smul.addr %s132, 22
        %s134 = smul.addr %s133, 4
        %s135 = scalar_lea.vmem %s0, %s134
      $region28: #{ddqn_forward.4} parent=23 // pred_fallthru
        _
    $region24: #{ddqn_forward.4} parent=5 // pred_fallthru
      _
    %p136 = scmp.le.s32.totalorder 1, %s9
    %p137 = scmp.lt.s32.totalorder %s9, 3
    %p138 = pnand %p136, %p137
    %p139 = pneg %p138
    // Predicated region
    $region29: #{ddqn_forward.4} parent=5 // pred_check
      _
    $region30: #{ddqn_forward.4} parent=5 // pred_check_branch
      %141 = sbr.rel (%p138) target = $region32
    $region31: #{ddqn_forward.4} parent=5 // pred_region
      %s142 = ssub.s32 %s9, 1
      %p143 = scmp.lt.s32.totalorder %s14, 1
      %s144 = scalar_select %p143, %s14, 1
      %s145 = smul.addr %s144, 22
      %s146 = smul.addr %s145, 4
      %s147 = scalar_lea.vmem %s0, %s146
      %p148 = pneg %p35
      %p149 = pneg %p32
      %p150 = pneg %p56
      %p151 = pneg %p53
      %p152 = pneg %p77
      %p153 = pneg %p74
      %p154 = pneg %p103
      %p155 = pneg %p100
      %p156 = scmp.lt.s32.totalorder %s14, 1
      %s157 = scalar_select %p156, %s14, 1
      %s158 = smul.addr %s157, 20
      %s159 = smul.addr %s158, 4
      %s160 = scalar_lea.vmem %s3, %s159
      %p161 = scmp.lt.s32.totalorder %s14, 1
      %s162 = scalar_select %p161, %s14, 1
      %s163 = smul.addr %s162, 22
      %s164 = smul.addr %s163, 4
      %s165 = scalar_lea.vmem %s0, %s164
      %p166 = scmp.lt.s32.totalorder %s14, 1
      %s167 = scalar_select %p166, %s14, 1
      %s168 = smul.addr %s167, 20
      %s169 = smul.addr %s168, 4
      %s170 = scalar_lea.vmem %s3, %s169
      %v172 = vld [vmem:[%s2] sm:$0x1]
      %v173 = vld [vmem:[%s1] sm:$0xf]
      %v174 = vld [vmem:[%s1 + $0x4] sm:$0xf]
      %v175 = vld [vmem:[%s1 + $0x8] sm:$0xf]
      %v176 = vld [vmem:[%s1 + $0xc] sm:$0xf]
      %v177 = vld [vmem:[%s1 + $0x10] sm:$0xf]
      %v178 = vld [vmem:[%s1 + $0x14] sm:$0xf]
      %v179 = vld [vmem:[%s1 + $0x18] sm:$0xf]
      %v180 = vld [vmem:[%s1 + $0x1c] sm:$0xf]
      %s181 = scalar_lea.vmem %s1, 32
      %v182 = vld [vmem:[%s181] sm:$0xf]
      %v183 = vld [vmem:[%s181 + $0x4] sm:$0xf]
      %v184 = vld [vmem:[%s181 + $0x8] sm:$0xf]
      %v185 = vld [vmem:[%s181 + $0xc] sm:$0xf]
      %v186 = vld [vmem:[%s181 + $0x10] sm:$0xf]
      %v187 = vld [vmem:[%s181 + $0x14] sm:$0xf]
      %v188 = vld [vmem:[%s181 + $0x18] sm:$0xf]
      %v189 = vld [vmem:[%s181 + $0x1c] sm:$0xf]
      %s190 = scalar_lea.vmem %s1, 64
      %v191 = vld [vmem:[%s190] sm:$0xf]
      %v192 = vld [vmem:[%s190 + $0x4] sm:$0xf]
      %v193 = vld [vmem:[%s190 + $0x8] sm:$0xf]
      %v194 = vld [vmem:[%s190 + $0xc] sm:$0xf]
      %v195 = vld [vmem:[%s190 + $0x10] sm:$0xf]
      %v196 = vld [vmem:[%s190 + $0x14] sm:$0xf]
      %v197 = vld [vmem:[%s190 + $0x18] sm:$0xf]
      %v198 = vld [vmem:[%s190 + $0x1c] sm:$0xf]
      %s199 = scalar_lea.vmem %s1, 96
      %v200 = vld [vmem:[%s199] sm:$0xf]
      %v201 = vld [vmem:[%s199 + $0x4] sm:$0xf]
      %v202 = vld [vmem:[%s199 + $0x8] sm:$0xf]
      %v203 = vld [vmem:[%s199 + $0xc] sm:$0xf]
      %v204 = vld [vmem:[%s199 + $0x10] sm:$0xf]
      %v205 = vld [vmem:[%s199 + $0x14] sm:$0xf]
      %v206 = vld [vmem:[%s199 + $0x18] sm:$0xf]
      %v207 = vld [vmem:[%s199 + $0x1c] sm:$0xf]
      %v208 = vld [vmem:[%s165] sm:$0xf]
      %v209 = vld [vmem:[%s165 + $0x4] sm:$0x7]
      %v210 = vld [vmem:[%s165 + $0x4] sm:$0xf]
      %v213 = vunpack.c.l.b16 %v208
      %v214 = vunpack.c.l.b16 %v210
      %v215 = vpack.c.b16 %v214, %v213
      %v217 = vshrl.u32 %v215, 16
      %v219 = vshll.u32 %v215, 16
      %v221 = vrot.slane %v219, 1
      %v222 = vor.u32 %v217, %v221
      %v231 = vunpack.c.l.b16 %v182
      %v232 = vunpack.c.l.b16 %v183
      %v233 = vunpack.c.l.b16 %v184
      %v234 = vunpack.c.l.b16 %v185
      %v235 = vunpack.c.l.b16 %v186
      %v236 = vunpack.c.l.b16 %v187
      %v237 = vunpack.c.l.b16 %v188
      %v238 = vunpack.c.l.b16 %v189
      %v239 = vpack.c.b16 %v232, %v231
      %v240 = vpack.c.b16 %v234, %v233
      %v241 = vpack.c.b16 %v236, %v235
      %v242 = vpack.c.b16 %v238, %v237
      %vm247 = vcmask 523264
      %v249 = vsel %vm247, %v222, 0
      %251 = vmatprep.subr.bf16.mxu0 0
      %252 = vmatpush1.bf16.msra.mxu0 %v239
      %253 = vmatprep.subr.bf16.mxu0 0
      %254 = vmatpush1.bf16.msra.mxu0 %v240
      %255 = vmatprep.subr.bf16.mxu0 0
      %256 = vmatpush1.bf16.msra.mxu0 %v241
      %257 = vmatprep.subr.bf16.mxu0 0
      %258 = vmatpush1.bf16.msra.mxu0 %v242
      %259 = vmatprep.subr.bf16.mxu0 0
      %260 = vmatpush1.bf16.msra.mxu0 0
      %261 = vmatprep.subr.bf16.mxu0 0
      %262 = vmatpush1.bf16.msra.mxu0 0
      %263 = vmatprep.subr.bf16.mxu0 0
      %264 = vmatpush1.bf16.msra.mxu0 0
      %265 = vmatprep.subr.bf16.mxu0 0
      %266 = vmatpush1.bf16.msra.mxu0 0
      %267 = vmatprep.subr.bf16.mxu0 0
      %268 = vmatpush1.bf16.msra.mxu0 0
      %269 = vmatprep.subr.bf16.mxu0 0
      %270 = vmatpush1.bf16.msra.mxu0 0
      %271 = vmatprep.subr.bf16.mxu0 0
      %272 = vmatpush1.bf16.msra.mxu0 0
      %273 = vmatprep.subr.bf16.mxu0 0
      %274 = vmatpush1.bf16.msra.mxu0 0
      %275 = vmatprep.subr.bf16.mxu0 0
      %276 = vmatpush1.bf16.msra.mxu0 0
      %277 = vmatprep.subr.bf16.mxu0 0
      %278 = vmatpush1.bf16.msra.mxu0 0
      %279 = vmatprep.subr.bf16.mxu0 0
      %280 = vmatpush1.bf16.msra.mxu0 0
      %281 = vmatprep.subr.bf16.mxu0 0
      %282 = vmatpush1.bf16.msra.mxu0 0
      %283 = vmatprep.mubr.bf16.mxu0 0
      %284 = vmatmul.mubr.bf16.gmra.mrb[0].mxu0 %v249
      %v285 = vpop.f32.mrb[0].mxu0
      %v286 = vadd.f32 0.0, %v285
      %v287 = vpop.f32.mrb[0].mxu0
      %v288 = vpop.f32.mrb[0].mxu0
      %v289 = vadd.f32 0.0, %v288
      %v290 = vpop.f32.mrb[0].mxu0
      %291 = vdwg.mxu0
      %v293 = vunpack.c.l.b16 %v209
      %v294 = vpack.c.b16 %v293, %v213
      %v303 = vunpack.c.l.b16 %v173
      %v304 = vunpack.c.l.b16 %v174
      %v305 = vunpack.c.l.b16 %v175
      %v306 = vunpack.c.l.b16 %v176
      %v307 = vunpack.c.l.b16 %v177
      %v308 = vunpack.c.l.b16 %v178
      %v309 = vunpack.c.l.b16 %v179
      %v310 = vunpack.c.l.b16 %v180
      %v311 = vpack.c.b16 %v304, %v303
      %v312 = vpack.c.b16 %v306, %v305
      %v313 = vpack.c.b16 %v308, %v307
      %v314 = vpack.c.b16 %v310, %v309
      %v320 = vsel %vm247, %v294, 0
      %322 = vmatprep.subr.bf16.mxu0 0
      %323 = vmatpush1.bf16.msra.mxu0 %v311
      %324 = vmatprep.subr.bf16.mxu0 0
      %325 = vmatpush1.bf16.msra.mxu0 %v312
      %326 = vmatprep.subr.bf16.mxu0 0
      %327 = vmatpush1.bf16.msra.mxu0 %v313
      %328 = vmatprep.subr.bf16.mxu0 0
      %329 = vmatpush1.bf16.msra.mxu0 %v314
      %330 = vmatprep.subr.bf16.mxu0 0
      %331 = vmatpush1.bf16.msra.mxu0 0
      %332 = vmatprep.subr.bf16.mxu0 0
      %333 = vmatpush1.bf16.msra.mxu0 0
      %334 = vmatprep.subr.bf16.mxu0 0
      %335 = vmatpush1.bf16.msra.mxu0 0
      %336 = vmatprep.subr.bf16.mxu0 0
      %337 = vmatpush1.bf16.msra.mxu0 0
      %338 = vmatprep.subr.bf16.mxu0 0
      %339 = vmatpush1.bf16.msra.mxu0 0
      %340 = vmatprep.subr.bf16.mxu0 0
      %341 = vmatpush1.bf16.msra.mxu0 0
      %342 = vmatprep.subr.bf16.mxu0 0
      %343 = vmatpush1.bf16.msra.mxu0 0
      %344 = vmatprep.subr.bf16.mxu0 0
      %345 = vmatpush1.bf16.msra.mxu0 0
      %346 = vmatprep.subr.bf16.mxu0 0
      %347 = vmatpush1.bf16.msra.mxu0 0
      %348 = vmatprep.subr.bf16.mxu0 0
      %349 = vmatpush1.bf16.msra.mxu0 0
      %350 = vmatprep.subr.bf16.mxu0 0
      %351 = vmatpush1.bf16.msra.mxu0 0
      %352 = vmatprep.subr.bf16.mxu0 0
      %353 = vmatpush1.bf16.msra.mxu0 0
      %354 = vmatprep.mubr.bf16.mxu0 0
      %355 = vmatmul.mubr.bf16.gmra.mrb[0].mxu0 %v320
      %v356 = vpop.f32.mrb[0].mxu0
      %v357 = vadd.f32 %v286, %v356
      %v358 = vpop.f32.mrb[0].mxu0
      %v359 = vpop.f32.mrb[0].mxu0
      %v360 = vadd.f32 %v289, %v359
      %v361 = vpop.f32.mrb[0].mxu0
      %362 = vdwg.mxu0
      %s363 = scalar_lea.vmem %s165, 8
      %v364 = vld [vmem:[%s363] sm:$0xf]
      %v365 = vld [vmem:[%s363 + $0x4] sm:$0x7]
      %v368 = vunpack.c.l.b16 %v364
      %v369 = vunpack.c.l.b16 %v365
      %v370 = vpack.c.b16 %v369, %v368
      %v379 = vunpack.c.l.b16 %v191
      %v380 = vunpack.c.l.b16 %v192
      %v381 = vunpack.c.l.b16 %v193
      %v382 = vunpack.c.l.b16 %v194
      %v383 = vunpack.c.l.b16 %v195
      %v384 = vunpack.c.l.b16 %v196
      %v385 = vunpack.c.l.b16 %v197
      %v386 = vunpack.c.l.b16 %v198
      %v387 = vpack.c.b16 %v380, %v379
      %v388 = vpack.c.b16 %v382, %v381
      %v389 = vpack.c.b16 %v384, %v383
      %v390 = vpack.c.b16 %v386, %v385
      %v396 = vsel %vm247, %v370, 0
      %398 = vmatprep.subr.bf16.mxu0 0
      %399 = vmatpush1.bf16.msra.mxu0 %v387
      %400 = vmatprep.subr.bf16.mxu0 0
      %401 = vmatpush1.bf16.msra.mxu0 %v388
      %402 = vmatprep.subr.bf16.mxu0 0
      %403 = vmatpush1.bf16.msra.mxu0 %v389
      %404 = vmatprep.subr.bf16.mxu0 0
      %405 = vmatpush1.bf16.msra.mxu0 %v390
      %406 = vmatprep.subr.bf16.mxu0 0
      %407 = vmatpush1.bf16.msra.mxu0 0
      %408 = vmatprep.subr.bf16.mxu0 0
      %409 = vmatpush1.bf16.msra.mxu0 0
      %410 = vmatprep.subr.bf16.mxu0 0
      %411 = vmatpush1.bf16.msra.mxu0 0
      %412 = vmatprep.subr.bf16.mxu0 0
      %413 = vmatpush1.bf16.msra.mxu0 0
      %414 = vmatprep.subr.bf16.mxu0 0
      %415 = vmatpush1.bf16.msra.mxu0 0
      %416 = vmatprep.subr.bf16.mxu0 0
      %417 = vmatpush1.bf16.msra.mxu0 0
      %418 = vmatprep.subr.bf16.mxu0 0
      %419 = vmatpush1.bf16.msra.mxu0 0
      %420 = vmatprep.subr.bf16.mxu0 0
      %421 = vmatpush1.bf16.msra.mxu0 0
      %422 = vmatprep.subr.bf16.mxu0 0
      %423 = vmatpush1.bf16.msra.mxu0 0
      %424 = vmatprep.subr.bf16.mxu0 0
      %425 = vmatpush1.bf16.msra.mxu0 0
      %426 = vmatprep.subr.bf16.mxu0 0
      %427 = vmatpush1.bf16.msra.mxu0 0
      %428 = vmatprep.subr.bf16.mxu0 0
      %429 = vmatpush1.bf16.msra.mxu0 0
      %430 = vmatprep.mubr.bf16.mxu0 0
      %431 = vmatmul.mubr.bf16.gmra.mrb[0].mxu0 %v396
      %v432 = vpop.f32.mrb[0].mxu0
      %v433 = vadd.f32 0.0, %v432
      %v434 = vpop.f32.mrb[0].mxu0
      %v435 = vpop.f32.mrb[0].mxu0
      %v436 = vadd.f32 0.0, %v435
      %v437 = vpop.f32.mrb[0].mxu0
      %438 = vdwg.mxu0
      %v439 = vadd.f32 %v357, %v433
      %v440 = vadd.f32 %v360, %v436
      %v441 = vld [vmem:[%s363 + $0x4] sm:$0xf]
      %v443 = vunpack.c.l.b16 %v441
      %v444 = vpack.c.b16 %v443, %v368
      %v446 = vshrl.u32 %v444, 16
      %v448 = vshll.u32 %v444, 16
      %v450 = vrot.slane %v448, 1
      %v451 = vor.u32 %v446, %v450
      %v460 = vunpack.c.l.b16 %v200
      %v461 = vunpack.c.l.b16 %v201
      %v462 = vunpack.c.l.b16 %v202
      %v463 = vunpack.c.l.b16 %v203
      %v464 = vunpack.c.l.b16 %v204
      %v465 = vunpack.c.l.b16 %v205
      %v466 = vunpack.c.l.b16 %v206
      %v467 = vunpack.c.l.b16 %v207
      %v468 = vpack.c.b16 %v461, %v460
      %v469 = vpack.c.b16 %v463, %v462
      %v470 = vpack.c.b16 %v465, %v464
      %v471 = vpack.c.b16 %v467, %v466
      %v477 = vsel %vm247, %v451, 0
      %479 = vmatprep.subr.bf16.mxu0 0
      %480 = vmatpush1.bf16.msra.mxu0 %v468
      %481 = vmatprep.subr.bf16.mxu0 0
      %482 = vmatpush1.bf16.msra.mxu0 %v469
      %483 = vmatprep.subr.bf16.mxu0 0
      %484 = vmatpush1.bf16.msra.mxu0 %v470
      %485 = vmatprep.subr.bf16.mxu0 0
      %486 = vmatpush1.bf16.msra.mxu0 %v471
      %487 = vmatprep.subr.bf16.mxu0 0
      %488 = vmatpush1.bf16.msra.mxu0 0
      %489 = vmatprep.subr.bf16.mxu0 0
      %490 = vmatpush1.bf16.msra.mxu0 0
      %491 = vmatprep.subr.bf16.mxu0 0
      %492 = vmatpush1.bf16.msra.mxu0 0
      %493 = vmatprep.subr.bf16.mxu0 0
      %494 = vmatpush1.bf16.msra.mxu0 0
      %495 = vmatprep.subr.bf16.mxu0 0
      %496 = vmatpush1.bf16.msra.mxu0 0
      %497 = vmatprep.subr.bf16.mxu0 0
      %498 = vmatpush1.bf16.msra.mxu0 0
      %499 = vmatprep.subr.bf16.mxu0 0
      %500 = vmatpush1.bf16.msra.mxu0 0
      %501 = vmatprep.subr.bf16.mxu0 0
      %502 = vmatpush1.bf16.msra.mxu0 0
      %503 = vmatprep.subr.bf16.mxu0 0
      %504 = vmatpush1.bf16.msra.mxu0 0
      %505 = vmatprep.subr.bf16.mxu0 0
      %506 = vmatpush1.bf16.msra.mxu0 0
      %507 = vmatprep.subr.bf16.mxu0 0
      %508 = vmatpush1.bf16.msra.mxu0 0
      %509 = vmatprep.subr.bf16.mxu0 0
      %510 = vmatpush1.bf16.msra.mxu0 0
      %511 = vmatprep.mubr.bf16.mxu0 0
      %512 = vmatmul.mubr.bf16.gmra.mrb[0].mxu0 %v477
      %v513 = vpop.f32.mrb[0].mxu0
      %v514 = vadd.f32 0.0, %v513
      %v515 = vpop.f32.mrb[0].mxu0
      %v516 = vpop.f32.mrb[0].mxu0
      %v517 = vadd.f32 0.0, %v516
      %v518 = vpop.f32.mrb[0].mxu0
      %519 = vdwg.mxu0
      %v520 = vadd.f32 %v439, %v514
      %v521 = vadd.f32 %v440, %v517
      %v523 = vlaneseq
      %v524 = vshrl.u32 %v523, 7
      %v525 = vsub.s32 0, %v524
      %v526 = vrot.slane %v172, %v525
      %v528 = vadd.f32 %v520, %v526
      %v529 = vadd.f32 %v521, %v526
      %v530 = vmax.f32 %v528, 0.0
      %v531 = vmax.f32 %v529, 0.0
      %v532 = vpack.c.bf16 %v531, %v530
      %v534 = vunpack.c.l.b16 %v532
      %v535 = vunpack.c.h.b16 %v532
      %v536 = vpack.c.b16 %v534, %v534
      %v537 = vpack.c.b16 %v535, %v535
      %vm540 = vcmask 257024
      %541 = vst.msk [vmem:[%s170] sm:$0xf] %vm540, %v536
      %vm542 = vcmask 256000
      %543 = vst.msk [vmem:[%s170 + $0x4] sm:$0x7] %vm542, %v537
      %v544 = vld [vmem:[%s363] sm:$0xf]
      %v545 = vld [vmem:[%s363 + $0x4] sm:$0x7]
      %v546 = vld [vmem:[%s363 + $0x4] sm:$0xf]
      %v549 = vunpack.c.l.b16 %v544
      %v550 = vunpack.c.l.b16 %v546
      %v551 = vpack.c.b16 %v550, %v549
      %v553 = vshrl.u32 %v551, 16
      %v555 = vshll.u32 %v551, 16
      %v557 = vrot.slane %v555, 1
      %v558 = vor.u32 %v553, %v557
      %v560 = vsel %vm247, %v558, 0
      %562 = vmatprep.subr.bf16.mxu0 0
      %563 = vmatpush1.bf16.msra.mxu0 %v239
      %564 = vmatprep.subr.bf16.mxu0 0
      %565 = vmatpush1.bf16.msra.mxu0 %v240
      %566 = vmatprep.subr.bf16.mxu0 0
      %567 = vmatpush1.bf16.msra.mxu0 %v241
      %568 = vmatprep.subr.bf16.mxu0 0
      %569 = vmatpush1.bf16.msra.mxu0 %v242
      %570 = vmatprep.subr.bf16.mxu0 0
      %571 = vmatpush1.bf16.msra.mxu0 0
      %572 = vmatprep.subr.bf16.mxu0 0
      %573 = vmatpush1.bf16.msra.mxu0 0
      %574 = vmatprep.subr.bf16.mxu0 0
      %575 = vmatpush1.bf16.msra.mxu0 0
      %576 = vmatprep.subr.bf16.mxu0 0
      %577 = vmatpush1.bf16.msra.mxu0 0
      %578 = vmatprep.subr.bf16.mxu0 0
      %579 = vmatpush1.bf16.msra.mxu0 0
      %580 = vmatprep.subr.bf16.mxu0 0
      %581 = vmatpush1.bf16.msra.mxu0 0
      %582 = vmatprep.subr.bf16.mxu0 0
      %583 = vmatpush1.bf16.msra.mxu0 0
      %584 = vmatprep.subr.bf16.mxu0 0
      %585 = vmatpush1.bf16.msra.mxu0 0
      %586 = vmatprep.subr.bf16.mxu0 0
      %587 = vmatpush1.bf16.msra.mxu0 0
      %588 = vmatprep.subr.bf16.mxu0 0
      %589 = vmatpush1.bf16.msra.mxu0 0
      %590 = vmatprep.subr.bf16.mxu0 0
      %591 = vmatpush1.bf16.msra.mxu0 0
      %592 = vmatprep.subr.bf16.mxu0 0
      %593 = vmatpush1.bf16.msra.mxu0 0
      %594 = vmatprep.mubr.bf16.mxu0 0
      %595 = vmatmul.mubr.bf16.gmra.mrb[0].mxu0 %v560
      %v596 = vpop.f32.mrb[0].mxu0
      %v597 = vadd.f32 0.0, %v596
      %v598 = vpop.f32.mrb[0].mxu0
      %v599 = vpop.f32.mrb[0].mxu0
      %v600 = vadd.f32 0.0, %v599
      %v601 = vpop.f32.mrb[0].mxu0
      %602 = vdwg.mxu0
      %v604 = vunpack.c.l.b16 %v545
      %v605 = vpack.c.b16 %v604, %v549
      %v607 = vsel %vm247, %v605, 0
      %609 = vmatprep.subr.bf16.mxu0 0
      %610 = vmatpush1.bf16.msra.mxu0 %v311
      %611 = vmatprep.subr.bf16.mxu0 0
      %612 = vmatpush1.bf16.msra.mxu0 %v312
      %613 = vmatprep.subr.bf16.mxu0 0
      %614 = vmatpush1.bf16.msra.mxu0 %v313
      %615 = vmatprep.subr.bf16.mxu0 0
      %616 = vmatpush1.bf16.msra.mxu0 %v314
      %617 = vmatprep.subr.bf16.mxu0 0
      %618 = vmatpush1.bf16.msra.mxu0 0
      %619 = vmatprep.subr.bf16.mxu0 0
      %620 = vmatpush1.bf16.msra.mxu0 0
      %621 = vmatprep.subr.bf16.mxu0 0
      %622 = vmatpush1.bf16.msra.mxu0 0
      %623 = vmatprep.subr.bf16.mxu0 0
      %624 = vmatpush1.bf16.msra.mxu0 0
      %625 = vmatprep.subr.bf16.mxu0 0
      %626 = vmatpush1.bf16.msra.mxu0 0
      %627 = vmatprep.subr.bf16.mxu0 0
      %628 = vmatpush1.bf16.msra.mxu0 0
      %629 = vmatprep.subr.bf16.mxu0 0
      %630 = vmatpush1.bf16.msra.mxu0 0
      %631 = vmatprep.subr.bf16.mxu0 0
      %632 = vmatpush1.bf16.msra.mxu0 0
      %633 = vmatprep.subr.bf16.mxu0 0
      %634 = vmatpush1.bf16.msra.mxu0 0
      %635 = vmatprep.subr.bf16.mxu0 0
      %636 = vmatpush1.bf16.msra.mxu0 0
      %637 = vmatprep.subr.bf16.mxu0 0
      %638 = vmatpush1.bf16.msra.mxu0 0
      %639 = vmatprep.subr.bf16.mxu0 0
      %640 = vmatpush1.bf16.msra.mxu0 0
      %641 = vmatprep.mubr.bf16.mxu0 0
      %642 = vmatmul.mubr.bf16.gmra.mrb[0].mxu0 %v607
      %v643 = vpop.f32.mrb[0].mxu0
      %v644 = vadd.f32 %v597, %v643
      %v645 = vpop.f32.mrb[0].mxu0
      %v646 = vpop.f32.mrb[0].mxu0
      %v647 = vadd.f32 %v600, %v646
      %v648 = vpop.f32.mrb[0].mxu0
      %649 = vdwg.mxu0
      %s650 = scalar_lea.vmem %s165, 16
      %v651 = vld [vmem:[%s650] sm:$0xf]
      %v652 = vld [vmem:[%s650 + $0x4] sm:$0x7]
      %v655 = vunpack.c.l.b16 %v651
      %v656 = vunpack.c.l.b16 %v652
      %v657 = vpack.c.b16 %v656, %v655
      %v659 = vsel %vm247, %v657, 0
      %661 = vmatprep.subr.bf16.mxu0 0
      %662 = vmatpush1.bf16.msra.mxu0 %v387
      %663 = vmatprep.subr.bf16.mxu0 0
      %664 = vmatpush1.bf16.msra.mxu0 %v388
      %665 = vmatprep.subr.bf16.mxu0 0
      %666 = vmatpush1.bf16.msra.mxu0 %v389
      %667 = vmatprep.subr.bf16.mxu0 0
      %668 = vmatpush1.bf16.msra.mxu0 %v390
      %669 = vmatprep.subr.bf16.mxu0 0
      %670 = vmatpush1.bf16.msra.mxu0 0
      %671 = vmatprep.subr.bf16.mxu0 0
      %672 = vmatpush1.bf16.msra.mxu0 0
      %673 = vmatprep.subr.bf16.mxu0 0
      %674 = vmatpush1.bf16.msra.mxu0 0
      %675 = vmatprep.subr.bf16.mxu0 0
      %676 = vmatpush1.bf16.msra.mxu0 0
      %677 = vmatprep.subr.bf16.mxu0 0
      %678 = vmatpush1.bf16.msra.mxu0 0
      %679 = vmatprep.subr.bf16.mxu0 0
      %680 = vmatpush1.bf16.msra.mxu0 0
      %681 = vmatprep.subr.bf16.mxu0 0
      %682 = vmatpush1.bf16.msra.mxu0 0
      %683 = vmatprep.subr.bf16.mxu0 0
      %684 = vmatpush1.bf16.msra.mxu0 0
      %685 = vmatprep.subr.bf16.mxu0 0
      %686 = vmatpush1.bf16.msra.mxu0 0
      %687 = vmatprep.subr.bf16.mxu0 0
      %688 = vmatpush1.bf16.msra.mxu0 0
      %689 = vmatprep.subr.bf16.mxu0 0
      %690 = vmatpush1.bf16.msra.mxu0 0
      %691 = vmatprep.subr.bf16.mxu0 0
      %692 = vmatpush1.bf16.msra.mxu0 0
      %693 = vmatprep.mubr.bf16.mxu0 0
      %694 = vmatmul.mubr.bf16.gmra.mrb[0].mxu0 %v659
      %v695 = vpop.f32.mrb[0].mxu0
      %v696 = vadd.f32 0.0, %v695
      %v697 = vpop.f32.mrb[0].mxu0
      %v698 = vpop.f32.mrb[0].mxu0
      %v699 = vadd.f32 0.0, %v698
      %v700 = vpop.f32.mrb[0].mxu0
      %701 = vdwg.mxu0
      %v702 = vadd.f32 %v644, %v696
      %v703 = vadd.f32 %v647, %v699
      %v704 = vld [vmem:[%s650 + $0x4] sm:$0xf]
      %v706 = vunpack.c.l.b16 %v704
      %v707 = vpack.c.b16 %v706, %v655
      %v709 = vshrl.u32 %v707, 16
      %v711 = vshll.u32 %v707, 16
      %v713 = vrot.slane %v711, 1
      %v714 = vor.u32 %v709, %v713
      %v716 = vsel %vm247, %v714, 0
      %718 = vmatprep.subr.bf16.mxu0 0
      %719 = vmatpush1.bf16.msra.mxu0 %v468
      %720 = vmatprep.subr.bf16.mxu0 0
      %721 = vmatpush1.bf16.msra.mxu0 %v469
      %722 = vmatprep.subr.bf16.mxu0 0
      %723 = vmatpush1.bf16.msra.mxu0 %v470
      %724 = vmatprep.subr.bf16.mxu0 0
      %725 = vmatpush1.bf16.msra.mxu0 %v471
      %726 = vmatprep.subr.bf16.mxu0 0
      %727 = vmatpush1.bf16.msra.mxu0 0
      %728 = vmatprep.subr.bf16.mxu0 0
      %729 = vmatpush1.bf16.msra.mxu0 0
      %730 = vmatprep.subr.bf16.mxu0 0
      %731 = vmatpush1.bf16.msra.mxu0 0
      %732 = vmatprep.subr.bf16.mxu0 0
      %733 = vmatpush1.bf16.msra.mxu0 0
      %734 = vmatprep.subr.bf16.mxu0 0
      %735 = vmatpush1.bf16.msra.mxu0 0
      %736 = vmatprep.subr.bf16.mxu0 0
      %737 = vmatpush1.bf16.msra.mxu0 0
      %738 = vmatprep.subr.bf16.mxu0 0
      %739 = vmatpush1.bf16.msra.mxu0 0
      %740 = vmatprep.subr.bf16.mxu0 0
      %741 = vmatpush1.bf16.msra.mxu0 0
      %742 = vmatprep.subr.bf16.mxu0 0
      %743 = vmatpush1.bf16.msra.mxu0 0
      %744 = vmatprep.subr.bf16.mxu0 0
      %745 = vmatpush1.bf16.msra.mxu0 0
      %746 = vmatprep.subr.bf16.mxu0 0
      %747 = vmatpush1.bf16.msra.mxu0 0
      %748 = vmatprep.subr.bf16.mxu0 0
      %749 = vmatpush1.bf16.msra.mxu0 0
      %750 = vmatprep.mubr.bf16.mxu0 0
      %751 = vmatmul.mubr.bf16.gmra.mrb[0].mxu0 %v716
      %v752 = vpop.f32.mrb[0].mxu0
      %v753 = vadd.f32 0.0, %v752
      %v754 = vpop.f32.mrb[0].mxu0
      %v755 = vpop.f32.mrb[0].mxu0
      %v756 = vadd.f32 0.0, %v755
      %v757 = vpop.f32.mrb[0].mxu0
      %758 = vdwg.mxu0
      %v759 = vadd.f32 %v702, %v753
      %v760 = vadd.f32 %v703, %v756
      %v761 = vadd.f32 %v759, %v526
      %v762 = vadd.f32 %v760, %v526
      %v763 = vmax.f32 %v761, 0.0
      %v764 = vmax.f32 %v762, 0.0
      %v765 = vpack.c.bf16 %v764, %v763
      %v767 = vunpack.c.l.b16 %v765
      %v768 = vunpack.c.h.b16 %v765
      %v769 = vpack.c.b16 %v767, %v767
      %v770 = vpack.c.b16 %v768, %v768
      %s773 = scalar_lea.vmem %s170, 8
      %774 = vst.msk [vmem:[%s773] sm:$0xf] %vm540, %v769
      %775 = vst.msk [vmem:[%s773 + $0x4] sm:$0x7] %vm542, %v770
      %v776 = vld [vmem:[%s650] sm:$0xf]
      %v777 = vld [vmem:[%s650 + $0x4] sm:$0x7]
      %v778 = vld [vmem:[%s650 + $0x4] sm:$0xf]
      %v781 = vunpack.c.l.b16 %v776
      %v782 = vunpack.c.l.b16 %v778
      %v783 = vpack.c.b16 %v782, %v781
      %v785 = vshrl.u32 %v783, 16
      %v787 = vshll.u32 %v783, 16
      %v789 = vrot.slane %v787, 1
      %v790 = vor.u32 %v785, %v789
      %v792 = vsel %vm247, %v790, 0
      %794 = vmatprep.subr.bf16.mxu0 0
      %795 = vmatpush1.bf16.msra.mxu0 %v239
      %796 = vmatprep.subr.bf16.mxu0 0
      %797 = vmatpush1.bf16.msra.mxu0 %v240
      %798 = vmatprep.subr.bf16.mxu0 0
      %799 = vmatpush1.bf16.msra.mxu0 %v241
      %800 = vmatprep.subr.bf16.mxu0 0
      %801 = vmatpush1.bf16.msra.mxu0 %v242
      %802 = vmatprep.subr.bf16.mxu0 0
      %803 = vmatpush1.bf16.msra.mxu0 0
      %804 = vmatprep.subr.bf16.mxu0 0
      %805 = vmatpush1.bf16.msra.mxu0 0
      %806 = vmatprep.subr.bf16.mxu0 0
      %807 = vmatpush1.bf16.msra.mxu0 0
      %808 = vmatprep.subr.bf16.mxu0 0
      %809 = vmatpush1.bf16.msra.mxu0 0
      %810 = vmatprep.subr.bf16.mxu0 0
      %811 = vmatpush1.bf16.msra.mxu0 0
      %812 = vmatprep.subr.bf16.mxu0 0
      %813 = vmatpush1.bf16.msra.mxu0 0
      %814 = vmatprep.subr.bf16.mxu0 0
      %815 = vmatpush1.bf16.msra.mxu0 0
      %816 = vmatprep.subr.bf16.mxu0 0
      %817 = vmatpush1.bf16.msra.mxu0 0
      %818 = vmatprep.subr.bf16.mxu0 0
      %819 = vmatpush1.bf16.msra.mxu0 0
      %820 = vmatprep.subr.bf16.mxu0 0
      %821 = vmatpush1.bf16.msra.mxu0 0
      %822 = vmatprep.subr.bf16.mxu0 0
      %823 = vmatpush1.bf16.msra.mxu0 0
      %824 = vmatprep.subr.bf16.mxu0 0
      %825 = vmatpush1.bf16.msra.mxu0 0
      %826 = vmatprep.mubr.bf16.mxu0 0
      %827 = vmatmul.mubr.bf16.gmra.mrb[0].mxu0 %v792
      %v828 = vpop.f32.mrb[0].mxu0
      %v829 = vadd.f32 0.0, %v828
      %v830 = vpop.f32.mrb[0].mxu0
      %v831 = vpop.f32.mrb[0].mxu0
      %v832 = vadd.f32 0.0, %v831
      %v833 = vpop.f32.mrb[0].mxu0
      %834 = vdwg.mxu0
      %v836 = vunpack.c.l.b16 %v777
      %v837 = vpack.c.b16 %v836, %v781
      %v839 = vsel %vm247, %v837, 0
      %841 = vmatprep.subr.bf16.mxu0 0
      %842 = vmatpush1.bf16.msra.mxu0 %v311
      %843 = vmatprep.subr.bf16.mxu0 0
      %844 = vmatpush1.bf16.msra.mxu0 %v312
      %845 = vmatprep.subr.bf16.mxu0 0
      %846 = vmatpush1.bf16.msra.mxu0 %v313
      %847 = vmatprep.subr.bf16.mxu0 0
      %848 = vmatpush1.bf16.msra.mxu0 %v314
      %849 = vmatprep.subr.bf16.mxu0 0
      %850 = vmatpush1.bf16.msra.mxu0 0
      %851 = vmatprep.subr.bf16.mxu0 0
      %852 = vmatpush1.bf16.msra.mxu0 0
      %853 = vmatprep.subr.bf16.mxu0 0
      %854 = vmatpush1.bf16.msra.mxu0 0
      %855 = vmatprep.subr.bf16.mxu0 0
      %856 = vmatpush1.bf16.msra.mxu0 0
      %857 = vmatprep.subr.bf16.mxu0 0
      %858 = vmatpush1.bf16.msra.mxu0 0
      %859 = vmatprep.subr.bf16.mxu0 0
      %860 = vmatpush1.bf16.msra.mxu0 0
      %861 = vmatprep.subr.bf16.mxu0 0
      %862 = vmatpush1.bf16.msra.mxu0 0
      %863 = vmatprep.subr.bf16.mxu0 0
      %864 = vmatpush1.bf16.msra.mxu0 0
      %865 = vmatprep.subr.bf16.mxu0 0
      %866 = vmatpush1.bf16.msra.mxu0 0
      %867 = vmatprep.subr.bf16.mxu0 0
      %868 = vmatpush1.bf16.msra.mxu0 0
      %869 = vmatprep.subr.bf16.mxu0 0
      %870 = vmatpush1.bf16.msra.mxu0 0
      %871 = vmatprep.subr.bf16.mxu0 0
      %872 = vmatpush1.bf16.msra.mxu0 0
      %873 = vmatprep.mubr.bf16.mxu0 0
      %874 = vmatmul.mubr.bf16.gmra.mrb[0].mxu0 %v839
      %v875 = vpop.f32.mrb[0].mxu0
      %v876 = vadd.f32 %v829, %v875
      %v877 = vpop.f32.mrb[0].mxu0
      %v878 = vpop.f32.mrb[0].mxu0
      %v879 = vadd.f32 %v832, %v878
      %v880 = vpop.f32.mrb[0].mxu0
      %881 = vdwg.mxu0
      %s882 = scalar_lea.vmem %s165, 24
      %v883 = vld [vmem:[%s882] sm:$0xf]
      %v884 = vld [vmem:[%s882 + $0x4] sm:$0x7]
      %v887 = vunpack.c.l.b16 %v883
      %v888 = vunpack.c.l.b16 %v884
      %v889 = vpack.c.b16 %v888, %v887
      %v891 = vsel %vm247, %v889, 0
      %893 = vmatprep.subr.bf16.mxu0 0
      %894 = vmatpush1.bf16.msra.mxu0 %v387
      %895 = vmatprep.subr.bf16.mxu0 0
      %896 = vmatpush1.bf16.msra.mxu0 %v388
      %897 = vmatprep.subr.bf16.mxu0 0
      %898 = vmatpush1.bf16.msra.mxu0 %v389
      %899 = vmatprep.subr.bf16.mxu0 0
      %900 = vmatpush1.bf16.msra.mxu0 %v390
      %901 = vmatprep.subr.bf16.mxu0 0
      %902 = vmatpush1.bf16.msra.mxu0 0
      %903 = vmatprep.subr.bf16.mxu0 0
      %904 = vmatpush1.bf16.msra.mxu0 0
      %905 = vmatprep.subr.bf16.mxu0 0
      %906 = vmatpush1.bf16.msra.mxu0 0
      %907 = vmatprep.subr.bf16.mxu0 0
      %908 = vmatpush1.bf16.msra.mxu0 0
      %909 = vmatprep.subr.bf16.mxu0 0
      %910 = vmatpush1.bf16.msra.mxu0 0
      %911 = vmatprep.subr.bf16.mxu0 0
      %912 = vmatpush1.bf16.msra.mxu0 0
      %913 = vmatprep.subr.bf16.mxu0 0
      %914 = vmatpush1.bf16.msra.mxu0 0
      %915 = vmatprep.subr.bf16.mxu0 0
      %916 = vmatpush1.bf16.msra.mxu0 0
      %917 = vmatprep.subr.bf16.mxu0 0
      %918 = vmatpush1.bf16.msra.mxu0 0
      %919 = vmatprep.subr.bf16.mxu0 0
      %920 = vmatpush1.bf16.msra.mxu0 0
      %921 = vmatprep.subr.bf16.mxu0 0
      %922 = vmatpush1.bf16.msra.mxu0 0
      %923 = vmatprep.subr.bf16.mxu0 0
      %924 = vmatpush1.bf16.msra.mxu0 0
      %925 = vmatprep.mubr.bf16.mxu0 0
      %926 = vmatmul.mubr.bf16.gmra.mrb[0].mxu0 %v891
      %v927 = vpop.f32.mrb[0].mxu0
      %v928 = vadd.f32 0.0, %v927
      %v929 = vpop.f32.mrb[0].mxu0
      %v930 = vpop.f32.mrb[0].mxu0
      %v931 = vadd.f32 0.0, %v930
      %v932 = vpop.f32.mrb[0].mxu0
      %933 = vdwg.mxu0
      %v934 = vadd.f32 %v876, %v928
      %v935 = vadd.f32 %v879, %v931
      %v936 = vld [vmem:[%s882 + $0x4] sm:$0xf]
      %v938 = vunpack.c.l.b16 %v936
      %v939 = vpack.c.b16 %v938, %v887
      %v941 = vshrl.u32 %v939, 16
      %v943 = vshll.u32 %v939, 16
      %v945 = vrot.slane %v943, 1
      %v946 = vor.u32 %v941, %v945
      %v948 = vsel %vm247, %v946, 0
      %950 = vmatprep.subr.bf16.mxu0 0
      %951 = vmatpush1.bf16.msra.mxu0 %v468
      %952 = vmatprep.subr.bf16.mxu0 0
      %953 = vmatpush1.bf16.msra.mxu0 %v469
      %954 = vmatprep.subr.bf16.mxu0 0
      %955 = vmatpush1.bf16.msra.mxu0 %v470
      %956 = vmatprep.subr.bf16.mxu0 0
      %957 = vmatpush1.bf16.msra.mxu0 %v471
      %958 = vmatprep.subr.bf16.mxu0 0
      %959 = vmatpush1.bf16.msra.mxu0 0
      %960 = vmatprep.subr.bf16.mxu0 0
      %961 = vmatpush1.bf16.msra.mxu0 0
      %962 = vmatprep.subr.bf16.mxu0 0
      %963 = vmatpush1.bf16.msra.mxu0 0
      %964 = vmatprep.subr.bf16.mxu0 0
      %965 = vmatpush1.bf16.msra.mxu0 0
      %966 = vmatprep.subr.bf16.mxu0 0
      %967 = vmatpush1.bf16.msra.mxu0 0
      %968 = vmatprep.subr.bf16.mxu0 0
      %969 = vmatpush1.bf16.msra.mxu0 0
      %970 = vmatprep.subr.bf16.mxu0 0
      %971 = vmatpush1.bf16.msra.mxu0 0
      %972 = vmatprep.subr.bf16.mxu0 0
      %973 = vmatpush1.bf16.msra.mxu0 0
      %974 = vmatprep.subr.bf16.mxu0 0
      %975 = vmatpush1.bf16.msra.mxu0 0
      %976 = vmatprep.subr.bf16.mxu0 0
      %977 = vmatpush1.bf16.msra.mxu0 0
      %978 = vmatprep.subr.bf16.mxu0 0
      %979 = vmatpush1.bf16.msra.mxu0 0
      %980 = vmatprep.subr.bf16.mxu0 0
      %981 = vmatpush1.bf16.msra.mxu0 0
      %982 = vmatprep.mubr.bf16.mxu0 0
      %983 = vmatmul.mubr.bf16.gmra.mrb[0].mxu0 %v948
      %v984 = vpop.f32.mrb[0].mxu0
      %v985 = vadd.f32 0.0, %v984
      %v986 = vpop.f32.mrb[0].mxu0
      %v987 = vpop.f32.mrb[0].mxu0
      %v988 = vadd.f32 0.0, %v987
      %v989 = vpop.f32.mrb[0].mxu0
      %990 = vdwg.mxu0
      %v991 = vadd.f32 %v934, %v985
      %v992 = vadd.f32 %v935, %v988
      %v993 = vadd.f32 %v991, %v526
      %v994 = vadd.f32 %v992, %v526
      %v995 = vmax.f32 %v993, 0.0
      %v996 = vmax.f32 %v994, 0.0
      %v997 = vpack.c.bf16 %v996, %v995
      %v999 = vunpack.c.l.b16 %v997
      %v1000 = vunpack.c.h.b16 %v997
      %v1001 = vpack.c.b16 %v999, %v999
      %v1002 = vpack.c.b16 %v1000, %v1000
      %s1005 = scalar_lea.vmem %s170, 16
      %1006 = vst.msk [vmem:[%s1005] sm:$0xf] %vm540, %v1001
      %1007 = vst.msk [vmem:[%s1005 + $0x4] sm:$0x7] %vm542, %v1002
      %v1008 = vld [vmem:[%s882] sm:$0xf]
      %v1009 = vld [vmem:[%s882 + $0x4] sm:$0x7]
      %v1010 = vld [vmem:[%s882 + $0x4] sm:$0xf]
      %v1013 = vunpack.c.l.b16 %v1008
      %v1014 = vunpack.c.l.b16 %v1010
      %v1015 = vpack.c.b16 %v1014, %v1013
      %v1017 = vshrl.u32 %v1015, 16
      %v1019 = vshll.u32 %v1015, 16
      %v1021 = vrot.slane %v1019, 1
      %v1022 = vor.u32 %v1017, %v1021
      %v1024 = vsel %vm247, %v1022, 0
      %1026 = vmatprep.subr.bf16.mxu0 0
      %1027 = vmatpush1.bf16.msra.mxu0 %v239
      %1028 = vmatprep.subr.bf16.mxu0 0
      %1029 = vmatpush1.bf16.msra.mxu0 %v240
      %1030 = vmatprep.subr.bf16.mxu0 0
      %1031 = vmatpush1.bf16.msra.mxu0 %v241
      %1032 = vmatprep.subr.bf16.mxu0 0
      %1033 = vmatpush1.bf16.msra.mxu0 %v242
      %1034 = vmatprep.subr.bf16.mxu0 0
      %1035 = vmatpush1.bf16.msra.mxu0 0
      %1036 = vmatprep.subr.bf16.mxu0 0
      %1037 = vmatpush1.bf16.msra.mxu0 0
      %1038 = vmatprep.subr.bf16.mxu0 0
      %1039 = vmatpush1.bf16.msra.mxu0 0
      %1040 = vmatprep.subr.bf16.mxu0 0
      %1041 = vmatpush1.bf16.msra.mxu0 0
      %1042 = vmatprep.subr.bf16.mxu0 0
      %1043 = vmatpush1.bf16.msra.mxu0 0
      %1044 = vmatprep.subr.bf16.mxu0 0
      %1045 = vmatpush1.bf16.msra.mxu0 0
      %1046 = vmatprep.subr.bf16.mxu0 0
      %1047 = vmatpush1.bf16.msra.mxu0 0
      %1048 = vmatprep.subr.bf16.mxu0 0
      %1049 = vmatpush1.bf16.msra.mxu0 0
      %1050 = vmatprep.subr.bf16.mxu0 0
      %1051 = vmatpush1.bf16.msra.mxu0 0
      %1052 = vmatprep.subr.bf16.mxu0 0
      %1053 = vmatpush1.bf16.msra.mxu0 0
      %1054 = vmatprep.subr.bf16.mxu0 0
      %1055 = vmatpush1.bf16.msra.mxu0 0
      %1056 = vmatprep.subr.bf16.mxu0 0
      %1057 = vmatpush1.bf16.msra.mxu0 0
      %1058 = vmatprep.mubr.bf16.mxu0 0
      %1059 = vmatmul.mubr.bf16.gmra.mrb[0].mxu0 %v1024
      %v1060 = vpop.f32.mrb[0].mxu0
      %v1061 = vadd.f32 0.0, %v1060
      %v1062 = vpop.f32.mrb[0].mxu0
      %v1063 = vpop.f32.mrb[0].mxu0
      %v1064 = vadd.f32 0.0, %v1063
      %v1065 = vpop.f32.mrb[0].mxu0
      %1066 = vdwg.mxu0
      %v1068 = vunpack.c.l.b16 %v1009
      %v1069 = vpack.c.b16 %v1068, %v1013
      %v1071 = vsel %vm247, %v1069, 0
      %1073 = vmatprep.subr.bf16.mxu0 0
      %1074 = vmatpush1.bf16.msra.mxu0 %v311
      %1075 = vmatprep.subr.bf16.mxu0 0
      %1076 = vmatpush1.bf16.msra.mxu0 %v312
      %1077 = vmatprep.subr.bf16.mxu0 0
      %1078 = vmatpush1.bf16.msra.mxu0 %v313
      %1079 = vmatprep.subr.bf16.mxu0 0
      %1080 = vmatpush1.bf16.msra.mxu0 %v314
      %1081 = vmatprep.subr.bf16.mxu0 0
      %1082 = vmatpush1.bf16.msra.mxu0 0
      %1083 = vmatprep.subr.bf16.mxu0 0
      %1084 = vmatpush1.bf16.msra.mxu0 0
      %1085 = vmatprep.subr.bf16.mxu0 0
      %1086 = vmatpush1.bf16.msra.mxu0 0
      %1087 = vmatprep.subr.bf16.mxu0 0
      %1088 = vmatpush1.bf16.msra.mxu0 0
      %1089 = vmatprep.subr.bf16.mxu0 0
      %1090 = vmatpush1.bf16.msra.mxu0 0
      %1091 = vmatprep.subr.bf16.mxu0 0
      %1092 = vmatpush1.bf16.msra.mxu0 0
      %1093 = vmatprep.subr.bf16.mxu0 0
      %1094 = vmatpush1.bf16.msra.mxu0 0
      %1095 = vmatprep.subr.bf16.mxu0 0
      %1096 = vmatpush1.bf16.msra.mxu0 0
      %1097 = vmatprep.subr.bf16.mxu0 0
      %1098 = vmatpush1.bf16.msra.mxu0 0
      %1099 = vmatprep.subr.bf16.mxu0 0
      %1100 = vmatpush1.bf16.msra.mxu0 0
      %1101 = vmatprep.subr.bf16.mxu0 0
      %1102 = vmatpush1.bf16.msra.mxu0 0
      %1103 = vmatprep.subr.bf16.mxu0 0
      %1104 = vmatpush1.bf16.msra.mxu0 0
      %1105 = vmatprep.mubr.bf16.mxu0 0
      %1106 = vmatmul.mubr.bf16.gmra.mrb[0].mxu0 %v1071
      %v1107 = vpop.f32.mrb[0].mxu0
      %v1108 = vadd.f32 %v1061, %v1107
      %v1109 = vpop.f32.mrb[0].mxu0
      %v1110 = vpop.f32.mrb[0].mxu0
      %v1111 = vadd.f32 %v1064, %v1110
      %v1112 = vpop.f32.mrb[0].mxu0
      %1113 = vdwg.mxu0
      %s1114 = scalar_lea.vmem %s165, 32
      %v1115 = vld [vmem:[%s1114] sm:$0xf]
      %v1116 = vld [vmem:[%s1114 + $0x4] sm:$0x7]
      %v1119 = vunpack.c.l.b16 %v1115
      %v1120 = vunpack.c.l.b16 %v1116
      %v1121 = vpack.c.b16 %v1120, %v1119
      %v1123 = vsel %vm247, %v1121, 0
      %1125 = vmatprep.subr.bf16.mxu0 0
      %1126 = vmatpush1.bf16.msra.mxu0 %v387
      %1127 = vmatprep.subr.bf16.mxu0 0
      %1128 = vmatpush1.bf16.msra.mxu0 %v388
      %1129 = vmatprep.subr.bf16.mxu0 0
      %1130 = vmatpush1.bf16.msra.mxu0 %v389
      %1131 = vmatprep.subr.bf16.mxu0 0
      %1132 = vmatpush1.bf16.msra.mxu0 %v390
      %1133 = vmatprep.subr.bf16.mxu0 0
      %1134 = vmatpush1.bf16.msra.mxu0 0
      %1135 = vmatprep.subr.bf16.mxu0 0
      %1136 = vmatpush1.bf16.msra.mxu0 0
      %1137 = vmatprep.subr.bf16.mxu0 0
      %1138 = vmatpush1.bf16.msra.mxu0 0
      %1139 = vmatprep.subr.bf16.mxu0 0
      %1140 = vmatpush1.bf16.msra.mxu0 0
      %1141 = vmatprep.subr.bf16.mxu0 0
      %1142 = vmatpush1.bf16.msra.mxu0 0
      %1143 = vmatprep.subr.bf16.mxu0 0
      %1144 = vmatpush1.bf16.msra.mxu0 0
      %1145 = vmatprep.subr.bf16.mxu0 0
      %1146 = vmatpush1.bf16.msra.mxu0 0
      %1147 = vmatprep.subr.bf16.mxu0 0
      %1148 = vmatpush1.bf16.msra.mxu0 0
      %1149 = vmatprep.subr.bf16.mxu0 0
      %1150 = vmatpush1.bf16.msra.mxu0 0
      %1151 = vmatprep.subr.bf16.mxu0 0
      %1152 = vmatpush1.bf16.msra.mxu0 0
      %1153 = vmatprep.subr.bf16.mxu0 0
      %1154 = vmatpush1.bf16.msra.mxu0 0
      %1155 = vmatprep.subr.bf16.mxu0 0
      %1156 = vmatpush1.bf16.msra.mxu0 0
      %1157 = vmatprep.mubr.bf16.mxu0 0
      %1158 = vmatmul.mubr.bf16.gmra.mrb[0].mxu0 %v1123
      %v1159 = vpop.f32.mrb[0].mxu0
      %v1160 = vadd.f32 0.0, %v1159
      %v1161 = vpop.f32.mrb[0].mxu0
      %v1162 = vpop.f32.mrb[0].mxu0
      %v1163 = vadd.f32 0.0, %v1162
      %v1164 = vpop.f32.mrb[0].mxu0
      %1165 = vdwg.mxu0
      %v1166 = vadd.f32 %v1108, %v1160
      %v1167 = vadd.f32 %v1111, %v1163
      %v1168 = vld [vmem:[%s1114 + $0x4] sm:$0xf]
      %v1170 = vunpack.c.l.b16 %v1168
      %v1171 = vpack.c.b16 %v1170, %v1119
      %v1173 = vshrl.u32 %v1171, 16
      %v1175 = vshll.u32 %v1171, 16
      %v1177 = vrot.slane %v1175, 1
      %v1178 = vor.u32 %v1173, %v1177
      %v1180 = vsel %vm247, %v1178, 0
      %1182 = vmatprep.subr.bf16.mxu0 0
      %1183 = vmatpush1.bf16.msra.mxu0 %v468
      %1184 = vmatprep.subr.bf16.mxu0 0
      %1185 = vmatpush1.bf16.msra.mxu0 %v469
      %1186 = vmatprep.subr.bf16.mxu0 0
      %1187 = vmatpush1.bf16.msra.mxu0 %v470
      %1188 = vmatprep.subr.bf16.mxu0 0
      %1189 = vmatpush1.bf16.msra.mxu0 %v471
      %1190 = vmatprep.subr.bf16.mxu0 0
      %1191 = vmatpush1.bf16.msra.mxu0 0
      %1192 = vmatprep.subr.bf16.mxu0 0
      %1193 = vmatpush1.bf16.msra.mxu0 0
      %1194 = vmatprep.subr.bf16.mxu0 0
      %1195 = vmatpush1.bf16.msra.mxu0 0
      %1196 = vmatprep.subr.bf16.mxu0 0
      %1197 = vmatpush1.bf16.msra.mxu0 0
      %1198 = vmatprep.subr.bf16.mxu0 0
      %1199 = vmatpush1.bf16.msra.mxu0 0
      %1200 = vmatprep.subr.bf16.mxu0 0
      %1201 = vmatpush1.bf16.msra.mxu0 0
      %1202 = vmatprep.subr.bf16.mxu0 0
      %1203 = vmatpush1.bf16.msra.mxu0 0
      %1204 = vmatprep.subr.bf16.mxu0 0
      %1205 = vmatpush1.bf16.msra.mxu0 0
      %1206 = vmatprep.subr.bf16.mxu0 0
      %1207 = vmatpush1.bf16.msra.mxu0 0
      %1208 = vmatprep.subr.bf16.mxu0 0
      %1209 = vmatpush1.bf16.msra.mxu0 0
      %1210 = vmatprep.subr.bf16.mxu0 0
      %1211 = vmatpush1.bf16.msra.mxu0 0
      %1212 = vmatprep.subr.bf16.mxu0 0
      %1213 = vmatpush1.bf16.msra.mxu0 0
      %1214 = vmatprep.mubr.bf16.mxu0 0
      %1215 = vmatmul.mubr.bf16.gmra.mrb[0].mxu0 %v1180
      %v1216 = vpop.f32.mrb[0].mxu0
      %v1217 = vadd.f32 0.0, %v1216
      %v1218 = vpop.f32.mrb[0].mxu0
      %v1219 = vpop.f32.mrb[0].mxu0
      %v1220 = vadd.f32 0.0, %v1219
      %v1221 = vpop.f32.mrb[0].mxu0
      %1222 = vdwg.mxu0
      %v1223 = vadd.f32 %v1166, %v1217
      %v1224 = vadd.f32 %v1167, %v1220
      %v1225 = vadd.f32 %v1223, %v526
      %v1226 = vadd.f32 %v1224, %v526
      %v1227 = vmax.f32 %v1225, 0.0
      %v1228 = vmax.f32 %v1226, 0.0
      %v1229 = vpack.c.bf16 %v1228, %v1227
      %v1231 = vunpack.c.l.b16 %v1229
      %v1232 = vunpack.c.h.b16 %v1229
      %v1233 = vpack.c.b16 %v1231, %v1231
      %v1234 = vpack.c.b16 %v1232, %v1232
      %s1237 = scalar_lea.vmem %s170, 24
      %1238 = vst.msk [vmem:[%s1237] sm:$0xf] %vm540, %v1233
      %1239 = vst.msk [vmem:[%s1237 + $0x4] sm:$0x7] %vm542, %v1234
      %v1240 = vld [vmem:[%s1114] sm:$0xf]
      %v1241 = vld [vmem:[%s1114 + $0x4] sm:$0x7]
      %v1242 = vld [vmem:[%s1114 + $0x4] sm:$0xf]
      %v1245 = vunpack.c.l.b16 %v1240
      %v1246 = vunpack.c.l.b16 %v1242
      %v1247 = vpack.c.b16 %v1246, %v1245
      %v1249 = vshrl.u32 %v1247, 16
      %v1251 = vshll.u32 %v1247, 16
      %v1253 = vrot.slane %v1251, 1
      %v1254 = vor.u32 %v1249, %v1253
      %v1256 = vsel %vm247, %v1254, 0
      %1258 = vmatprep.subr.bf16.mxu0 0
      %1259 = vmatpush1.bf16.msra.mxu0 %v239
      %1260 = vmatprep.subr.bf16.mxu0 0
      %1261 = vmatpush1.bf16.msra.mxu0 %v240
      %1262 = vmatprep.subr.bf16.mxu0 0
      %1263 = vmatpush1.bf16.msra.mxu0 %v241
      %1264 = vmatprep.subr.bf16.mxu0 0
      %1265 = vmatpush1.bf16.msra.mxu0 %v242
      %1266 = vmatprep.subr.bf16.mxu0 0
      %1267 = vmatpush1.bf16.msra.mxu0 0
      %1268 = vmatprep.subr.bf16.mxu0 0
      %1269 = vmatpush1.bf16.msra.mxu0 0
      %1270 = vmatprep.subr.bf16.mxu0 0
      %1271 = vmatpush1.bf16.msra.mxu0 0
      %1272 = vmatprep.subr.bf16.mxu0 0
      %1273 = vmatpush1.bf16.msra.mxu0 0
      %1274 = vmatprep.subr.bf16.mxu0 0
      %1275 = vmatpush1.bf16.msra.mxu0 0
      %1276 = vmatprep.subr.bf16.mxu0 0
      %1277 = vmatpush1.bf16.msra.mxu0 0
      %1278 = vmatprep.subr.bf16.mxu0 0
      %1279 = vmatpush1.bf16.msra.mxu0 0
      %1280 = vmatprep.subr.bf16.mxu0 0
      %1281 = vmatpush1.bf16.msra.mxu0 0
      %1282 = vmatprep.subr.bf16.mxu0 0
      %1283 = vmatpush1.bf16.msra.mxu0 0
      %1284 = vmatprep.subr.bf16.mxu0 0
      %1285 = vmatpush1.bf16.msra.mxu0 0
      %1286 = vmatprep.subr.bf16.mxu0 0
      %1287 = vmatpush1.bf16.msra.mxu0 0
      %1288 = vmatprep.subr.bf16.mxu0 0
      %1289 = vmatpush1.bf16.msra.mxu0 0
      %1290 = vmatprep.mubr.bf16.mxu0 0
      %1291 = vmatmul.mubr.bf16.gmra.mrb[0].mxu0 %v1256
      %v1292 = vpop.f32.mrb[0].mxu0
      %v1293 = vadd.f32 0.0, %v1292
      %v1294 = vpop.f32.mrb[0].mxu0
      %v1295 = vpop.f32.mrb[0].mxu0
      %v1296 = vadd.f32 0.0, %v1295
      %v1297 = vpop.f32.mrb[0].mxu0
      %1298 = vdwg.mxu0
      %v1300 = vunpack.c.l.b16 %v1241
      %v1301 = vpack.c.b16 %v1300, %v1245
      %v1303 = vsel %vm247, %v1301, 0
      %1305 = vmatprep.subr.bf16.mxu0 0
      %1306 = vmatpush1.bf16.msra.mxu0 %v311
      %1307 = vmatprep.subr.bf16.mxu0 0
      %1308 = vmatpush1.bf16.msra.mxu0 %v312
      %1309 = vmatprep.subr.bf16.mxu0 0
      %1310 = vmatpush1.bf16.msra.mxu0 %v313
      %1311 = vmatprep.subr.bf16.mxu0 0
      %1312 = vmatpush1.bf16.msra.mxu0 %v314
      %1313 = vmatprep.subr.bf16.mxu0 0
      %1314 = vmatpush1.bf16.msra.mxu0 0
      %1315 = vmatprep.subr.bf16.mxu0 0
      %1316 = vmatpush1.bf16.msra.mxu0 0
      %1317 = vmatprep.subr.bf16.mxu0 0
      %1318 = vmatpush1.bf16.msra.mxu0 0
      %1319 = vmatprep.subr.bf16.mxu0 0
      %1320 = vmatpush1.bf16.msra.mxu0 0
      %1321 = vmatprep.subr.bf16.mxu0 0
      %1322 = vmatpush1.bf16.msra.mxu0 0
      %1323 = vmatprep.subr.bf16.mxu0 0
      %1324 = vmatpush1.bf16.msra.mxu0 0
      %1325 = vmatprep.subr.bf16.mxu0 0
      %1326 = vmatpush1.bf16.msra.mxu0 0
      %1327 = vmatprep.subr.bf16.mxu0 0
      %1328 = vmatpush1.bf16.msra.mxu0 0
      %1329 = vmatprep.subr.bf16.mxu0 0
      %1330 = vmatpush1.bf16.msra.mxu0 0
      %1331 = vmatprep.subr.bf16.mxu0 0
      %1332 = vmatpush1.bf16.msra.mxu0 0
      %1333 = vmatprep.subr.bf16.mxu0 0
      %1334 = vmatpush1.bf16.msra.mxu0 0
      %1335 = vmatprep.subr.bf16.mxu0 0
      %1336 = vmatpush1.bf16.msra.mxu0 0
      %1337 = vmatprep.mubr.bf16.mxu0 0
      %1338 = vmatmul.mubr.bf16.gmra.mrb[0].mxu0 %v1303
      %v1339 = vpop.f32.mrb[0].mxu0
      %v1340 = vadd.f32 %v1293, %v1339
      %v1341 = vpop.f32.mrb[0].mxu0
      %v1342 = vpop.f32.mrb[0].mxu0
      %v1343 = vadd.f32 %v1296, %v1342
      %v1344 = vpop.f32.mrb[0].mxu0
      %1345 = vdwg.mxu0
      %s1346 = scalar_lea.vmem %s165, 40
      %v1347 = vld [vmem:[%s1346] sm:$0xf]
      %v1348 = vld [vmem:[%s1346 + $0x4] sm:$0x7]
      %v1351 = vunpack.c.l.b16 %v1347
      %v1352 = vunpack.c.l.b16 %v1348
      %v1353 = vpack.c.b16 %v1352, %v1351
      %v1355 = vsel %vm247, %v1353, 0
      %1357 = vmatprep.subr.bf16.mxu0 0
      %1358 = vmatpush1.bf16.msra.mxu0 %v387
      %1359 = vmatprep.subr.bf16.mxu0 0
      %1360 = vmatpush1.bf16.msra.mxu0 %v388
      %1361 = vmatprep.subr.bf16.mxu0 0
      %1362 = vmatpush1.bf16.msra.mxu0 %v389
      %1363 = vmatprep.subr.bf16.mxu0 0
      %1364 = vmatpush1.bf16.msra.mxu0 %v390
      %1365 = vmatprep.subr.bf16.mxu0 0
      %1366 = vmatpush1.bf16.msra.mxu0 0
      %1367 = vmatprep.subr.bf16.mxu0 0
      %1368 = vmatpush1.bf16.msra.mxu0 0
      %1369 = vmatprep.subr.bf16.mxu0 0
      %1370 = vmatpush1.bf16.msra.mxu0 0
      %1371 = vmatprep.subr.bf16.mxu0 0
      %1372 = vmatpush1.bf16.msra.mxu0 0
      %1373 = vmatprep.subr.bf16.mxu0 0
      %1374 = vmatpush1.bf16.msra.mxu0 0
      %1375 = vmatprep.subr.bf16.mxu0 0
      %1376 = vmatpush1.bf16.msra.mxu0 0
      %1377 = vmatprep.subr.bf16.mxu0 0
      %1378 = vmatpush1.bf16.msra.mxu0 0
      %1379 = vmatprep.subr.bf16.mxu0 0
      %1380 = vmatpush1.bf16.msra.mxu0 0
      %1381 = vmatprep.subr.bf16.mxu0 0
      %1382 = vmatpush1.bf16.msra.mxu0 0
      %1383 = vmatprep.subr.bf16.mxu0 0
      %1384 = vmatpush1.bf16.msra.mxu0 0
      %1385 = vmatprep.subr.bf16.mxu0 0
      %1386 = vmatpush1.bf16.msra.mxu0 0
      %1387 = vmatprep.subr.bf16.mxu0 0
      %1388 = vmatpush1.bf16.msra.mxu0 0
      %1389 = vmatprep.mubr.bf16.mxu0 0
      %1390 = vmatmul.mubr.bf16.gmra.mrb[0].mxu0 %v1355
      %v1391 = vpop.f32.mrb[0].mxu0
      %v1392 = vadd.f32 0.0, %v1391
      %v1393 = vpop.f32.mrb[0].mxu0
      %v1394 = vpop.f32.mrb[0].mxu0
      %v1395 = vadd.f32 0.0, %v1394
      %v1396 = vpop.f32.mrb[0].mxu0
      %1397 = vdwg.mxu0
      %v1398 = vadd.f32 %v1340, %v1392
      %v1399 = vadd.f32 %v1343, %v1395
      %v1400 = vld [vmem:[%s1346 + $0x4] sm:$0xf]
      %v1402 = vunpack.c.l.b16 %v1400
      %v1403 = vpack.c.b16 %v1402, %v1351
      %v1405 = vshrl.u32 %v1403, 16
      %v1407 = vshll.u32 %v1403, 16
      %v1409 = vrot.slane %v1407, 1
      %v1410 = vor.u32 %v1405, %v1409
      %v1412 = vsel %vm247, %v1410, 0
      %1414 = vmatprep.subr.bf16.mxu0 0
      %1415 = vmatpush1.bf16.msra.mxu0 %v468
      %1416 = vmatprep.subr.bf16.mxu0 0
      %1417 = vmatpush1.bf16.msra.mxu0 %v469
      %1418 = vmatprep.subr.bf16.mxu0 0
      %1419 = vmatpush1.bf16.msra.mxu0 %v470
      %1420 = vmatprep.subr.bf16.mxu0 0
      %1421 = vmatpush1.bf16.msra.mxu0 %v471
      %1422 = vmatprep.subr.bf16.mxu0 0
      %1423 = vmatpush1.bf16.msra.mxu0 0
      %1424 = vmatprep.subr.bf16.mxu0 0
      %1425 = vmatpush1.bf16.msra.mxu0 0
      %1426 = vmatprep.subr.bf16.mxu0 0
      %1427 = vmatpush1.bf16.msra.mxu0 0
      %1428 = vmatprep.subr.bf16.mxu0 0
      %1429 = vmatpush1.bf16.msra.mxu0 0
      %1430 = vmatprep.subr.bf16.mxu0 0
      %1431 = vmatpush1.bf16.msra.mxu0 0
      %1432 = vmatprep.subr.bf16.mxu0 0
      %1433 = vmatpush1.bf16.msra.mxu0 0
      %1434 = vmatprep.subr.bf16.mxu0 0
      %1435 = vmatpush1.bf16.msra.mxu0 0
      %1436 = vmatprep.subr.bf16.mxu0 0
      %1437 = vmatpush1.bf16.msra.mxu0 0
      %1438 = vmatprep.subr.bf16.mxu0 0
      %1439 = vmatpush1.bf16.msra.mxu0 0
      %1440 = vmatprep.subr.bf16.mxu0 0
      %1441 = vmatpush1.bf16.msra.mxu0 0
      %1442 = vmatprep.subr.bf16.mxu0 0
      %1443 = vmatpush1.bf16.msra.mxu0 0
      %1444 = vmatprep.subr.bf16.mxu0 0
      %1445 = vmatpush1.bf16.msra.mxu0 0
      %1446 = vmatprep.mubr.bf16.mxu0 0
      %1447 = vmatmul.mubr.bf16.gmra.mrb[0].mxu0 %v1412
      %v1448 = vpop.f32.mrb[0].mxu0
      %v1449 = vadd.f32 0.0, %v1448
      %v1450 = vpop.f32.mrb[0].mxu0
      %v1451 = vpop.f32.mrb[0].mxu0
      %v1452 = vadd.f32 0.0, %v1451
      %v1453 = vpop.f32.mrb[0].mxu0
      %1454 = vdwg.mxu0
      %v1455 = vadd.f32 %v1398, %v1449
      %v1456 = vadd.f32 %v1399, %v1452
      %v1457 = vadd.f32 %v1455, %v526
      %v1458 = vadd.f32 %v1456, %v526
      %v1459 = vmax.f32 %v1457, 0.0
      %v1460 = vmax.f32 %v1458, 0.0
      %v1461 = vpack.c.bf16 %v1460, %v1459
      %v1463 = vunpack.c.l.b16 %v1461
      %v1464 = vunpack.c.h.b16 %v1461
      %v1465 = vpack.c.b16 %v1463, %v1463
      %v1466 = vpack.c.b16 %v1464, %v1464
      %s1469 = scalar_lea.vmem %s170, 32
      %1470 = vst.msk [vmem:[%s1469] sm:$0xf] %vm540, %v1465
      %1471 = vst.msk [vmem:[%s1469 + $0x4] sm:$0x7] %vm542, %v1466
      %v1472 = vld [vmem:[%s1346] sm:$0xf]
      %v1473 = vld [vmem:[%s1346 + $0x4] sm:$0x7]
      %v1474 = vld [vmem:[%s1346 + $0x4] sm:$0xf]
      %v1477 = vunpack.c.l.b16 %v1472
      %v1478 = vunpack.c.l.b16 %v1474
      %v1479 = vpack.c.b16 %v1478, %v1477
      %v1481 = vshrl.u32 %v1479, 16
      %v1483 = vshll.u32 %v1479, 16
      %v1485 = vrot.slane %v1483, 1
      %v1486 = vor.u32 %v1481, %v1485
      %v1488 = vsel %vm247, %v1486, 0
      %1490 = vmatprep.subr.bf16.mxu0 0
      %1491 = vmatpush1.bf16.msra.mxu0 %v239
      %1492 = vmatprep.subr.bf16.mxu0 0
      %1493 = vmatpush1.bf16.msra.mxu0 %v240
      %1494 = vmatprep.subr.bf16.mxu0 0
      %1495 = vmatpush1.bf16.msra.mxu0 %v241
      %1496 = vmatprep.subr.bf16.mxu0 0
      %1497 = vmatpush1.bf16.msra.mxu0 %v242
      %1498 = vmatprep.subr.bf16.mxu0 0
      %1499 = vmatpush1.bf16.msra.mxu0 0
      %1500 = vmatprep.subr.bf16.mxu0 0
      %1501 = vmatpush1.bf16.msra.mxu0 0
      %1502 = vmatprep.subr.bf16.mxu0 0
      %1503 = vmatpush1.bf16.msra.mxu0 0
      %1504 = vmatprep.subr.bf16.mxu0 0
      %1505 = vmatpush1.bf16.msra.mxu0 0
      %1506 = vmatprep.subr.bf16.mxu0 0
      %1507 = vmatpush1.bf16.msra.mxu0 0
      %1508 = vmatprep.subr.bf16.mxu0 0
      %1509 = vmatpush1.bf16.msra.mxu0 0
      %1510 = vmatprep.subr.bf16.mxu0 0
      %1511 = vmatpush1.bf16.msra.mxu0 0
      %1512 = vmatprep.subr.bf16.mxu0 0
      %1513 = vmatpush1.bf16.msra.mxu0 0
      %1514 = vmatprep.subr.bf16.mxu0 0
      %1515 = vmatpush1.bf16.msra.mxu0 0
      %1516 = vmatprep.subr.bf16.mxu0 0
      %1517 = vmatpush1.bf16.msra.mxu0 0
      %1518 = vmatprep.subr.bf16.mxu0 0
      %1519 = vmatpush1.bf16.msra.mxu0 0
      %1520 = vmatprep.subr.bf16.mxu0 0
      %1521 = vmatpush1.bf16.msra.mxu0 0
      %1522 = vmatprep.mubr.bf16.mxu0 0
      %1523 = vmatmul.mubr.bf16.gmra.mrb[0].mxu0 %v1488
      %v1524 = vpop.f32.mrb[0].mxu0
      %v1525 = vadd.f32 0.0, %v1524
      %v1526 = vpop.f32.mrb[0].mxu0
      %v1527 = vpop.f32.mrb[0].mxu0
      %v1528 = vadd.f32 0.0, %v1527
      %v1529 = vpop.f32.mrb[0].mxu0
      %1530 = vdwg.mxu0
      %v1532 = vunpack.c.l.b16 %v1473
      %v1533 = vpack.c.b16 %v1532, %v1477
      %v1535 = vsel %vm247, %v1533, 0
      %1537 = vmatprep.subr.bf16.mxu0 0
      %1538 = vmatpush1.bf16.msra.mxu0 %v311
      %1539 = vmatprep.subr.bf16.mxu0 0
      %1540 = vmatpush1.bf16.msra.mxu0 %v312
      %1541 = vmatprep.subr.bf16.mxu0 0
      %1542 = vmatpush1.bf16.msra.mxu0 %v313
      %1543 = vmatprep.subr.bf16.mxu0 0
      %1544 = vmatpush1.bf16.msra.mxu0 %v314
      %1545 = vmatprep.subr.bf16.mxu0 0
      %1546 = vmatpush1.bf16.msra.mxu0 0
      %1547 = vmatprep.subr.bf16.mxu0 0
      %1548 = vmatpush1.bf16.msra.mxu0 0
      %1549 = vmatprep.subr.bf16.mxu0 0
      %1550 = vmatpush1.bf16.msra.mxu0 0
      %1551 = vmatprep.subr.bf16.mxu0 0
      %1552 = vmatpush1.bf16.msra.mxu0 0
      %1553 = vmatprep.subr.bf16.mxu0 0
      %1554 = vmatpush1.bf16.msra.mxu0 0
      %1555 = vmatprep.subr.bf16.mxu0 0
      %1556 = vmatpush1.bf16.msra.mxu0 0
      %1557 = vmatprep.subr.bf16.mxu0 0
      %1558 = vmatpush1.bf16.msra.mxu0 0
      %1559 = vmatprep.subr.bf16.mxu0 0
      %1560 = vmatpush1.bf16.msra.mxu0 0
      %1561 = vmatprep.subr.bf16.mxu0 0
      %1562 = vmatpush1.bf16.msra.mxu0 0
      %1563 = vmatprep.subr.bf16.mxu0 0
      %1564 = vmatpush1.bf16.msra.mxu0 0
      %1565 = vmatprep.subr.bf16.mxu0 0
      %1566 = vmatpush1.bf16.msra.mxu0 0
      %1567 = vmatprep.subr.bf16.mxu0 0
      %1568 = vmatpush1.bf16.msra.mxu0 0
      %1569 = vmatprep.mubr.bf16.mxu0 0
      %1570 = vmatmul.mubr.bf16.gmra.mrb[0].mxu0 %v1535
      %v1571 = vpop.f32.mrb[0].mxu0
      %v1572 = vadd.f32 %v1525, %v1571
      %v1573 = vpop.f32.mrb[0].mxu0
      %v1574 = vpop.f32.mrb[0].mxu0
      %v1575 = vadd.f32 %v1528, %v1574
      %v1576 = vpop.f32.mrb[0].mxu0
      %1577 = vdwg.mxu0
      %s1578 = scalar_lea.vmem %s165, 48
      %v1579 = vld [vmem:[%s1578] sm:$0xf]
      %v1580 = vld [vmem:[%s1578 + $0x4] sm:$0x7]
      %v1583 = vunpack.c.l.b16 %v1579
      %v1584 = vunpack.c.l.b16 %v1580
      %v1585 = vpack.c.b16 %v1584, %v1583
      %v1587 = vsel %vm247, %v1585, 0
      %1589 = vmatprep.subr.bf16.mxu0 0
      %1590 = vmatpush1.bf16.msra.mxu0 %v387
      %1591 = vmatprep.subr.bf16.mxu0 0
      %1592 = vmatpush1.bf16.msra.mxu0 %v388
      %1593 = vmatprep.subr.bf16.mxu0 0
      %1594 = vmatpush1.bf16.msra.mxu0 %v389
      %1595 = vmatprep.subr.bf16.mxu0 0
      %1596 = vmatpush1.bf16.msra.mxu0 %v390
      %1597 = vmatprep.subr.bf16.mxu0 0
      %1598 = vmatpush1.bf16.msra.mxu0 0
      %1599 = vmatprep.subr.bf16.mxu0 0
      %1600 = vmatpush1.bf16.msra.mxu0 0
      %1601 = vmatprep.subr.bf16.mxu0 0
      %1602 = vmatpush1.bf16.msra.mxu0 0
      %1603 = vmatprep.subr.bf16.mxu0 0
      %1604 = vmatpush1.bf16.msra.mxu0 0
      %1605 = vmatprep.subr.bf16.mxu0 0
      %1606 = vmatpush1.bf16.msra.mxu0 0
      %1607 = vmatprep.subr.bf16.mxu0 0
      %1608 = vmatpush1.bf16.msra.mxu0 0
      %1609 = vmatprep.subr.bf16.mxu0 0
      %1610 = vmatpush1.bf16.msra.mxu0 0
      %1611 = vmatprep.subr.bf16.mxu0 0
      %1612 = vmatpush1.bf16.msra.mxu0 0
      %1613 = vmatprep.subr.bf16.mxu0 0
      %1614 = vmatpush1.bf16.msra.mxu0 0
      %1615 = vmatprep.subr.bf16.mxu0 0
      %1616 = vmatpush1.bf16.msra.mxu0 0
      %1617 = vmatprep.subr.bf16.mxu0 0
      %1618 = vmatpush1.bf16.msra.mxu0 0
      %1619 = vmatprep.subr.bf16.mxu0 0
      %1620 = vmatpush1.bf16.msra.mxu0 0
      %1621 = vmatprep.mubr.bf16.mxu0 0
      %1622 = vmatmul.mubr.bf16.gmra.mrb[0].mxu0 %v1587
      %v1623 = vpop.f32.mrb[0].mxu0
      %v1624 = vadd.f32 0.0, %v1623
      %v1625 = vpop.f32.mrb[0].mxu0
      %v1626 = vpop.f32.mrb[0].mxu0
      %v1627 = vadd.f32 0.0, %v1626
      %v1628 = vpop.f32.mrb[0].mxu0
      %1629 = vdwg.mxu0
      %v1630 = vadd.f32 %v1572, %v1624
      %v1631 = vadd.f32 %v1575, %v1627
      %v1632 = vld [vmem:[%s1578 + $0x4] sm:$0xf]
      %v1634 = vunpack.c.l.b16 %v1632
      %v1635 = vpack.c.b16 %v1634, %v1583
      %v1637 = vshrl.u32 %v1635, 16
      %v1639 = vshll.u32 %v1635, 16
      %v1641 = vrot.slane %v1639, 1
      %v1642 = vor.u32 %v1637, %v1641
      %v1644 = vsel %vm247, %v1642, 0
      %1646 = vmatprep.subr.bf16.mxu0 0
      %1647 = vmatpush1.bf16.msra.mxu0 %v468
      %1648 = vmatprep.subr.bf16.mxu0 0
      %1649 = vmatpush1.bf16.msra.mxu0 %v469
      %1650 = vmatprep.subr.bf16.mxu0 0
      %1651 = vmatpush1.bf16.msra.mxu0 %v470
      %1652 = vmatprep.subr.bf16.mxu0 0
      %1653 = vmatpush1.bf16.msra.mxu0 %v471
      %1654 = vmatprep.subr.bf16.mxu0 0
      %1655 = vmatpush1.bf16.msra.mxu0 0
      %1656 = vmatprep.subr.bf16.mxu0 0
      %1657 = vmatpush1.bf16.msra.mxu0 0
      %1658 = vmatprep.subr.bf16.mxu0 0
      %1659 = vmatpush1.bf16.msra.mxu0 0
      %1660 = vmatprep.subr.bf16.mxu0 0
      %1661 = vmatpush1.bf16.msra.mxu0 0
      %1662 = vmatprep.subr.bf16.mxu0 0
      %1663 = vmatpush1.bf16.msra.mxu0 0
      %1664 = vmatprep.subr.bf16.mxu0 0
      %1665 = vmatpush1.bf16.msra.mxu0 0
      %1666 = vmatprep.subr.bf16.mxu0 0
      %1667 = vmatpush1.bf16.msra.mxu0 0
      %1668 = vmatprep.subr.bf16.mxu0 0
      %1669 = vmatpush1.bf16.msra.mxu0 0
      %1670 = vmatprep.subr.bf16.mxu0 0
      %1671 = vmatpush1.bf16.msra.mxu0 0
      %1672 = vmatprep.subr.bf16.mxu0 0
      %1673 = vmatpush1.bf16.msra.mxu0 0
      %1674 = vmatprep.subr.bf16.mxu0 0
      %1675 = vmatpush1.bf16.msra.mxu0 0
      %1676 = vmatprep.subr.bf16.mxu0 0
      %1677 = vmatpush1.bf16.msra.mxu0 0
      %1678 = vmatprep.mubr.bf16.mxu0 0
      %1679 = vmatmul.mubr.bf16.gmra.mrb[0].mxu0 %v1644
      %v1680 = vpop.f32.mrb[0].mxu0
      %v1681 = vadd.f32 0.0, %v1680
      %v1682 = vpop.f32.mrb[0].mxu0
      %v1683 = vpop.f32.mrb[0].mxu0
      %v1684 = vadd.f32 0.0, %v1683
      %v1685 = vpop.f32.mrb[0].mxu0
      %1686 = vdwg.mxu0
      %v1687 = vadd.f32 %v1630, %v1681
      %v1688 = vadd.f32 %v1631, %v1684
      %v1689 = vadd.f32 %v1687, %v526
      %v1690 = vadd.f32 %v1688, %v526
      %v1691 = vmax.f32 %v1689, 0.0
      %v1692 = vmax.f32 %v1690, 0.0
      %v1693 = vpack.c.bf16 %v1692, %v1691
      %v1695 = vunpack.c.l.b16 %v1693
      %v1696 = vunpack.c.h.b16 %v1693
      %v1697 = vpack.c.b16 %v1695, %v1695
      %v1698 = vpack.c.b16 %v1696, %v1696
      %s1701 = scalar_lea.vmem %s170, 40
      %1702 = vst.msk [vmem:[%s1701] sm:$0xf] %vm540, %v1697
      %1703 = vst.msk [vmem:[%s1701 + $0x4] sm:$0x7] %vm542, %v1698
      %v1704 = vld [vmem:[%s1578] sm:$0xf]
      %v1705 = vld [vmem:[%s1578 + $0x4] sm:$0x7]
      %v1706 = vld [vmem:[%s1578 + $0x4] sm:$0xf]
      %v1709 = vunpack.c.l.b16 %v1704
      %v1710 = vunpack.c.l.b16 %v1706
      %v1711 = vpack.c.b16 %v1710, %v1709
      %v1713 = vshrl.u32 %v1711, 16
      %v1715 = vshll.u32 %v1711, 16
      %v1717 = vrot.slane %v1715, 1
      %v1718 = vor.u32 %v1713, %v1717
      %v1720 = vsel %vm247, %v1718, 0
      %1722 = vmatprep.subr.bf16.mxu0 0
      %1723 = vmatpush1.bf16.msra.mxu0 %v239
      %1724 = vmatprep.subr.bf16.mxu0 0
      %1725 = vmatpush1.bf16.msra.mxu0 %v240
      %1726 = vmatprep.subr.bf16.mxu0 0
      %1727 = vmatpush1.bf16.msra.mxu0 %v241
      %1728 = vmatprep.subr.bf16.mxu0 0
      %1729 = vmatpush1.bf16.msra.mxu0 %v242
      %1730 = vmatprep.subr.bf16.mxu0 0
      %1731 = vmatpush1.bf16.msra.mxu0 0
      %1732 = vmatprep.subr.bf16.mxu0 0
      %1733 = vmatpush1.bf16.msra.mxu0 0
      %1734 = vmatprep.subr.bf16.mxu0 0
      %1735 = vmatpush1.bf16.msra.mxu0 0
      %1736 = vmatprep.subr.bf16.mxu0 0
      %1737 = vmatpush1.bf16.msra.mxu0 0
      %1738 = vmatprep.subr.bf16.mxu0 0
      %1739 = vmatpush1.bf16.msra.mxu0 0
      %1740 = vmatprep.subr.bf16.mxu0 0
      %1741 = vmatpush1.bf16.msra.mxu0 0
      %1742 = vmatprep.subr.bf16.mxu0 0
      %1743 = vmatpush1.bf16.msra.mxu0 0
      %1744 = vmatprep.subr.bf16.mxu0 0
      %1745 = vmatpush1.bf16.msra.mxu0 0
      %1746 = vmatprep.subr.bf16.mxu0 0
      %1747 = vmatpush1.bf16.msra.mxu0 0
      %1748 = vmatprep.subr.bf16.mxu0 0
      %1749 = vmatpush1.bf16.msra.mxu0 0
      %1750 = vmatprep.subr.bf16.mxu0 0
      %1751 = vmatpush1.bf16.msra.mxu0 0
      %1752 = vmatprep.subr.bf16.mxu0 0
      %1753 = vmatpush1.bf16.msra.mxu0 0
      %1754 = vmatprep.mubr.bf16.mxu0 0
      %1755 = vmatmul.mubr.bf16.gmra.mrb[0].mxu0 %v1720
      %v1756 = vpop.f32.mrb[0].mxu0
      %v1757 = vadd.f32 0.0, %v1756
      %v1758 = vpop.f32.mrb[0].mxu0
      %v1759 = vpop.f32.mrb[0].mxu0
      %v1760 = vadd.f32 0.0, %v1759
      %v1761 = vpop.f32.mrb[0].mxu0
      %1762 = vdwg.mxu0
      %v1764 = vunpack.c.l.b16 %v1705
      %v1765 = vpack.c.b16 %v1764, %v1709
      %v1767 = vsel %vm247, %v1765, 0
      %1769 = vmatprep.subr.bf16.mxu0 0
      %1770 = vmatpush1.bf16.msra.mxu0 %v311
      %1771 = vmatprep.subr.bf16.mxu0 0
      %1772 = vmatpush1.bf16.msra.mxu0 %v312
      %1773 = vmatprep.subr.bf16.mxu0 0
      %1774 = vmatpush1.bf16.msra.mxu0 %v313
      %1775 = vmatprep.subr.bf16.mxu0 0
      %1776 = vmatpush1.bf16.msra.mxu0 %v314
      %1777 = vmatprep.subr.bf16.mxu0 0
      %1778 = vmatpush1.bf16.msra.mxu0 0
      %1779 = vmatprep.subr.bf16.mxu0 0
      %1780 = vmatpush1.bf16.msra.mxu0 0
      %1781 = vmatprep.subr.bf16.mxu0 0
      %1782 = vmatpush1.bf16.msra.mxu0 0
      %1783 = vmatprep.subr.bf16.mxu0 0
      %1784 = vmatpush1.bf16.msra.mxu0 0
      %1785 = vmatprep.subr.bf16.mxu0 0
      %1786 = vmatpush1.bf16.msra.mxu0 0
      %1787 = vmatprep.subr.bf16.mxu0 0
      %1788 = vmatpush1.bf16.msra.mxu0 0
      %1789 = vmatprep.subr.bf16.mxu0 0
      %1790 = vmatpush1.bf16.msra.mxu0 0
      %1791 = vmatprep.subr.bf16.mxu0 0
      %1792 = vmatpush1.bf16.msra.mxu0 0
      %1793 = vmatprep.subr.bf16.mxu0 0
      %1794 = vmatpush1.bf16.msra.mxu0 0
      %1795 = vmatprep.subr.bf16.mxu0 0
      %1796 = vmatpush1.bf16.msra.mxu0 0
      %1797 = vmatprep.subr.bf16.mxu0 0
      %1798 = vmatpush1.bf16.msra.mxu0 0
      %1799 = vmatprep.subr.bf16.mxu0 0
      %1800 = vmatpush1.bf16.msra.mxu0 0
      %1801 = vmatprep.mubr.bf16.mxu0 0
      %1802 = vmatmul.mubr.bf16.gmra.mrb[0].mxu0 %v1767
      %v1803 = vpop.f32.mrb[0].mxu0
      %v1804 = vadd.f32 %v1757, %v1803
      %v1805 = vpop.f32.mrb[0].mxu0
      %v1806 = vpop.f32.mrb[0].mxu0
      %v1807 = vadd.f32 %v1760, %v1806
      %v1808 = vpop.f32.mrb[0].mxu0
      %1809 = vdwg.mxu0
      %s1810 = scalar_lea.vmem %s165, 56
      %v1811 = vld [vmem:[%s1810] sm:$0xf]
      %v1812 = vld [vmem:[%s1810 + $0x4] sm:$0x7]
      %v1815 = vunpack.c.l.b16 %v1811
      %v1816 = vunpack.c.l.b16 %v1812
      %v1817 = vpack.c.b16 %v1816, %v1815
      %v1819 = vsel %vm247, %v1817, 0
      %1821 = vmatprep.subr.bf16.mxu0 0
      %1822 = vmatpush1.bf16.msra.mxu0 %v387
      %1823 = vmatprep.subr.bf16.mxu0 0
      %1824 = vmatpush1.bf16.msra.mxu0 %v388
      %1825 = vmatprep.subr.bf16.mxu0 0
      %1826 = vmatpush1.bf16.msra.mxu0 %v389
      %1827 = vmatprep.subr.bf16.mxu0 0
      %1828 = vmatpush1.bf16.msra.mxu0 %v390
      %1829 = vmatprep.subr.bf16.mxu0 0
      %1830 = vmatpush1.bf16.msra.mxu0 0
      %1831 = vmatprep.subr.bf16.mxu0 0
      %1832 = vmatpush1.bf16.msra.mxu0 0
      %1833 = vmatprep.subr.bf16.mxu0 0
      %1834 = vmatpush1.bf16.msra.mxu0 0
      %1835 = vmatprep.subr.bf16.mxu0 0
      %1836 = vmatpush1.bf16.msra.mxu0 0
      %1837 = vmatprep.subr.bf16.mxu0 0
      %1838 = vmatpush1.bf16.msra.mxu0 0
      %1839 = vmatprep.subr.bf16.mxu0 0
      %1840 = vmatpush1.bf16.msra.mxu0 0
      %1841 = vmatprep.subr.bf16.mxu0 0
      %1842 = vmatpush1.bf16.msra.mxu0 0
      %1843 = vmatprep.subr.bf16.mxu0 0
      %1844 = vmatpush1.bf16.msra.mxu0 0
      %1845 = vmatprep.subr.bf16.mxu0 0
      %1846 = vmatpush1.bf16.msra.mxu0 0
      %1847 = vmatprep.subr.bf16.mxu0 0
      %1848 = vmatpush1.bf16.msra.mxu0 0
      %1849 = vmatprep.subr.bf16.mxu0 0
      %1850 = vmatpush1.bf16.msra.mxu0 0
      %1851 = vmatprep.subr.bf16.mxu0 0
      %1852 = vmatpush1.bf16.msra.mxu0 0
      %1853 = vmatprep.mubr.bf16.mxu0 0
      %1854 = vmatmul.mubr.bf16.gmra.mrb[0].mxu0 %v1819
      %v1855 = vpop.f32.mrb[0].mxu0
      %v1856 = vadd.f32 0.0, %v1855
      %v1857 = vpop.f32.mrb[0].mxu0
      %v1858 = vpop.f32.mrb[0].mxu0
      %v1859 = vadd.f32 0.0, %v1858
      %v1860 = vpop.f32.mrb[0].mxu0
      %1861 = vdwg.mxu0
      %v1862 = vadd.f32 %v1804, %v1856
      %v1863 = vadd.f32 %v1807, %v1859
      %v1864 = vld [vmem:[%s1810 + $0x4] sm:$0xf]
      %v1866 = vunpack.c.l.b16 %v1864
      %v1867 = vpack.c.b16 %v1866, %v1815
      %v1869 = vshrl.u32 %v1867, 16
      %v1871 = vshll.u32 %v1867, 16
      %v1873 = vrot.slane %v1871, 1
      %v1874 = vor.u32 %v1869, %v1873
      %v1876 = vsel %vm247, %v1874, 0
      %1878 = vmatprep.subr.bf16.mxu0 0
      %1879 = vmatpush1.bf16.msra.mxu0 %v468
      %1880 = vmatprep.subr.bf16.mxu0 0
      %1881 = vmatpush1.bf16.msra.mxu0 %v469
      %1882 = vmatprep.subr.bf16.mxu0 0
      %1883 = vmatpush1.bf16.msra.mxu0 %v470
      %1884 = vmatprep.subr.bf16.mxu0 0
      %1885 = vmatpush1.bf16.msra.mxu0 %v471
      %1886 = vmatprep.subr.bf16.mxu0 0
      %1887 = vmatpush1.bf16.msra.mxu0 0
      %1888 = vmatprep.subr.bf16.mxu0 0
      %1889 = vmatpush1.bf16.msra.mxu0 0
      %1890 = vmatprep.subr.bf16.mxu0 0
      %1891 = vmatpush1.bf16.msra.mxu0 0
      %1892 = vmatprep.subr.bf16.mxu0 0
      %1893 = vmatpush1.bf16.msra.mxu0 0
      %1894 = vmatprep.subr.bf16.mxu0 0
      %1895 = vmatpush1.bf16.msra.mxu0 0
      %1896 = vmatprep.subr.bf16.mxu0 0
      %1897 = vmatpush1.bf16.msra.mxu0 0
      %1898 = vmatprep.subr.bf16.mxu0 0
      %1899 = vmatpush1.bf16.msra.mxu0 0
      %1900 = vmatprep.subr.bf16.mxu0 0
      %1901 = vmatpush1.bf16.msra.mxu0 0
      %1902 = vmatprep.subr.bf16.mxu0 0
      %1903 = vmatpush1.bf16.msra.mxu0 0
      %1904 = vmatprep.subr.bf16.mxu0 0
      %1905 = vmatpush1.bf16.msra.mxu0 0
      %1906 = vmatprep.subr.bf16.mxu0 0
      %1907 = vmatpush1.bf16.msra.mxu0 0
      %1908 = vmatprep.subr.bf16.mxu0 0
      %1909 = vmatpush1.bf16.msra.mxu0 0
      %1910 = vmatprep.mubr.bf16.mxu0 0
      %1911 = vmatmul.mubr.bf16.gmra.mrb[0].mxu0 %v1876
      %v1912 = vpop.f32.mrb[0].mxu0
      %v1913 = vadd.f32 0.0, %v1912
      %v1914 = vpop.f32.mrb[0].mxu0
      %v1915 = vpop.f32.mrb[0].mxu0
      %v1916 = vadd.f32 0.0, %v1915
      %v1917 = vpop.f32.mrb[0].mxu0
      %1918 = vdwg.mxu0
      %v1919 = vadd.f32 %v1862, %v1913
      %v1920 = vadd.f32 %v1863, %v1916
      %v1921 = vadd.f32 %v1919, %v526
      %v1922 = vadd.f32 %v1920, %v526
      %v1923 = vmax.f32 %v1921, 0.0
      %v1924 = vmax.f32 %v1922, 0.0
      %v1925 = vpack.c.bf16 %v1924, %v1923
      %v1927 = vunpack.c.l.b16 %v1925
      %v1928 = vunpack.c.h.b16 %v1925
      %v1929 = vpack.c.b16 %v1927, %v1927
      %v1930 = vpack.c.b16 %v1928, %v1928
      %s1933 = scalar_lea.vmem %s170, 48
      %1934 = vst.msk [vmem:[%s1933] sm:$0xf] %vm540, %v1929
      %1935 = vst.msk [vmem:[%s1933 + $0x4] sm:$0x7] %vm542, %v1930
      %v1936 = vld [vmem:[%s1810] sm:$0xf]
      %v1937 = vld [vmem:[%s1810 + $0x4] sm:$0x7]
      %v1938 = vld [vmem:[%s1810 + $0x4] sm:$0xf]
      %v1941 = vunpack.c.l.b16 %v1936
      %v1942 = vunpack.c.l.b16 %v1938
      %v1943 = vpack.c.b16 %v1942, %v1941
      %v1945 = vshrl.u32 %v1943, 16
      %v1947 = vshll.u32 %v1943, 16
      %v1949 = vrot.slane %v1947, 1
      %v1950 = vor.u32 %v1945, %v1949
      %v1952 = vsel %vm247, %v1950, 0
      %1954 = vmatprep.subr.bf16.mxu0 0
      %1955 = vmatpush1.bf16.msra.mxu0 %v239
      %1956 = vmatprep.subr.bf16.mxu0 0
      %1957 = vmatpush1.bf16.msra.mxu0 %v240
      %1958 = vmatprep.subr.bf16.mxu0 0
      %1959 = vmatpush1.bf16.msra.mxu0 %v241
      %1960 = vmatprep.subr.bf16.mxu0 0
      %1961 = vmatpush1.bf16.msra.mxu0 %v242
      %1962 = vmatprep.subr.bf16.mxu0 0
      %1963 = vmatpush1.bf16.msra.mxu0 0
      %1964 = vmatprep.subr.bf16.mxu0 0
      %1965 = vmatpush1.bf16.msra.mxu0 0
      %1966 = vmatprep.subr.bf16.mxu0 0
      %1967 = vmatpush1.bf16.msra.mxu0 0
      %1968 = vmatprep.subr.bf16.mxu0 0
      %1969 = vmatpush1.bf16.msra.mxu0 0
      %1970 = vmatprep.subr.bf16.mxu0 0
      %1971 = vmatpush1.bf16.msra.mxu0 0
      %1972 = vmatprep.subr.bf16.mxu0 0
      %1973 = vmatpush1.bf16.msra.mxu0 0
      %1974 = vmatprep.subr.bf16.mxu0 0
      %1975 = vmatpush1.bf16.msra.mxu0 0
      %1976 = vmatprep.subr.bf16.mxu0 0
      %1977 = vmatpush1.bf16.msra.mxu0 0
      %1978 = vmatprep.subr.bf16.mxu0 0
      %1979 = vmatpush1.bf16.msra.mxu0 0
      %1980 = vmatprep.subr.bf16.mxu0 0
      %1981 = vmatpush1.bf16.msra.mxu0 0
      %1982 = vmatprep.subr.bf16.mxu0 0
      %1983 = vmatpush1.bf16.msra.mxu0 0
      %1984 = vmatprep.subr.bf16.mxu0 0
      %1985 = vmatpush1.bf16.msra.mxu0 0
      %1986 = vmatprep.mubr.bf16.mxu0 0
      %1987 = vmatmul.mubr.bf16.gmra.mrb[0].mxu0 %v1952
      %v1988 = vpop.f32.mrb[0].mxu0
      %v1989 = vadd.f32 0.0, %v1988
      %v1990 = vpop.f32.mrb[0].mxu0
      %v1991 = vpop.f32.mrb[0].mxu0
      %v1992 = vadd.f32 0.0, %v1991
      %v1993 = vpop.f32.mrb[0].mxu0
      %1994 = vdwg.mxu0
      %v1996 = vunpack.c.l.b16 %v1937
      %v1997 = vpack.c.b16 %v1996, %v1941
      %v1999 = vsel %vm247, %v1997, 0
      %2001 = vmatprep.subr.bf16.mxu0 0
      %2002 = vmatpush1.bf16.msra.mxu0 %v311
      %2003 = vmatprep.subr.bf16.mxu0 0
      %2004 = vmatpush1.bf16.msra.mxu0 %v312
      %2005 = vmatprep.subr.bf16.mxu0 0
      %2006 = vmatpush1.bf16.msra.mxu0 %v313
      %2007 = vmatprep.subr.bf16.mxu0 0
      %2008 = vmatpush1.bf16.msra.mxu0 %v314
      %2009 = vmatprep.subr.bf16.mxu0 0
      %2010 = vmatpush1.bf16.msra.mxu0 0
      %2011 = vmatprep.subr.bf16.mxu0 0
      %2012 = vmatpush1.bf16.msra.mxu0 0
      %2013 = vmatprep.subr.bf16.mxu0 0
      %2014 = vmatpush1.bf16.msra.mxu0 0
      %2015 = vmatprep.subr.bf16.mxu0 0
      %2016 = vmatpush1.bf16.msra.mxu0 0
      %2017 = vmatprep.subr.bf16.mxu0 0
      %2018 = vmatpush1.bf16.msra.mxu0 0
      %2019 = vmatprep.subr.bf16.mxu0 0
      %2020 = vmatpush1.bf16.msra.mxu0 0
      %2021 = vmatprep.subr.bf16.mxu0 0
      %2022 = vmatpush1.bf16.msra.mxu0 0
      %2023 = vmatprep.subr.bf16.mxu0 0
      %2024 = vmatpush1.bf16.msra.mxu0 0
      %2025 = vmatprep.subr.bf16.mxu0 0
      %2026 = vmatpush1.bf16.msra.mxu0 0
      %2027 = vmatprep.subr.bf16.mxu0 0
      %2028 = vmatpush1.bf16.msra.mxu0 0
      %2029 = vmatprep.subr.bf16.mxu0 0
      %2030 = vmatpush1.bf16.msra.mxu0 0
      %2031 = vmatprep.subr.bf16.mxu0 0
      %2032 = vmatpush1.bf16.msra.mxu0 0
      %2033 = vmatprep.mubr.bf16.mxu0 0
      %2034 = vmatmul.mubr.bf16.gmra.mrb[0].mxu0 %v1999
      %v2035 = vpop.f32.mrb[0].mxu0
      %v2036 = vadd.f32 %v1989, %v2035
      %v2037 = vpop.f32.mrb[0].mxu0
      %v2038 = vpop.f32.mrb[0].mxu0
      %v2039 = vadd.f32 %v1992, %v2038
      %v2040 = vpop.f32.mrb[0].mxu0
      %2041 = vdwg.mxu0
      %s2042 = scalar_lea.vmem %s165, 64
      %v2043 = vld [vmem:[%s2042] sm:$0xf]
      %v2044 = vld [vmem:[%s2042 + $0x4] sm:$0x7]
      %v2047 = vunpack.c.l.b16 %v2043
      %v2048 = vunpack.c.l.b16 %v2044
      %v2049 = vpack.c.b16 %v2048, %v2047
      %v2051 = vsel %vm247, %v2049, 0
      %2053 = vmatprep.subr.bf16.mxu0 0
      %2054 = vmatpush1.bf16.msra.mxu0 %v387
      %2055 = vmatprep.subr.bf16.mxu0 0
      %2056 = vmatpush1.bf16.msra.mxu0 %v388
      %2057 = vmatprep.subr.bf16.mxu0 0
      %2058 = vmatpush1.bf16.msra.mxu0 %v389
      %2059 = vmatprep.subr.bf16.mxu0 0
      %2060 = vmatpush1.bf16.msra.mxu0 %v390
      %2061 = vmatprep.subr.bf16.mxu0 0
      %2062 = vmatpush1.bf16.msra.mxu0 0
      %2063 = vmatprep.subr.bf16.mxu0 0
      %2064 = vmatpush1.bf16.msra.mxu0 0
      %2065 = vmatprep.subr.bf16.mxu0 0
      %2066 = vmatpush1.bf16.msra.mxu0 0
      %2067 = vmatprep.subr.bf16.mxu0 0
      %2068 = vmatpush1.bf16.msra.mxu0 0
      %2069 = vmatprep.subr.bf16.mxu0 0
      %2070 = vmatpush1.bf16.msra.mxu0 0
      %2071 = vmatprep.subr.bf16.mxu0 0
      %2072 = vmatpush1.bf16.msra.mxu0 0
      %2073 = vmatprep.subr.bf16.mxu0 0
      %2074 = vmatpush1.bf16.msra.mxu0 0
      %2075 = vmatprep.subr.bf16.mxu0 0
      %2076 = vmatpush1.bf16.msra.mxu0 0
      %2077 = vmatprep.subr.bf16.mxu0 0
      %2078 = vmatpush1.bf16.msra.mxu0 0
      %2079 = vmatprep.subr.bf16.mxu0 0
      %2080 = vmatpush1.bf16.msra.mxu0 0
      %2081 = vmatprep.subr.bf16.mxu0 0
      %2082 = vmatpush1.bf16.msra.mxu0 0
      %2083 = vmatprep.subr.bf16.mxu0 0
      %2084 = vmatpush1.bf16.msra.mxu0 0
      %2085 = vmatprep.mubr.bf16.mxu0 0
      %2086 = vmatmul.mubr.bf16.gmra.mrb[0].mxu0 %v2051
      %v2087 = vpop.f32.mrb[0].mxu0
      %v2088 = vadd.f32 0.0, %v2087
      %v2089 = vpop.f32.mrb[0].mxu0
      %v2090 = vpop.f32.mrb[0].mxu0
      %v2091 = vadd.f32 0.0, %v2090
      %v2092 = vpop.f32.mrb[0].mxu0
      %2093 = vdwg.mxu0
      %v2094 = vadd.f32 %v2036, %v2088
      %v2095 = vadd.f32 %v2039, %v2091
      %v2096 = vld [vmem:[%s2042 + $0x4] sm:$0xf]
      %v2098 = vunpack.c.l.b16 %v2096
      %v2099 = vpack.c.b16 %v2098, %v2047
      %v2101 = vshrl.u32 %v2099, 16
      %v2103 = vshll.u32 %v2099, 16
      %v2105 = vrot.slane %v2103, 1
      %v2106 = vor.u32 %v2101, %v2105
      %v2108 = vsel %vm247, %v2106, 0
      %2110 = vmatprep.subr.bf16.mxu0 0
      %2111 = vmatpush1.bf16.msra.mxu0 %v468
      %2112 = vmatprep.subr.bf16.mxu0 0
      %2113 = vmatpush1.bf16.msra.mxu0 %v469
      %2114 = vmatprep.subr.bf16.mxu0 0
      %2115 = vmatpush1.bf16.msra.mxu0 %v470
      %2116 = vmatprep.subr.bf16.mxu0 0
      %2117 = vmatpush1.bf16.msra.mxu0 %v471
      %2118 = vmatprep.subr.bf16.mxu0 0
      %2119 = vmatpush1.bf16.msra.mxu0 0
      %2120 = vmatprep.subr.bf16.mxu0 0
      %2121 = vmatpush1.bf16.msra.mxu0 0
      %2122 = vmatprep.subr.bf16.mxu0 0
      %2123 = vmatpush1.bf16.msra.mxu0 0
      %2124 = vmatprep.subr.bf16.mxu0 0
      %2125 = vmatpush1.bf16.msra.mxu0 0
      %2126 = vmatprep.subr.bf16.mxu0 0
      %2127 = vmatpush1.bf16.msra.mxu0 0
      %2128 = vmatprep.subr.bf16.mxu0 0
      %2129 = vmatpush1.bf16.msra.mxu0 0
      %2130 = vmatprep.subr.bf16.mxu0 0
      %2131 = vmatpush1.bf16.msra.mxu0 0
      %2132 = vmatprep.subr.bf16.mxu0 0
      %2133 = vmatpush1.bf16.msra.mxu0 0
      %2134 = vmatprep.subr.bf16.mxu0 0
      %2135 = vmatpush1.bf16.msra.mxu0 0
      %2136 = vmatprep.subr.bf16.mxu0 0
      %2137 = vmatpush1.bf16.msra.mxu0 0
      %2138 = vmatprep.subr.bf16.mxu0 0
      %2139 = vmatpush1.bf16.msra.mxu0 0
      %2140 = vmatprep.subr.bf16.mxu0 0
      %2141 = vmatpush1.bf16.msra.mxu0 0
      %2142 = vmatprep.mubr.bf16.mxu0 0
      %2143 = vmatmul.mubr.bf16.gmra.mrb[0].mxu0 %v2108
      %v2144 = vpop.f32.mrb[0].mxu0
      %v2145 = vadd.f32 0.0, %v2144
      %v2146 = vpop.f32.mrb[0].mxu0
      %v2147 = vpop.f32.mrb[0].mxu0
      %v2148 = vadd.f32 0.0, %v2147
      %v2149 = vpop.f32.mrb[0].mxu0
      %2150 = vdwg.mxu0
      %v2151 = vadd.f32 %v2094, %v2145
      %v2152 = vadd.f32 %v2095, %v2148
      %v2153 = vadd.f32 %v2151, %v526
      %v2154 = vadd.f32 %v2152, %v526
      %v2155 = vmax.f32 %v2153, 0.0
      %v2156 = vmax.f32 %v2154, 0.0
      %v2157 = vpack.c.bf16 %v2156, %v2155
      %v2159 = vunpack.c.l.b16 %v2157
      %v2160 = vunpack.c.h.b16 %v2157
      %v2161 = vpack.c.b16 %v2159, %v2159
      %v2162 = vpack.c.b16 %v2160, %v2160
      %s2165 = scalar_lea.vmem %s170, 56
      %2166 = vst.msk [vmem:[%s2165] sm:$0xf] %vm540, %v2161
      %2167 = vst.msk [vmem:[%s2165 + $0x4] sm:$0x7] %vm542, %v2162
      %v2168 = vld [vmem:[%s2042] sm:$0xf]
      %v2169 = vld [vmem:[%s2042 + $0x4] sm:$0x7]
      %v2170 = vld [vmem:[%s2042 + $0x4] sm:$0xf]
      %v2173 = vunpack.c.l.b16 %v2168
      %v2174 = vunpack.c.l.b16 %v2170
      %v2175 = vpack.c.b16 %v2174, %v2173
      %v2177 = vshrl.u32 %v2175, 16
      %v2179 = vshll.u32 %v2175, 16
      %v2181 = vrot.slane %v2179, 1
      %v2182 = vor.u32 %v2177, %v2181
      %v2184 = vsel %vm247, %v2182, 0
      %2186 = vmatprep.subr.bf16.mxu0 0
      %2187 = vmatpush1.bf16.msra.mxu0 %v239
      %2188 = vmatprep.subr.bf16.mxu0 0
      %2189 = vmatpush1.bf16.msra.mxu0 %v240
      %2190 = vmatprep.subr.bf16.mxu0 0
      %2191 = vmatpush1.bf16.msra.mxu0 %v241
      %2192 = vmatprep.subr.bf16.mxu0 0
      %2193 = vmatpush1.bf16.msra.mxu0 %v242
      %2194 = vmatprep.subr.bf16.mxu0 0
      %2195 = vmatpush1.bf16.msra.mxu0 0
      %2196 = vmatprep.subr.bf16.mxu0 0
      %2197 = vmatpush1.bf16.msra.mxu0 0
      %2198 = vmatprep.subr.bf16.mxu0 0
      %2199 = vmatpush1.bf16.msra.mxu0 0
      %2200 = vmatprep.subr.bf16.mxu0 0
      %2201 = vmatpush1.bf16.msra.mxu0 0
      %2202 = vmatprep.subr.bf16.mxu0 0
      %2203 = vmatpush1.bf16.msra.mxu0 0
      %2204 = vmatprep.subr.bf16.mxu0 0
      %2205 = vmatpush1.bf16.msra.mxu0 0
      %2206 = vmatprep.subr.bf16.mxu0 0
      %2207 = vmatpush1.bf16.msra.mxu0 0
      %2208 = vmatprep.subr.bf16.mxu0 0
      %2209 = vmatpush1.bf16.msra.mxu0 0
      %2210 = vmatprep.subr.bf16.mxu0 0
      %2211 = vmatpush1.bf16.msra.mxu0 0
      %2212 = vmatprep.subr.bf16.mxu0 0
      %2213 = vmatpush1.bf16.msra.mxu0 0
      %2214 = vmatprep.subr.bf16.mxu0 0
      %2215 = vmatpush1.bf16.msra.mxu0 0
      %2216 = vmatprep.subr.bf16.mxu0 0
      %2217 = vmatpush1.bf16.msra.mxu0 0
      %2218 = vmatprep.mubr.bf16.mxu0 0
      %2219 = vmatmul.mubr.bf16.gmra.mrb[0].mxu0 %v2184
      %v2220 = vpop.f32.mrb[0].mxu0
      %v2221 = vadd.f32 0.0, %v2220
      %v2222 = vpop.f32.mrb[0].mxu0
      %v2223 = vpop.f32.mrb[0].mxu0
      %v2224 = vadd.f32 0.0, %v2223
      %v2225 = vpop.f32.mrb[0].mxu0
      %2226 = vdwg.mxu0
      %v2228 = vunpack.c.l.b16 %v2169
      %v2229 = vpack.c.b16 %v2228, %v2173
      %v2231 = vsel %vm247, %v2229, 0
      %2233 = vmatprep.subr.bf16.mxu0 0
      %2234 = vmatpush1.bf16.msra.mxu0 %v311
      %2235 = vmatprep.subr.bf16.mxu0 0
      %2236 = vmatpush1.bf16.msra.mxu0 %v312
      %2237 = vmatprep.subr.bf16.mxu0 0
      %2238 = vmatpush1.bf16.msra.mxu0 %v313
      %2239 = vmatprep.subr.bf16.mxu0 0
      %2240 = vmatpush1.bf16.msra.mxu0 %v314
      %2241 = vmatprep.subr.bf16.mxu0 0
      %2242 = vmatpush1.bf16.msra.mxu0 0
      %2243 = vmatprep.subr.bf16.mxu0 0
      %2244 = vmatpush1.bf16.msra.mxu0 0
      %2245 = vmatprep.subr.bf16.mxu0 0
      %2246 = vmatpush1.bf16.msra.mxu0 0
      %2247 = vmatprep.subr.bf16.mxu0 0
      %2248 = vmatpush1.bf16.msra.mxu0 0
      %2249 = vmatprep.subr.bf16.mxu0 0
      %2250 = vmatpush1.bf16.msra.mxu0 0
      %2251 = vmatprep.subr.bf16.mxu0 0
      %2252 = vmatpush1.bf16.msra.mxu0 0
      %2253 = vmatprep.subr.bf16.mxu0 0
      %2254 = vmatpush1.bf16.msra.mxu0 0
      %2255 = vmatprep.subr.bf16.mxu0 0
      %2256 = vmatpush1.bf16.msra.mxu0 0
      %2257 = vmatprep.subr.bf16.mxu0 0
      %2258 = vmatpush1.bf16.msra.mxu0 0
      %2259 = vmatprep.subr.bf16.mxu0 0
      %2260 = vmatpush1.bf16.msra.mxu0 0
      %2261 = vmatprep.subr.bf16.mxu0 0
      %2262 = vmatpush1.bf16.msra.mxu0 0
      %2263 = vmatprep.subr.bf16.mxu0 0
      %2264 = vmatpush1.bf16.msra.mxu0 0
      %2265 = vmatprep.mubr.bf16.mxu0 0
      %2266 = vmatmul.mubr.bf16.gmra.mrb[0].mxu0 %v2231
      %v2267 = vpop.f32.mrb[0].mxu0
      %v2268 = vadd.f32 %v2221, %v2267
      %v2269 = vpop.f32.mrb[0].mxu0
      %v2270 = vpop.f32.mrb[0].mxu0
      %v2271 = vadd.f32 %v2224, %v2270
      %v2272 = vpop.f32.mrb[0].mxu0
      %2273 = vdwg.mxu0
      %s2274 = scalar_lea.vmem %s165, 72
      %v2275 = vld [vmem:[%s2274] sm:$0xf]
      %v2276 = vld [vmem:[%s2274 + $0x4] sm:$0x7]
      %v2279 = vunpack.c.l.b16 %v2275
      %v2280 = vunpack.c.l.b16 %v2276
      %v2281 = vpack.c.b16 %v2280, %v2279
      %v2283 = vsel %vm247, %v2281, 0
      %2285 = vmatprep.subr.bf16.mxu0 0
      %2286 = vmatpush1.bf16.msra.mxu0 %v387
      %2287 = vmatprep.subr.bf16.mxu0 0
      %2288 = vmatpush1.bf16.msra.mxu0 %v388
      %2289 = vmatprep.subr.bf16.mxu0 0
      %2290 = vmatpush1.bf16.msra.mxu0 %v389
      %2291 = vmatprep.subr.bf16.mxu0 0
      %2292 = vmatpush1.bf16.msra.mxu0 %v390
      %2293 = vmatprep.subr.bf16.mxu0 0
      %2294 = vmatpush1.bf16.msra.mxu0 0
      %2295 = vmatprep.subr.bf16.mxu0 0
      %2296 = vmatpush1.bf16.msra.mxu0 0
      %2297 = vmatprep.subr.bf16.mxu0 0
      %2298 = vmatpush1.bf16.msra.mxu0 0
      %2299 = vmatprep.subr.bf16.mxu0 0
      %2300 = vmatpush1.bf16.msra.mxu0 0
      %2301 = vmatprep.subr.bf16.mxu0 0
      %2302 = vmatpush1.bf16.msra.mxu0 0
      %2303 = vmatprep.subr.bf16.mxu0 0
      %2304 = vmatpush1.bf16.msra.mxu0 0
      %2305 = vmatprep.subr.bf16.mxu0 0
      %2306 = vmatpush1.bf16.msra.mxu0 0
      %2307 = vmatprep.subr.bf16.mxu0 0
      %2308 = vmatpush1.bf16.msra.mxu0 0
      %2309 = vmatprep.subr.bf16.mxu0 0
      %2310 = vmatpush1.bf16.msra.mxu0 0
      %2311 = vmatprep.subr.bf16.mxu0 0
      %2312 = vmatpush1.bf16.msra.mxu0 0
      %2313 = vmatprep.subr.bf16.mxu0 0
      %2314 = vmatpush1.bf16.msra.mxu0 0
      %2315 = vmatprep.subr.bf16.mxu0 0
      %2316 = vmatpush1.bf16.msra.mxu0 0
      %2317 = vmatprep.mubr.bf16.mxu0 0
      %2318 = vmatmul.mubr.bf16.gmra.mrb[0].mxu0 %v2283
      %v2319 = vpop.f32.mrb[0].mxu0
      %v2320 = vadd.f32 0.0, %v2319
      %v2321 = vpop.f32.mrb[0].mxu0
      %v2322 = vpop.f32.mrb[0].mxu0
      %v2323 = vadd.f32 0.0, %v2322
      %v2324 = vpop.f32.mrb[0].mxu0
      %2325 = vdwg.mxu0
      %v2326 = vadd.f32 %v2268, %v2320
      %v2327 = vadd.f32 %v2271, %v2323
      %v2328 = vld [vmem:[%s2274 + $0x4] sm:$0xf]
      %v2330 = vunpack.c.l.b16 %v2328
      %v2331 = vpack.c.b16 %v2330, %v2279
      %v2333 = vshrl.u32 %v2331, 16
      %v2335 = vshll.u32 %v2331, 16
      %v2337 = vrot.slane %v2335, 1
      %v2338 = vor.u32 %v2333, %v2337
      %v2340 = vsel %vm247, %v2338, 0
      %2342 = vmatprep.subr.bf16.mxu0 0
      %2343 = vmatpush1.bf16.msra.mxu0 %v468
      %2344 = vmatprep.subr.bf16.mxu0 0
      %2345 = vmatpush1.bf16.msra.mxu0 %v469
      %2346 = vmatprep.subr.bf16.mxu0 0
      %2347 = vmatpush1.bf16.msra.mxu0 %v470
      %2348 = vmatprep.subr.bf16.mxu0 0
      %2349 = vmatpush1.bf16.msra.mxu0 %v471
      %2350 = vmatprep.subr.bf16.mxu0 0
      %2351 = vmatpush1.bf16.msra.mxu0 0
      %2352 = vmatprep.subr.bf16.mxu0 0
      %2353 = vmatpush1.bf16.msra.mxu0 0
      %2354 = vmatprep.subr.bf16.mxu0 0
      %2355 = vmatpush1.bf16.msra.mxu0 0
      %2356 = vmatprep.subr.bf16.mxu0 0
      %2357 = vmatpush1.bf16.msra.mxu0 0
      %2358 = vmatprep.subr.bf16.mxu0 0
      %2359 = vmatpush1.bf16.msra.mxu0 0
      %2360 = vmatprep.subr.bf16.mxu0 0
      %2361 = vmatpush1.bf16.msra.mxu0 0
      %2362 = vmatprep.subr.bf16.mxu0 0
      %2363 = vmatpush1.bf16.msra.mxu0 0
      %2364 = vmatprep.subr.bf16.mxu0 0
      %2365 = vmatpush1.bf16.msra.mxu0 0
      %2366 = vmatprep.subr.bf16.mxu0 0
      %2367 = vmatpush1.bf16.msra.mxu0 0
      %2368 = vmatprep.subr.bf16.mxu0 0
      %2369 = vmatpush1.bf16.msra.mxu0 0
      %2370 = vmatprep.subr.bf16.mxu0 0
      %2371 = vmatpush1.bf16.msra.mxu0 0
      %2372 = vmatprep.subr.bf16.mxu0 0
      %2373 = vmatpush1.bf16.msra.mxu0 0
      %2374 = vmatprep.mubr.bf16.mxu0 0
      %2375 = vmatmul.mubr.bf16.gmra.mrb[0].mxu0 %v2340
      %v2376 = vpop.f32.mrb[0].mxu0
      %v2377 = vadd.f32 0.0, %v2376
      %v2378 = vpop.f32.mrb[0].mxu0
      %v2379 = vpop.f32.mrb[0].mxu0
      %v2380 = vadd.f32 0.0, %v2379
      %v2381 = vpop.f32.mrb[0].mxu0
      %2382 = vdwg.mxu0
      %v2383 = vadd.f32 %v2326, %v2377
      %v2384 = vadd.f32 %v2327, %v2380
      %v2385 = vadd.f32 %v2383, %v526
      %v2386 = vadd.f32 %v2384, %v526
      %v2387 = vmax.f32 %v2385, 0.0
      %v2388 = vmax.f32 %v2386, 0.0
      %v2389 = vpack.c.bf16 %v2388, %v2387
      %v2391 = vunpack.c.l.b16 %v2389
      %v2392 = vunpack.c.h.b16 %v2389
      %v2393 = vpack.c.b16 %v2391, %v2391
      %v2394 = vpack.c.b16 %v2392, %v2392
      %s2397 = scalar_lea.vmem %s170, 64
      %2398 = vst.msk [vmem:[%s2397] sm:$0xf] %vm540, %v2393
      %2399 = vst.msk [vmem:[%s2397 + $0x4] sm:$0x7] %vm542, %v2394
      %v2400 = vld [vmem:[%s2274] sm:$0xf]
      %v2401 = vld [vmem:[%s2274 + $0x4] sm:$0x7]
      %v2402 = vld [vmem:[%s2274 + $0x4] sm:$0xf]
      %v2405 = vunpack.c.l.b16 %v2400
      %v2406 = vunpack.c.l.b16 %v2402
      %v2407 = vpack.c.b16 %v2406, %v2405
      %v2409 = vshrl.u32 %v2407, 16
      %v2411 = vshll.u32 %v2407, 16
      %v2413 = vrot.slane %v2411, 1
      %v2414 = vor.u32 %v2409, %v2413
      %v2416 = vsel %vm247, %v2414, 0
      %2418 = vmatprep.subr.bf16.mxu0 0
      %2419 = vmatpush1.bf16.msra.mxu0 %v239
      %2420 = vmatprep.subr.bf16.mxu0 0
      %2421 = vmatpush1.bf16.msra.mxu0 %v240
      %2422 = vmatprep.subr.bf16.mxu0 0
      %2423 = vmatpush1.bf16.msra.mxu0 %v241
      %2424 = vmatprep.subr.bf16.mxu0 0
      %2425 = vmatpush1.bf16.msra.mxu0 %v242
      %2426 = vmatprep.subr.bf16.mxu0 0
      %2427 = vmatpush1.bf16.msra.mxu0 0
      %2428 = vmatprep.subr.bf16.mxu0 0
      %2429 = vmatpush1.bf16.msra.mxu0 0
      %2430 = vmatprep.subr.bf16.mxu0 0
      %2431 = vmatpush1.bf16.msra.mxu0 0
      %2432 = vmatprep.subr.bf16.mxu0 0
      %2433 = vmatpush1.bf16.msra.mxu0 0
      %2434 = vmatprep.subr.bf16.mxu0 0
      %2435 = vmatpush1.bf16.msra.mxu0 0
      %2436 = vmatprep.subr.bf16.mxu0 0
      %2437 = vmatpush1.bf16.msra.mxu0 0
      %2438 = vmatprep.subr.bf16.mxu0 0
      %2439 = vmatpush1.bf16.msra.mxu0 0
      %2440 = vmatprep.subr.bf16.mxu0 0
      %2441 = vmatpush1.bf16.msra.mxu0 0
      %2442 = vmatprep.subr.bf16.mxu0 0
      %2443 = vmatpush1.bf16.msra.mxu0 0
      %2444 = vmatprep.subr.bf16.mxu0 0
      %2445 = vmatpush1.bf16.msra.mxu0 0
      %2446 = vmatprep.subr.bf16.mxu0 0
      %2447 = vmatpush1.bf16.msra.mxu0 0
      %2448 = vmatprep.subr.bf16.mxu0 0
      %2449 = vmatpush1.bf16.msra.mxu0 0
      %2450 = vmatprep.mubr.bf16.mxu0 0
      %2451 = vmatmul.mubr.bf16.gmra.mrb[0].mxu0 %v2416
      %v2452 = vpop.f32.mrb[0].mxu0
      %v2453 = vadd.f32 0.0, %v2452
      %v2454 = vpop.f32.mrb[0].mxu0
      %v2455 = vpop.f32.mrb[0].mxu0
      %v2456 = vadd.f32 0.0, %v2455
      %v2457 = vpop.f32.mrb[0].mxu0
      %2458 = vdwg.mxu0
      %v2460 = vunpack.c.l.b16 %v2401
      %v2461 = vpack.c.b16 %v2460, %v2405
      %v2463 = vsel %vm247, %v2461, 0
      %2465 = vmatprep.subr.bf16.mxu0 0
      %2466 = vmatpush1.bf16.msra.mxu0 %v311
      %2467 = vmatprep.subr.bf16.mxu0 0
      %2468 = vmatpush1.bf16.msra.mxu0 %v312
      %2469 = vmatprep.subr.bf16.mxu0 0
      %2470 = vmatpush1.bf16.msra.mxu0 %v313
      %2471 = vmatprep.subr.bf16.mxu0 0
      %2472 = vmatpush1.bf16.msra.mxu0 %v314
      %2473 = vmatprep.subr.bf16.mxu0 0
      %2474 = vmatpush1.bf16.msra.mxu0 0
      %2475 = vmatprep.subr.bf16.mxu0 0
      %2476 = vmatpush1.bf16.msra.mxu0 0
      %2477 = vmatprep.subr.bf16.mxu0 0
      %2478 = vmatpush1.bf16.msra.mxu0 0
      %2479 = vmatprep.subr.bf16.mxu0 0
      %2480 = vmatpush1.bf16.msra.mxu0 0
      %2481 = vmatprep.subr.bf16.mxu0 0
      %2482 = vmatpush1.bf16.msra.mxu0 0
      %2483 = vmatprep.subr.bf16.mxu0 0
      %2484 = vmatpush1.bf16.msra.mxu0 0
      %2485 = vmatprep.subr.bf16.mxu0 0
      %2486 = vmatpush1.bf16.msra.mxu0 0
      %2487 = vmatprep.subr.bf16.mxu0 0
      %2488 = vmatpush1.bf16.msra.mxu0 0
      %2489 = vmatprep.subr.bf16.mxu0 0
      %2490 = vmatpush1.bf16.msra.mxu0 0
      %2491 = vmatprep.subr.bf16.mxu0 0
      %2492 = vmatpush1.bf16.msra.mxu0 0
      %2493 = vmatprep.subr.bf16.mxu0 0
      %2494 = vmatpush1.bf16.msra.mxu0 0
      %2495 = vmatprep.subr.bf16.mxu0 0
      %2496 = vmatpush1.bf16.msra.mxu0 0
      %2497 = vmatprep.mubr.bf16.mxu0 0
      %2498 = vmatmul.mubr.bf16.gmra.mrb[0].mxu0 %v2463
      %v2499 = vpop.f32.mrb[0].mxu0
      %v2500 = vadd.f32 %v2453, %v2499
      %v2501 = vpop.f32.mrb[0].mxu0
      %v2502 = vpop.f32.mrb[0].mxu0
      %v2503 = vadd.f32 %v2456, %v2502
      %v2504 = vpop.f32.mrb[0].mxu0
      %2505 = vdwg.mxu0
      %s2506 = scalar_lea.vmem %s165, 80
      %v2507 = vld [vmem:[%s2506] sm:$0xf]
      %v2508 = vld [vmem:[%s2506 + $0x4] sm:$0x7]
      %v2511 = vunpack.c.l.b16 %v2507
      %v2512 = vunpack.c.l.b16 %v2508
      %v2513 = vpack.c.b16 %v2512, %v2511
      %v2515 = vsel %vm247, %v2513, 0
      %2517 = vmatprep.subr.bf16.mxu0 0
      %2518 = vmatpush1.bf16.msra.mxu0 %v387
      %2519 = vmatprep.subr.bf16.mxu0 0
      %2520 = vmatpush1.bf16.msra.mxu0 %v388
      %2521 = vmatprep.subr.bf16.mxu0 0
      %2522 = vmatpush1.bf16.msra.mxu0 %v389
      %2523 = vmatprep.subr.bf16.mxu0 0
      %2524 = vmatpush1.bf16.msra.mxu0 %v390
      %2525 = vmatprep.subr.bf16.mxu0 0
      %2526 = vmatpush1.bf16.msra.mxu0 0
      %2527 = vmatprep.subr.bf16.mxu0 0
      %2528 = vmatpush1.bf16.msra.mxu0 0
      %2529 = vmatprep.subr.bf16.mxu0 0
      %2530 = vmatpush1.bf16.msra.mxu0 0
      %2531 = vmatprep.subr.bf16.mxu0 0
      %2532 = vmatpush1.bf16.msra.mxu0 0
      %2533 = vmatprep.subr.bf16.mxu0 0
      %2534 = vmatpush1.bf16.msra.mxu0 0
      %2535 = vmatprep.subr.bf16.mxu0 0
      %2536 = vmatpush1.bf16.msra.mxu0 0
      %2537 = vmatprep.subr.bf16.mxu0 0
      %2538 = vmatpush1.bf16.msra.mxu0 0
      %2539 = vmatprep.subr.bf16.mxu0 0
      %2540 = vmatpush1.bf16.msra.mxu0 0
      %2541 = vmatprep.subr.bf16.mxu0 0
      %2542 = vmatpush1.bf16.msra.mxu0 0
      %2543 = vmatprep.subr.bf16.mxu0 0
      %2544 = vmatpush1.bf16.msra.mxu0 0
      %2545 = vmatprep.subr.bf16.mxu0 0
      %2546 = vmatpush1.bf16.msra.mxu0 0
      %2547 = vmatprep.subr.bf16.mxu0 0
      %2548 = vmatpush1.bf16.msra.mxu0 0
      %2549 = vmatprep.mubr.bf16.mxu0 0
      %2550 = vmatmul.mubr.bf16.gmra.mrb[0].mxu0 %v2515
      %v2551 = vpop.f32.mrb[0].mxu0
      %v2552 = vadd.f32 0.0, %v2551
      %v2553 = vpop.f32.mrb[0].mxu0
      %v2554 = vpop.f32.mrb[0].mxu0
      %v2555 = vadd.f32 0.0, %v2554
      %v2556 = vpop.f32.mrb[0].mxu0
      %2557 = vdwg.mxu0
      %v2558 = vadd.f32 %v2500, %v2552
      %v2559 = vadd.f32 %v2503, %v2555
      %v2560 = vld [vmem:[%s2506 + $0x4] sm:$0xf]
      %v2562 = vunpack.c.l.b16 %v2560
      %v2563 = vpack.c.b16 %v2562, %v2511
      %v2565 = vshrl.u32 %v2563, 16
      %v2567 = vshll.u32 %v2563, 16
      %v2569 = vrot.slane %v2567, 1
      %v2570 = vor.u32 %v2565, %v2569
      %v2572 = vsel %vm247, %v2570, 0
      %2574 = vmatprep.subr.bf16.mxu0 0
      %2575 = vmatpush1.bf16.msra.mxu0 %v468
      %2576 = vmatprep.subr.bf16.mxu0 0
      %2577 = vmatpush1.bf16.msra.mxu0 %v469
      %2578 = vmatprep.subr.bf16.mxu0 0
      %2579 = vmatpush1.bf16.msra.mxu0 %v470
      %2580 = vmatprep.subr.bf16.mxu0 0
      %2581 = vmatpush1.bf16.msra.mxu0 %v471
      %2582 = vmatprep.subr.bf16.mxu0 0
      %2583 = vmatpush1.bf16.msra.mxu0 0
      %2584 = vmatprep.subr.bf16.mxu0 0
      %2585 = vmatpush1.bf16.msra.mxu0 0
      %2586 = vmatprep.subr.bf16.mxu0 0
      %2587 = vmatpush1.bf16.msra.mxu0 0
      %2588 = vmatprep.subr.bf16.mxu0 0
      %2589 = vmatpush1.bf16.msra.mxu0 0
      %2590 = vmatprep.subr.bf16.mxu0 0
      %2591 = vmatpush1.bf16.msra.mxu0 0
      %2592 = vmatprep.subr.bf16.mxu0 0
      %2593 = vmatpush1.bf16.msra.mxu0 0
      %2594 = vmatprep.subr.bf16.mxu0 0
      %2595 = vmatpush1.bf16.msra.mxu0 0
      %2596 = vmatprep.subr.bf16.mxu0 0
      %2597 = vmatpush1.bf16.msra.mxu0 0
      %2598 = vmatprep.subr.bf16.mxu0 0
      %2599 = vmatpush1.bf16.msra.mxu0 0
      %2600 = vmatprep.subr.bf16.mxu0 0
      %2601 = vmatpush1.bf16.msra.mxu0 0
      %2602 = vmatprep.subr.bf16.mxu0 0
      %2603 = vmatpush1.bf16.msra.mxu0 0
      %2604 = vmatprep.subr.bf16.mxu0 0
      %2605 = vmatpush1.bf16.msra.mxu0 0
      %2606 = vmatprep.mubr.bf16.mxu0 0
      %2607 = vmatmul.mubr.bf16.gmra.mrb[0].mxu0 %v2572
      %v2608 = vpop.f32.mrb[0].mxu0
      %v2609 = vadd.f32 0.0, %v2608
      %v2610 = vpop.f32.mrb[0].mxu0
      %v2611 = vpop.f32.mrb[0].mxu0
      %v2612 = vadd.f32 0.0, %v2611
      %v2613 = vpop.f32.mrb[0].mxu0
      %2614 = vdwg.mxu0
      %v2615 = vadd.f32 %v2558, %v2609
      %v2616 = vadd.f32 %v2559, %v2612
      %v2617 = vadd.f32 %v2615, %v526
      %v2618 = vadd.f32 %v2616, %v526
      %v2619 = vmax.f32 %v2617, 0.0
      %v2620 = vmax.f32 %v2618, 0.0
      %v2621 = vpack.c.bf16 %v2620, %v2619
      %v2623 = vunpack.c.l.b16 %v2621
      %v2624 = vunpack.c.h.b16 %v2621
      %v2625 = vpack.c.b16 %v2623, %v2623
      %v2626 = vpack.c.b16 %v2624, %v2624
      %s2629 = scalar_lea.vmem %s170, 72
      %2630 = vst.msk [vmem:[%s2629] sm:$0xf] %vm540, %v2625
      %2631 = vst.msk [vmem:[%s2629 + $0x4] sm:$0x7] %vm542, %v2626
      %p2632 = scmp.lt.s32.totalorder %s14, 1
      %s2633 = scalar_select %p2632, %s14, 1
      %s2634 = smul.addr %s2633, 20
      %s2635 = smul.addr %s2634, 4
      %s2636 = scalar_lea.vmem %s3, %s2635
      // Predicated region
      $region33: #{ddqn_forward.4} parent=31 // pred_check
        %p2637 = pneg %p100
      $region34: #{ddqn_forward.4} parent=31 // pred_check_branch
        %2639 = sbr.rel (%p2637) target = $region36
      $region35: #{ddqn_forward.4} parent=31 // pred_region
        _
      $region36: #{ddqn_forward.4} parent=31 // pred_fallthru
        _
    $region32: #{ddqn_forward.4} parent=5 // pred_fallthru
      _
    %p2640 = scmp.le.s32.totalorder 2, %s9
    // Predicated region
    $region37: #{ddqn_forward.4} parent=5 // pred_check
      %p2641 = pneg %p2640
    $region38: #{ddqn_forward.4} parent=5 // pred_check_branch
      %2643 = sbr.rel (%p2641) target = $region40
    $region39: #{ddqn_forward.4} parent=5 // pred_region
      %s2644 = ssub.s32 %s9, 2
      // Predicated region
      $region41: #{ddqn_forward.4} parent=39 // pred_check
        %p2645 = pneg %p106
      $region42: #{ddqn_forward.4} parent=39 // pred_check_branch
        %2647 = sbr.rel (%p2645) target = $region44
      $region43: #{ddqn_forward.4} parent=39 // pred_region
        %p2648 = scmp.lt.s32.totalorder %s15, 1
        %s2649 = scalar_select %p2648, %s15, 1
        %s2650 = smul.addr %s2649, 20
        %s2651 = smul.addr %s2650, 4
        %s2652 = scalar_lea.vmem %s3, %s2651
      $region44: #{ddqn_forward.4} parent=39 // pred_fallthru
        _
    $region40: #{ddqn_forward.4} parent=5 // pred_fallthru
      _
  $region6: #{ddqn_forward.4} parent=0 // loop_footer
    %s13 = sadd.s32 1, %s9
  $region7: #{ddqn_forward.4} parent=0 // loop_footer_branch
    %8 = sbr.rel target = $region3
  $region8: #{ddqn_forward.4} parent=0 // loop_exit
    _

// kernel: ddqn_forward.5
$region0: #{ddqn_forward.5}
  #allocation0 [shape = 'u32[]', space=smem, size = 0x4, offset = 0x4, fixed_abs, tag = 'smem constant byte address 0x4 - core index']
  #allocation1 [shape = 'u32[144,128]{1,0:T(1,128)}', space=vmem, size = 0x12000, scoped, tag = 'internal scratch']
  %s0 = inlined_call_operand.vmem [shape: bf16[2,5,7,128], index: 0, kind: input, shape index: {}]
  %s1 = inlined_call_operand.vmem [shape: bf16[4,128,64], index: 1, kind: input, shape index: {}]
  %s2 = inlined_call_operand.vmem [shape: f32[1,64], index: 2, kind: input, shape index: {}]
  %s3 = inlined_call_operand.vmem [shape: bf16[2,4,6,64], index: 3, kind: output, shape index: {}]
  %s4 = sld [smem:[#allocation0]]
  $region45: #{ddqn_forward.5} parent=0
    _
  %s6 = ssub.s32 1, %s4
  %s7 = scalar_select 0, %s6, %s4
  loop: start=0, step=1, limit=4
  $region2: #{ddqn_forward.5} parent=0 // loop_pre_header
    _
  $region3: #{ddqn_forward.5} parent=0 // loop_header
    %s9 = sphi 0, %s13
    %p10 = scmp.ge.s32.totalorder %s9, 4
    %s19 = sphi 0, %s21
    %s22 = sphi 0, %s19
    %s23 = sphi 0, %s22
    %s39 = sphi 0, %s23
    %s43 = sphi 0, %s43
    %s45 = sphi 0, %s43
    %s46 = sphi 0, %s45
    %s60 = sphi 0, %s46
    %s64 = sphi 0, %s64
    %s66 = sphi 0, %s64
    %s67 = sphi 0, %s66
    %s81 = sphi 0, %s67
    %s87 = sphi 0, %s89
    %s90 = sphi 0, %s87
    %s91 = sphi 0, %s90
    %s107 = sphi 0, %s91
  $region4: #{ddqn_forward.5} parent=0 // loop_header_branch
    %12 = sbr.rel (%p10) target = $region8
  $region5: #{ddqn_forward.5} parent=0 // loop_body
    %s14 = ssub.s32 %s9, 1
    %s15 = ssub.s32 %s9, 2
    %s16 = sadd.s32 %s9, 1
    %s17 = ssub.s32 %s9, %s16
    %p18 = scmp.eq.s32.totalorder %s17, 0
    %s20 = sadd.s32 %s19, 1
    %s21 = scalar_select %p18, %s19, %s20
    %p24 = pneg %p18
    %p25 = scmp.eq.s32.totalorder %s9, 1
    %p26 = por %p24, %p25
    %p27 = scmp.ne.s32.totalorder %s19, %s22
    %p28 = scmp.eq.s32.totalorder %s9, 0
    %p29 = por %p27, %p28
    %p30 = scmp.ne.s32.totalorder %s19, %s22
    %p31 = scmp.eq.s32.totalorder %s14, 1
    %p32 = por %p30, %p31
    %p33 = scmp.ne.s32.totalorder %s22, %s23
    %p34 = scmp.eq.s32.totalorder %s14, 0
    %p35 = por %p33, %p34
    %p36 = scmp.ne.s32.totalorder %s22, %s23
    %p37 = scmp.eq.s32.totalorder %s15, 1
    %p38 = por %p36, %p37
    %p40 = scmp.ne.s32.totalorder %s23, %s39
    %p41 = scmp.eq.s32.totalorder %s15, 0
    %p42 = por %p40, %p41
    %s44 = sadd.s32 %s43, 1
    %p47 = scmp.eq.s32.totalorder %s9, 1
    %p48 = scmp.ne.s32.totalorder %s43, %s45
    %p49 = scmp.eq.s32.totalorder %s9, 0
    %p50 = por %p48, %p49
    %p51 = scmp.ne.s32.totalorder %s43, %s45
    %p52 = scmp.eq.s32.totalorder %s14, 1
    %p53 = por %p51, %p52
    %p54 = scmp.ne.s32.totalorder %s45, %s46
    %p55 = scmp.eq.s32.totalorder %s14, 0
    %p56 = por %p54, %p55
    %p57 = scmp.ne.s32.totalorder %s45, %s46
    %p58 = scmp.eq.s32.totalorder %s15, 1
    %p59 = por %p57, %p58
    %p61 = scmp.ne.s32.totalorder %s46, %s60
    %p62 = scmp.eq.s32.totalorder %s15, 0
    %p63 = por %p61, %p62
    %s65 = sadd.s32 %s64, 1
    %p68 = scmp.eq.s32.totalorder %s9, 1
    %p69 = scmp.ne.s32.totalorder %s64, %s66
    %p70 = scmp.eq.s32.totalorder %s9, 0
    %p71 = por %p69, %p70
    %p72 = scmp.ne.s32.totalorder %s64, %s66
    %p73 = scmp.eq.s32.totalorder %s14, 1
    %p74 = por %p72, %p73
    %p75 = scmp.ne.s32.totalorder %s66, %s67
    %p76 = scmp.eq.s32.totalorder %s14, 0
    %p77 = por %p75, %p76
    %p78 = scmp.ne.s32.totalorder %s66, %s67
    %p79 = scmp.eq.s32.totalorder %s15, 1
    %p80 = por %p78, %p79
    %p82 = scmp.ne.s32.totalorder %s67, %s81
    %p83 = scmp.eq.s32.totalorder %s15, 0
    %p84 = por %p82, %p83
    %s85 = ssub.s32 %s9, %s16
    %p86 = scmp.eq.s32.totalorder %s85, 0
    %s88 = sadd.s32 %s87, 1
    %s89 = scalar_select %p86, %s87, %s88
    %p92 = pneg %p86
    %p93 = scmp.eq.s32.totalorder %s9, 1
    %p94 = por %p92, %p93
    %p95 = scmp.ne.s32.totalorder %s87, %s90
    %p96 = scmp.eq.s32.totalorder %s9, 0
    %p97 = por %p95, %p96
    %p98 = scmp.ne.s32.totalorder %s87, %s90
    %p99 = scmp.eq.s32.totalorder %s14, 1
    %p100 = por %p98, %p99
    %p101 = scmp.ne.s32.totalorder %s90, %s91
    %p102 = scmp.eq.s32.totalorder %s14, 0
    %p103 = por %p101, %p102
    %p104 = scmp.ne.s32.totalorder %s90, %s91
    %p105 = scmp.eq.s32.totalorder %s15, 1
    %p106 = por %p104, %p105
    %p108 = scmp.ne.s32.totalorder %s91, %s107
    %p109 = scmp.eq.s32.totalorder %s15, 0
    %p110 = por %p108, %p109
    %p111 = scmp.le.s32.totalorder 1, %s9
    %p112 = scmp.lt.s32.totalorder %s9, 3
    %p113 = pnand %p111, %p112
    %p114 = pneg %p113
    // Predicated region
    $region9: #{ddqn_forward.5} parent=5 // pred_check
      _
    $region10: #{ddqn_forward.5} parent=5 // pred_check_branch
      %116 = sbr.rel (%p113) target = $region12
    $region11: #{ddqn_forward.5} parent=5 // pred_region
      %s117 = ssub.s32 %s9, 1
      // Predicated region
      $region13: #{ddqn_forward.5} parent=11 // pred_check
        %p118 = pneg %p56
      $region14: #{ddqn_forward.5} parent=11 // pred_check_branch
        %120 = sbr.rel (%p118) target = $region16
      $region15: #{ddqn_forward.5} parent=11 // pred_region
        _
      $region16: #{ddqn_forward.5} parent=11 // pred_fallthru
        _
      // Predicated region
      $region17: #{ddqn_forward.5} parent=11 // pred_check
        %p121 = pneg %p77
      $region18: #{ddqn_forward.5} parent=11 // pred_check_branch
        %123 = sbr.rel (%p121) target = $region20
      $region19: #{ddqn_forward.5} parent=11 // pred_region
        _
      $region20: #{ddqn_forward.5} parent=11 // pred_fallthru
        _
    $region12: #{ddqn_forward.5} parent=5 // pred_fallthru
      _
    %p124 = scmp.lt.s32.totalorder %s9, 2
    // Predicated region
    $region21: #{ddqn_forward.5} parent=5 // pred_check
      %p125 = pneg %p124
    $region22: #{ddqn_forward.5} parent=5 // pred_check_branch
      %127 = sbr.rel (%p125) target = $region24
    $region23: #{ddqn_forward.5} parent=5 // pred_region
      // Predicated region
      $region25: #{ddqn_forward.5} parent=23 // pred_check
        %p128 = pneg %p29
      $region26: #{ddqn_forward.5} parent=23 // pred_check_branch
        %130 = sbr.rel (%p128) target = $region28
      $region27: #{ddqn_forward.5} parent=23 // pred_region
        %p131 = scmp.lt.s32.totalorder %s9, 1
        %s132 = scalar_select %p131, %s9, 1
        %s133 = smul.addr %s132, 5
        %s134 = smul.addr %s133, 4
        %s135 = scalar_lea.vmem %s0, %s134
      $region28: #{ddqn_forward.5} parent=23 // pred_fallthru
        _
    $region24: #{ddqn_forward.5} parent=5 // pred_fallthru
      _
    %p136 = scmp.le.s32.totalorder 1, %s9
    %p137 = scmp.lt.s32.totalorder %s9, 3
    %p138 = pnand %p136, %p137
    %p139 = pneg %p138
    // Predicated region
    $region29: #{ddqn_forward.5} parent=5 // pred_check
      _
    $region30: #{ddqn_forward.5} parent=5 // pred_check_branch
      %141 = sbr.rel (%p138) target = $region32
    $region31: #{ddqn_forward.5} parent=5 // pred_region
      %s142 = ssub.s32 %s9, 1
      %p143 = scmp.lt.s32.totalorder %s14, 1
      %s144 = scalar_select %p143, %s14, 1
      %s145 = smul.addr %s144, 5
      %s146 = smul.addr %s145, 4
      %s147 = scalar_lea.vmem %s0, %s146
      %p148 = pneg %p35
      %p149 = pneg %p32
      %p150 = pneg %p56
      %p151 = pneg %p53
      %p152 = pneg %p77
      %p153 = pneg %p74
      %p154 = pneg %p103
      %p155 = pneg %p100
      %p156 = scmp.lt.s32.totalorder %s14, 1
      %s157 = scalar_select %p156, %s14, 1
      %s158 = smul.addr %s157, 4
      %s159 = smul.addr %s158, 4
      %s160 = scalar_lea.vmem %s3, %s159
      %p161 = scmp.lt.s32.totalorder %s14, 1
      %s162 = scalar_select %p161, %s14, 1
      %s163 = smul.addr %s162, 5
      %s164 = smul.addr %s163, 4
      %s165 = scalar_lea.vmem %s0, %s164
      %p166 = scmp.lt.s32.totalorder %s14, 1
      %s167 = scalar_select %p166, %s14, 1
      %s168 = smul.addr %s167, 4
      %s169 = smul.addr %s168, 4
      %s170 = scalar_lea.vmem %s3, %s169
      %v172 = vld [vmem:[%s2] sm:$0x1]
      %v173 = vld [vmem:[%s1] sm:$0xf]
      %v174 = vld [vmem:[%s1 + $0x4] sm:$0xf]
      %v175 = vld [vmem:[%s1 + $0x8] sm:$0xf]
      %v176 = vld [vmem:[%s1 + $0xc] sm:$0xf]
      %v177 = vld [vmem:[%s1 + $0x10] sm:$0xf]
      %v178 = vld [vmem:[%s1 + $0x14] sm:$0xf]
      %v179 = vld [vmem:[%s1 + $0x18] sm:$0xf]
      %v180 = vld [vmem:[%s1 + $0x1c] sm:$0xf]
      %v181 = vld [vmem:[%s1 + $0x20] sm:$0xf]
      %v182 = vld [vmem:[%s1 + $0x24] sm:$0xf]
      %v183 = vld [vmem:[%s1 + $0x28] sm:$0xf]
      %v184 = vld [vmem:[%s1 + $0x2c] sm:$0xf]
      %v185 = vld [vmem:[%s1 + $0x30] sm:$0xf]
      %v186 = vld [vmem:[%s1 + $0x34] sm:$0xf]
      %v187 = vld [vmem:[%s1 + $0x38] sm:$0xf]
      %v188 = vld [vmem:[%s1 + $0x3c] sm:$0xf]
      %s189 = scalar_lea.vmem %s1, 64
      %v190 = vld [vmem:[%s189] sm:$0xf]
      %v191 = vld [vmem:[%s189 + $0x4] sm:$0xf]
      %v192 = vld [vmem:[%s189 + $0x8] sm:$0xf]
      %v193 = vld [vmem:[%s189 + $0xc] sm:$0xf]
      %v194 = vld [vmem:[%s189 + $0x10] sm:$0xf]
      %v195 = vld [vmem:[%s189 + $0x14] sm:$0xf]
      %v196 = vld [vmem:[%s189 + $0x18] sm:$0xf]
      %v197 = vld [vmem:[%s189 + $0x1c] sm:$0xf]
      %v198 = vld [vmem:[%s189 + $0x20] sm:$0xf]
      %v199 = vld [vmem:[%s189 + $0x24] sm:$0xf]
      %v200 = vld [vmem:[%s189 + $0x28] sm:$0xf]
      %v201 = vld [vmem:[%s189 + $0x2c] sm:$0xf]
      %v202 = vld [vmem:[%s189 + $0x30] sm:$0xf]
      %v203 = vld [vmem:[%s189 + $0x34] sm:$0xf]
      %v204 = vld [vmem:[%s189 + $0x38] sm:$0xf]
      %v205 = vld [vmem:[%s189 + $0x3c] sm:$0xf]
      %s206 = scalar_lea.vmem %s1, 128
      %v207 = vld [vmem:[%s206] sm:$0xf]
      %v208 = vld [vmem:[%s206 + $0x4] sm:$0xf]
      %v209 = vld [vmem:[%s206 + $0x8] sm:$0xf]
      %v210 = vld [vmem:[%s206 + $0xc] sm:$0xf]
      %v211 = vld [vmem:[%s206 + $0x10] sm:$0xf]
      %v212 = vld [vmem:[%s206 + $0x14] sm:$0xf]
      %v213 = vld [vmem:[%s206 + $0x18] sm:$0xf]
      %v214 = vld [vmem:[%s206 + $0x1c] sm:$0xf]
      %v215 = vld [vmem:[%s206 + $0x20] sm:$0xf]
      %v216 = vld [vmem:[%s206 + $0x24] sm:$0xf]
      %v217 = vld [vmem:[%s206 + $0x28] sm:$0xf]
      %v218 = vld [vmem:[%s206 + $0x2c] sm:$0xf]
      %v219 = vld [vmem:[%s206 + $0x30] sm:$0xf]
      %v220 = vld [vmem:[%s206 + $0x34] sm:$0xf]
      %v221 = vld [vmem:[%s206 + $0x38] sm:$0xf]
      %v222 = vld [vmem:[%s206 + $0x3c] sm:$0xf]
      %s223 = scalar_lea.vmem %s1, 192
      %v224 = vld [vmem:[%s223] sm:$0xf]
      %v225 = vld [vmem:[%s223 + $0x4] sm:$0xf]
      %v226 = vld [vmem:[%s223 + $0x8] sm:$0xf]
      %v227 = vld [vmem:[%s223 + $0xc] sm:$0xf]
      %v228 = vld [vmem:[%s223 + $0x10] sm:$0xf]
      %v229 = vld [vmem:[%s223 + $0x14] sm:$0xf]
      %v230 = vld [vmem:[%s223 + $0x18] sm:$0xf]
      %v231 = vld [vmem:[%s223 + $0x1c] sm:$0xf]
      %v232 = vld [vmem:[%s223 + $0x20] sm:$0xf]
      %v233 = vld [vmem:[%s223 + $0x24] sm:$0xf]
      %v234 = vld [vmem:[%s223 + $0x28] sm:$0xf]
      %v235 = vld [vmem:[%s223 + $0x2c] sm:$0xf]
      %v236 = vld [vmem:[%s223 + $0x30] sm:$0xf]
      %v237 = vld [vmem:[%s223 + $0x34] sm:$0xf]
      %v238 = vld [vmem:[%s223 + $0x38] sm:$0xf]
      %v239 = vld [vmem:[%s223 + $0x3c] sm:$0xf]
      %v240 = vld [vmem:[%s165] sm:$0x7]
      %v241 = vld [vmem:[%s165] sm:$0xf]
      %v243 = vunpack.c.l.b16 %v241
      %v244 = vpack.c.b16 %v243, %v243
      %v246 = vshrl.u32 %v244, 16
      %v248 = vshll.u32 %v244, 16
      %v250 = vrot.slane %v248, 1
      %v251 = vor.u32 %v246, %v250
      %v269 = vunpack.c.l.b16 %v190
      %v270 = vunpack.c.l.b16 %v191
      %v271 = vunpack.c.l.b16 %v192
      %v272 = vunpack.c.l.b16 %v193
      %v273 = vunpack.c.l.b16 %v194
      %v274 = vunpack.c.l.b16 %v195
      %v275 = vunpack.c.l.b16 %v196
      %v276 = vunpack.c.l.b16 %v197
      %v277 = vunpack.c.l.b16 %v198
      %v278 = vunpack.c.l.b16 %v199
      %v279 = vunpack.c.l.b16 %v200
      %v280 = vunpack.c.l.b16 %v201
      %v281 = vunpack.c.l.b16 %v202
      %v282 = vunpack.c.l.b16 %v203
      %v283 = vunpack.c.l.b16 %v204
      %v284 = vunpack.c.l.b16 %v205
      %v285 = vpack.c.b16 %v270, %v269
      %v286 = vpack.c.b16 %v272, %v271
      %v287 = vpack.c.b16 %v274, %v273
      %v288 = vpack.c.b16 %v276, %v275
      %v289 = vpack.c.b16 %v278, %v277
      %v290 = vpack.c.b16 %v280, %v279
      %v291 = vpack.c.b16 %v282, %v281
      %v292 = vpack.c.b16 %v284, %v283
      %301 = vmatprep.subr.bf16.mxu0 0
      %302 = vmatpush1.bf16.msra.mxu0 %v285
      %303 = vmatprep.subr.bf16.mxu0 0
      %304 = vmatpush1.bf16.msra.mxu0 %v286
      %305 = vmatprep.subr.bf16.mxu0 0
      %306 = vmatpush1.bf16.msra.mxu0 %v287
      %307 = vmatprep.subr.bf16.mxu0 0
      %308 = vmatpush1.bf16.msra.mxu0 %v288
      %309 = vmatprep.subr.bf16.mxu0 0
      %310 = vmatpush1.bf16.msra.mxu0 %v289
      %311 = vmatprep.subr.bf16.mxu0 0
      %312 = vmatpush1.bf16.msra.mxu0 %v290
      %313 = vmatprep.subr.bf16.mxu0 0
      %314 = vmatpush1.bf16.msra.mxu0 %v291
      %315 = vmatprep.subr.bf16.mxu0 0
      %316 = vmatpush1.bf16.msra.mxu0 %v292
      %317 = vmatprep.subr.bf16.mxu0 0
      %318 = vmatpush1.bf16.msra.mxu0 0
      %319 = vmatprep.subr.bf16.mxu0 0
      %320 = vmatpush1.bf16.msra.mxu0 0
      %321 = vmatprep.subr.bf16.mxu0 0
      %322 = vmatpush1.bf16.msra.mxu0 0
      %323 = vmatprep.subr.bf16.mxu0 0
      %324 = vmatpush1.bf16.msra.mxu0 0
      %325 = vmatprep.subr.bf16.mxu0 0
      %326 = vmatpush1.bf16.msra.mxu0 0
      %327 = vmatprep.subr.bf16.mxu0 0
      %328 = vmatpush1.bf16.msra.mxu0 0
      %329 = vmatprep.subr.bf16.mxu0 0
      %330 = vmatpush1.bf16.msra.mxu0 0
      %331 = vmatprep.subr.bf16.mxu0 0
      %332 = vmatpush1.bf16.msra.mxu0 0
      %333 = vmatprep.mubr.bf16.mxu0 0
      %334 = vmatmul.mubr.bf16.gmra.mrb[0].mxu0 %v251
      %v335 = vpop.f32.mrb[0].mxu0
      %v336 = vadd.f32 0.0, %v335
      %v337 = vpop.f32.mrb[0].mxu0
      %v338 = vpop.f32.mrb[0].mxu0
      %v339 = vpop.f32.mrb[0].mxu0
      %340 = vdwg.mxu0
      %v357 = vunpack.c.l.b16 %v173
      %v358 = vunpack.c.l.b16 %v174
      %v359 = vunpack.c.l.b16 %v175
      %v360 = vunpack.c.l.b16 %v176
      %v361 = vunpack.c.l.b16 %v177
      %v362 = vunpack.c.l.b16 %v178
      %v363 = vunpack.c.l.b16 %v179
      %v364 = vunpack.c.l.b16 %v180
      %v365 = vunpack.c.l.b16 %v181
      %v366 = vunpack.c.l.b16 %v182
      %v367 = vunpack.c.l.b16 %v183
      %v368 = vunpack.c.l.b16 %v184
      %v369 = vunpack.c.l.b16 %v185
      %v370 = vunpack.c.l.b16 %v186
      %v371 = vunpack.c.l.b16 %v187
      %v372 = vunpack.c.l.b16 %v188
      %v373 = vpack.c.b16 %v358, %v357
      %v374 = vpack.c.b16 %v360, %v359
      %v375 = vpack.c.b16 %v362, %v361
      %v376 = vpack.c.b16 %v364, %v363
      %v377 = vpack.c.b16 %v366, %v365
      %v378 = vpack.c.b16 %v368, %v367
      %v379 = vpack.c.b16 %v370, %v369
      %v380 = vpack.c.b16 %v372, %v371
      %389 = vmatprep.subr.bf16.mxu0 0
      %390 = vmatpush1.bf16.msra.mxu0 %v373
      %391 = vmatprep.subr.bf16.mxu0 0
      %392 = vmatpush1.bf16.msra.mxu0 %v374
      %393 = vmatprep.subr.bf16.mxu0 0
      %394 = vmatpush1.bf16.msra.mxu0 %v375
      %395 = vmatprep.subr.bf16.mxu0 0
      %396 = vmatpush1.bf16.msra.mxu0 %v376
      %397 = vmatprep.subr.bf16.mxu0 0
      %398 = vmatpush1.bf16.msra.mxu0 %v377
      %399 = vmatprep.subr.bf16.mxu0 0
      %400 = vmatpush1.bf16.msra.mxu0 %v378
      %401 = vmatprep.subr.bf16.mxu0 0
      %402 = vmatpush1.bf16.msra.mxu0 %v379
      %403 = vmatprep.subr.bf16.mxu0 0
      %404 = vmatpush1.bf16.msra.mxu0 %v380
      %405 = vmatprep.subr.bf16.mxu0 0
      %406 = vmatpush1.bf16.msra.mxu0 0
      %407 = vmatprep.subr.bf16.mxu0 0
      %408 = vmatpush1.bf16.msra.mxu0 0
      %409 = vmatprep.subr.bf16.mxu0 0
      %410 = vmatpush1.bf16.msra.mxu0 0
      %411 = vmatprep.subr.bf16.mxu0 0
      %412 = vmatpush1.bf16.msra.mxu0 0
      %413 = vmatprep.subr.bf16.mxu0 0
      %414 = vmatpush1.bf16.msra.mxu0 0
      %415 = vmatprep.subr.bf16.mxu0 0
      %416 = vmatpush1.bf16.msra.mxu0 0
      %417 = vmatprep.subr.bf16.mxu0 0
      %418 = vmatpush1.bf16.msra.mxu0 0
      %419 = vmatprep.subr.bf16.mxu0 0
      %420 = vmatpush1.bf16.msra.mxu0 0
      %421 = vmatprep.mubr.bf16.mxu0 0
      %422 = vmatmul.mubr.bf16.gmra.mrb[0].mxu0 %v240
      %v423 = vpop.f32.mrb[0].mxu0
      %v424 = vadd.f32 %v336, %v423
      %v425 = vpop.f32.mrb[0].mxu0
      %v426 = vpop.f32.mrb[0].mxu0
      %v427 = vpop.f32.mrb[0].mxu0
      %428 = vdwg.mxu0
      %s429 = scalar_lea.vmem %s165, 4
      %v430 = vld [vmem:[%s429] sm:$0x7]
      %v447 = vunpack.c.l.b16 %v207
      %v448 = vunpack.c.l.b16 %v208
      %v449 = vunpack.c.l.b16 %v209
      %v450 = vunpack.c.l.b16 %v210
      %v451 = vunpack.c.l.b16 %v211
      %v452 = vunpack.c.l.b16 %v212
      %v453 = vunpack.c.l.b16 %v213
      %v454 = vunpack.c.l.b16 %v214
      %v455 = vunpack.c.l.b16 %v215
      %v456 = vunpack.c.l.b16 %v216
      %v457 = vunpack.c.l.b16 %v217
      %v458 = vunpack.c.l.b16 %v218
      %v459 = vunpack.c.l.b16 %v219
      %v460 = vunpack.c.l.b16 %v220
      %v461 = vunpack.c.l.b16 %v221
      %v462 = vunpack.c.l.b16 %v222
      %v463 = vpack.c.b16 %v448, %v447
      %v464 = vpack.c.b16 %v450, %v449
      %v465 = vpack.c.b16 %v452, %v451
      %v466 = vpack.c.b16 %v454, %v453
      %v467 = vpack.c.b16 %v456, %v455
      %v468 = vpack.c.b16 %v458, %v457
      %v469 = vpack.c.b16 %v460, %v459
      %v470 = vpack.c.b16 %v462, %v461
      %479 = vmatprep.subr.bf16.mxu0 0
      %480 = vmatpush1.bf16.msra.mxu0 %v463
      %481 = vmatprep.subr.bf16.mxu0 0
      %482 = vmatpush1.bf16.msra.mxu0 %v464
      %483 = vmatprep.subr.bf16.mxu0 0
      %484 = vmatpush1.bf16.msra.mxu0 %v465
      %485 = vmatprep.subr.bf16.mxu0 0
      %486 = vmatpush1.bf16.msra.mxu0 %v466
      %487 = vmatprep.subr.bf16.mxu0 0
      %488 = vmatpush1.bf16.msra.mxu0 %v467
      %489 = vmatprep.subr.bf16.mxu0 0
      %490 = vmatpush1.bf16.msra.mxu0 %v468
      %491 = vmatprep.subr.bf16.mxu0 0
      %492 = vmatpush1.bf16.msra.mxu0 %v469
      %493 = vmatprep.subr.bf16.mxu0 0
      %494 = vmatpush1.bf16.msra.mxu0 %v470
      %495 = vmatprep.subr.bf16.mxu0 0
      %496 = vmatpush1.bf16.msra.mxu0 0
      %497 = vmatprep.subr.bf16.mxu0 0
      %498 = vmatpush1.bf16.msra.mxu0 0
      %499 = vmatprep.subr.bf16.mxu0 0
      %500 = vmatpush1.bf16.msra.mxu0 0
      %501 = vmatprep.subr.bf16.mxu0 0
      %502 = vmatpush1.bf16.msra.mxu0 0
      %503 = vmatprep.subr.bf16.mxu0 0
      %504 = vmatpush1.bf16.msra.mxu0 0
      %505 = vmatprep.subr.bf16.mxu0 0
      %506 = vmatpush1.bf16.msra.mxu0 0
      %507 = vmatprep.subr.bf16.mxu0 0
      %508 = vmatpush1.bf16.msra.mxu0 0
      %509 = vmatprep.subr.bf16.mxu0 0
      %510 = vmatpush1.bf16.msra.mxu0 0
      %511 = vmatprep.mubr.bf16.mxu0 0
      %512 = vmatmul.mubr.bf16.gmra.mrb[0].mxu0 %v430
      %v513 = vpop.f32.mrb[0].mxu0
      %v514 = vadd.f32 0.0, %v513
      %v515 = vpop.f32.mrb[0].mxu0
      %v516 = vpop.f32.mrb[0].mxu0
      %v517 = vpop.f32.mrb[0].mxu0
      %518 = vdwg.mxu0
      %v519 = vadd.f32 %v424, %v514
      %v520 = vld [vmem:[%s429] sm:$0xf]
      %v522 = vunpack.c.l.b16 %v520
      %v523 = vpack.c.b16 %v522, %v522
      %v525 = vshrl.u32 %v523, 16
      %v527 = vshll.u32 %v523, 16
      %v529 = vrot.slane %v527, 1
      %v530 = vor.u32 %v525, %v529
      %v548 = vunpack.c.l.b16 %v224
      %v549 = vunpack.c.l.b16 %v225
      %v550 = vunpack.c.l.b16 %v226
      %v551 = vunpack.c.l.b16 %v227
      %v552 = vunpack.c.l.b16 %v228
      %v553 = vunpack.c.l.b16 %v229
      %v554 = vunpack.c.l.b16 %v230
      %v555 = vunpack.c.l.b16 %v231
      %v556 = vunpack.c.l.b16 %v232
      %v557 = vunpack.c.l.b16 %v233
      %v558 = vunpack.c.l.b16 %v234
      %v559 = vunpack.c.l.b16 %v235
      %v560 = vunpack.c.l.b16 %v236
      %v561 = vunpack.c.l.b16 %v237
      %v562 = vunpack.c.l.b16 %v238
      %v563 = vunpack.c.l.b16 %v239
      %v564 = vpack.c.b16 %v549, %v548
      %v565 = vpack.c.b16 %v551, %v550
      %v566 = vpack.c.b16 %v553, %v552
      %v567 = vpack.c.b16 %v555, %v554
      %v568 = vpack.c.b16 %v557, %v556
      %v569 = vpack.c.b16 %v559, %v558
      %v570 = vpack.c.b16 %v561, %v560
      %v571 = vpack.c.b16 %v563, %v562
      %580 = vmatprep.subr.bf16.mxu0 0
      %581 = vmatpush1.bf16.msra.mxu0 %v564
      %582 = vmatprep.subr.bf16.mxu0 0
      %583 = vmatpush1.bf16.msra.mxu0 %v565
      %584 = vmatprep.subr.bf16.mxu0 0
      %585 = vmatpush1.bf16.msra.mxu0 %v566
      %586 = vmatprep.subr.bf16.mxu0 0
      %587 = vmatpush1.bf16.msra.mxu0 %v567
      %588 = vmatprep.subr.bf16.mxu0 0
      %589 = vmatpush1.bf16.msra.mxu0 %v568
      %590 = vmatprep.subr.bf16.mxu0 0
      %591 = vmatpush1.bf16.msra.mxu0 %v569
      %592 = vmatprep.subr.bf16.mxu0 0
      %593 = vmatpush1.bf16.msra.mxu0 %v570
      %594 = vmatprep.subr.bf16.mxu0 0
      %595 = vmatpush1.bf16.msra.mxu0 %v571
      %596 = vmatprep.subr.bf16.mxu0 0
      %597 = vmatpush1.bf16.msra.mxu0 0
      %598 = vmatprep.subr.bf16.mxu0 0
      %599 = vmatpush1.bf16.msra.mxu0 0
      %600 = vmatprep.subr.bf16.mxu0 0
      %601 = vmatpush1.bf16.msra.mxu0 0
      %602 = vmatprep.subr.bf16.mxu0 0
      %603 = vmatpush1.bf16.msra.mxu0 0
      %604 = vmatprep.subr.bf16.mxu0 0
      %605 = vmatpush1.bf16.msra.mxu0 0
      %606 = vmatprep.subr.bf16.mxu0 0
      %607 = vmatpush1.bf16.msra.mxu0 0
      %608 = vmatprep.subr.bf16.mxu0 0
      %609 = vmatpush1.bf16.msra.mxu0 0
      %610 = vmatprep.subr.bf16.mxu0 0
      %611 = vmatpush1.bf16.msra.mxu0 0
      %612 = vmatprep.mubr.bf16.mxu0 0
      %613 = vmatmul.mubr.bf16.gmra.mrb[0].mxu0 %v530
      %v614 = vpop.f32.mrb[0].mxu0
      %v615 = vadd.f32 0.0, %v614
      %v616 = vpop.f32.mrb[0].mxu0
      %v617 = vpop.f32.mrb[0].mxu0
      %v618 = vpop.f32.mrb[0].mxu0
      %619 = vdwg.mxu0
      %v620 = vadd.f32 %v519, %v615
      %v622 = vlaneseq
      %v623 = vshrl.u32 %v622, 7
      %v624 = vsub.s32 0, %v623
      %v625 = vrot.slane %v172, %v624
      %v627 = vadd.f32 %v620, %v625
      %v628 = vmax.f32 %v627, 0.0
      %v629 = vpack.c.bf16 %v628, %v628
      %vm630 = vcmask 518144
      %631 = vst.msk [vmem:[%s170] sm:$0x7] %vm630, %v629
      %v632 = vld [vmem:[%s429] sm:$0x7]
      %v633 = vld [vmem:[%s429] sm:$0xf]
      %v635 = vunpack.c.l.b16 %v633
      %v636 = vpack.c.b16 %v635, %v635
      %v638 = vshrl.u32 %v636, 16
      %v640 = vshll.u32 %v636, 16
      %v642 = vrot.slane %v640, 1
      %v643 = vor.u32 %v638, %v642
      %645 = vmatprep.subr.bf16.mxu0 0
      %646 = vmatpush1.bf16.msra.mxu0 %v285
      %647 = vmatprep.subr.bf16.mxu0 0
      %648 = vmatpush1.bf16.msra.mxu0 %v286
      %649 = vmatprep.subr.bf16.mxu0 0
      %650 = vmatpush1.bf16.msra.mxu0 %v287
      %651 = vmatprep.subr.bf16.mxu0 0
      %652 = vmatpush1.bf16.msra.mxu0 %v288
      %653 = vmatprep.subr.bf16.mxu0 0
      %654 = vmatpush1.bf16.msra.mxu0 %v289
      %655 = vmatprep.subr.bf16.mxu0 0
      %656 = vmatpush1.bf16.msra.mxu0 %v290
      %657 = vmatprep.subr.bf16.mxu0 0
      %658 = vmatpush1.bf16.msra.mxu0 %v291
      %659 = vmatprep.subr.bf16.mxu0 0
      %660 = vmatpush1.bf16.msra.mxu0 %v292
      %661 = vmatprep.subr.bf16.mxu0 0
      %662 = vmatpush1.bf16.msra.mxu0 0
      %663 = vmatprep.subr.bf16.mxu0 0
      %664 = vmatpush1.bf16.msra.mxu0 0
      %665 = vmatprep.subr.bf16.mxu0 0
      %666 = vmatpush1.bf16.msra.mxu0 0
      %667 = vmatprep.subr.bf16.mxu0 0
      %668 = vmatpush1.bf16.msra.mxu0 0
      %669 = vmatprep.subr.bf16.mxu0 0
      %670 = vmatpush1.bf16.msra.mxu0 0
      %671 = vmatprep.subr.bf16.mxu0 0
      %672 = vmatpush1.bf16.msra.mxu0 0
      %673 = vmatprep.subr.bf16.mxu0 0
      %674 = vmatpush1.bf16.msra.mxu0 0
      %675 = vmatprep.subr.bf16.mxu0 0
      %676 = vmatpush1.bf16.msra.mxu0 0
      %677 = vmatprep.mubr.bf16.mxu0 0
      %678 = vmatmul.mubr.bf16.gmra.mrb[0].mxu0 %v643
      %v679 = vpop.f32.mrb[0].mxu0
      %v680 = vadd.f32 0.0, %v679
      %v681 = vpop.f32.mrb[0].mxu0
      %v682 = vpop.f32.mrb[0].mxu0
      %v683 = vpop.f32.mrb[0].mxu0
      %684 = vdwg.mxu0
      %685 = vmatprep.subr.bf16.mxu0 0
      %686 = vmatpush1.bf16.msra.mxu0 %v373
      %687 = vmatprep.subr.bf16.mxu0 0
      %688 = vmatpush1.bf16.msra.mxu0 %v374
      %689 = vmatprep.subr.bf16.mxu0 0
      %690 = vmatpush1.bf16.msra.mxu0 %v375
      %691 = vmatprep.subr.bf16.mxu0 0
      %692 = vmatpush1.bf16.msra.mxu0 %v376
      %693 = vmatprep.subr.bf16.mxu0 0
      %694 = vmatpush1.bf16.msra.mxu0 %v377
      %695 = vmatprep.subr.bf16.mxu0 0
      %696 = vmatpush1.bf16.msra.mxu0 %v378
      %697 = vmatprep.subr.bf16.mxu0 0
      %698 = vmatpush1.bf16.msra.mxu0 %v379
      %699 = vmatprep.subr.bf16.mxu0 0
      %700 = vmatpush1.bf16.msra.mxu0 %v380
      %701 = vmatprep.subr.bf16.mxu0 0
      %702 = vmatpush1.bf16.msra.mxu0 0
      %703 = vmatprep.subr.bf16.mxu0 0
      %704 = vmatpush1.bf16.msra.mxu0 0
      %705 = vmatprep.subr.bf16.mxu0 0
      %706 = vmatpush1.bf16.msra.mxu0 0
      %707 = vmatprep.subr.bf16.mxu0 0
      %708 = vmatpush1.bf16.msra.mxu0 0
      %709 = vmatprep.subr.bf16.mxu0 0
      %710 = vmatpush1.bf16.msra.mxu0 0
      %711 = vmatprep.subr.bf16.mxu0 0
      %712 = vmatpush1.bf16.msra.mxu0 0
      %713 = vmatprep.subr.bf16.mxu0 0
      %714 = vmatpush1.bf16.msra.mxu0 0
      %715 = vmatprep.subr.bf16.mxu0 0
      %716 = vmatpush1.bf16.msra.mxu0 0
      %717 = vmatprep.mubr.bf16.mxu0 0
      %718 = vmatmul.mubr.bf16.gmra.mrb[0].mxu0 %v632
      %v719 = vpop.f32.mrb[0].mxu0
      %v720 = vadd.f32 %v680, %v719
      %v721 = vpop.f32.mrb[0].mxu0
      %v722 = vpop.f32.mrb[0].mxu0
      %v723 = vpop.f32.mrb[0].mxu0
      %724 = vdwg.mxu0
      %s725 = scalar_lea.vmem %s165, 8
      %v726 = vld [vmem:[%s725] sm:$0x7]
      %727 = vmatprep.subr.bf16.mxu0 0
      %728 = vmatpush1.bf16.msra.mxu0 %v463
      %729 = vmatprep.subr.bf16.mxu0 0
      %730 = vmatpush1.bf16.msra.mxu0 %v464
      %731 = vmatprep.subr.bf16.mxu0 0
      %732 = vmatpush1.bf16.msra.mxu0 %v465
      %733 = vmatprep.subr.bf16.mxu0 0
      %734 = vmatpush1.bf16.msra.mxu0 %v466
      %735 = vmatprep.subr.bf16.mxu0 0
      %736 = vmatpush1.bf16.msra.mxu0 %v467
      %737 = vmatprep.subr.bf16.mxu0 0
      %738 = vmatpush1.bf16.msra.mxu0 %v468
      %739 = vmatprep.subr.bf16.mxu0 0
      %740 = vmatpush1.bf16.msra.mxu0 %v469
      %741 = vmatprep.subr.bf16.mxu0 0
      %742 = vmatpush1.bf16.msra.mxu0 %v470
      %743 = vmatprep.subr.bf16.mxu0 0
      %744 = vmatpush1.bf16.msra.mxu0 0
      %745 = vmatprep.subr.bf16.mxu0 0
      %746 = vmatpush1.bf16.msra.mxu0 0
      %747 = vmatprep.subr.bf16.mxu0 0
      %748 = vmatpush1.bf16.msra.mxu0 0
      %749 = vmatprep.subr.bf16.mxu0 0
      %750 = vmatpush1.bf16.msra.mxu0 0
      %751 = vmatprep.subr.bf16.mxu0 0
      %752 = vmatpush1.bf16.msra.mxu0 0
      %753 = vmatprep.subr.bf16.mxu0 0
      %754 = vmatpush1.bf16.msra.mxu0 0
      %755 = vmatprep.subr.bf16.mxu0 0
      %756 = vmatpush1.bf16.msra.mxu0 0
      %757 = vmatprep.subr.bf16.mxu0 0
      %758 = vmatpush1.bf16.msra.mxu0 0
      %759 = vmatprep.mubr.bf16.mxu0 0
      %760 = vmatmul.mubr.bf16.gmra.mrb[0].mxu0 %v726
      %v761 = vpop.f32.mrb[0].mxu0
      %v762 = vadd.f32 0.0, %v761
      %v763 = vpop.f32.mrb[0].mxu0
      %v764 = vpop.f32.mrb[0].mxu0
      %v765 = vpop.f32.mrb[0].mxu0
      %766 = vdwg.mxu0
      %v767 = vadd.f32 %v720, %v762
      %v768 = vld [vmem:[%s725] sm:$0xf]
      %v770 = vunpack.c.l.b16 %v768
      %v771 = vpack.c.b16 %v770, %v770
      %v773 = vshrl.u32 %v771, 16
      %v775 = vshll.u32 %v771, 16
      %v777 = vrot.slane %v775, 1
      %v778 = vor.u32 %v773, %v777
      %780 = vmatprep.subr.bf16.mxu0 0
      %781 = vmatpush1.bf16.msra.mxu0 %v564
      %782 = vmatprep.subr.bf16.mxu0 0
      %783 = vmatpush1.bf16.msra.mxu0 %v565
      %784 = vmatprep.subr.bf16.mxu0 0
      %785 = vmatpush1.bf16.msra.mxu0 %v566
      %786 = vmatprep.subr.bf16.mxu0 0
      %787 = vmatpush1.bf16.msra.mxu0 %v567
      %788 = vmatprep.subr.bf16.mxu0 0
      %789 = vmatpush1.bf16.msra.mxu0 %v568
      %790 = vmatprep.subr.bf16.mxu0 0
      %791 = vmatpush1.bf16.msra.mxu0 %v569
      %792 = vmatprep.subr.bf16.mxu0 0
      %793 = vmatpush1.bf16.msra.mxu0 %v570
      %794 = vmatprep.subr.bf16.mxu0 0
      %795 = vmatpush1.bf16.msra.mxu0 %v571
      %796 = vmatprep.subr.bf16.mxu0 0
      %797 = vmatpush1.bf16.msra.mxu0 0
      %798 = vmatprep.subr.bf16.mxu0 0
      %799 = vmatpush1.bf16.msra.mxu0 0
      %800 = vmatprep.subr.bf16.mxu0 0
      %801 = vmatpush1.bf16.msra.mxu0 0
      %802 = vmatprep.subr.bf16.mxu0 0
      %803 = vmatpush1.bf16.msra.mxu0 0
      %804 = vmatprep.subr.bf16.mxu0 0
      %805 = vmatpush1.bf16.msra.mxu0 0
      %806 = vmatprep.subr.bf16.mxu0 0
      %807 = vmatpush1.bf16.msra.mxu0 0
      %808 = vmatprep.subr.bf16.mxu0 0
      %809 = vmatpush1.bf16.msra.mxu0 0
      %810 = vmatprep.subr.bf16.mxu0 0
      %811 = vmatpush1.bf16.msra.mxu0 0
      %812 = vmatprep.mubr.bf16.mxu0 0
      %813 = vmatmul.mubr.bf16.gmra.mrb[0].mxu0 %v778
      %v814 = vpop.f32.mrb[0].mxu0
      %v815 = vadd.f32 0.0, %v814
      %v816 = vpop.f32.mrb[0].mxu0
      %v817 = vpop.f32.mrb[0].mxu0
      %v818 = vpop.f32.mrb[0].mxu0
      %819 = vdwg.mxu0
      %v820 = vadd.f32 %v767, %v815
      %v821 = vadd.f32 %v820, %v625
      %v822 = vmax.f32 %v821, 0.0
      %v823 = vpack.c.bf16 %v822, %v822
      %s824 = scalar_lea.vmem %s170, 4
      %825 = vst.msk [vmem:[%s824] sm:$0x7] %vm630, %v823
      %v826 = vld [vmem:[%s725] sm:$0x7]
      %v827 = vld [vmem:[%s725] sm:$0xf]
      %v829 = vunpack.c.l.b16 %v827
      %v830 = vpack.c.b16 %v829, %v829
      %v832 = vshrl.u32 %v830, 16
      %v834 = vshll.u32 %v830, 16
      %v836 = vrot.slane %v834, 1
      %v837 = vor.u32 %v832, %v836
      %839 = vmatprep.subr.bf16.mxu0 0
      %840 = vmatpush1.bf16.msra.mxu0 %v285
      %841 = vmatprep.subr.bf16.mxu0 0
      %842 = vmatpush1.bf16.msra.mxu0 %v286
      %843 = vmatprep.subr.bf16.mxu0 0
      %844 = vmatpush1.bf16.msra.mxu0 %v287
      %845 = vmatprep.subr.bf16.mxu0 0
      %846 = vmatpush1.bf16.msra.mxu0 %v288
      %847 = vmatprep.subr.bf16.mxu0 0
      %848 = vmatpush1.bf16.msra.mxu0 %v289
      %849 = vmatprep.subr.bf16.mxu0 0
      %850 = vmatpush1.bf16.msra.mxu0 %v290
      %851 = vmatprep.subr.bf16.mxu0 0
      %852 = vmatpush1.bf16.msra.mxu0 %v291
      %853 = vmatprep.subr.bf16.mxu0 0
      %854 = vmatpush1.bf16.msra.mxu0 %v292
      %855 = vmatprep.subr.bf16.mxu0 0
      %856 = vmatpush1.bf16.msra.mxu0 0
      %857 = vmatprep.subr.bf16.mxu0 0
      %858 = vmatpush1.bf16.msra.mxu0 0
      %859 = vmatprep.subr.bf16.mxu0 0
      %860 = vmatpush1.bf16.msra.mxu0 0
      %861 = vmatprep.subr.bf16.mxu0 0
      %862 = vmatpush1.bf16.msra.mxu0 0
      %863 = vmatprep.subr.bf16.mxu0 0
      %864 = vmatpush1.bf16.msra.mxu0 0
      %865 = vmatprep.subr.bf16.mxu0 0
      %866 = vmatpush1.bf16.msra.mxu0 0
      %867 = vmatprep.subr.bf16.mxu0 0
      %868 = vmatpush1.bf16.msra.mxu0 0
      %869 = vmatprep.subr.bf16.mxu0 0
      %870 = vmatpush1.bf16.msra.mxu0 0
      %871 = vmatprep.mubr.bf16.mxu0 0
      %872 = vmatmul.mubr.bf16.gmra.mrb[0].mxu0 %v837
      %v873 = vpop.f32.mrb[0].mxu0
      %v874 = vadd.f32 0.0, %v873
      %v875 = vpop.f32.mrb[0].mxu0
      %v876 = vpop.f32.mrb[0].mxu0
      %v877 = vpop.f32.mrb[0].mxu0
      %878 = vdwg.mxu0
      %879 = vmatprep.subr.bf16.mxu0 0
      %880 = vmatpush1.bf16.msra.mxu0 %v373
      %881 = vmatprep.subr.bf16.mxu0 0
      %882 = vmatpush1.bf16.msra.mxu0 %v374
      %883 = vmatprep.subr.bf16.mxu0 0
      %884 = vmatpush1.bf16.msra.mxu0 %v375
      %885 = vmatprep.subr.bf16.mxu0 0
      %886 = vmatpush1.bf16.msra.mxu0 %v376
      %887 = vmatprep.subr.bf16.mxu0 0
      %888 = vmatpush1.bf16.msra.mxu0 %v377
      %889 = vmatprep.subr.bf16.mxu0 0
      %890 = vmatpush1.bf16.msra.mxu0 %v378
      %891 = vmatprep.subr.bf16.mxu0 0
      %892 = vmatpush1.bf16.msra.mxu0 %v379
      %893 = vmatprep.subr.bf16.mxu0 0
      %894 = vmatpush1.bf16.msra.mxu0 %v380
      %895 = vmatprep.subr.bf16.mxu0 0
      %896 = vmatpush1.bf16.msra.mxu0 0
      %897 = vmatprep.subr.bf16.mxu0 0
      %898 = vmatpush1.bf16.msra.mxu0 0
      %899 = vmatprep.subr.bf16.mxu0 0
      %900 = vmatpush1.bf16.msra.mxu0 0
      %901 = vmatprep.subr.bf16.mxu0 0
      %902 = vmatpush1.bf16.msra.mxu0 0
      %903 = vmatprep.subr.bf16.mxu0 0
      %904 = vmatpush1.bf16.msra.mxu0 0
      %905 = vmatprep.subr.bf16.mxu0 0
      %906 = vmatpush1.bf16.msra.mxu0 0
      %907 = vmatprep.subr.bf16.mxu0 0
      %908 = vmatpush1.bf16.msra.mxu0 0
      %909 = vmatprep.subr.bf16.mxu0 0
      %910 = vmatpush1.bf16.msra.mxu0 0
      %911 = vmatprep.mubr.bf16.mxu0 0
      %912 = vmatmul.mubr.bf16.gmra.mrb[0].mxu0 %v826
      %v913 = vpop.f32.mrb[0].mxu0
      %v914 = vadd.f32 %v874, %v913
      %v915 = vpop.f32.mrb[0].mxu0
      %v916 = vpop.f32.mrb[0].mxu0
      %v917 = vpop.f32.mrb[0].mxu0
      %918 = vdwg.mxu0
      %s919 = scalar_lea.vmem %s165, 12
      %v920 = vld [vmem:[%s919] sm:$0x7]
      %921 = vmatprep.subr.bf16.mxu0 0
      %922 = vmatpush1.bf16.msra.mxu0 %v463
      %923 = vmatprep.subr.bf16.mxu0 0
      %924 = vmatpush1.bf16.msra.mxu0 %v464
      %925 = vmatprep.subr.bf16.mxu0 0
      %926 = vmatpush1.bf16.msra.mxu0 %v465
      %927 = vmatprep.subr.bf16.mxu0 0
      %928 = vmatpush1.bf16.msra.mxu0 %v466
      %929 = vmatprep.subr.bf16.mxu0 0
      %930 = vmatpush1.bf16.msra.mxu0 %v467
      %931 = vmatprep.subr.bf16.mxu0 0
      %932 = vmatpush1.bf16.msra.mxu0 %v468
      %933 = vmatprep.subr.bf16.mxu0 0
      %934 = vmatpush1.bf16.msra.mxu0 %v469
      %935 = vmatprep.subr.bf16.mxu0 0
      %936 = vmatpush1.bf16.msra.mxu0 %v470
      %937 = vmatprep.subr.bf16.mxu0 0
      %938 = vmatpush1.bf16.msra.mxu0 0
      %939 = vmatprep.subr.bf16.mxu0 0
      %940 = vmatpush1.bf16.msra.mxu0 0
      %941 = vmatprep.subr.bf16.mxu0 0
      %942 = vmatpush1.bf16.msra.mxu0 0
      %943 = vmatprep.subr.bf16.mxu0 0
      %944 = vmatpush1.bf16.msra.mxu0 0
      %945 = vmatprep.subr.bf16.mxu0 0
      %946 = vmatpush1.bf16.msra.mxu0 0
      %947 = vmatprep.subr.bf16.mxu0 0
      %948 = vmatpush1.bf16.msra.mxu0 0
      %949 = vmatprep.subr.bf16.mxu0 0
      %950 = vmatpush1.bf16.msra.mxu0 0
      %951 = vmatprep.subr.bf16.mxu0 0
      %952 = vmatpush1.bf16.msra.mxu0 0
      %953 = vmatprep.mubr.bf16.mxu0 0
      %954 = vmatmul.mubr.bf16.gmra.mrb[0].mxu0 %v920
      %v955 = vpop.f32.mrb[0].mxu0
      %v956 = vadd.f32 0.0, %v955
      %v957 = vpop.f32.mrb[0].mxu0
      %v958 = vpop.f32.mrb[0].mxu0
      %v959 = vpop.f32.mrb[0].mxu0
      %960 = vdwg.mxu0
      %v961 = vadd.f32 %v914, %v956
      %v962 = vld [vmem:[%s919] sm:$0xf]
      %v964 = vunpack.c.l.b16 %v962
      %v965 = vpack.c.b16 %v964, %v964
      %v967 = vshrl.u32 %v965, 16
      %v969 = vshll.u32 %v965, 16
      %v971 = vrot.slane %v969, 1
      %v972 = vor.u32 %v967, %v971
      %974 = vmatprep.subr.bf16.mxu0 0
      %975 = vmatpush1.bf16.msra.mxu0 %v564
      %976 = vmatprep.subr.bf16.mxu0 0
      %977 = vmatpush1.bf16.msra.mxu0 %v565
      %978 = vmatprep.subr.bf16.mxu0 0
      %979 = vmatpush1.bf16.msra.mxu0 %v566
      %980 = vmatprep.subr.bf16.mxu0 0
      %981 = vmatpush1.bf16.msra.mxu0 %v567
      %982 = vmatprep.subr.bf16.mxu0 0
      %983 = vmatpush1.bf16.msra.mxu0 %v568
      %984 = vmatprep.subr.bf16.mxu0 0
      %985 = vmatpush1.bf16.msra.mxu0 %v569
      %986 = vmatprep.subr.bf16.mxu0 0
      %987 = vmatpush1.bf16.msra.mxu0 %v570
      %988 = vmatprep.subr.bf16.mxu0 0
      %989 = vmatpush1.bf16.msra.mxu0 %v571
      %990 = vmatprep.subr.bf16.mxu0 0
      %991 = vmatpush1.bf16.msra.mxu0 0
      %992 = vmatprep.subr.bf16.mxu0 0
      %993 = vmatpush1.bf16.msra.mxu0 0
      %994 = vmatprep.subr.bf16.mxu0 0
      %995 = vmatpush1.bf16.msra.mxu0 0
      %996 = vmatprep.subr.bf16.mxu0 0
      %997 = vmatpush1.bf16.msra.mxu0 0
      %998 = vmatprep.subr.bf16.mxu0 0
      %999 = vmatpush1.bf16.msra.mxu0 0
      %1000 = vmatprep.subr.bf16.mxu0 0
      %1001 = vmatpush1.bf16.msra.mxu0 0
      %1002 = vmatprep.subr.bf16.mxu0 0
      %1003 = vmatpush1.bf16.msra.mxu0 0
      %1004 = vmatprep.subr.bf16.mxu0 0
      %1005 = vmatpush1.bf16.msra.mxu0 0
      %1006 = vmatprep.mubr.bf16.mxu0 0
      %1007 = vmatmul.mubr.bf16.gmra.mrb[0].mxu0 %v972
      %v1008 = vpop.f32.mrb[0].mxu0
      %v1009 = vadd.f32 0.0, %v1008
      %v1010 = vpop.f32.mrb[0].mxu0
      %v1011 = vpop.f32.mrb[0].mxu0
      %v1012 = vpop.f32.mrb[0].mxu0
      %1013 = vdwg.mxu0
      %v1014 = vadd.f32 %v961, %v1009
      %v1015 = vadd.f32 %v1014, %v625
      %v1016 = vmax.f32 %v1015, 0.0
      %v1017 = vpack.c.bf16 %v1016, %v1016
      %s1018 = scalar_lea.vmem %s170, 8
      %1019 = vst.msk [vmem:[%s1018] sm:$0x7] %vm630, %v1017
      %v1020 = vld [vmem:[%s919] sm:$0x7]
      %v1021 = vld [vmem:[%s919] sm:$0xf]
      %v1023 = vunpack.c.l.b16 %v1021
      %v1024 = vpack.c.b16 %v1023, %v1023
      %v1026 = vshrl.u32 %v1024, 16
      %v1028 = vshll.u32 %v1024, 16
      %v1030 = vrot.slane %v1028, 1
      %v1031 = vor.u32 %v1026, %v1030
      %1033 = vmatprep.subr.bf16.mxu0 0
      %1034 = vmatpush1.bf16.msra.mxu0 %v285
      %1035 = vmatprep.subr.bf16.mxu0 0
      %1036 = vmatpush1.bf16.msra.mxu0 %v286
      %1037 = vmatprep.subr.bf16.mxu0 0
      %1038 = vmatpush1.bf16.msra.mxu0 %v287
      %1039 = vmatprep.subr.bf16.mxu0 0
      %1040 = vmatpush1.bf16.msra.mxu0 %v288
      %1041 = vmatprep.subr.bf16.mxu0 0
      %1042 = vmatpush1.bf16.msra.mxu0 %v289
      %1043 = vmatprep.subr.bf16.mxu0 0
      %1044 = vmatpush1.bf16.msra.mxu0 %v290
      %1045 = vmatprep.subr.bf16.mxu0 0
      %1046 = vmatpush1.bf16.msra.mxu0 %v291
      %1047 = vmatprep.subr.bf16.mxu0 0
      %1048 = vmatpush1.bf16.msra.mxu0 %v292
      %1049 = vmatprep.subr.bf16.mxu0 0
      %1050 = vmatpush1.bf16.msra.mxu0 0
      %1051 = vmatprep.subr.bf16.mxu0 0
      %1052 = vmatpush1.bf16.msra.mxu0 0
      %1053 = vmatprep.subr.bf16.mxu0 0
      %1054 = vmatpush1.bf16.msra.mxu0 0
      %1055 = vmatprep.subr.bf16.mxu0 0
      %1056 = vmatpush1.bf16.msra.mxu0 0
      %1057 = vmatprep.subr.bf16.mxu0 0
      %1058 = vmatpush1.bf16.msra.mxu0 0
      %1059 = vmatprep.subr.bf16.mxu0 0
      %1060 = vmatpush1.bf16.msra.mxu0 0
      %1061 = vmatprep.subr.bf16.mxu0 0
      %1062 = vmatpush1.bf16.msra.mxu0 0
      %1063 = vmatprep.subr.bf16.mxu0 0
      %1064 = vmatpush1.bf16.msra.mxu0 0
      %1065 = vmatprep.mubr.bf16.mxu0 0
      %1066 = vmatmul.mubr.bf16.gmra.mrb[0].mxu0 %v1031
      %v1067 = vpop.f32.mrb[0].mxu0
      %v1068 = vadd.f32 0.0, %v1067
      %v1069 = vpop.f32.mrb[0].mxu0
      %v1070 = vpop.f32.mrb[0].mxu0
      %v1071 = vpop.f32.mrb[0].mxu0
      %1072 = vdwg.mxu0
      %1073 = vmatprep.subr.bf16.mxu0 0
      %1074 = vmatpush1.bf16.msra.mxu0 %v373
      %1075 = vmatprep.subr.bf16.mxu0 0
      %1076 = vmatpush1.bf16.msra.mxu0 %v374
      %1077 = vmatprep.subr.bf16.mxu0 0
      %1078 = vmatpush1.bf16.msra.mxu0 %v375
      %1079 = vmatprep.subr.bf16.mxu0 0
      %1080 = vmatpush1.bf16.msra.mxu0 %v376
      %1081 = vmatprep.subr.bf16.mxu0 0
      %1082 = vmatpush1.bf16.msra.mxu0 %v377
      %1083 = vmatprep.subr.bf16.mxu0 0
      %1084 = vmatpush1.bf16.msra.mxu0 %v378
      %1085 = vmatprep.subr.bf16.mxu0 0
      %1086 = vmatpush1.bf16.msra.mxu0 %v379
      %1087 = vmatprep.subr.bf16.mxu0 0
      %1088 = vmatpush1.bf16.msra.mxu0 %v380
      %1089 = vmatprep.subr.bf16.mxu0 0
      %1090 = vmatpush1.bf16.msra.mxu0 0
      %1091 = vmatprep.subr.bf16.mxu0 0
      %1092 = vmatpush1.bf16.msra.mxu0 0
      %1093 = vmatprep.subr.bf16.mxu0 0
      %1094 = vmatpush1.bf16.msra.mxu0 0
      %1095 = vmatprep.subr.bf16.mxu0 0
      %1096 = vmatpush1.bf16.msra.mxu0 0
      %1097 = vmatprep.subr.bf16.mxu0 0
      %1098 = vmatpush1.bf16.msra.mxu0 0
      %1099 = vmatprep.subr.bf16.mxu0 0
      %1100 = vmatpush1.bf16.msra.mxu0 0
      %1101 = vmatprep.subr.bf16.mxu0 0
      %1102 = vmatpush1.bf16.msra.mxu0 0
      %1103 = vmatprep.subr.bf16.mxu0 0
      %1104 = vmatpush1.bf16.msra.mxu0 0
      %1105 = vmatprep.mubr.bf16.mxu0 0
      %1106 = vmatmul.mubr.bf16.gmra.mrb[0].mxu0 %v1020
      %v1107 = vpop.f32.mrb[0].mxu0
      %v1108 = vadd.f32 %v1068, %v1107
      %v1109 = vpop.f32.mrb[0].mxu0
      %v1110 = vpop.f32.mrb[0].mxu0
      %v1111 = vpop.f32.mrb[0].mxu0
      %1112 = vdwg.mxu0
      %s1113 = scalar_lea.vmem %s165, 16
      %v1114 = vld [vmem:[%s1113] sm:$0x7]
      %1115 = vmatprep.subr.bf16.mxu0 0
      %1116 = vmatpush1.bf16.msra.mxu0 %v463
      %1117 = vmatprep.subr.bf16.mxu0 0
      %1118 = vmatpush1.bf16.msra.mxu0 %v464
      %1119 = vmatprep.subr.bf16.mxu0 0
      %1120 = vmatpush1.bf16.msra.mxu0 %v465
      %1121 = vmatprep.subr.bf16.mxu0 0
      %1122 = vmatpush1.bf16.msra.mxu0 %v466
      %1123 = vmatprep.subr.bf16.mxu0 0
      %1124 = vmatpush1.bf16.msra.mxu0 %v467
      %1125 = vmatprep.subr.bf16.mxu0 0
      %1126 = vmatpush1.bf16.msra.mxu0 %v468
      %1127 = vmatprep.subr.bf16.mxu0 0
      %1128 = vmatpush1.bf16.msra.mxu0 %v469
      %1129 = vmatprep.subr.bf16.mxu0 0
      %1130 = vmatpush1.bf16.msra.mxu0 %v470
      %1131 = vmatprep.subr.bf16.mxu0 0
      %1132 = vmatpush1.bf16.msra.mxu0 0
      %1133 = vmatprep.subr.bf16.mxu0 0
      %1134 = vmatpush1.bf16.msra.mxu0 0
      %1135 = vmatprep.subr.bf16.mxu0 0
      %1136 = vmatpush1.bf16.msra.mxu0 0
      %1137 = vmatprep.subr.bf16.mxu0 0
      %1138 = vmatpush1.bf16.msra.mxu0 0
      %1139 = vmatprep.subr.bf16.mxu0 0
      %1140 = vmatpush1.bf16.msra.mxu0 0
      %1141 = vmatprep.subr.bf16.mxu0 0
      %1142 = vmatpush1.bf16.msra.mxu0 0
      %1143 = vmatprep.subr.bf16.mxu0 0
      %1144 = vmatpush1.bf16.msra.mxu0 0
      %1145 = vmatprep.subr.bf16.mxu0 0
      %1146 = vmatpush1.bf16.msra.mxu0 0
      %1147 = vmatprep.mubr.bf16.mxu0 0
      %1148 = vmatmul.mubr.bf16.gmra.mrb[0].mxu0 %v1114
      %v1149 = vpop.f32.mrb[0].mxu0
      %v1150 = vadd.f32 0.0, %v1149
      %v1151 = vpop.f32.mrb[0].mxu0
      %v1152 = vpop.f32.mrb[0].mxu0
      %v1153 = vpop.f32.mrb[0].mxu0
      %1154 = vdwg.mxu0
      %v1155 = vadd.f32 %v1108, %v1150
      %v1156 = vld [vmem:[%s1113] sm:$0xf]
      %v1158 = vunpack.c.l.b16 %v1156
      %v1159 = vpack.c.b16 %v1158, %v1158
      %v1161 = vshrl.u32 %v1159, 16
      %v1163 = vshll.u32 %v1159, 16
      %v1165 = vrot.slane %v1163, 1
      %v1166 = vor.u32 %v1161, %v1165
      %1168 = vmatprep.subr.bf16.mxu0 0
      %1169 = vmatpush1.bf16.msra.mxu0 %v564
      %1170 = vmatprep.subr.bf16.mxu0 0
      %1171 = vmatpush1.bf16.msra.mxu0 %v565
      %1172 = vmatprep.subr.bf16.mxu0 0
      %1173 = vmatpush1.bf16.msra.mxu0 %v566
      %1174 = vmatprep.subr.bf16.mxu0 0
      %1175 = vmatpush1.bf16.msra.mxu0 %v567
      %1176 = vmatprep.subr.bf16.mxu0 0
      %1177 = vmatpush1.bf16.msra.mxu0 %v568
      %1178 = vmatprep.subr.bf16.mxu0 0
      %1179 = vmatpush1.bf16.msra.mxu0 %v569
      %1180 = vmatprep.subr.bf16.mxu0 0
      %1181 = vmatpush1.bf16.msra.mxu0 %v570
      %1182 = vmatprep.subr.bf16.mxu0 0
      %1183 = vmatpush1.bf16.msra.mxu0 %v571
      %1184 = vmatprep.subr.bf16.mxu0 0
      %1185 = vmatpush1.bf16.msra.mxu0 0
      %1186 = vmatprep.subr.bf16.mxu0 0
      %1187 = vmatpush1.bf16.msra.mxu0 0
      %1188 = vmatprep.subr.bf16.mxu0 0
      %1189 = vmatpush1.bf16.msra.mxu0 0
      %1190 = vmatprep.subr.bf16.mxu0 0
      %1191 = vmatpush1.bf16.msra.mxu0 0
      %1192 = vmatprep.subr.bf16.mxu0 0
      %1193 = vmatpush1.bf16.msra.mxu0 0
      %1194 = vmatprep.subr.bf16.mxu0 0
      %1195 = vmatpush1.bf16.msra.mxu0 0
      %1196 = vmatprep.subr.bf16.mxu0 0
      %1197 = vmatpush1.bf16.msra.mxu0 0
      %1198 = vmatprep.subr.bf16.mxu0 0
      %1199 = vmatpush1.bf16.msra.mxu0 0
      %1200 = vmatprep.mubr.bf16.mxu0 0
      %1201 = vmatmul.mubr.bf16.gmra.mrb[0].mxu0 %v1166
      %v1202 = vpop.f32.mrb[0].mxu0
      %v1203 = vadd.f32 0.0, %v1202
      %v1204 = vpop.f32.mrb[0].mxu0
      %v1205 = vpop.f32.mrb[0].mxu0
      %v1206 = vpop.f32.mrb[0].mxu0
      %1207 = vdwg.mxu0
      %v1208 = vadd.f32 %v1155, %v1203
      %v1209 = vadd.f32 %v1208, %v625
      %v1210 = vmax.f32 %v1209, 0.0
      %v1211 = vpack.c.bf16 %v1210, %v1210
      %s1212 = scalar_lea.vmem %s170, 12
      %1213 = vst.msk [vmem:[%s1212] sm:$0x7] %vm630, %v1211
      %p1214 = scmp.lt.s32.totalorder %s14, 1
      %s1215 = scalar_select %p1214, %s14, 1
      %s1216 = smul.addr %s1215, 4
      %s1217 = smul.addr %s1216, 4
      %s1218 = scalar_lea.vmem %s3, %s1217
      // Predicated region
      $region33: #{ddqn_forward.5} parent=31 // pred_check
        %p1219 = pneg %p100
      $region34: #{ddqn_forward.5} parent=31 // pred_check_branch
        %1221 = sbr.rel (%p1219) target = $region36
      $region35: #{ddqn_forward.5} parent=31 // pred_region
        _
      $region36: #{ddqn_forward.5} parent=31 // pred_fallthru
        _
    $region32: #{ddqn_forward.5} parent=5 // pred_fallthru
      _
    %p1222 = scmp.le.s32.totalorder 2, %s9
    // Predicated region
    $region37: #{ddqn_forward.5} parent=5 // pred_check
      %p1223 = pneg %p1222
    $region38: #{ddqn_forward.5} parent=5 // pred_check_branch
      %1225 = sbr.rel (%p1223) target = $region40
    $region39: #{ddqn_forward.5} parent=5 // pred_region
      %s1226 = ssub.s32 %s9, 2
      // Predicated region
      $region41: #{ddqn_forward.5} parent=39 // pred_check
        %p1227 = pneg %p106
      $region42: #{ddqn_forward.5} parent=39 // pred_check_branch
        %1229 = sbr.rel (%p1227) target = $region44
      $region43: #{ddqn_forward.5} parent=39 // pred_region
        %p1230 = scmp.lt.s32.totalorder %s15, 1
        %s1231 = scalar_select %p1230, %s15, 1
        %s1232 = smul.addr %s1231, 4
        %s1233 = smul.addr %s1232, 4
        %s1234 = scalar_lea.vmem %s3, %s1233
      $region44: #{ddqn_forward.5} parent=39 // pred_fallthru
        _
    $region40: #{ddqn_forward.5} parent=5 // pred_fallthru
      _
  $region6: #{ddqn_forward.5} parent=0 // loop_footer
    %s13 = sadd.s32 1, %s9
  $region7: #{ddqn_forward.5} parent=0 // loop_footer_branch
    %8 = sbr.rel target = $region3
  $region8: #{ddqn_forward.5} parent=0 // loop_exit
    _

// kernel: ddqn_forward.6
$region0: #{ddqn_forward.6}
  #allocation0 [shape = 'u32[]', space=smem, size = 0x4, offset = 0x4, fixed_abs, tag = 'smem constant byte address 0x4 - core index']
  #allocation1 [shape = 'u32[144,128]{1,0:T(1,128)}', space=vmem, size = 0x12000, scoped, tag = 'internal scratch']
  %s0 = inlined_call_operand.vmem [shape: bf16[2,4,6,64], index: 0, kind: input, shape index: {}]
  %s1 = inlined_call_operand.vmem [shape: bf16[9,64,64], index: 1, kind: input, shape index: {}]
  %s2 = inlined_call_operand.vmem [shape: f32[1,64], index: 2, kind: input, shape index: {}]
  %s3 = inlined_call_operand.vmem [shape: bf16[2,2,4,64], index: 3, kind: output, shape index: {}]
  %s4 = sld [smem:[#allocation0]]
  $region45: #{ddqn_forward.6} parent=0
    _
  %s6 = ssub.s32 1, %s4
  %s7 = scalar_select 0, %s6, %s4
  loop: start=0, step=1, limit=4
  $region2: #{ddqn_forward.6} parent=0 // loop_pre_header
    _
  $region3: #{ddqn_forward.6} parent=0 // loop_header
    %s9 = sphi 0, %s13
    %p10 = scmp.ge.s32.totalorder %s9, 4
    %s19 = sphi 0, %s21
    %s22 = sphi 0, %s19
    %s23 = sphi 0, %s22
    %s39 = sphi 0, %s23
    %s43 = sphi 0, %s43
    %s45 = sphi 0, %s43
    %s46 = sphi 0, %s45
    %s60 = sphi 0, %s46
    %s64 = sphi 0, %s64
    %s66 = sphi 0, %s64
    %s67 = sphi 0, %s66
    %s81 = sphi 0, %s67
    %s87 = sphi 0, %s89
    %s90 = sphi 0, %s87
    %s91 = sphi 0, %s90
    %s107 = sphi 0, %s91
  $region4: #{ddqn_forward.6} parent=0 // loop_header_branch
    %12 = sbr.rel (%p10) target = $region8
  $region5: #{ddqn_forward.6} parent=0 // loop_body
    %s14 = ssub.s32 %s9, 1
    %s15 = ssub.s32 %s9, 2
    %s16 = sadd.s32 %s9, 1
    %s17 = ssub.s32 %s9, %s16
    %p18 = scmp.eq.s32.totalorder %s17, 0
    %s20 = sadd.s32 %s19, 1
    %s21 = scalar_select %p18, %s19, %s20
    %p24 = pneg %p18
    %p25 = scmp.eq.s32.totalorder %s9, 1
    %p26 = por %p24, %p25
    %p27 = scmp.ne.s32.totalorder %s19, %s22
    %p28 = scmp.eq.s32.totalorder %s9, 0
    %p29 = por %p27, %p28
    %p30 = scmp.ne.s32.totalorder %s19, %s22
    %p31 = scmp.eq.s32.totalorder %s14, 1
    %p32 = por %p30, %p31
    %p33 = scmp.ne.s32.totalorder %s22, %s23
    %p34 = scmp.eq.s32.totalorder %s14, 0
    %p35 = por %p33, %p34
    %p36 = scmp.ne.s32.totalorder %s22, %s23
    %p37 = scmp.eq.s32.totalorder %s15, 1
    %p38 = por %p36, %p37
    %p40 = scmp.ne.s32.totalorder %s23, %s39
    %p41 = scmp.eq.s32.totalorder %s15, 0
    %p42 = por %p40, %p41
    %s44 = sadd.s32 %s43, 1
    %p47 = scmp.eq.s32.totalorder %s9, 1
    %p48 = scmp.ne.s32.totalorder %s43, %s45
    %p49 = scmp.eq.s32.totalorder %s9, 0
    %p50 = por %p48, %p49
    %p51 = scmp.ne.s32.totalorder %s43, %s45
    %p52 = scmp.eq.s32.totalorder %s14, 1
    %p53 = por %p51, %p52
    %p54 = scmp.ne.s32.totalorder %s45, %s46
    %p55 = scmp.eq.s32.totalorder %s14, 0
    %p56 = por %p54, %p55
    %p57 = scmp.ne.s32.totalorder %s45, %s46
    %p58 = scmp.eq.s32.totalorder %s15, 1
    %p59 = por %p57, %p58
    %p61 = scmp.ne.s32.totalorder %s46, %s60
    %p62 = scmp.eq.s32.totalorder %s15, 0
    %p63 = por %p61, %p62
    %s65 = sadd.s32 %s64, 1
    %p68 = scmp.eq.s32.totalorder %s9, 1
    %p69 = scmp.ne.s32.totalorder %s64, %s66
    %p70 = scmp.eq.s32.totalorder %s9, 0
    %p71 = por %p69, %p70
    %p72 = scmp.ne.s32.totalorder %s64, %s66
    %p73 = scmp.eq.s32.totalorder %s14, 1
    %p74 = por %p72, %p73
    %p75 = scmp.ne.s32.totalorder %s66, %s67
    %p76 = scmp.eq.s32.totalorder %s14, 0
    %p77 = por %p75, %p76
    %p78 = scmp.ne.s32.totalorder %s66, %s67
    %p79 = scmp.eq.s32.totalorder %s15, 1
    %p80 = por %p78, %p79
    %p82 = scmp.ne.s32.totalorder %s67, %s81
    %p83 = scmp.eq.s32.totalorder %s15, 0
    %p84 = por %p82, %p83
    %s85 = ssub.s32 %s9, %s16
    %p86 = scmp.eq.s32.totalorder %s85, 0
    %s88 = sadd.s32 %s87, 1
    %s89 = scalar_select %p86, %s87, %s88
    %p92 = pneg %p86
    %p93 = scmp.eq.s32.totalorder %s9, 1
    %p94 = por %p92, %p93
    %p95 = scmp.ne.s32.totalorder %s87, %s90
    %p96 = scmp.eq.s32.totalorder %s9, 0
    %p97 = por %p95, %p96
    %p98 = scmp.ne.s32.totalorder %s87, %s90
    %p99 = scmp.eq.s32.totalorder %s14, 1
    %p100 = por %p98, %p99
    %p101 = scmp.ne.s32.totalorder %s90, %s91
    %p102 = scmp.eq.s32.totalorder %s14, 0
    %p103 = por %p101, %p102
    %p104 = scmp.ne.s32.totalorder %s90, %s91
    %p105 = scmp.eq.s32.totalorder %s15, 1
    %p106 = por %p104, %p105
    %p108 = scmp.ne.s32.totalorder %s91, %s107
    %p109 = scmp.eq.s32.totalorder %s15, 0
    %p110 = por %p108, %p109
    %p111 = scmp.le.s32.totalorder 1, %s9
    %p112 = scmp.lt.s32.totalorder %s9, 3
    %p113 = pnand %p111, %p112
    %p114 = pneg %p113
    // Predicated region
    $region9: #{ddqn_forward.6} parent=5 // pred_check
      _
    $region10: #{ddqn_forward.6} parent=5 // pred_check_branch
      %116 = sbr.rel (%p113) target = $region12
    $region11: #{ddqn_forward.6} parent=5 // pred_region
      %s117 = ssub.s32 %s9, 1
      // Predicated region
      $region13: #{ddqn_forward.6} parent=11 // pred_check
        %p118 = pneg %p56
      $region14: #{ddqn_forward.6} parent=11 // pred_check_branch
        %120 = sbr.rel (%p118) target = $region16
      $region15: #{ddqn_forward.6} parent=11 // pred_region
        _
      $region16: #{ddqn_forward.6} parent=11 // pred_fallthru
        _
      // Predicated region
      $region17: #{ddqn_forward.6} parent=11 // pred_check
        %p121 = pneg %p77
      $region18: #{ddqn_forward.6} parent=11 // pred_check_branch
        %123 = sbr.rel (%p121) target = $region20
      $region19: #{ddqn_forward.6} parent=11 // pred_region
        _
      $region20: #{ddqn_forward.6} parent=11 // pred_fallthru
        _
    $region12: #{ddqn_forward.6} parent=5 // pred_fallthru
      _
    %p124 = scmp.lt.s32.totalorder %s9, 2
    // Predicated region
    $region21: #{ddqn_forward.6} parent=5 // pred_check
      %p125 = pneg %p124
    $region22: #{ddqn_forward.6} parent=5 // pred_check_branch
      %127 = sbr.rel (%p125) target = $region24
    $region23: #{ddqn_forward.6} parent=5 // pred_region
      // Predicated region
      $region25: #{ddqn_forward.6} parent=23 // pred_check
        %p128 = pneg %p29
      $region26: #{ddqn_forward.6} parent=23 // pred_check_branch
        %130 = sbr.rel (%p128) target = $region28
      $region27: #{ddqn_forward.6} parent=23 // pred_region
        %p131 = scmp.lt.s32.totalorder %s9, 1
        %s132 = scalar_select %p131, %s9, 1
        %s133 = smul.addr %s132, 4
        %s134 = smul.addr %s133, 4
        %s135 = scalar_lea.vmem %s0, %s134
      $region28: #{ddqn_forward.6} parent=23 // pred_fallthru
        _
    $region24: #{ddqn_forward.6} parent=5 // pred_fallthru
      _
    %p136 = scmp.le.s32.totalorder 1, %s9
    %p137 = scmp.lt.s32.totalorder %s9, 3
    %p138 = pnand %p136, %p137
    %p139 = pneg %p138
    // Predicated region
    $region29: #{ddqn_forward.6} parent=5 // pred_check
      _
    $region30: #{ddqn_forward.6} parent=5 // pred_check_branch
      %141 = sbr.rel (%p138) target = $region32
    $region31: #{ddqn_forward.6} parent=5 // pred_region
      %s142 = ssub.s32 %s9, 1
      %p143 = scmp.lt.s32.totalorder %s14, 1
      %s144 = scalar_select %p143, %s14, 1
      %s145 = smul.addr %s144, 4
      %s146 = smul.addr %s145, 4
      %s147 = scalar_lea.vmem %s0, %s146
      %p148 = pneg %p35
      %p149 = pneg %p32
      %p150 = pneg %p56
      %p151 = pneg %p53
      %p152 = pneg %p77
      %p153 = pneg %p74
      %p154 = pneg %p103
      %p155 = pneg %p100
      %p156 = scmp.lt.s32.totalorder %s14, 1
      %s157 = scalar_select %p156, %s14, 1
      %s158 = smul.addr %s157, 2
      %s159 = smul.addr %s158, 2
      %s160 = scalar_lea.vmem %s3, %s159
      %p161 = scmp.lt.s32.totalorder %s14, 1
      %s162 = scalar_select %p161, %s14, 1
      %s163 = smul.addr %s162, 4
      %s164 = smul.addr %s163, 4
      %s165 = scalar_lea.vmem %s0, %s164
      %p166 = scmp.lt.s32.totalorder %s14, 1
      %s167 = scalar_select %p166, %s14, 1
      %s168 = smul.addr %s167, 2
      %s169 = smul.addr %s168, 2
      %s170 = scalar_lea.vmem %s3, %s169
      %v172 = vld [vmem:[%s2] sm:$0x1]
      %v173 = vld [vmem:[%s1] sm:$0xf]
      %v174 = vld [vmem:[%s1 + $0x4] sm:$0xf]
      %v175 = vld [vmem:[%s1 + $0x8] sm:$0xf]
      %v176 = vld [vmem:[%s1 + $0xc] sm:$0xf]
      %v177 = vld [vmem:[%s1 + $0x10] sm:$0xf]
      %v178 = vld [vmem:[%s1 + $0x14] sm:$0xf]
      %v179 = vld [vmem:[%s1 + $0x18] sm:$0xf]
      %v180 = vld [vmem:[%s1 + $0x1c] sm:$0xf]
      %s181 = scalar_lea.vmem %s1, 32
      %v182 = vld [vmem:[%s181] sm:$0xf]
      %v183 = vld [vmem:[%s181 + $0x4] sm:$0xf]
      %v184 = vld [vmem:[%s181 + $0x8] sm:$0xf]
      %v185 = vld [vmem:[%s181 + $0xc] sm:$0xf]
      %v186 = vld [vmem:[%s181 + $0x10] sm:$0xf]
      %v187 = vld [vmem:[%s181 + $0x14] sm:$0xf]
      %v188 = vld [vmem:[%s181 + $0x18] sm:$0xf]
      %v189 = vld [vmem:[%s181 + $0x1c] sm:$0xf]
      %s190 = scalar_lea.vmem %s1, 64
      %v191 = vld [vmem:[%s190] sm:$0xf]
      %v192 = vld [vmem:[%s190 + $0x4] sm:$0xf]
      %v193 = vld [vmem:[%s190 + $0x8] sm:$0xf]
      %v194 = vld [vmem:[%s190 + $0xc] sm:$0xf]
      %v195 = vld [vmem:[%s190 + $0x10] sm:$0xf]
      %v196 = vld [vmem:[%s190 + $0x14] sm:$0xf]
      %v197 = vld [vmem:[%s190 + $0x18] sm:$0xf]
      %v198 = vld [vmem:[%s190 + $0x1c] sm:$0xf]
      %s199 = scalar_lea.vmem %s1, 96
      %v200 = vld [vmem:[%s199] sm:$0xf]
      %v201 = vld [vmem:[%s199 + $0x4] sm:$0xf]
      %v202 = vld [vmem:[%s199 + $0x8] sm:$0xf]
      %v203 = vld [vmem:[%s199 + $0xc] sm:$0xf]
      %v204 = vld [vmem:[%s199 + $0x10] sm:$0xf]
      %v205 = vld [vmem:[%s199 + $0x14] sm:$0xf]
      %v206 = vld [vmem:[%s199 + $0x18] sm:$0xf]
      %v207 = vld [vmem:[%s199 + $0x1c] sm:$0xf]
      %s208 = scalar_lea.vmem %s1, 128
      %v209 = vld [vmem:[%s208] sm:$0xf]
      %v210 = vld [vmem:[%s208 + $0x4] sm:$0xf]
      %v211 = vld [vmem:[%s208 + $0x8] sm:$0xf]
      %v212 = vld [vmem:[%s208 + $0xc] sm:$0xf]
      %v213 = vld [vmem:[%s208 + $0x10] sm:$0xf]
      %v214 = vld [vmem:[%s208 + $0x14] sm:$0xf]
      %v215 = vld [vmem:[%s208 + $0x18] sm:$0xf]
      %v216 = vld [vmem:[%s208 + $0x1c] sm:$0xf]
      %s217 = scalar_lea.vmem %s1, 160
      %v218 = vld [vmem:[%s217] sm:$0xf]
      %v219 = vld [vmem:[%s217 + $0x4] sm:$0xf]
      %v220 = vld [vmem:[%s217 + $0x8] sm:$0xf]
      %v221 = vld [vmem:[%s217 + $0xc] sm:$0xf]
      %v222 = vld [vmem:[%s217 + $0x10] sm:$0xf]
      %v223 = vld [vmem:[%s217 + $0x14] sm:$0xf]
      %v224 = vld [vmem:[%s217 + $0x18] sm:$0xf]
      %v225 = vld [vmem:[%s217 + $0x1c] sm:$0xf]
      %s226 = scalar_lea.vmem %s1, 192
      %v227 = vld [vmem:[%s226] sm:$0xf]
      %v228 = vld [vmem:[%s226 + $0x4] sm:$0xf]
      %v229 = vld [vmem:[%s226 + $0x8] sm:$0xf]
      %v230 = vld [vmem:[%s226 + $0xc] sm:$0xf]
      %v231 = vld [vmem:[%s226 + $0x10] sm:$0xf]
      %v232 = vld [vmem:[%s226 + $0x14] sm:$0xf]
      %v233 = vld [vmem:[%s226 + $0x18] sm:$0xf]
      %v234 = vld [vmem:[%s226 + $0x1c] sm:$0xf]
      %s235 = scalar_lea.vmem %s1, 224
      %v236 = vld [vmem:[%s235] sm:$0xf]
      %v237 = vld [vmem:[%s235 + $0x4] sm:$0xf]
      %v238 = vld [vmem:[%s235 + $0x8] sm:$0xf]
      %v239 = vld [vmem:[%s235 + $0xc] sm:$0xf]
      %v240 = vld [vmem:[%s235 + $0x10] sm:$0xf]
      %v241 = vld [vmem:[%s235 + $0x14] sm:$0xf]
      %v242 = vld [vmem:[%s235 + $0x18] sm:$0xf]
      %v243 = vld [vmem:[%s235 + $0x1c] sm:$0xf]
      %s244 = scalar_lea.vmem %s1, 256
      %v245 = vld [vmem:[%s244] sm:$0xf]
      %v246 = vld [vmem:[%s244 + $0x4] sm:$0xf]
      %v247 = vld [vmem:[%s244 + $0x8] sm:$0xf]
      %v248 = vld [vmem:[%s244 + $0xc] sm:$0xf]
      %v249 = vld [vmem:[%s244 + $0x10] sm:$0xf]
      %v250 = vld [vmem:[%s244 + $0x14] sm:$0xf]
      %v251 = vld [vmem:[%s244 + $0x18] sm:$0xf]
      %v252 = vld [vmem:[%s244 + $0x1c] sm:$0xf]
      %v253 = vld [vmem:[%s165] sm:$0x3]
      %v254 = vld [vmem:[%s165] sm:$0x7]
      %v256 = vunpack.c.l.b16 %v254
      %v257 = vpack.c.b16 %v256, %v256
      %v259 = vshrl.u32 %v257, 16
      %v261 = vshll.u32 %v257, 16
      %v263 = vrot.slane %v261, 1
      %v264 = vor.u32 %v259, %v263
      %v273 = vunpack.c.l.b16 %v182
      %v274 = vunpack.c.l.b16 %v183
      %v275 = vunpack.c.l.b16 %v184
      %v276 = vunpack.c.l.b16 %v185
      %v277 = vunpack.c.l.b16 %v186
      %v278 = vunpack.c.l.b16 %v187
      %v279 = vunpack.c.l.b16 %v188
      %v280 = vunpack.c.l.b16 %v189
      %v281 = vpack.c.b16 %v274, %v273
      %v282 = vpack.c.b16 %v276, %v275
      %v283 = vpack.c.b16 %v278, %v277
      %v284 = vpack.c.b16 %v280, %v279
      %vm289 = vcmask 523264
      %v291 = vsel %vm289, %v264, 0
      %293 = vmatprep.subr.bf16.mxu0 0
      %294 = vmatpush1.bf16.msra.mxu0 %v281
      %295 = vmatprep.subr.bf16.mxu0 0
      %296 = vmatpush1.bf16.msra.mxu0 %v282
      %297 = vmatprep.subr.bf16.mxu0 0
      %298 = vmatpush1.bf16.msra.mxu0 %v283
      %299 = vmatprep.subr.bf16.mxu0 0
      %300 = vmatpush1.bf16.msra.mxu0 %v284
      %301 = vmatprep.subr.bf16.mxu0 0
      %302 = vmatpush1.bf16.msra.mxu0 0
      %303 = vmatprep.subr.bf16.mxu0 0
      %304 = vmatpush1.bf16.msra.mxu0 0
      %305 = vmatprep.subr.bf16.mxu0 0
      %306 = vmatpush1.bf16.msra.mxu0 0
      %307 = vmatprep.subr.bf16.mxu0 0
      %308 = vmatpush1.bf16.msra.mxu0 0
      %309 = vmatprep.subr.bf16.mxu0 0
      %310 = vmatpush1.bf16.msra.mxu0 0
      %311 = vmatprep.subr.bf16.mxu0 0
      %312 = vmatpush1.bf16.msra.mxu0 0
      %313 = vmatprep.subr.bf16.mxu0 0
      %314 = vmatpush1.bf16.msra.mxu0 0
      %315 = vmatprep.subr.bf16.mxu0 0
      %316 = vmatpush1.bf16.msra.mxu0 0
      %317 = vmatprep.subr.bf16.mxu0 0
      %318 = vmatpush1.bf16.msra.mxu0 0
      %319 = vmatprep.subr.bf16.mxu0 0
      %320 = vmatpush1.bf16.msra.mxu0 0
      %321 = vmatprep.subr.bf16.mxu0 0
      %322 = vmatpush1.bf16.msra.mxu0 0
      %323 = vmatprep.subr.bf16.mxu0 0
      %324 = vmatpush1.bf16.msra.mxu0 0
      %325 = vmatprep.mubr.bf16.mxu0 0
      %326 = vmatmul.mubr.bf16.gmra.mrb[0].mxu0 %v291
      %v327 = vpop.f32.mrb[0].mxu0
      %v328 = vadd.f32 0.0, %v327
      %v329 = vpop.f32.mrb[0].mxu0
      %v330 = vpop.f32.mrb[0].mxu0
      %v331 = vpop.f32.mrb[0].mxu0
      %332 = vdwg.mxu0
      %v341 = vunpack.c.l.b16 %v173
      %v342 = vunpack.c.l.b16 %v174
      %v343 = vunpack.c.l.b16 %v175
      %v344 = vunpack.c.l.b16 %v176
      %v345 = vunpack.c.l.b16 %v177
      %v346 = vunpack.c.l.b16 %v178
      %v347 = vunpack.c.l.b16 %v179
      %v348 = vunpack.c.l.b16 %v180
      %v349 = vpack.c.b16 %v342, %v341
      %v350 = vpack.c.b16 %v344, %v343
      %v351 = vpack.c.b16 %v346, %v345
      %v352 = vpack.c.b16 %v348, %v347
      %v358 = vsel %vm289, %v253, 0
      %360 = vmatprep.subr.bf16.mxu0 0
      %361 = vmatpush1.bf16.msra.mxu0 %v349
      %362 = vmatprep.subr.bf16.mxu0 0
      %363 = vmatpush1.bf16.msra.mxu0 %v350
      %364 = vmatprep.subr.bf16.mxu0 0
      %365 = vmatpush1.bf16.msra.mxu0 %v351
      %366 = vmatprep.subr.bf16.mxu0 0
      %367 = vmatpush1.bf16.msra.mxu0 %v352
      %368 = vmatprep.subr.bf16.mxu0 0
      %369 = vmatpush1.bf16.msra.mxu0 0
      %370 = vmatprep.subr.bf16.mxu0 0
      %371 = vmatpush1.bf16.msra.mxu0 0
      %372 = vmatprep.subr.bf16.mxu0 0
      %373 = vmatpush1.bf16.msra.mxu0 0
      %374 = vmatprep.subr.bf16.mxu0 0
      %375 = vmatpush1.bf16.msra.mxu0 0
      %376 = vmatprep.subr.bf16.mxu0 0
      %377 = vmatpush1.bf16.msra.mxu0 0
      %378 = vmatprep.subr.bf16.mxu0 0
      %379 = vmatpush1.bf16.msra.mxu0 0
      %380 = vmatprep.subr.bf16.mxu0 0
      %381 = vmatpush1.bf16.msra.mxu0 0
      %382 = vmatprep.subr.bf16.mxu0 0
      %383 = vmatpush1.bf16.msra.mxu0 0
      %384 = vmatprep.subr.bf16.mxu0 0
      %385 = vmatpush1.bf16.msra.mxu0 0
      %386 = vmatprep.subr.bf16.mxu0 0
      %387 = vmatpush1.bf16.msra.mxu0 0
      %388 = vmatprep.subr.bf16.mxu0 0
      %389 = vmatpush1.bf16.msra.mxu0 0
      %390 = vmatprep.subr.bf16.mxu0 0
      %391 = vmatpush1.bf16.msra.mxu0 0
      %392 = vmatprep.mubr.bf16.mxu0 0
      %393 = vmatmul.mubr.bf16.gmra.mrb[0].mxu0 %v358
      %v394 = vpop.f32.mrb[0].mxu0
      %v395 = vadd.f32 %v328, %v394
      %v396 = vpop.f32.mrb[0].mxu0
      %v397 = vpop.f32.mrb[0].mxu0
      %v398 = vpop.f32.mrb[0].mxu0
      %399 = vdwg.mxu0
      %v400 = vld [vmem:[%s165] sm:$0x6]
      %v402 = vunpack.c.l.b16 %v400
      %v403 = vpack.c.b16 %v402, %v402
      %v404 = vrot.slane %v403, 1
      %v413 = vunpack.c.l.b16 %v191
      %v414 = vunpack.c.l.b16 %v192
      %v415 = vunpack.c.l.b16 %v193
      %v416 = vunpack.c.l.b16 %v194
      %v417 = vunpack.c.l.b16 %v195
      %v418 = vunpack.c.l.b16 %v196
      %v419 = vunpack.c.l.b16 %v197
      %v420 = vunpack.c.l.b16 %v198
      %v421 = vpack.c.b16 %v414, %v413
      %v422 = vpack.c.b16 %v416, %v415
      %v423 = vpack.c.b16 %v418, %v417
      %v424 = vpack.c.b16 %v420, %v419
      %v430 = vsel %vm289, %v404, 0
      %432 = vmatprep.subr.bf16.mxu0 0
      %433 = vmatpush1.bf16.msra.mxu0 %v421
      %434 = vmatprep.subr.bf16.mxu0 0
      %435 = vmatpush1.bf16.msra.mxu0 %v422
      %436 = vmatprep.subr.bf16.mxu0 0
      %437 = vmatpush1.bf16.msra.mxu0 %v423
      %438 = vmatprep.subr.bf16.mxu0 0
      %439 = vmatpush1.bf16.msra.mxu0 %v424
      %440 = vmatprep.subr.bf16.mxu0 0
      %441 = vmatpush1.bf16.msra.mxu0 0
      %442 = vmatprep.subr.bf16.mxu0 0
      %443 = vmatpush1.bf16.msra.mxu0 0
      %444 = vmatprep.subr.bf16.mxu0 0
      %445 = vmatpush1.bf16.msra.mxu0 0
      %446 = vmatprep.subr.bf16.mxu0 0
      %447 = vmatpush1.bf16.msra.mxu0 0
      %448 = vmatprep.subr.bf16.mxu0 0
      %449 = vmatpush1.bf16.msra.mxu0 0
      %450 = vmatprep.subr.bf16.mxu0 0
      %451 = vmatpush1.bf16.msra.mxu0 0
      %452 = vmatprep.subr.bf16.mxu0 0
      %453 = vmatpush1.bf16.msra.mxu0 0
      %454 = vmatprep.subr.bf16.mxu0 0
      %455 = vmatpush1.bf16.msra.mxu0 0
      %456 = vmatprep.subr.bf16.mxu0 0
      %457 = vmatpush1.bf16.msra.mxu0 0
      %458 = vmatprep.subr.bf16.mxu0 0
      %459 = vmatpush1.bf16.msra.mxu0 0
      %460 = vmatprep.subr.bf16.mxu0 0
      %461 = vmatpush1.bf16.msra.mxu0 0
      %462 = vmatprep.subr.bf16.mxu0 0
      %463 = vmatpush1.bf16.msra.mxu0 0
      %464 = vmatprep.mubr.bf16.mxu0 0
      %465 = vmatmul.mubr.bf16.gmra.mrb[0].mxu0 %v430
      %v466 = vpop.f32.mrb[0].mxu0
      %v467 = vadd.f32 0.0, %v466
      %v468 = vpop.f32.mrb[0].mxu0
      %v469 = vpop.f32.mrb[0].mxu0
      %v470 = vpop.f32.mrb[0].mxu0
      %471 = vdwg.mxu0
      %v472 = vadd.f32 %v395, %v467
      %s473 = scalar_lea.vmem %s165, 4
      %v474 = vld [vmem:[%s473] sm:$0x3]
      %v483 = vunpack.c.l.b16 %v200
      %v484 = vunpack.c.l.b16 %v201
      %v485 = vunpack.c.l.b16 %v202
      %v486 = vunpack.c.l.b16 %v203
      %v487 = vunpack.c.l.b16 %v204
      %v488 = vunpack.c.l.b16 %v205
      %v489 = vunpack.c.l.b16 %v206
      %v490 = vunpack.c.l.b16 %v207
      %v491 = vpack.c.b16 %v484, %v483
      %v492 = vpack.c.b16 %v486, %v485
      %v493 = vpack.c.b16 %v488, %v487
      %v494 = vpack.c.b16 %v490, %v489
      %v500 = vsel %vm289, %v474, 0
      %502 = vmatprep.subr.bf16.mxu0 0
      %503 = vmatpush1.bf16.msra.mxu0 %v491
      %504 = vmatprep.subr.bf16.mxu0 0
      %505 = vmatpush1.bf16.msra.mxu0 %v492
      %506 = vmatprep.subr.bf16.mxu0 0
      %507 = vmatpush1.bf16.msra.mxu0 %v493
      %508 = vmatprep.subr.bf16.mxu0 0
      %509 = vmatpush1.bf16.msra.mxu0 %v494
      %510 = vmatprep.subr.bf16.mxu0 0
      %511 = vmatpush1.bf16.msra.mxu0 0
      %512 = vmatprep.subr.bf16.mxu0 0
      %513 = vmatpush1.bf16.msra.mxu0 0
      %514 = vmatprep.subr.bf16.mxu0 0
      %515 = vmatpush1.bf16.msra.mxu0 0
      %516 = vmatprep.subr.bf16.mxu0 0
      %517 = vmatpush1.bf16.msra.mxu0 0
      %518 = vmatprep.subr.bf16.mxu0 0
      %519 = vmatpush1.bf16.msra.mxu0 0
      %520 = vmatprep.subr.bf16.mxu0 0
      %521 = vmatpush1.bf16.msra.mxu0 0
      %522 = vmatprep.subr.bf16.mxu0 0
      %523 = vmatpush1.bf16.msra.mxu0 0
      %524 = vmatprep.subr.bf16.mxu0 0
      %525 = vmatpush1.bf16.msra.mxu0 0
      %526 = vmatprep.subr.bf16.mxu0 0
      %527 = vmatpush1.bf16.msra.mxu0 0
      %528 = vmatprep.subr.bf16.mxu0 0
      %529 = vmatpush1.bf16.msra.mxu0 0
      %530 = vmatprep.subr.bf16.mxu0 0
      %531 = vmatpush1.bf16.msra.mxu0 0
      %532 = vmatprep.subr.bf16.mxu0 0
      %533 = vmatpush1.bf16.msra.mxu0 0
      %534 = vmatprep.mubr.bf16.mxu0 0
      %535 = vmatmul.mubr.bf16.gmra.mrb[0].mxu0 %v500
      %v536 = vpop.f32.mrb[0].mxu0
      %v537 = vadd.f32 0.0, %v536
      %v538 = vpop.f32.mrb[0].mxu0
      %v539 = vpop.f32.mrb[0].mxu0
      %v540 = vpop.f32.mrb[0].mxu0
      %541 = vdwg.mxu0
      %v542 = vadd.f32 %v472, %v537
      %v543 = vld [vmem:[%s473] sm:$0x7]
      %v545 = vunpack.c.l.b16 %v543
      %v546 = vpack.c.b16 %v545, %v545
      %v548 = vshrl.u32 %v546, 16
      %v550 = vshll.u32 %v546, 16
      %v552 = vrot.slane %v550, 1
      %v553 = vor.u32 %v548, %v552
      %v562 = vunpack.c.l.b16 %v209
      %v563 = vunpack.c.l.b16 %v210
      %v564 = vunpack.c.l.b16 %v211
      %v565 = vunpack.c.l.b16 %v212
      %v566 = vunpack.c.l.b16 %v213
      %v567 = vunpack.c.l.b16 %v214
      %v568 = vunpack.c.l.b16 %v215
      %v569 = vunpack.c.l.b16 %v216
      %v570 = vpack.c.b16 %v563, %v562
      %v571 = vpack.c.b16 %v565, %v564
      %v572 = vpack.c.b16 %v567, %v566
      %v573 = vpack.c.b16 %v569, %v568
      %v579 = vsel %vm289, %v553, 0
      %581 = vmatprep.subr.bf16.mxu0 0
      %582 = vmatpush1.bf16.msra.mxu0 %v570
      %583 = vmatprep.subr.bf16.mxu0 0
      %584 = vmatpush1.bf16.msra.mxu0 %v571
      %585 = vmatprep.subr.bf16.mxu0 0
      %586 = vmatpush1.bf16.msra.mxu0 %v572
      %587 = vmatprep.subr.bf16.mxu0 0
      %588 = vmatpush1.bf16.msra.mxu0 %v573
      %589 = vmatprep.subr.bf16.mxu0 0
      %590 = vmatpush1.bf16.msra.mxu0 0
      %591 = vmatprep.subr.bf16.mxu0 0
      %592 = vmatpush1.bf16.msra.mxu0 0
      %593 = vmatprep.subr.bf16.mxu0 0
      %594 = vmatpush1.bf16.msra.mxu0 0
      %595 = vmatprep.subr.bf16.mxu0 0
      %596 = vmatpush1.bf16.msra.mxu0 0
      %597 = vmatprep.subr.bf16.mxu0 0
      %598 = vmatpush1.bf16.msra.mxu0 0
      %599 = vmatprep.subr.bf16.mxu0 0
      %600 = vmatpush1.bf16.msra.mxu0 0
      %601 = vmatprep.subr.bf16.mxu0 0
      %602 = vmatpush1.bf16.msra.mxu0 0
      %603 = vmatprep.subr.bf16.mxu0 0
      %604 = vmatpush1.bf16.msra.mxu0 0
      %605 = vmatprep.subr.bf16.mxu0 0
      %606 = vmatpush1.bf16.msra.mxu0 0
      %607 = vmatprep.subr.bf16.mxu0 0
      %608 = vmatpush1.bf16.msra.mxu0 0
      %609 = vmatprep.subr.bf16.mxu0 0
      %610 = vmatpush1.bf16.msra.mxu0 0
      %611 = vmatprep.subr.bf16.mxu0 0
      %612 = vmatpush1.bf16.msra.mxu0 0
      %613 = vmatprep.mubr.bf16.mxu0 0
      %614 = vmatmul.mubr.bf16.gmra.mrb[0].mxu0 %v579
      %v615 = vpop.f32.mrb[0].mxu0
      %v616 = vadd.f32 0.0, %v615
      %v617 = vpop.f32.mrb[0].mxu0
      %v618 = vpop.f32.mrb[0].mxu0
      %v619 = vpop.f32.mrb[0].mxu0
      %620 = vdwg.mxu0
      %v621 = vadd.f32 %v542, %v616
      %v622 = vld [vmem:[%s473] sm:$0x6]
      %v624 = vunpack.c.l.b16 %v622
      %v625 = vpack.c.b16 %v624, %v624
      %v626 = vrot.slane %v625, 1
      %v635 = vunpack.c.l.b16 %v218
      %v636 = vunpack.c.l.b16 %v219
      %v637 = vunpack.c.l.b16 %v220
      %v638 = vunpack.c.l.b16 %v221
      %v639 = vunpack.c.l.b16 %v222
      %v640 = vunpack.c.l.b16 %v223
      %v641 = vunpack.c.l.b16 %v224
      %v642 = vunpack.c.l.b16 %v225
      %v643 = vpack.c.b16 %v636, %v635
      %v644 = vpack.c.b16 %v638, %v637
      %v645 = vpack.c.b16 %v640, %v639
      %v646 = vpack.c.b16 %v642, %v641
      %v652 = vsel %vm289, %v626, 0
      %654 = vmatprep.subr.bf16.mxu0 0
      %655 = vmatpush1.bf16.msra.mxu0 %v643
      %656 = vmatprep.subr.bf16.mxu0 0
      %657 = vmatpush1.bf16.msra.mxu0 %v644
      %658 = vmatprep.subr.bf16.mxu0 0
      %659 = vmatpush1.bf16.msra.mxu0 %v645
      %660 = vmatprep.subr.bf16.mxu0 0
      %661 = vmatpush1.bf16.msra.mxu0 %v646
      %662 = vmatprep.subr.bf16.mxu0 0
      %663 = vmatpush1.bf16.msra.mxu0 0
      %664 = vmatprep.subr.bf16.mxu0 0
      %665 = vmatpush1.bf16.msra.mxu0 0
      %666 = vmatprep.subr.bf16.mxu0 0
      %667 = vmatpush1.bf16.msra.mxu0 0
      %668 = vmatprep.subr.bf16.mxu0 0
      %669 = vmatpush1.bf16.msra.mxu0 0
      %670 = vmatprep.subr.bf16.mxu0 0
      %671 = vmatpush1.bf16.msra.mxu0 0
      %672 = vmatprep.subr.bf16.mxu0 0
      %673 = vmatpush1.bf16.msra.mxu0 0
      %674 = vmatprep.subr.bf16.mxu0 0
      %675 = vmatpush1.bf16.msra.mxu0 0
      %676 = vmatprep.subr.bf16.mxu0 0
      %677 = vmatpush1.bf16.msra.mxu0 0
      %678 = vmatprep.subr.bf16.mxu0 0
      %679 = vmatpush1.bf16.msra.mxu0 0
      %680 = vmatprep.subr.bf16.mxu0 0
      %681 = vmatpush1.bf16.msra.mxu0 0
      %682 = vmatprep.subr.bf16.mxu0 0
      %683 = vmatpush1.bf16.msra.mxu0 0
      %684 = vmatprep.subr.bf16.mxu0 0
      %685 = vmatpush1.bf16.msra.mxu0 0
      %686 = vmatprep.mubr.bf16.mxu0 0
      %687 = vmatmul.mubr.bf16.gmra.mrb[0].mxu0 %v652
      %v688 = vpop.f32.mrb[0].mxu0
      %v689 = vadd.f32 0.0, %v688
      %v690 = vpop.f32.mrb[0].mxu0
      %v691 = vpop.f32.mrb[0].mxu0
      %v692 = vpop.f32.mrb[0].mxu0
      %693 = vdwg.mxu0
      %v694 = vadd.f32 %v621, %v689
      %s695 = scalar_lea.vmem %s165, 8
      %v696 = vld [vmem:[%s695] sm:$0x3]
      %v705 = vunpack.c.l.b16 %v227
      %v706 = vunpack.c.l.b16 %v228
      %v707 = vunpack.c.l.b16 %v229
      %v708 = vunpack.c.l.b16 %v230
      %v709 = vunpack.c.l.b16 %v231
      %v710 = vunpack.c.l.b16 %v232
      %v711 = vunpack.c.l.b16 %v233
      %v712 = vunpack.c.l.b16 %v234
      %v713 = vpack.c.b16 %v706, %v705
      %v714 = vpack.c.b16 %v708, %v707
      %v715 = vpack.c.b16 %v710, %v709
      %v716 = vpack.c.b16 %v712, %v711
      %v722 = vsel %vm289, %v696, 0
      %724 = vmatprep.subr.bf16.mxu0 0
      %725 = vmatpush1.bf16.msra.mxu0 %v713
      %726 = vmatprep.subr.bf16.mxu0 0
      %727 = vmatpush1.bf16.msra.mxu0 %v714
      %728 = vmatprep.subr.bf16.mxu0 0
      %729 = vmatpush1.bf16.msra.mxu0 %v715
      %730 = vmatprep.subr.bf16.mxu0 0
      %731 = vmatpush1.bf16.msra.mxu0 %v716
      %732 = vmatprep.subr.bf16.mxu0 0
      %733 = vmatpush1.bf16.msra.mxu0 0
      %734 = vmatprep.subr.bf16.mxu0 0
      %735 = vmatpush1.bf16.msra.mxu0 0
      %736 = vmatprep.subr.bf16.mxu0 0
      %737 = vmatpush1.bf16.msra.mxu0 0
      %738 = vmatprep.subr.bf16.mxu0 0
      %739 = vmatpush1.bf16.msra.mxu0 0
      %740 = vmatprep.subr.bf16.mxu0 0
      %741 = vmatpush1.bf16.msra.mxu0 0
      %742 = vmatprep.subr.bf16.mxu0 0
      %743 = vmatpush1.bf16.msra.mxu0 0
      %744 = vmatprep.subr.bf16.mxu0 0
      %745 = vmatpush1.bf16.msra.mxu0 0
      %746 = vmatprep.subr.bf16.mxu0 0
      %747 = vmatpush1.bf16.msra.mxu0 0
      %748 = vmatprep.subr.bf16.mxu0 0
      %749 = vmatpush1.bf16.msra.mxu0 0
      %750 = vmatprep.subr.bf16.mxu0 0
      %751 = vmatpush1.bf16.msra.mxu0 0
      %752 = vmatprep.subr.bf16.mxu0 0
      %753 = vmatpush1.bf16.msra.mxu0 0
      %754 = vmatprep.subr.bf16.mxu0 0
      %755 = vmatpush1.bf16.msra.mxu0 0
      %756 = vmatprep.mubr.bf16.mxu0 0
      %757 = vmatmul.mubr.bf16.gmra.mrb[0].mxu0 %v722
      %v758 = vpop.f32.mrb[0].mxu0
      %v759 = vadd.f32 0.0, %v758
      %v760 = vpop.f32.mrb[0].mxu0
      %v761 = vpop.f32.mrb[0].mxu0
      %v762 = vpop.f32.mrb[0].mxu0
      %763 = vdwg.mxu0
      %v764 = vadd.f32 %v694, %v759
      %v765 = vld [vmem:[%s695] sm:$0x7]
      %v767 = vunpack.c.l.b16 %v765
      %v768 = vpack.c.b16 %v767, %v767
      %v770 = vshrl.u32 %v768, 16
      %v772 = vshll.u32 %v768, 16
      %v774 = vrot.slane %v772, 1
      %v775 = vor.u32 %v770, %v774
      %v784 = vunpack.c.l.b16 %v236
      %v785 = vunpack.c.l.b16 %v237
      %v786 = vunpack.c.l.b16 %v238
      %v787 = vunpack.c.l.b16 %v239
      %v788 = vunpack.c.l.b16 %v240
      %v789 = vunpack.c.l.b16 %v241
      %v790 = vunpack.c.l.b16 %v242
      %v791 = vunpack.c.l.b16 %v243
      %v792 = vpack.c.b16 %v785, %v784
      %v793 = vpack.c.b16 %v787, %v786
      %v794 = vpack.c.b16 %v789, %v788
      %v795 = vpack.c.b16 %v791, %v790
      %v801 = vsel %vm289, %v775, 0
      %803 = vmatprep.subr.bf16.mxu0 0
      %804 = vmatpush1.bf16.msra.mxu0 %v792
      %805 = vmatprep.subr.bf16.mxu0 0
      %806 = vmatpush1.bf16.msra.mxu0 %v793
      %807 = vmatprep.subr.bf16.mxu0 0
      %808 = vmatpush1.bf16.msra.mxu0 %v794
      %809 = vmatprep.subr.bf16.mxu0 0
      %810 = vmatpush1.bf16.msra.mxu0 %v795
      %811 = vmatprep.subr.bf16.mxu0 0
      %812 = vmatpush1.bf16.msra.mxu0 0
      %813 = vmatprep.subr.bf16.mxu0 0
      %814 = vmatpush1.bf16.msra.mxu0 0
      %815 = vmatprep.subr.bf16.mxu0 0
      %816 = vmatpush1.bf16.msra.mxu0 0
      %817 = vmatprep.subr.bf16.mxu0 0
      %818 = vmatpush1.bf16.msra.mxu0 0
      %819 = vmatprep.subr.bf16.mxu0 0
      %820 = vmatpush1.bf16.msra.mxu0 0
      %821 = vmatprep.subr.bf16.mxu0 0
      %822 = vmatpush1.bf16.msra.mxu0 0
      %823 = vmatprep.subr.bf16.mxu0 0
      %824 = vmatpush1.bf16.msra.mxu0 0
      %825 = vmatprep.subr.bf16.mxu0 0
      %826 = vmatpush1.bf16.msra.mxu0 0
      %827 = vmatprep.subr.bf16.mxu0 0
      %828 = vmatpush1.bf16.msra.mxu0 0
      %829 = vmatprep.subr.bf16.mxu0 0
      %830 = vmatpush1.bf16.msra.mxu0 0
      %831 = vmatprep.subr.bf16.mxu0 0
      %832 = vmatpush1.bf16.msra.mxu0 0
      %833 = vmatprep.subr.bf16.mxu0 0
      %834 = vmatpush1.bf16.msra.mxu0 0
      %835 = vmatprep.mubr.bf16.mxu0 0
      %836 = vmatmul.mubr.bf16.gmra.mrb[0].mxu0 %v801
      %v837 = vpop.f32.mrb[0].mxu0
      %v838 = vadd.f32 0.0, %v837
      %v839 = vpop.f32.mrb[0].mxu0
      %v840 = vpop.f32.mrb[0].mxu0
      %v841 = vpop.f32.mrb[0].mxu0
      %842 = vdwg.mxu0
      %v843 = vadd.f32 %v764, %v838
      %v844 = vld [vmem:[%s695] sm:$0x6]
      %v846 = vunpack.c.l.b16 %v844
      %v847 = vpack.c.b16 %v846, %v846
      %v848 = vrot.slane %v847, 1
      %v857 = vunpack.c.l.b16 %v245
      %v858 = vunpack.c.l.b16 %v246
      %v859 = vunpack.c.l.b16 %v247
      %v860 = vunpack.c.l.b16 %v248
      %v861 = vunpack.c.l.b16 %v249
      %v862 = vunpack.c.l.b16 %v250
      %v863 = vunpack.c.l.b16 %v251
      %v864 = vunpack.c.l.b16 %v252
      %v865 = vpack.c.b16 %v858, %v857
      %v866 = vpack.c.b16 %v860, %v859
      %v867 = vpack.c.b16 %v862, %v861
      %v868 = vpack.c.b16 %v864, %v863
      %v874 = vsel %vm289, %v848, 0
      %876 = vmatprep.subr.bf16.mxu0 0
      %877 = vmatpush1.bf16.msra.mxu0 %v865
      %878 = vmatprep.subr.bf16.mxu0 0
      %879 = vmatpush1.bf16.msra.mxu0 %v866
      %880 = vmatprep.subr.bf16.mxu0 0
      %881 = vmatpush1.bf16.msra.mxu0 %v867
      %882 = vmatprep.subr.bf16.mxu0 0
      %883 = vmatpush1.bf16.msra.mxu0 %v868
      %884 = vmatprep.subr.bf16.mxu0 0
      %885 = vmatpush1.bf16.msra.mxu0 0
      %886 = vmatprep.subr.bf16.mxu0 0
      %887 = vmatpush1.bf16.msra.mxu0 0
      %888 = vmatprep.subr.bf16.mxu0 0
      %889 = vmatpush1.bf16.msra.mxu0 0
      %890 = vmatprep.subr.bf16.mxu0 0
      %891 = vmatpush1.bf16.msra.mxu0 0
      %892 = vmatprep.subr.bf16.mxu0 0
      %893 = vmatpush1.bf16.msra.mxu0 0
      %894 = vmatprep.subr.bf16.mxu0 0
      %895 = vmatpush1.bf16.msra.mxu0 0
      %896 = vmatprep.subr.bf16.mxu0 0
      %897 = vmatpush1.bf16.msra.mxu0 0
      %898 = vmatprep.subr.bf16.mxu0 0
      %899 = vmatpush1.bf16.msra.mxu0 0
      %900 = vmatprep.subr.bf16.mxu0 0
      %901 = vmatpush1.bf16.msra.mxu0 0
      %902 = vmatprep.subr.bf16.mxu0 0
      %903 = vmatpush1.bf16.msra.mxu0 0
      %904 = vmatprep.subr.bf16.mxu0 0
      %905 = vmatpush1.bf16.msra.mxu0 0
      %906 = vmatprep.subr.bf16.mxu0 0
      %907 = vmatpush1.bf16.msra.mxu0 0
      %908 = vmatprep.mubr.bf16.mxu0 0
      %909 = vmatmul.mubr.bf16.gmra.mrb[0].mxu0 %v874
      %v910 = vpop.f32.mrb[0].mxu0
      %v911 = vadd.f32 0.0, %v910
      %v912 = vpop.f32.mrb[0].mxu0
      %v913 = vpop.f32.mrb[0].mxu0
      %v914 = vpop.f32.mrb[0].mxu0
      %915 = vdwg.mxu0
      %v916 = vadd.f32 %v843, %v911
      %v918 = vlaneseq
      %v919 = vshrl.u32 %v918, 7
      %v920 = vsub.s32 0, %v919
      %v921 = vrot.slane %v172, %v920
      %v923 = vadd.f32 %v916, %v921
      %v924 = vmax.f32 %v923, 0.0
      %v925 = vpack.c.bf16 %v924, %v924
      %vm926 = vcmask 517120
      %927 = vst.msk [vmem:[%s170] sm:$0x3] %vm926, %v925
      %v928 = vld [vmem:[%s473] sm:$0x3]
      %v929 = vld [vmem:[%s473] sm:$0x7]
      %v931 = vunpack.c.l.b16 %v929
      %v932 = vpack.c.b16 %v931, %v931
      %v934 = vshrl.u32 %v932, 16
      %v936 = vshll.u32 %v932, 16
      %v938 = vrot.slane %v936, 1
      %v939 = vor.u32 %v934, %v938
      %v941 = vsel %vm289, %v939, 0
      %943 = vmatprep.subr.bf16.mxu0 0
      %944 = vmatpush1.bf16.msra.mxu0 %v281
      %945 = vmatprep.subr.bf16.mxu0 0
      %946 = vmatpush1.bf16.msra.mxu0 %v282
      %947 = vmatprep.subr.bf16.mxu0 0
      %948 = vmatpush1.bf16.msra.mxu0 %v283
      %949 = vmatprep.subr.bf16.mxu0 0
      %950 = vmatpush1.bf16.msra.mxu0 %v284
      %951 = vmatprep.subr.bf16.mxu0 0
      %952 = vmatpush1.bf16.msra.mxu0 0
      %953 = vmatprep.subr.bf16.mxu0 0
      %954 = vmatpush1.bf16.msra.mxu0 0
      %955 = vmatprep.subr.bf16.mxu0 0
      %956 = vmatpush1.bf16.msra.mxu0 0
      %957 = vmatprep.subr.bf16.mxu0 0
      %958 = vmatpush1.bf16.msra.mxu0 0
      %959 = vmatprep.subr.bf16.mxu0 0
      %960 = vmatpush1.bf16.msra.mxu0 0
      %961 = vmatprep.subr.bf16.mxu0 0
      %962 = vmatpush1.bf16.msra.mxu0 0
      %963 = vmatprep.subr.bf16.mxu0 0
      %964 = vmatpush1.bf16.msra.mxu0 0
      %965 = vmatprep.subr.bf16.mxu0 0
      %966 = vmatpush1.bf16.msra.mxu0 0
      %967 = vmatprep.subr.bf16.mxu0 0
      %968 = vmatpush1.bf16.msra.mxu0 0
      %969 = vmatprep.subr.bf16.mxu0 0
      %970 = vmatpush1.bf16.msra.mxu0 0
      %971 = vmatprep.subr.bf16.mxu0 0
      %972 = vmatpush1.bf16.msra.mxu0 0
      %973 = vmatprep.subr.bf16.mxu0 0
      %974 = vmatpush1.bf16.msra.mxu0 0
      %975 = vmatprep.mubr.bf16.mxu0 0
      %976 = vmatmul.mubr.bf16.gmra.mrb[0].mxu0 %v941
      %v977 = vpop.f32.mrb[0].mxu0
      %v978 = vadd.f32 0.0, %v977
      %v979 = vpop.f32.mrb[0].mxu0
      %v980 = vpop.f32.mrb[0].mxu0
      %v981 = vpop.f32.mrb[0].mxu0
      %982 = vdwg.mxu0
      %v984 = vsel %vm289, %v928, 0
      %986 = vmatprep.subr.bf16.mxu0 0
      %987 = vmatpush1.bf16.msra.mxu0 %v349
      %988 = vmatprep.subr.bf16.mxu0 0
      %989 = vmatpush1.bf16.msra.mxu0 %v350
      %990 = vmatprep.subr.bf16.mxu0 0
      %991 = vmatpush1.bf16.msra.mxu0 %v351
      %992 = vmatprep.subr.bf16.mxu0 0
      %993 = vmatpush1.bf16.msra.mxu0 %v352
      %994 = vmatprep.subr.bf16.mxu0 0
      %995 = vmatpush1.bf16.msra.mxu0 0
      %996 = vmatprep.subr.bf16.mxu0 0
      %997 = vmatpush1.bf16.msra.mxu0 0
      %998 = vmatprep.subr.bf16.mxu0 0
      %999 = vmatpush1.bf16.msra.mxu0 0
      %1000 = vmatprep.subr.bf16.mxu0 0
      %1001 = vmatpush1.bf16.msra.mxu0 0
      %1002 = vmatprep.subr.bf16.mxu0 0
      %1003 = vmatpush1.bf16.msra.mxu0 0
      %1004 = vmatprep.subr.bf16.mxu0 0
      %1005 = vmatpush1.bf16.msra.mxu0 0
      %1006 = vmatprep.subr.bf16.mxu0 0
      %1007 = vmatpush1.bf16.msra.mxu0 0
      %1008 = vmatprep.subr.bf16.mxu0 0
      %1009 = vmatpush1.bf16.msra.mxu0 0
      %1010 = vmatprep.subr.bf16.mxu0 0
      %1011 = vmatpush1.bf16.msra.mxu0 0
      %1012 = vmatprep.subr.bf16.mxu0 0
      %1013 = vmatpush1.bf16.msra.mxu0 0
      %1014 = vmatprep.subr.bf16.mxu0 0
      %1015 = vmatpush1.bf16.msra.mxu0 0
      %1016 = vmatprep.subr.bf16.mxu0 0
      %1017 = vmatpush1.bf16.msra.mxu0 0
      %1018 = vmatprep.mubr.bf16.mxu0 0
      %1019 = vmatmul.mubr.bf16.gmra.mrb[0].mxu0 %v984
      %v1020 = vpop.f32.mrb[0].mxu0
      %v1021 = vadd.f32 %v978, %v1020
      %v1022 = vpop.f32.mrb[0].mxu0
      %v1023 = vpop.f32.mrb[0].mxu0
      %v1024 = vpop.f32.mrb[0].mxu0
      %1025 = vdwg.mxu0
      %v1026 = vld [vmem:[%s473] sm:$0x6]
      %v1028 = vunpack.c.l.b16 %v1026
      %v1029 = vpack.c.b16 %v1028, %v1028
      %v1030 = vrot.slane %v1029, 1
      %v1032 = vsel %vm289, %v1030, 0
      %1034 = vmatprep.subr.bf16.mxu0 0
      %1035 = vmatpush1.bf16.msra.mxu0 %v421
      %1036 = vmatprep.subr.bf16.mxu0 0
      %1037 = vmatpush1.bf16.msra.mxu0 %v422
      %1038 = vmatprep.subr.bf16.mxu0 0
      %1039 = vmatpush1.bf16.msra.mxu0 %v423
      %1040 = vmatprep.subr.bf16.mxu0 0
      %1041 = vmatpush1.bf16.msra.mxu0 %v424
      %1042 = vmatprep.subr.bf16.mxu0 0
      %1043 = vmatpush1.bf16.msra.mxu0 0
      %1044 = vmatprep.subr.bf16.mxu0 0
      %1045 = vmatpush1.bf16.msra.mxu0 0
      %1046 = vmatprep.subr.bf16.mxu0 0
      %1047 = vmatpush1.bf16.msra.mxu0 0
      %1048 = vmatprep.subr.bf16.mxu0 0
      %1049 = vmatpush1.bf16.msra.mxu0 0
      %1050 = vmatprep.subr.bf16.mxu0 0
      %1051 = vmatpush1.bf16.msra.mxu0 0
      %1052 = vmatprep.subr.bf16.mxu0 0
      %1053 = vmatpush1.bf16.msra.mxu0 0
      %1054 = vmatprep.subr.bf16.mxu0 0
      %1055 = vmatpush1.bf16.msra.mxu0 0
      %1056 = vmatprep.subr.bf16.mxu0 0
      %1057 = vmatpush1.bf16.msra.mxu0 0
      %1058 = vmatprep.subr.bf16.mxu0 0
      %1059 = vmatpush1.bf16.msra.mxu0 0
      %1060 = vmatprep.subr.bf16.mxu0 0
      %1061 = vmatpush1.bf16.msra.mxu0 0
      %1062 = vmatprep.subr.bf16.mxu0 0
      %1063 = vmatpush1.bf16.msra.mxu0 0
      %1064 = vmatprep.subr.bf16.mxu0 0
      %1065 = vmatpush1.bf16.msra.mxu0 0
      %1066 = vmatprep.mubr.bf16.mxu0 0
      %1067 = vmatmul.mubr.bf16.gmra.mrb[0].mxu0 %v1032
      %v1068 = vpop.f32.mrb[0].mxu0
      %v1069 = vadd.f32 0.0, %v1068
      %v1070 = vpop.f32.mrb[0].mxu0
      %v1071 = vpop.f32.mrb[0].mxu0
      %v1072 = vpop.f32.mrb[0].mxu0
      %1073 = vdwg.mxu0
      %v1074 = vadd.f32 %v1021, %v1069
      %v1075 = vld [vmem:[%s695] sm:$0x3]
      %v1077 = vsel %vm289, %v1075, 0
      %1079 = vmatprep.subr.bf16.mxu0 0
      %1080 = vmatpush1.bf16.msra.mxu0 %v491
      %1081 = vmatprep.subr.bf16.mxu0 0
      %1082 = vmatpush1.bf16.msra.mxu0 %v492
      %1083 = vmatprep.subr.bf16.mxu0 0
      %1084 = vmatpush1.bf16.msra.mxu0 %v493
      %1085 = vmatprep.subr.bf16.mxu0 0
      %1086 = vmatpush1.bf16.msra.mxu0 %v494
      %1087 = vmatprep.subr.bf16.mxu0 0
      %1088 = vmatpush1.bf16.msra.mxu0 0
      %1089 = vmatprep.subr.bf16.mxu0 0
      %1090 = vmatpush1.bf16.msra.mxu0 0
      %1091 = vmatprep.subr.bf16.mxu0 0
      %1092 = vmatpush1.bf16.msra.mxu0 0
      %1093 = vmatprep.subr.bf16.mxu0 0
      %1094 = vmatpush1.bf16.msra.mxu0 0
      %1095 = vmatprep.subr.bf16.mxu0 0
      %1096 = vmatpush1.bf16.msra.mxu0 0
      %1097 = vmatprep.subr.bf16.mxu0 0
      %1098 = vmatpush1.bf16.msra.mxu0 0
      %1099 = vmatprep.subr.bf16.mxu0 0
      %1100 = vmatpush1.bf16.msra.mxu0 0
      %1101 = vmatprep.subr.bf16.mxu0 0
      %1102 = vmatpush1.bf16.msra.mxu0 0
      %1103 = vmatprep.subr.bf16.mxu0 0
      %1104 = vmatpush1.bf16.msra.mxu0 0
      %1105 = vmatprep.subr.bf16.mxu0 0
      %1106 = vmatpush1.bf16.msra.mxu0 0
      %1107 = vmatprep.subr.bf16.mxu0 0
      %1108 = vmatpush1.bf16.msra.mxu0 0
      %1109 = vmatprep.subr.bf16.mxu0 0
      %1110 = vmatpush1.bf16.msra.mxu0 0
      %1111 = vmatprep.mubr.bf16.mxu0 0
      %1112 = vmatmul.mubr.bf16.gmra.mrb[0].mxu0 %v1077
      %v1113 = vpop.f32.mrb[0].mxu0
      %v1114 = vadd.f32 0.0, %v1113
      %v1115 = vpop.f32.mrb[0].mxu0
      %v1116 = vpop.f32.mrb[0].mxu0
      %v1117 = vpop.f32.mrb[0].mxu0
      %1118 = vdwg.mxu0
      %v1119 = vadd.f32 %v1074, %v1114
      %v1120 = vld [vmem:[%s695] sm:$0x7]
      %v1122 = vunpack.c.l.b16 %v1120
      %v1123 = vpack.c.b16 %v1122, %v1122
      %v1125 = vshrl.u32 %v1123, 16
      %v1127 = vshll.u32 %v1123, 16
      %v1129 = vrot.slane %v1127, 1
      %v1130 = vor.u32 %v1125, %v1129
      %v1132 = vsel %vm289, %v1130, 0
      %1134 = vmatprep.subr.bf16.mxu0 0
      %1135 = vmatpush1.bf16.msra.mxu0 %v570
      %1136 = vmatprep.subr.bf16.mxu0 0
      %1137 = vmatpush1.bf16.msra.mxu0 %v571
      %1138 = vmatprep.subr.bf16.mxu0 0
      %1139 = vmatpush1.bf16.msra.mxu0 %v572
      %1140 = vmatprep.subr.bf16.mxu0 0
      %1141 = vmatpush1.bf16.msra.mxu0 %v573
      %1142 = vmatprep.subr.bf16.mxu0 0
      %1143 = vmatpush1.bf16.msra.mxu0 0
      %1144 = vmatprep.subr.bf16.mxu0 0
      %1145 = vmatpush1.bf16.msra.mxu0 0
      %1146 = vmatprep.subr.bf16.mxu0 0
      %1147 = vmatpush1.bf16.msra.mxu0 0
      %1148 = vmatprep.subr.bf16.mxu0 0
      %1149 = vmatpush1.bf16.msra.mxu0 0
      %1150 = vmatprep.subr.bf16.mxu0 0
      %1151 = vmatpush1.bf16.msra.mxu0 0
      %1152 = vmatprep.subr.bf16.mxu0 0
      %1153 = vmatpush1.bf16.msra.mxu0 0
      %1154 = vmatprep.subr.bf16.mxu0 0
      %1155 = vmatpush1.bf16.msra.mxu0 0
      %1156 = vmatprep.subr.bf16.mxu0 0
      %1157 = vmatpush1.bf16.msra.mxu0 0
      %1158 = vmatprep.subr.bf16.mxu0 0
      %1159 = vmatpush1.bf16.msra.mxu0 0
      %1160 = vmatprep.subr.bf16.mxu0 0
      %1161 = vmatpush1.bf16.msra.mxu0 0
      %1162 = vmatprep.subr.bf16.mxu0 0
      %1163 = vmatpush1.bf16.msra.mxu0 0
      %1164 = vmatprep.subr.bf16.mxu0 0
      %1165 = vmatpush1.bf16.msra.mxu0 0
      %1166 = vmatprep.mubr.bf16.mxu0 0
      %1167 = vmatmul.mubr.bf16.gmra.mrb[0].mxu0 %v1132
      %v1168 = vpop.f32.mrb[0].mxu0
      %v1169 = vadd.f32 0.0, %v1168
      %v1170 = vpop.f32.mrb[0].mxu0
      %v1171 = vpop.f32.mrb[0].mxu0
      %v1172 = vpop.f32.mrb[0].mxu0
      %1173 = vdwg.mxu0
      %v1174 = vadd.f32 %v1119, %v1169
      %v1175 = vld [vmem:[%s695] sm:$0x6]
      %v1177 = vunpack.c.l.b16 %v1175
      %v1178 = vpack.c.b16 %v1177, %v1177
      %v1179 = vrot.slane %v1178, 1
      %v1181 = vsel %vm289, %v1179, 0
      %1183 = vmatprep.subr.bf16.mxu0 0
      %1184 = vmatpush1.bf16.msra.mxu0 %v643
      %1185 = vmatprep.subr.bf16.mxu0 0
      %1186 = vmatpush1.bf16.msra.mxu0 %v644
      %1187 = vmatprep.subr.bf16.mxu0 0
      %1188 = vmatpush1.bf16.msra.mxu0 %v645
      %1189 = vmatprep.subr.bf16.mxu0 0
      %1190 = vmatpush1.bf16.msra.mxu0 %v646
      %1191 = vmatprep.subr.bf16.mxu0 0
      %1192 = vmatpush1.bf16.msra.mxu0 0
      %1193 = vmatprep.subr.bf16.mxu0 0
      %1194 = vmatpush1.bf16.msra.mxu0 0
      %1195 = vmatprep.subr.bf16.mxu0 0
      %1196 = vmatpush1.bf16.msra.mxu0 0
      %1197 = vmatprep.subr.bf16.mxu0 0
      %1198 = vmatpush1.bf16.msra.mxu0 0
      %1199 = vmatprep.subr.bf16.mxu0 0
      %1200 = vmatpush1.bf16.msra.mxu0 0
      %1201 = vmatprep.subr.bf16.mxu0 0
      %1202 = vmatpush1.bf16.msra.mxu0 0
      %1203 = vmatprep.subr.bf16.mxu0 0
      %1204 = vmatpush1.bf16.msra.mxu0 0
      %1205 = vmatprep.subr.bf16.mxu0 0
      %1206 = vmatpush1.bf16.msra.mxu0 0
      %1207 = vmatprep.subr.bf16.mxu0 0
      %1208 = vmatpush1.bf16.msra.mxu0 0
      %1209 = vmatprep.subr.bf16.mxu0 0
      %1210 = vmatpush1.bf16.msra.mxu0 0
      %1211 = vmatprep.subr.bf16.mxu0 0
      %1212 = vmatpush1.bf16.msra.mxu0 0
      %1213 = vmatprep.subr.bf16.mxu0 0
      %1214 = vmatpush1.bf16.msra.mxu0 0
      %1215 = vmatprep.mubr.bf16.mxu0 0
      %1216 = vmatmul.mubr.bf16.gmra.mrb[0].mxu0 %v1181
      %v1217 = vpop.f32.mrb[0].mxu0
      %v1218 = vadd.f32 0.0, %v1217
      %v1219 = vpop.f32.mrb[0].mxu0
      %v1220 = vpop.f32.mrb[0].mxu0
      %v1221 = vpop.f32.mrb[0].mxu0
      %1222 = vdwg.mxu0
      %v1223 = vadd.f32 %v1174, %v1218
      %s1224 = scalar_lea.vmem %s165, 12
      %v1225 = vld [vmem:[%s1224] sm:$0x3]
      %v1227 = vsel %vm289, %v1225, 0
      %1229 = vmatprep.subr.bf16.mxu0 0
      %1230 = vmatpush1.bf16.msra.mxu0 %v713
      %1231 = vmatprep.subr.bf16.mxu0 0
      %1232 = vmatpush1.bf16.msra.mxu0 %v714
      %1233 = vmatprep.subr.bf16.mxu0 0
      %1234 = vmatpush1.bf16.msra.mxu0 %v715
      %1235 = vmatprep.subr.bf16.mxu0 0
      %1236 = vmatpush1.bf16.msra.mxu0 %v716
      %1237 = vmatprep.subr.bf16.mxu0 0
      %1238 = vmatpush1.bf16.msra.mxu0 0
      %1239 = vmatprep.subr.bf16.mxu0 0
      %1240 = vmatpush1.bf16.msra.mxu0 0
      %1241 = vmatprep.subr.bf16.mxu0 0
      %1242 = vmatpush1.bf16.msra.mxu0 0
      %1243 = vmatprep.subr.bf16.mxu0 0
      %1244 = vmatpush1.bf16.msra.mxu0 0
      %1245 = vmatprep.subr.bf16.mxu0 0
      %1246 = vmatpush1.bf16.msra.mxu0 0
      %1247 = vmatprep.subr.bf16.mxu0 0
      %1248 = vmatpush1.bf16.msra.mxu0 0
      %1249 = vmatprep.subr.bf16.mxu0 0
      %1250 = vmatpush1.bf16.msra.mxu0 0
      %1251 = vmatprep.subr.bf16.mxu0 0
      %1252 = vmatpush1.bf16.msra.mxu0 0
      %1253 = vmatprep.subr.bf16.mxu0 0
      %1254 = vmatpush1.bf16.msra.mxu0 0
      %1255 = vmatprep.subr.bf16.mxu0 0
      %1256 = vmatpush1.bf16.msra.mxu0 0
      %1257 = vmatprep.subr.bf16.mxu0 0
      %1258 = vmatpush1.bf16.msra.mxu0 0
      %1259 = vmatprep.subr.bf16.mxu0 0
      %1260 = vmatpush1.bf16.msra.mxu0 0
      %1261 = vmatprep.mubr.bf16.mxu0 0
      %1262 = vmatmul.mubr.bf16.gmra.mrb[0].mxu0 %v1227
      %v1263 = vpop.f32.mrb[0].mxu0
      %v1264 = vadd.f32 0.0, %v1263
      %v1265 = vpop.f32.mrb[0].mxu0
      %v1266 = vpop.f32.mrb[0].mxu0
      %v1267 = vpop.f32.mrb[0].mxu0
      %1268 = vdwg.mxu0
      %v1269 = vadd.f32 %v1223, %v1264
      %v1270 = vld [vmem:[%s1224] sm:$0x7]
      %v1272 = vunpack.c.l.b16 %v1270
      %v1273 = vpack.c.b16 %v1272, %v1272
      %v1275 = vshrl.u32 %v1273, 16
      %v1277 = vshll.u32 %v1273, 16
      %v1279 = vrot.slane %v1277, 1
      %v1280 = vor.u32 %v1275, %v1279
      %v1282 = vsel %vm289, %v1280, 0
      %1284 = vmatprep.subr.bf16.mxu0 0
      %1285 = vmatpush1.bf16.msra.mxu0 %v792
      %1286 = vmatprep.subr.bf16.mxu0 0
      %1287 = vmatpush1.bf16.msra.mxu0 %v793
      %1288 = vmatprep.subr.bf16.mxu0 0
      %1289 = vmatpush1.bf16.msra.mxu0 %v794
      %1290 = vmatprep.subr.bf16.mxu0 0
      %1291 = vmatpush1.bf16.msra.mxu0 %v795
      %1292 = vmatprep.subr.bf16.mxu0 0
      %1293 = vmatpush1.bf16.msra.mxu0 0
      %1294 = vmatprep.subr.bf16.mxu0 0
      %1295 = vmatpush1.bf16.msra.mxu0 0
      %1296 = vmatprep.subr.bf16.mxu0 0
      %1297 = vmatpush1.bf16.msra.mxu0 0
      %1298 = vmatprep.subr.bf16.mxu0 0
      %1299 = vmatpush1.bf16.msra.mxu0 0
      %1300 = vmatprep.subr.bf16.mxu0 0
      %1301 = vmatpush1.bf16.msra.mxu0 0
      %1302 = vmatprep.subr.bf16.mxu0 0
      %1303 = vmatpush1.bf16.msra.mxu0 0
      %1304 = vmatprep.subr.bf16.mxu0 0
      %1305 = vmatpush1.bf16.msra.mxu0 0
      %1306 = vmatprep.subr.bf16.mxu0 0
      %1307 = vmatpush1.bf16.msra.mxu0 0
      %1308 = vmatprep.subr.bf16.mxu0 0
      %1309 = vmatpush1.bf16.msra.mxu0 0
      %1310 = vmatprep.subr.bf16.mxu0 0
      %1311 = vmatpush1.bf16.msra.mxu0 0
      %1312 = vmatprep.subr.bf16.mxu0 0
      %1313 = vmatpush1.bf16.msra.mxu0 0
      %1314 = vmatprep.subr.bf16.mxu0 0
      %1315 = vmatpush1.bf16.msra.mxu0 0
      %1316 = vmatprep.mubr.bf16.mxu0 0
      %1317 = vmatmul.mubr.bf16.gmra.mrb[0].mxu0 %v1282
      %v1318 = vpop.f32.mrb[0].mxu0
      %v1319 = vadd.f32 0.0, %v1318
      %v1320 = vpop.f32.mrb[0].mxu0
      %v1321 = vpop.f32.mrb[0].mxu0
      %v1322 = vpop.f32.mrb[0].mxu0
      %1323 = vdwg.mxu0
      %v1324 = vadd.f32 %v1269, %v1319
      %v1325 = vld [vmem:[%s1224] sm:$0x6]
      %v1327 = vunpack.c.l.b16 %v1325
      %v1328 = vpack.c.b16 %v1327, %v1327
      %v1329 = vrot.slane %v1328, 1
      %v1331 = vsel %vm289, %v1329, 0
      %1333 = vmatprep.subr.bf16.mxu0 0
      %1334 = vmatpush1.bf16.msra.mxu0 %v865
      %1335 = vmatprep.subr.bf16.mxu0 0
      %1336 = vmatpush1.bf16.msra.mxu0 %v866
      %1337 = vmatprep.subr.bf16.mxu0 0
      %1338 = vmatpush1.bf16.msra.mxu0 %v867
      %1339 = vmatprep.subr.bf16.mxu0 0
      %1340 = vmatpush1.bf16.msra.mxu0 %v868
      %1341 = vmatprep.subr.bf16.mxu0 0
      %1342 = vmatpush1.bf16.msra.mxu0 0
      %1343 = vmatprep.subr.bf16.mxu0 0
      %1344 = vmatpush1.bf16.msra.mxu0 0
      %1345 = vmatprep.subr.bf16.mxu0 0
      %1346 = vmatpush1.bf16.msra.mxu0 0
      %1347 = vmatprep.subr.bf16.mxu0 0
      %1348 = vmatpush1.bf16.msra.mxu0 0
      %1349 = vmatprep.subr.bf16.mxu0 0
      %1350 = vmatpush1.bf16.msra.mxu0 0
      %1351 = vmatprep.subr.bf16.mxu0 0
      %1352 = vmatpush1.bf16.msra.mxu0 0
      %1353 = vmatprep.subr.bf16.mxu0 0
      %1354 = vmatpush1.bf16.msra.mxu0 0
      %1355 = vmatprep.subr.bf16.mxu0 0
      %1356 = vmatpush1.bf16.msra.mxu0 0
      %1357 = vmatprep.subr.bf16.mxu0 0
      %1358 = vmatpush1.bf16.msra.mxu0 0
      %1359 = vmatprep.subr.bf16.mxu0 0
      %1360 = vmatpush1.bf16.msra.mxu0 0
      %1361 = vmatprep.subr.bf16.mxu0 0
      %1362 = vmatpush1.bf16.msra.mxu0 0
      %1363 = vmatprep.subr.bf16.mxu0 0
      %1364 = vmatpush1.bf16.msra.mxu0 0
      %1365 = vmatprep.mubr.bf16.mxu0 0
      %1366 = vmatmul.mubr.bf16.gmra.mrb[0].mxu0 %v1331
      %v1367 = vpop.f32.mrb[0].mxu0
      %v1368 = vadd.f32 0.0, %v1367
      %v1369 = vpop.f32.mrb[0].mxu0
      %v1370 = vpop.f32.mrb[0].mxu0
      %v1371 = vpop.f32.mrb[0].mxu0
      %1372 = vdwg.mxu0
      %v1373 = vadd.f32 %v1324, %v1368
      %v1374 = vadd.f32 %v1373, %v921
      %v1375 = vmax.f32 %v1374, 0.0
      %v1376 = vpack.c.bf16 %v1375, %v1375
      %s1377 = scalar_lea.vmem %s170, 2
      %1378 = vst.msk [vmem:[%s1377] sm:$0x3] %vm926, %v1376
      %p1379 = scmp.lt.s32.totalorder %s14, 1
      %s1380 = scalar_select %p1379, %s14, 1
      %s1381 = smul.addr %s1380, 2
      %s1382 = smul.addr %s1381, 2
      %s1383 = scalar_lea.vmem %s3, %s1382
      // Predicated region
      $region33: #{ddqn_forward.6} parent=31 // pred_check
        %p1384 = pneg %p100
      $region34: #{ddqn_forward.6} parent=31 // pred_check_branch
        %1386 = sbr.rel (%p1384) target = $region36
      $region35: #{ddqn_forward.6} parent=31 // pred_region
        _
      $region36: #{ddqn_forward.6} parent=31 // pred_fallthru
        _
    $region32: #{ddqn_forward.6} parent=5 // pred_fallthru
      _
    %p1387 = scmp.le.s32.totalorder 2, %s9
    // Predicated region
    $region37: #{ddqn_forward.6} parent=5 // pred_check
      %p1388 = pneg %p1387
    $region38: #{ddqn_forward.6} parent=5 // pred_check_branch
      %1390 = sbr.rel (%p1388) target = $region40
    $region39: #{ddqn_forward.6} parent=5 // pred_region
      %s1391 = ssub.s32 %s9, 2
      // Predicated region
      $region41: #{ddqn_forward.6} parent=39 // pred_check
        %p1392 = pneg %p106
      $region42: #{ddqn_forward.6} parent=39 // pred_check_branch
        %1394 = sbr.rel (%p1392) target = $region44
      $region43: #{ddqn_forward.6} parent=39 // pred_region
        %p1395 = scmp.lt.s32.totalorder %s15, 1
        %s1396 = scalar_select %p1395, %s15, 1
        %s1397 = smul.addr %s1396, 2
        %s1398 = smul.addr %s1397, 2
        %s1399 = scalar_lea.vmem %s3, %s1398
      $region44: #{ddqn_forward.6} parent=39 // pred_fallthru
        _
    $region40: #{ddqn_forward.6} parent=5 // pred_fallthru
      _
  $region6: #{ddqn_forward.6} parent=0 // loop_footer
    %s13 = sadd.s32 1, %s9
  $region7: #{ddqn_forward.6} parent=0 // loop_footer_branch
    %8 = sbr.rel target = $region3
  $region8: #{ddqn_forward.6} parent=0 // loop_exit
    _

// kernel: ddqn_forward.7
$region0: #{ddqn_forward.7}
  #allocation0 [shape = 'u32[]', space=smem, size = 0x4, offset = 0x4, fixed_abs, tag = 'smem constant byte address 0x4 - core index']
  #allocation1 [shape = 'u32[144,128]{1,0:T(1,128)}', space=vmem, size = 0x12000, scoped, tag = 'internal scratch']
  #allocation2 [shape = 'f32[2,1024]{1,0:T(2,128)}', space=vmem, size = 0x2000, scoped, tag = 'scratch operand']
  %s0 = inlined_call_operand.vmem [shape: bf16[2,512], index: 0, kind: input, shape index: {}]
  %s1 = inlined_call_operand.vmem [shape: bf16[512,1024], index: 1, kind: input, shape index: {}]
  %s2 = inlined_call_operand.vmem [shape: f32[1,1024], index: 2, kind: input, shape index: {}]
  %s3 = inlined_call_operand.vmem [shape: bf16[1024,7], index: 3, kind: input, shape index: {}]
  %s4 = inlined_call_operand.vmem [shape: f32[1,7], index: 4, kind: input, shape index: {}]
  %s5 = inlined_call_operand.hbm [shape: f32[2,6], index: 5, kind: output, shape index: {}]
  %s6 = sld [smem:[#allocation0]]
  $region38: #{ddqn_forward.7} parent=0
    _
  %s8 = ssub.s32 1, %s6
  %s9 = scalar_select 0, %s8, %s6
  $region1: #{ddqn_forward.7} parent=0
    #allocation3 [shape = 'u8[1024]{0}', space=vmem, size = 0x400, scoped, tag = 'output window, operand 0, single buffered']
    #allocation4 [shape = 's32[1]{0}', space=sflag, size = 0x4, scoped, tag = 'scoped memory for ddqn_forward.7']
    %10 = vsyncpa [#allocation4], 0
    // Predicated region
    $region2: #{ddqn_forward.7} parent=1 // pred_check
      _
    $region3: #{ddqn_forward.7} parent=1 // pred_check_branch
      %12 = sbr.rel (0) target = $region5
    $region4: #{ddqn_forward.7} parent=1 // pred_region
      _
    $region5: #{ddqn_forward.7} parent=1 // pred_fallthru
      _
    // Predicated region
    $region6: #{ddqn_forward.7} parent=1 // pred_check
      _
    $region7: #{ddqn_forward.7} parent=1 // pred_check_branch
      %14 = sbr.rel (0) target = $region9
    $region8: #{ddqn_forward.7} parent=1 // pred_region
      _
    $region9: #{ddqn_forward.7} parent=1 // pred_fallthru
      _
    // Predicated region
    $region10: #{ddqn_forward.7} parent=1 // pred_check
      _
    $region11: #{ddqn_forward.7} parent=1 // pred_check_branch
      %16 = sbr.rel (0) target = $region13
    $region12: #{ddqn_forward.7} parent=1 // pred_region
      _
    $region13: #{ddqn_forward.7} parent=1 // pred_fallthru
      _
    // Predicated region
    $region14: #{ddqn_forward.7} parent=1 // pred_check
      _
    $region15: #{ddqn_forward.7} parent=1 // pred_check_branch
      %18 = sbr.rel (0) target = $region17
    $region16: #{ddqn_forward.7} parent=1 // pred_region
      _
    $region17: #{ddqn_forward.7} parent=1 // pred_fallthru
      _
    // Predicated region
    $region18: #{ddqn_forward.7} parent=1 // pred_check
      _
    $region19: #{ddqn_forward.7} parent=1 // pred_check_branch
      %20 = sbr.rel (0) target = $region21
    $region20: #{ddqn_forward.7} parent=1 // pred_region
      _
    $region21: #{ddqn_forward.7} parent=1 // pred_fallthru
      _
    %p22 = scmp.eq.s32.totalorder 0, 0
    // Predicated region
    $region22: #{ddqn_forward.7} parent=1 // pred_check
      %p23 = pneg %p22
    $region23: #{ddqn_forward.7} parent=1 // pred_check_branch
      %25 = sbr.rel (%p23) target = $region25
    $region24: #{ddqn_forward.7} parent=1 // pred_region
      %26 = vst [vmem:[#allocation2] sm:$0xff] 0.0
      %27 = vst [vmem:[#allocation2 + $0x8] sm:$0xff] 0.0
    $region25: #{ddqn_forward.7} parent=1 // pred_fallthru
      _
    %v28 = vld [vmem:[#allocation2] sm:$0xff]
    %v29 = vld [vmem:[#allocation2 + $0x8] sm:$0xff]
    %v30 = vld [vmem:[%s0] sm:$0xf]
    %v31 = vld [vmem:[%s1] sm:$0xff]
    %v32 = vld [vmem:[%s1 + $0x8] sm:$0xff]
    %v33 = vld [vmem:[%s1 + $0x10] sm:$0xff]
    %v34 = vld [vmem:[%s1 + $0x18] sm:$0xff]
    %v35 = vld [vmem:[%s1 + $0x20] sm:$0xff]
    %v36 = vld [vmem:[%s1 + $0x28] sm:$0xff]
    %v37 = vld [vmem:[%s1 + $0x30] sm:$0xff]
    %v38 = vld [vmem:[%s1 + $0x38] sm:$0xff]
    %v39 = vld [vmem:[%s1 + $0x40] sm:$0xff]
    %v40 = vld [vmem:[%s1 + $0x48] sm:$0xff]
    %v41 = vld [vmem:[%s1 + $0x50] sm:$0xff]
    %v42 = vld [vmem:[%s1 + $0x58] sm:$0xff]
    %v43 = vld [vmem:[%s1 + $0x60] sm:$0xff]
    %v44 = vld [vmem:[%s1 + $0x68] sm:$0xff]
    %v45 = vld [vmem:[%s1 + $0x70] sm:$0xff]
    %v46 = vld [vmem:[%s1 + $0x78] sm:$0xff]
    %v47 = vld [vmem:[%s1 + $0x80] sm:$0xff]
    %v48 = vld [vmem:[%s1 + $0x88] sm:$0xff]
    %v49 = vld [vmem:[%s1 + $0x90] sm:$0xff]
    %v50 = vld [vmem:[%s1 + $0x98] sm:$0xff]
    %v51 = vld [vmem:[%s1 + $0xa0] sm:$0xff]
    %v52 = vld [vmem:[%s1 + $0xa8] sm:$0xff]
    %v53 = vld [vmem:[%s1 + $0xb0] sm:$0xff]
    %v54 = vld [vmem:[%s1 + $0xb8] sm:$0xff]
    %v55 = vld [vmem:[%s1 + $0xc0] sm:$0xff]
    %v56 = vld [vmem:[%s1 + $0xc8] sm:$0xff]
    %v57 = vld [vmem:[%s1 + $0xd0] sm:$0xff]
    %v58 = vld [vmem:[%s1 + $0xd8] sm:$0xff]
    %v59 = vld [vmem:[%s1 + $0xe0] sm:$0xff]
    %v60 = vld [vmem:[%s1 + $0xe8] sm:$0xff]
    %v61 = vld [vmem:[%s1 + $0xf0] sm:$0xff]
    %v62 = vld [vmem:[%s1 + $0xf8] sm:$0xff]
    %v63 = vld [vmem:[%s1 + $0x100] sm:$0xff]
    %v64 = vld [vmem:[%s1 + $0x108] sm:$0xff]
    %v65 = vld [vmem:[%s1 + $0x110] sm:$0xff]
    %v66 = vld [vmem:[%s1 + $0x118] sm:$0xff]
    %v67 = vld [vmem:[%s1 + $0x120] sm:$0xff]
    %v68 = vld [vmem:[%s1 + $0x128] sm:$0xff]
    %v69 = vld [vmem:[%s1 + $0x130] sm:$0xff]
    %v70 = vld [vmem:[%s1 + $0x138] sm:$0xff]
    %v71 = vld [vmem:[%s1 + $0x140] sm:$0xff]
    %v72 = vld [vmem:[%s1 + $0x148] sm:$0xff]
    %v73 = vld [vmem:[%s1 + $0x150] sm:$0xff]
    %v74 = vld [vmem:[%s1 + $0x158] sm:$0xff]
    %v75 = vld [vmem:[%s1 + $0x160] sm:$0xff]
    %v76 = vld [vmem:[%s1 + $0x168] sm:$0xff]
    %v77 = vld [vmem:[%s1 + $0x170] sm:$0xff]
    %v78 = vld [vmem:[%s1 + $0x178] sm:$0xff]
    %v79 = vld [vmem:[%s1 + $0x180] sm:$0xff]
    %v80 = vld [vmem:[%s1 + $0x188] sm:$0xff]
    %v81 = vld [vmem:[%s1 + $0x190] sm:$0xff]
    %v82 = vld [vmem:[%s1 + $0x198] sm:$0xff]
    %v83 = vld [vmem:[%s1 + $0x1a0] sm:$0xff]
    %v84 = vld [vmem:[%s1 + $0x1a8] sm:$0xff]
    %v85 = vld [vmem:[%s1 + $0x1b0] sm:$0xff]
    %v86 = vld [vmem:[%s1 + $0x1b8] sm:$0xff]
    %v87 = vld [vmem:[%s1 + $0x1c0] sm:$0xff]
    %v88 = vld [vmem:[%s1 + $0x1c8] sm:$0xff]
    %v89 = vld [vmem:[%s1 + $0x1d0] sm:$0xff]
    %v90 = vld [vmem:[%s1 + $0x1d8] sm:$0xff]
    %v91 = vld [vmem:[%s1 + $0x1e0] sm:$0xff]
    %v92 = vld [vmem:[%s1 + $0x1e8] sm:$0xff]
    %v93 = vld [vmem:[%s1 + $0x1f0] sm:$0xff]
    %v94 = vld [vmem:[%s1 + $0x1f8] sm:$0xff]
    %v95 = vld [vmem:[%s1 + $0x200] sm:$0xff]
    %v96 = vld [vmem:[%s1 + $0x208] sm:$0xff]
    %v97 = vld [vmem:[%s1 + $0x210] sm:$0xff]
    %v98 = vld [vmem:[%s1 + $0x218] sm:$0xff]
    %v99 = vld [vmem:[%s1 + $0x220] sm:$0xff]
    %v100 = vld [vmem:[%s1 + $0x228] sm:$0xff]
    %v101 = vld [vmem:[%s1 + $0x230] sm:$0xff]
    %v102 = vld [vmem:[%s1 + $0x238] sm:$0xff]
    %v103 = vld [vmem:[%s1 + $0x240] sm:$0xff]
    %v104 = vld [vmem:[%s1 + $0x248] sm:$0xff]
    %v105 = vld [vmem:[%s1 + $0x250] sm:$0xff]
    %v106 = vld [vmem:[%s1 + $0x258] sm:$0xff]
    %v107 = vld [vmem:[%s1 + $0x260] sm:$0xff]
    %v108 = vld [vmem:[%s1 + $0x268] sm:$0xff]
    %v109 = vld [vmem:[%s1 + $0x270] sm:$0xff]
    %v110 = vld [vmem:[%s1 + $0x278] sm:$0xff]
    %v111 = vld [vmem:[%s1 + $0x280] sm:$0xff]
    %v112 = vld [vmem:[%s1 + $0x288] sm:$0xff]
    %v113 = vld [vmem:[%s1 + $0x290] sm:$0xff]
    %v114 = vld [vmem:[%s1 + $0x298] sm:$0xff]
    %v115 = vld [vmem:[%s1 + $0x2a0] sm:$0xff]
    %v116 = vld [vmem:[%s1 + $0x2a8] sm:$0xff]
    %v117 = vld [vmem:[%s1 + $0x2b0] sm:$0xff]
    %v118 = vld [vmem:[%s1 + $0x2b8] sm:$0xff]
    %v119 = vld [vmem:[%s1 + $0x2c0] sm:$0xff]
    %v120 = vld [vmem:[%s1 + $0x2c8] sm:$0xff]
    %v121 = vld [vmem:[%s1 + $0x2d0] sm:$0xff]
    %v122 = vld [vmem:[%s1 + $0x2d8] sm:$0xff]
    %v123 = vld [vmem:[%s1 + $0x2e0] sm:$0xff]
    %v124 = vld [vmem:[%s1 + $0x2e8] sm:$0xff]
    %v125 = vld [vmem:[%s1 + $0x2f0] sm:$0xff]
    %v126 = vld [vmem:[%s1 + $0x2f8] sm:$0xff]
    %v127 = vld [vmem:[%s1 + $0x300] sm:$0xff]
    %v128 = vld [vmem:[%s1 + $0x308] sm:$0xff]
    %v129 = vld [vmem:[%s1 + $0x310] sm:$0xff]
    %v130 = vld [vmem:[%s1 + $0x318] sm:$0xff]
    %v131 = vld [vmem:[%s1 + $0x320] sm:$0xff]
    %v132 = vld [vmem:[%s1 + $0x328] sm:$0xff]
    %v133 = vld [vmem:[%s1 + $0x330] sm:$0xff]
    %v134 = vld [vmem:[%s1 + $0x338] sm:$0xff]
    %v135 = vld [vmem:[%s1 + $0x340] sm:$0xff]
    %v136 = vld [vmem:[%s1 + $0x348] sm:$0xff]
    %v137 = vld [vmem:[%s1 + $0x350] sm:$0xff]
    %v138 = vld [vmem:[%s1 + $0x358] sm:$0xff]
    %v139 = vld [vmem:[%s1 + $0x360] sm:$0xff]
    %v140 = vld [vmem:[%s1 + $0x368] sm:$0xff]
    %v141 = vld [vmem:[%s1 + $0x370] sm:$0xff]
    %v142 = vld [vmem:[%s1 + $0x378] sm:$0xff]
    %v143 = vld [vmem:[%s1 + $0x380] sm:$0xff]
    %v144 = vld [vmem:[%s1 + $0x388] sm:$0xff]
    %v145 = vld [vmem:[%s1 + $0x390] sm:$0xff]
    %v146 = vld [vmem:[%s1 + $0x398] sm:$0xff]
    %v147 = vld [vmem:[%s1 + $0x3a0] sm:$0xff]
    %v148 = vld [vmem:[%s1 + $0x3a8] sm:$0xff]
    %v149 = vld [vmem:[%s1 + $0x3b0] sm:$0xff]
    %v150 = vld [vmem:[%s1 + $0x3b8] sm:$0xff]
    %v151 = vld [vmem:[%s1 + $0x3c0] sm:$0xff]
    %v152 = vld [vmem:[%s1 + $0x3c8] sm:$0xff]
    %v153 = vld [vmem:[%s1 + $0x3d0] sm:$0xff]
    %v154 = vld [vmem:[%s1 + $0x3d8] sm:$0xff]
    %v155 = vld [vmem:[%s1 + $0x3e0] sm:$0xff]
    %v156 = vld [vmem:[%s1 + $0x3e8] sm:$0xff]
    %v157 = vld [vmem:[%s1 + $0x3f0] sm:$0xff]
    %v158 = vld [vmem:[%s1 + $0x3f8] sm:$0xff]
    %v159 = vld [vmem:[%s1 + $0x400] sm:$0xff]
    %v160 = vld [vmem:[%s1 + $0x408] sm:$0xff]
    %v161 = vld [vmem:[%s1 + $0x410] sm:$0xff]
    %v162 = vld [vmem:[%s1 + $0x418] sm:$0xff]
    %v163 = vld [vmem:[%s1 + $0x420] sm:$0xff]
    %v164 = vld [vmem:[%s1 + $0x428] sm:$0xff]
    %v165 = vld [vmem:[%s1 + $0x430] sm:$0xff]
    %v166 = vld [vmem:[%s1 + $0x438] sm:$0xff]
    %v167 = vld [vmem:[%s1 + $0x440] sm:$0xff]
    %v168 = vld [vmem:[%s1 + $0x448] sm:$0xff]
    %v169 = vld [vmem:[%s1 + $0x450] sm:$0xff]
    %v170 = vld [vmem:[%s1 + $0x458] sm:$0xff]
    %v171 = vld [vmem:[%s1 + $0x460] sm:$0xff]
    %v172 = vld [vmem:[%s1 + $0x468] sm:$0xff]
    %v173 = vld [vmem:[%s1 + $0x470] sm:$0xff]
    %v174 = vld [vmem:[%s1 + $0x478] sm:$0xff]
    %v175 = vld [vmem:[%s1 + $0x480] sm:$0xff]
    %v176 = vld [vmem:[%s1 + $0x488] sm:$0xff]
    %v177 = vld [vmem:[%s1 + $0x490] sm:$0xff]
    %v178 = vld [vmem:[%s1 + $0x498] sm:$0xff]
    %v179 = vld [vmem:[%s1 + $0x4a0] sm:$0xff]
    %v180 = vld [vmem:[%s1 + $0x4a8] sm:$0xff]
    %v181 = vld [vmem:[%s1 + $0x4b0] sm:$0xff]
    %v182 = vld [vmem:[%s1 + $0x4b8] sm:$0xff]
    %v183 = vld [vmem:[%s1 + $0x4c0] sm:$0xff]
    %v184 = vld [vmem:[%s1 + $0x4c8] sm:$0xff]
    %v185 = vld [vmem:[%s1 + $0x4d0] sm:$0xff]
    %v186 = vld [vmem:[%s1 + $0x4d8] sm:$0xff]
    %v187 = vld [vmem:[%s1 + $0x4e0] sm:$0xff]
    %v188 = vld [vmem:[%s1 + $0x4e8] sm:$0xff]
    %v189 = vld [vmem:[%s1 + $0x4f0] sm:$0xff]
    %v190 = vld [vmem:[%s1 + $0x4f8] sm:$0xff]
    %v191 = vld [vmem:[%s1 + $0x500] sm:$0xff]
    %v192 = vld [vmem:[%s1 + $0x508] sm:$0xff]
    %v193 = vld [vmem:[%s1 + $0x510] sm:$0xff]
    %v194 = vld [vmem:[%s1 + $0x518] sm:$0xff]
    %v195 = vld [vmem:[%s1 + $0x520] sm:$0xff]
    %v196 = vld [vmem:[%s1 + $0x528] sm:$0xff]
    %v197 = vld [vmem:[%s1 + $0x530] sm:$0xff]
    %v198 = vld [vmem:[%s1 + $0x538] sm:$0xff]
    %v199 = vld [vmem:[%s1 + $0x540] sm:$0xff]
    %v200 = vld [vmem:[%s1 + $0x548] sm:$0xff]
    %v201 = vld [vmem:[%s1 + $0x550] sm:$0xff]
    %v202 = vld [vmem:[%s1 + $0x558] sm:$0xff]
    %v203 = vld [vmem:[%s1 + $0x560] sm:$0xff]
    %v204 = vld [vmem:[%s1 + $0x568] sm:$0xff]
    %v205 = vld [vmem:[%s1 + $0x570] sm:$0xff]
    %v206 = vld [vmem:[%s1 + $0x578] sm:$0xff]
    %v207 = vld [vmem:[%s1 + $0x580] sm:$0xff]
    %v208 = vld [vmem:[%s1 + $0x588] sm:$0xff]
    %v209 = vld [vmem:[%s1 + $0x590] sm:$0xff]
    %v210 = vld [vmem:[%s1 + $0x598] sm:$0xff]
    %v211 = vld [vmem:[%s1 + $0x5a0] sm:$0xff]
    %v212 = vld [vmem:[%s1 + $0x5a8] sm:$0xff]
    %v213 = vld [vmem:[%s1 + $0x5b0] sm:$0xff]
    %v214 = vld [vmem:[%s1 + $0x5b8] sm:$0xff]
    %v215 = vld [vmem:[%s1 + $0x5c0] sm:$0xff]
    %v216 = vld [vmem:[%s1 + $0x5c8] sm:$0xff]
    %v217 = vld [vmem:[%s1 + $0x5d0] sm:$0xff]
    %v218 = vld [vmem:[%s1 + $0x5d8] sm:$0xff]
    %v219 = vld [vmem:[%s1 + $0x5e0] sm:$0xff]
    %v220 = vld [vmem:[%s1 + $0x5e8] sm:$0xff]
    %v221 = vld [vmem:[%s1 + $0x5f0] sm:$0xff]
    %v222 = vld [vmem:[%s1 + $0x5f8] sm:$0xff]
    %v223 = vld [vmem:[%s1 + $0x600] sm:$0xff]
    %v224 = vld [vmem:[%s1 + $0x608] sm:$0xff]
    %v225 = vld [vmem:[%s1 + $0x610] sm:$0xff]
    %v226 = vld [vmem:[%s1 + $0x618] sm:$0xff]
    %v227 = vld [vmem:[%s1 + $0x620] sm:$0xff]
    %v228 = vld [vmem:[%s1 + $0x628] sm:$0xff]
    %v229 = vld [vmem:[%s1 + $0x630] sm:$0xff]
    %v230 = vld [vmem:[%s1 + $0x638] sm:$0xff]
    %v231 = vld [vmem:[%s1 + $0x640] sm:$0xff]
    %v232 = vld [vmem:[%s1 + $0x648] sm:$0xff]
    %v233 = vld [vmem:[%s1 + $0x650] sm:$0xff]
    %v234 = vld [vmem:[%s1 + $0x658] sm:$0xff]
    %v235 = vld [vmem:[%s1 + $0x660] sm:$0xff]
    %v236 = vld [vmem:[%s1 + $0x668] sm:$0xff]
    %v237 = vld [vmem:[%s1 + $0x670] sm:$0xff]
    %v238 = vld [vmem:[%s1 + $0x678] sm:$0xff]
    %v239 = vld [vmem:[%s1 + $0x680] sm:$0xff]
    %v240 = vld [vmem:[%s1 + $0x688] sm:$0xff]
    %v241 = vld [vmem:[%s1 + $0x690] sm:$0xff]
    %v242 = vld [vmem:[%s1 + $0x698] sm:$0xff]
    %v243 = vld [vmem:[%s1 + $0x6a0] sm:$0xff]
    %v244 = vld [vmem:[%s1 + $0x6a8] sm:$0xff]
    %v245 = vld [vmem:[%s1 + $0x6b0] sm:$0xff]
    %v246 = vld [vmem:[%s1 + $0x6b8] sm:$0xff]
    %v247 = vld [vmem:[%s1 + $0x6c0] sm:$0xff]
    %v248 = vld [vmem:[%s1 + $0x6c8] sm:$0xff]
    %v249 = vld [vmem:[%s1 + $0x6d0] sm:$0xff]
    %v250 = vld [vmem:[%s1 + $0x6d8] sm:$0xff]
    %v251 = vld [vmem:[%s1 + $0x6e0] sm:$0xff]
    %v252 = vld [vmem:[%s1 + $0x6e8] sm:$0xff]
    %v253 = vld [vmem:[%s1 + $0x6f0] sm:$0xff]
    %v254 = vld [vmem:[%s1 + $0x6f8] sm:$0xff]
    %v255 = vld [vmem:[%s1 + $0x700] sm:$0xff]
    %v256 = vld [vmem:[%s1 + $0x708] sm:$0xff]
    %v257 = vld [vmem:[%s1 + $0x710] sm:$0xff]
    %v258 = vld [vmem:[%s1 + $0x718] sm:$0xff]
    %v259 = vld [vmem:[%s1 + $0x720] sm:$0xff]
    %v260 = vld [vmem:[%s1 + $0x728] sm:$0xff]
    %v261 = vld [vmem:[%s1 + $0x730] sm:$0xff]
    %v262 = vld [vmem:[%s1 + $0x738] sm:$0xff]
    %v263 = vld [vmem:[%s1 + $0x740] sm:$0xff]
    %v264 = vld [vmem:[%s1 + $0x748] sm:$0xff]
    %v265 = vld [vmem:[%s1 + $0x750] sm:$0xff]
    %v266 = vld [vmem:[%s1 + $0x758] sm:$0xff]
    %v267 = vld [vmem:[%s1 + $0x760] sm:$0xff]
    %v268 = vld [vmem:[%s1 + $0x768] sm:$0xff]
    %v269 = vld [vmem:[%s1 + $0x770] sm:$0xff]
    %v270 = vld [vmem:[%s1 + $0x778] sm:$0xff]
    %v271 = vld [vmem:[%s1 + $0x780] sm:$0xff]
    %v272 = vld [vmem:[%s1 + $0x788] sm:$0xff]
    %v273 = vld [vmem:[%s1 + $0x790] sm:$0xff]
    %v274 = vld [vmem:[%s1 + $0x798] sm:$0xff]
    %v275 = vld [vmem:[%s1 + $0x7a0] sm:$0xff]
    %v276 = vld [vmem:[%s1 + $0x7a8] sm:$0xff]
    %v277 = vld [vmem:[%s1 + $0x7b0] sm:$0xff]
    %v278 = vld [vmem:[%s1 + $0x7b8] sm:$0xff]
    %v279 = vld [vmem:[%s1 + $0x7c0] sm:$0xff]
    %v280 = vld [vmem:[%s1 + $0x7c8] sm:$0xff]
    %v281 = vld [vmem:[%s1 + $0x7d0] sm:$0xff]
    %v282 = vld [vmem:[%s1 + $0x7d8] sm:$0xff]
    %v283 = vld [vmem:[%s1 + $0x7e0] sm:$0xff]
    %v284 = vld [vmem:[%s1 + $0x7e8] sm:$0xff]
    %v285 = vld [vmem:[%s1 + $0x7f0] sm:$0xff]
    %v286 = vld [vmem:[%s1 + $0x7f8] sm:$0xff]
    %v289 = vunpack.c.l.s4 1966171168
    %v290 = vunpack.c.0.s8 %v289
    %v291 = vlaneseq
    %v292 = vshrl.u32 %v291, 7
    %v293 = vsub.s32 %v290, %v292
    %v294 = vrot.slane %v30, %v293
    %v295 = vcombine.high %v294, %v294
    %v297 = vunpack.c.l.s4 1966171168
    %v298 = vunpack.c.0.s8 %v297
    %v299 = vlaneseq
    %v300 = vshrl.u32 %v299, 7
    %v301 = vsub.s32 %v298, %v300
    %v302 = vrot.slane %v294, %v301
    %v304 = vunpack.c.l.s4 1966171168
    %v305 = vunpack.c.0.s8 %v304
    %v306 = vlaneseq
    %v307 = vshrl.u32 %v306, 7
    %v308 = vsub.s32 %v305, %v307
    %v309 = vrot.slane %v295, %v308
    %v310 = vcombine.high %v302, %v302
    %v311 = vcombine.high %v309, %v309
    %v572 = vunpack.c.l.b16 %v31
    %v573 = vunpack.c.h.b16 %v31
    %v574 = vunpack.c.l.b16 %v32
    %v575 = vunpack.c.h.b16 %v32
    %v576 = vunpack.c.l.b16 %v33
    %v577 = vunpack.c.h.b16 %v33
    %v578 = vunpack.c.l.b16 %v34
    %v579 = vunpack.c.h.b16 %v34
    %v580 = vunpack.c.l.b16 %v35
    %v581 = vunpack.c.h.b16 %v35
    %v582 = vunpack.c.l.b16 %v36
    %v583 = vunpack.c.h.b16 %v36
    %v584 = vunpack.c.l.b16 %v37
    %v585 = vunpack.c.h.b16 %v37
    %v586 = vunpack.c.l.b16 %v38
    %v587 = vunpack.c.h.b16 %v38
    %v588 = vunpack.c.l.b16 %v39
    %v589 = vunpack.c.h.b16 %v39
    %v590 = vunpack.c.l.b16 %v40
    %v591 = vunpack.c.h.b16 %v40
    %v592 = vunpack.c.l.b16 %v41
    %v593 = vunpack.c.h.b16 %v41
    %v594 = vunpack.c.l.b16 %v42
    %v595 = vunpack.c.h.b16 %v42
    %v596 = vunpack.c.l.b16 %v43
    %v597 = vunpack.c.h.b16 %v43
    %v598 = vunpack.c.l.b16 %v44
    %v599 = vunpack.c.h.b16 %v44
    %v600 = vunpack.c.l.b16 %v45
    %v601 = vunpack.c.h.b16 %v45
    %v602 = vunpack.c.l.b16 %v46
    %v603 = vunpack.c.h.b16 %v46
    %v604 = vunpack.c.l.b16 %v47
    %v605 = vunpack.c.h.b16 %v47
    %v606 = vunpack.c.l.b16 %v48
    %v607 = vunpack.c.h.b16 %v48
    %v608 = vunpack.c.l.b16 %v49
    %v609 = vunpack.c.h.b16 %v49
    %v610 = vunpack.c.l.b16 %v50
    %v611 = vunpack.c.h.b16 %v50
    %v612 = vunpack.c.l.b16 %v51
    %v613 = vunpack.c.h.b16 %v51
    %v614 = vunpack.c.l.b16 %v52
    %v615 = vunpack.c.h.b16 %v52
    %v616 = vunpack.c.l.b16 %v53
    %v617 = vunpack.c.h.b16 %v53
    %v618 = vunpack.c.l.b16 %v54
    %v619 = vunpack.c.h.b16 %v54
    %v620 = vunpack.c.l.b16 %v55
    %v621 = vunpack.c.h.b16 %v55
    %v622 = vunpack.c.l.b16 %v56
    %v623 = vunpack.c.h.b16 %v56
    %v624 = vunpack.c.l.b16 %v57
    %v625 = vunpack.c.h.b16 %v57
    %v626 = vunpack.c.l.b16 %v58
    %v627 = vunpack.c.h.b16 %v58
    %v628 = vunpack.c.l.b16 %v59
    %v629 = vunpack.c.h.b16 %v59
    %v630 = vunpack.c.l.b16 %v60
    %v631 = vunpack.c.h.b16 %v60
    %v632 = vunpack.c.l.b16 %v61
    %v633 = vunpack.c.h.b16 %v61
    %v634 = vunpack.c.l.b16 %v62
    %v635 = vunpack.c.h.b16 %v62
    %v636 = vunpack.c.l.b16 %v63
    %v637 = vunpack.c.h.b16 %v63
    %v638 = vunpack.c.l.b16 %v64
    %v639 = vunpack.c.h.b16 %v64
    %v640 = vunpack.c.l.b16 %v65
    %v641 = vunpack.c.h.b16 %v65
    %v642 = vunpack.c.l.b16 %v66
    %v643 = vunpack.c.h.b16 %v66
    %v644 = vunpack.c.l.b16 %v67
    %v645 = vunpack.c.h.b16 %v67
    %v646 = vunpack.c.l.b16 %v68
    %v647 = vunpack.c.h.b16 %v68
    %v648 = vunpack.c.l.b16 %v69
    %v649 = vunpack.c.h.b16 %v69
    %v650 = vunpack.c.l.b16 %v70
    %v651 = vunpack.c.h.b16 %v70
    %v652 = vunpack.c.l.b16 %v71
    %v653 = vunpack.c.h.b16 %v71
    %v654 = vunpack.c.l.b16 %v72
    %v655 = vunpack.c.h.b16 %v72
    %v656 = vunpack.c.l.b16 %v73
    %v657 = vunpack.c.h.b16 %v73
    %v658 = vunpack.c.l.b16 %v74
    %v659 = vunpack.c.h.b16 %v74
    %v660 = vunpack.c.l.b16 %v75
    %v661 = vunpack.c.h.b16 %v75
    %v662 = vunpack.c.l.b16 %v76
    %v663 = vunpack.c.h.b16 %v76
    %v664 = vunpack.c.l.b16 %v77
    %v665 = vunpack.c.h.b16 %v77
    %v666 = vunpack.c.l.b16 %v78
    %v667 = vunpack.c.h.b16 %v78
    %v668 = vunpack.c.l.b16 %v79
    %v669 = vunpack.c.h.b16 %v79
    %v670 = vunpack.c.l.b16 %v80
    %v671 = vunpack.c.h.b16 %v80
    %v672 = vunpack.c.l.b16 %v81
    %v673 = vunpack.c.h.b16 %v81
    %v674 = vunpack.c.l.b16 %v82
    %v675 = vunpack.c.h.b16 %v82
    %v676 = vunpack.c.l.b16 %v83
    %v677 = vunpack.c.h.b16 %v83
    %v678 = vunpack.c.l.b16 %v84
    %v679 = vunpack.c.h.b16 %v84
    %v680 = vunpack.c.l.b16 %v85
    %v681 = vunpack.c.h.b16 %v85
    %v682 = vunpack.c.l.b16 %v86
    %v683 = vunpack.c.h.b16 %v86
    %v684 = vunpack.c.l.b16 %v87
    %v685 = vunpack.c.h.b16 %v87
    %v686 = vunpack.c.l.b16 %v88
    %v687 = vunpack.c.h.b16 %v88
    %v688 = vunpack.c.l.b16 %v89
    %v689 = vunpack.c.h.b16 %v89
    %v690 = vunpack.c.l.b16 %v90
    %v691 = vunpack.c.h.b16 %v90
    %v692 = vunpack.c.l.b16 %v91
    %v693 = vunpack.c.h.b16 %v91
    %v694 = vunpack.c.l.b16 %v92
    %v695 = vunpack.c.h.b16 %v92
    %v696 = vunpack.c.l.b16 %v93
    %v697 = vunpack.c.h.b16 %v93
    %v698 = vunpack.c.l.b16 %v94
    %v699 = vunpack.c.h.b16 %v94
    %v700 = vunpack.c.l.b16 %v95
    %v701 = vunpack.c.h.b16 %v95
    %v702 = vunpack.c.l.b16 %v96
    %v703 = vunpack.c.h.b16 %v96
    %v704 = vunpack.c.l.b16 %v97
    %v705 = vunpack.c.h.b16 %v97
    %v706 = vunpack.c.l.b16 %v98
    %v707 = vunpack.c.h.b16 %v98
    %v708 = vunpack.c.l.b16 %v99
    %v709 = vunpack.c.h.b16 %v99
    %v710 = vunpack.c.l.b16 %v100
    %v711 = vunpack.c.h.b16 %v100
    %v712 = vunpack.c.l.b16 %v101
    %v713 = vunpack.c.h.b16 %v101
    %v714 = vunpack.c.l.b16 %v102
    %v715 = vunpack.c.h.b16 %v102
    %v716 = vunpack.c.l.b16 %v103
    %v717 = vunpack.c.h.b16 %v103
    %v718 = vunpack.c.l.b16 %v104
    %v719 = vunpack.c.h.b16 %v104
    %v720 = vunpack.c.l.b16 %v105
    %v721 = vunpack.c.h.b16 %v105
    %v722 = vunpack.c.l.b16 %v106
    %v723 = vunpack.c.h.b16 %v106
    %v724 = vunpack.c.l.b16 %v107
    %v725 = vunpack.c.h.b16 %v107
    %v726 = vunpack.c.l.b16 %v108
    %v727 = vunpack.c.h.b16 %v108
    %v728 = vunpack.c.l.b16 %v109
    %v729 = vunpack.c.h.b16 %v109
    %v730 = vunpack.c.l.b16 %v110
    %v731 = vunpack.c.h.b16 %v110
    %v732 = vunpack.c.l.b16 %v111
    %v733 = vunpack.c.h.b16 %v111
    %v734 = vunpack.c.l.b16 %v112
    %v735 = vunpack.c.h.b16 %v112
    %v736 = vunpack.c.l.b16 %v113
    %v737 = vunpack.c.h.b16 %v113
    %v738 = vunpack.c.l.b16 %v114
    %v739 = vunpack.c.h.b16 %v114
    %v740 = vunpack.c.l.b16 %v115
    %v741 = vunpack.c.h.b16 %v115
    %v742 = vunpack.c.l.b16 %v116
    %v743 = vunpack.c.h.b16 %v116
    %v744 = vunpack.c.l.b16 %v117
    %v745 = vunpack.c.h.b16 %v117
    %v746 = vunpack.c.l.b16 %v118
    %v747 = vunpack.c.h.b16 %v118
    %v748 = vunpack.c.l.b16 %v119
    %v749 = vunpack.c.h.b16 %v119
    %v750 = vunpack.c.l.b16 %v120
    %v751 = vunpack.c.h.b16 %v120
    %v752 = vunpack.c.l.b16 %v121
    %v753 = vunpack.c.h.b16 %v121
    %v754 = vunpack.c.l.b16 %v122
    %v755 = vunpack.c.h.b16 %v122
    %v756 = vunpack.c.l.b16 %v123
    %v757 = vunpack.c.h.b16 %v123
    %v758 = vunpack.c.l.b16 %v124
    %v759 = vunpack.c.h.b16 %v124
    %v760 = vunpack.c.l.b16 %v125
    %v761 = vunpack.c.h.b16 %v125
    %v762 = vunpack.c.l.b16 %v126
    %v763 = vunpack.c.h.b16 %v126
    %v764 = vunpack.c.l.b16 %v127
    %v765 = vunpack.c.h.b16 %v127
    %v766 = vunpack.c.l.b16 %v128
    %v767 = vunpack.c.h.b16 %v128
    %v768 = vunpack.c.l.b16 %v129
    %v769 = vunpack.c.h.b16 %v129
    %v770 = vunpack.c.l.b16 %v130
    %v771 = vunpack.c.h.b16 %v130
    %v772 = vunpack.c.l.b16 %v131
    %v773 = vunpack.c.h.b16 %v131
    %v774 = vunpack.c.l.b16 %v132
    %v775 = vunpack.c.h.b16 %v132
    %v776 = vunpack.c.l.b16 %v133
    %v777 = vunpack.c.h.b16 %v133
    %v778 = vunpack.c.l.b16 %v134
    %v779 = vunpack.c.h.b16 %v134
    %v780 = vunpack.c.l.b16 %v135
    %v781 = vunpack.c.h.b16 %v135
    %v782 = vunpack.c.l.b16 %v136
    %v783 = vunpack.c.h.b16 %v136
    %v784 = vunpack.c.l.b16 %v137
    %v785 = vunpack.c.h.b16 %v137
    %v786 = vunpack.c.l.b16 %v138
    %v787 = vunpack.c.h.b16 %v138
    %v788 = vunpack.c.l.b16 %v139
    %v789 = vunpack.c.h.b16 %v139
    %v790 = vunpack.c.l.b16 %v140
    %v791 = vunpack.c.h.b16 %v140
    %v792 = vunpack.c.l.b16 %v141
    %v793 = vunpack.c.h.b16 %v141
    %v794 = vunpack.c.l.b16 %v142
    %v795 = vunpack.c.h.b16 %v142
    %v796 = vunpack.c.l.b16 %v143
    %v797 = vunpack.c.h.b16 %v143
    %v798 = vunpack.c.l.b16 %v144
    %v799 = vunpack.c.h.b16 %v144
    %v800 = vunpack.c.l.b16 %v145
    %v801 = vunpack.c.h.b16 %v145
    %v802 = vunpack.c.l.b16 %v146
    %v803 = vunpack.c.h.b16 %v146
    %v804 = vunpack.c.l.b16 %v147
    %v805 = vunpack.c.h.b16 %v147
    %v806 = vunpack.c.l.b16 %v148
    %v807 = vunpack.c.h.b16 %v148
    %v808 = vunpack.c.l.b16 %v149
    %v809 = vunpack.c.h.b16 %v149
    %v810 = vunpack.c.l.b16 %v150
    %v811 = vunpack.c.h.b16 %v150
    %v812 = vunpack.c.l.b16 %v151
    %v813 = vunpack.c.h.b16 %v151
    %v814 = vunpack.c.l.b16 %v152
    %v815 = vunpack.c.h.b16 %v152
    %v816 = vunpack.c.l.b16 %v153
    %v817 = vunpack.c.h.b16 %v153
    %v818 = vunpack.c.l.b16 %v154
    %v819 = vunpack.c.h.b16 %v154
    %v820 = vunpack.c.l.b16 %v155
    %v821 = vunpack.c.h.b16 %v155
    %v822 = vunpack.c.l.b16 %v156
    %v823 = vunpack.c.h.b16 %v156
    %v824 = vunpack.c.l.b16 %v157
    %v825 = vunpack.c.h.b16 %v157
    %v826 = vunpack.c.l.b16 %v158
    %v827 = vunpack.c.h.b16 %v158
    %v828 = vunpack.c.l.b16 %v159
    %v829 = vunpack.c.h.b16 %v159
    %v830 = vunpack.c.l.b16 %v160
    %v831 = vunpack.c.h.b16 %v160
    %v832 = vunpack.c.l.b16 %v161
    %v833 = vunpack.c.h.b16 %v161
    %v834 = vunpack.c.l.b16 %v162
    %v835 = vunpack.c.h.b16 %v162
    %v836 = vunpack.c.l.b16 %v163
    %v837 = vunpack.c.h.b16 %v163
    %v838 = vunpack.c.l.b16 %v164
    %v839 = vunpack.c.h.b16 %v164
    %v840 = vunpack.c.l.b16 %v165
    %v841 = vunpack.c.h.b16 %v165
    %v842 = vunpack.c.l.b16 %v166
    %v843 = vunpack.c.h.b16 %v166
    %v844 = vunpack.c.l.b16 %v167
    %v845 = vunpack.c.h.b16 %v167
    %v846 = vunpack.c.l.b16 %v168
    %v847 = vunpack.c.h.b16 %v168
    %v848 = vunpack.c.l.b16 %v169
    %v849 = vunpack.c.h.b16 %v169
    %v850 = vunpack.c.l.b16 %v170
    %v851 = vunpack.c.h.b16 %v170
    %v852 = vunpack.c.l.b16 %v171
    %v853 = vunpack.c.h.b16 %v171
    %v854 = vunpack.c.l.b16 %v172
    %v855 = vunpack.c.h.b16 %v172
    %v856 = vunpack.c.l.b16 %v173
    %v857 = vunpack.c.h.b16 %v173
    %v858 = vunpack.c.l.b16 %v174
    %v859 = vunpack.c.h.b16 %v174
    %v860 = vunpack.c.l.b16 %v175
    %v861 = vunpack.c.h.b16 %v175
    %v862 = vunpack.c.l.b16 %v176
    %v863 = vunpack.c.h.b16 %v176
    %v864 = vunpack.c.l.b16 %v177
    %v865 = vunpack.c.h.b16 %v177
    %v866 = vunpack.c.l.b16 %v178
    %v867 = vunpack.c.h.b16 %v178
    %v868 = vunpack.c.l.b16 %v179
    %v869 = vunpack.c.h.b16 %v179
    %v870 = vunpack.c.l.b16 %v180
    %v871 = vunpack.c.h.b16 %v180
    %v872 = vunpack.c.l.b16 %v181
    %v873 = vunpack.c.h.b16 %v181
    %v874 = vunpack.c.l.b16 %v182
    %v875 = vunpack.c.h.b16 %v182
    %v876 = vunpack.c.l.b16 %v183
    %v877 = vunpack.c.h.b16 %v183
    %v878 = vunpack.c.l.b16 %v184
    %v879 = vunpack.c.h.b16 %v184
    %v880 = vunpack.c.l.b16 %v185
    %v881 = vunpack.c.h.b16 %v185
    %v882 = vunpack.c.l.b16 %v186
    %v883 = vunpack.c.h.b16 %v186
    %v884 = vunpack.c.l.b16 %v187
    %v885 = vunpack.c.h.b16 %v187
    %v886 = vunpack.c.l.b16 %v188
    %v887 = vunpack.c.h.b16 %v188
    %v888 = vunpack.c.l.b16 %v189
    %v889 = vunpack.c.h.b16 %v189
    %v890 = vunpack.c.l.b16 %v190
    %v891 = vunpack.c.h.b16 %v190
    %v892 = vunpack.c.l.b16 %v191
    %v893 = vunpack.c.h.b16 %v191
    %v894 = vunpack.c.l.b16 %v192
    %v895 = vunpack.c.h.b16 %v192
    %v896 = vunpack.c.l.b16 %v193
    %v897 = vunpack.c.h.b16 %v193
    %v898 = vunpack.c.l.b16 %v194
    %v899 = vunpack.c.h.b16 %v194
    %v900 = vunpack.c.l.b16 %v195
    %v901 = vunpack.c.h.b16 %v195
    %v902 = vunpack.c.l.b16 %v196
    %v903 = vunpack.c.h.b16 %v196
    %v904 = vunpack.c.l.b16 %v197
    %v905 = vunpack.c.h.b16 %v197
    %v906 = vunpack.c.l.b16 %v198
    %v907 = vunpack.c.h.b16 %v198
    %v908 = vunpack.c.l.b16 %v199
    %v909 = vunpack.c.h.b16 %v199
    %v910 = vunpack.c.l.b16 %v200
    %v911 = vunpack.c.h.b16 %v200
    %v912 = vunpack.c.l.b16 %v201
    %v913 = vunpack.c.h.b16 %v201
    %v914 = vunpack.c.l.b16 %v202
    %v915 = vunpack.c.h.b16 %v202
    %v916 = vunpack.c.l.b16 %v203
    %v917 = vunpack.c.h.b16 %v203
    %v918 = vunpack.c.l.b16 %v204
    %v919 = vunpack.c.h.b16 %v204
    %v920 = vunpack.c.l.b16 %v205
    %v921 = vunpack.c.h.b16 %v205
    %v922 = vunpack.c.l.b16 %v206
    %v923 = vunpack.c.h.b16 %v206
    %v924 = vunpack.c.l.b16 %v207
    %v925 = vunpack.c.h.b16 %v207
    %v926 = vunpack.c.l.b16 %v208
    %v927 = vunpack.c.h.b16 %v208
    %v928 = vunpack.c.l.b16 %v209
    %v929 = vunpack.c.h.b16 %v209
    %v930 = vunpack.c.l.b16 %v210
    %v931 = vunpack.c.h.b16 %v210
    %v932 = vunpack.c.l.b16 %v211
    %v933 = vunpack.c.h.b16 %v211
    %v934 = vunpack.c.l.b16 %v212
    %v935 = vunpack.c.h.b16 %v212
    %v936 = vunpack.c.l.b16 %v213
    %v937 = vunpack.c.h.b16 %v213
    %v938 = vunpack.c.l.b16 %v214
    %v939 = vunpack.c.h.b16 %v214
    %v940 = vunpack.c.l.b16 %v215
    %v941 = vunpack.c.h.b16 %v215
    %v942 = vunpack.c.l.b16 %v216
    %v943 = vunpack.c.h.b16 %v216
    %v944 = vunpack.c.l.b16 %v217
    %v945 = vunpack.c.h.b16 %v217
    %v946 = vunpack.c.l.b16 %v218
    %v947 = vunpack.c.h.b16 %v218
    %v948 = vunpack.c.l.b16 %v219
    %v949 = vunpack.c.h.b16 %v219
    %v950 = vunpack.c.l.b16 %v220
    %v951 = vunpack.c.h.b16 %v220
    %v952 = vunpack.c.l.b16 %v221
    %v953 = vunpack.c.h.b16 %v221
    %v954 = vunpack.c.l.b16 %v222
    %v955 = vunpack.c.h.b16 %v222
    %v956 = vunpack.c.l.b16 %v223
    %v957 = vunpack.c.h.b16 %v223
    %v958 = vunpack.c.l.b16 %v224
    %v959 = vunpack.c.h.b16 %v224
    %v960 = vunpack.c.l.b16 %v225
    %v961 = vunpack.c.h.b16 %v225
    %v962 = vunpack.c.l.b16 %v226
    %v963 = vunpack.c.h.b16 %v226
    %v964 = vunpack.c.l.b16 %v227
    %v965 = vunpack.c.h.b16 %v227
    %v966 = vunpack.c.l.b16 %v228
    %v967 = vunpack.c.h.b16 %v228
    %v968 = vunpack.c.l.b16 %v229
    %v969 = vunpack.c.h.b16 %v229
    %v970 = vunpack.c.l.b16 %v230
    %v971 = vunpack.c.h.b16 %v230
    %v972 = vunpack.c.l.b16 %v231
    %v973 = vunpack.c.h.b16 %v231
    %v974 = vunpack.c.l.b16 %v232
    %v975 = vunpack.c.h.b16 %v232
    %v976 = vunpack.c.l.b16 %v233
    %v977 = vunpack.c.h.b16 %v233
    %v978 = vunpack.c.l.b16 %v234
    %v979 = vunpack.c.h.b16 %v234
    %v980 = vunpack.c.l.b16 %v235
    %v981 = vunpack.c.h.b16 %v235
    %v982 = vunpack.c.l.b16 %v236
    %v983 = vunpack.c.h.b16 %v236
    %v984 = vunpack.c.l.b16 %v237
    %v985 = vunpack.c.h.b16 %v237
    %v986 = vunpack.c.l.b16 %v238
    %v987 = vunpack.c.h.b16 %v238
    %v988 = vunpack.c.l.b16 %v239
    %v989 = vunpack.c.h.b16 %v239
    %v990 = vunpack.c.l.b16 %v240
    %v991 = vunpack.c.h.b16 %v240
    %v992 = vunpack.c.l.b16 %v241
    %v993 = vunpack.c.h.b16 %v241
    %v994 = vunpack.c.l.b16 %v242
    %v995 = vunpack.c.h.b16 %v242
    %v996 = vunpack.c.l.b16 %v243
    %v997 = vunpack.c.h.b16 %v243
    %v998 = vunpack.c.l.b16 %v244
    %v999 = vunpack.c.h.b16 %v244
    %v1000 = vunpack.c.l.b16 %v245
    %v1001 = vunpack.c.h.b16 %v245
    %v1002 = vunpack.c.l.b16 %v246
    %v1003 = vunpack.c.h.b16 %v246
    %v1004 = vunpack.c.l.b16 %v247
    %v1005 = vunpack.c.h.b16 %v247
    %v1006 = vunpack.c.l.b16 %v248
    %v1007 = vunpack.c.h.b16 %v248
    %v1008 = vunpack.c.l.b16 %v249
    %v1009 = vunpack.c.h.b16 %v249
    %v1010 = vunpack.c.l.b16 %v250
    %v1011 = vunpack.c.h.b16 %v250
    %v1012 = vunpack.c.l.b16 %v251
    %v1013 = vunpack.c.h.b16 %v251
    %v1014 = vunpack.c.l.b16 %v252
    %v1015 = vunpack.c.h.b16 %v252
    %v1016 = vunpack.c.l.b16 %v253
    %v1017 = vunpack.c.h.b16 %v253
    %v1018 = vunpack.c.l.b16 %v254
    %v1019 = vunpack.c.h.b16 %v254
    %v1020 = vunpack.c.l.b16 %v255
    %v1021 = vunpack.c.h.b16 %v255
    %v1022 = vunpack.c.l.b16 %v256
    %v1023 = vunpack.c.h.b16 %v256
    %v1024 = vunpack.c.l.b16 %v257
    %v1025 = vunpack.c.h.b16 %v257
    %v1026 = vunpack.c.l.b16 %v258
    %v1027 = vunpack.c.h.b16 %v258
    %v1028 = vunpack.c.l.b16 %v259
    %v1029 = vunpack.c.h.b16 %v259
    %v1030 = vunpack.c.l.b16 %v260
    %v1031 = vunpack.c.h.b16 %v260
    %v1032 = vunpack.c.l.b16 %v261
    %v1033 = vunpack.c.h.b16 %v261
    %v1034 = vunpack.c.l.b16 %v262
    %v1035 = vunpack.c.h.b16 %v262
    %v1036 = vunpack.c.l.b16 %v263
    %v1037 = vunpack.c.h.b16 %v263
    %v1038 = vunpack.c.l.b16 %v264
    %v1039 = vunpack.c.h.b16 %v264
    %v1040 = vunpack.c.l.b16 %v265
    %v1041 = vunpack.c.h.b16 %v265
    %v1042 = vunpack.c.l.b16 %v266
    %v1043 = vunpack.c.h.b16 %v266
    %v1044 = vunpack.c.l.b16 %v267
    %v1045 = vunpack.c.h.b16 %v267
    %v1046 = vunpack.c.l.b16 %v268
    %v1047 = vunpack.c.h.b16 %v268
    %v1048 = vunpack.c.l.b16 %v269
    %v1049 = vunpack.c.h.b16 %v269
    %v1050 = vunpack.c.l.b16 %v270
    %v1051 = vunpack.c.h.b16 %v270
    %v1052 = vunpack.c.l.b16 %v271
    %v1053 = vunpack.c.h.b16 %v271
    %v1054 = vunpack.c.l.b16 %v272
    %v1055 = vunpack.c.h.b16 %v272
    %v1056 = vunpack.c.l.b16 %v273
    %v1057 = vunpack.c.h.b16 %v273
    %v1058 = vunpack.c.l.b16 %v274
    %v1059 = vunpack.c.h.b16 %v274
    %v1060 = vunpack.c.l.b16 %v275
    %v1061 = vunpack.c.h.b16 %v275
    %v1062 = vunpack.c.l.b16 %v276
    %v1063 = vunpack.c.h.b16 %v276
    %v1064 = vunpack.c.l.b16 %v277
    %v1065 = vunpack.c.h.b16 %v277
    %v1066 = vunpack.c.l.b16 %v278
    %v1067 = vunpack.c.h.b16 %v278
    %v1068 = vunpack.c.l.b16 %v279
    %v1069 = vunpack.c.h.b16 %v279
    %v1070 = vunpack.c.l.b16 %v280
    %v1071 = vunpack.c.h.b16 %v280
    %v1072 = vunpack.c.l.b16 %v281
    %v1073 = vunpack.c.h.b16 %v281
    %v1074 = vunpack.c.l.b16 %v282
    %v1075 = vunpack.c.h.b16 %v282
    %v1076 = vunpack.c.l.b16 %v283
    %v1077 = vunpack.c.h.b16 %v283
    %v1078 = vunpack.c.l.b16 %v284
    %v1079 = vunpack.c.h.b16 %v284
    %v1080 = vunpack.c.l.b16 %v285
    %v1081 = vunpack.c.h.b16 %v285
    %v1082 = vunpack.c.l.b16 %v286
    %v1083 = vunpack.c.h.b16 %v286
    %v1084 = vpack.c.b16 %v580, %v572
    %v1085 = vpack.c.b16 %v581, %v573
    %v1086 = vpack.c.b16 %v582, %v574
    %v1087 = vpack.c.b16 %v583, %v575
    %v1088 = vpack.c.b16 %v584, %v576
    %v1089 = vpack.c.b16 %v585, %v577
    %v1090 = vpack.c.b16 %v586, %v578
    %v1091 = vpack.c.b16 %v587, %v579
    %v1092 = vpack.c.b16 %v596, %v588
    %v1093 = vpack.c.b16 %v597, %v589
    %v1094 = vpack.c.b16 %v598, %v590
    %v1095 = vpack.c.b16 %v599, %v591
    %v1096 = vpack.c.b16 %v600, %v592
    %v1097 = vpack.c.b16 %v601, %v593
    %v1098 = vpack.c.b16 %v602, %v594
    %v1099 = vpack.c.b16 %v603, %v595
    %v1100 = vpack.c.b16 %v612, %v604
    %v1101 = vpack.c.b16 %v613, %v605
    %v1102 = vpack.c.b16 %v614, %v606
    %v1103 = vpack.c.b16 %v615, %v607
    %v1104 = vpack.c.b16 %v616, %v608
    %v1105 = vpack.c.b16 %v617, %v609
    %v1106 = vpack.c.b16 %v618, %v610
    %v1107 = vpack.c.b16 %v619, %v611
    %v1108 = vpack.c.b16 %v628, %v620
    %v1109 = vpack.c.b16 %v629, %v621
    %v1110 = vpack.c.b16 %v630, %v622
    %v1111 = vpack.c.b16 %v631, %v623
    %v1112 = vpack.c.b16 %v632, %v624
    %v1113 = vpack.c.b16 %v633, %v625
    %v1114 = vpack.c.b16 %v634, %v626
    %v1115 = vpack.c.b16 %v635, %v627
    %v1116 = vpack.c.b16 %v644, %v636
    %v1117 = vpack.c.b16 %v645, %v637
    %v1118 = vpack.c.b16 %v646, %v638
    %v1119 = vpack.c.b16 %v647, %v639
    %v1120 = vpack.c.b16 %v648, %v640
    %v1121 = vpack.c.b16 %v649, %v641
    %v1122 = vpack.c.b16 %v650, %v642
    %v1123 = vpack.c.b16 %v651, %v643
    %v1124 = vpack.c.b16 %v660, %v652
    %v1125 = vpack.c.b16 %v661, %v653
    %v1126 = vpack.c.b16 %v662, %v654
    %v1127 = vpack.c.b16 %v663, %v655
    %v1128 = vpack.c.b16 %v664, %v656
    %v1129 = vpack.c.b16 %v665, %v657
    %v1130 = vpack.c.b16 %v666, %v658
    %v1131 = vpack.c.b16 %v667, %v659
    %v1132 = vpack.c.b16 %v676, %v668
    %v1133 = vpack.c.b16 %v677, %v669
    %v1134 = vpack.c.b16 %v678, %v670
    %v1135 = vpack.c.b16 %v679, %v671
    %v1136 = vpack.c.b16 %v680, %v672
    %v1137 = vpack.c.b16 %v681, %v673
    %v1138 = vpack.c.b16 %v682, %v674
    %v1139 = vpack.c.b16 %v683, %v675
    %v1140 = vpack.c.b16 %v692, %v684
    %v1141 = vpack.c.b16 %v693, %v685
    %v1142 = vpack.c.b16 %v694, %v686
    %v1143 = vpack.c.b16 %v695, %v687
    %v1144 = vpack.c.b16 %v696, %v688
    %v1145 = vpack.c.b16 %v697, %v689
    %v1146 = vpack.c.b16 %v698, %v690
    %v1147 = vpack.c.b16 %v699, %v691
    %v1148 = vpack.c.b16 %v708, %v700
    %v1149 = vpack.c.b16 %v709, %v701
    %v1150 = vpack.c.b16 %v710, %v702
    %v1151 = vpack.c.b16 %v711, %v703
    %v1152 = vpack.c.b16 %v712, %v704
    %v1153 = vpack.c.b16 %v713, %v705
    %v1154 = vpack.c.b16 %v714, %v706
    %v1155 = vpack.c.b16 %v715, %v707
    %v1156 = vpack.c.b16 %v724, %v716
    %v1157 = vpack.c.b16 %v725, %v717
    %v1158 = vpack.c.b16 %v726, %v718
    %v1159 = vpack.c.b16 %v727, %v719
    %v1160 = vpack.c.b16 %v728, %v720
    %v1161 = vpack.c.b16 %v729, %v721
    %v1162 = vpack.c.b16 %v730, %v722
    %v1163 = vpack.c.b16 %v731, %v723
    %v1164 = vpack.c.b16 %v740, %v732
    %v1165 = vpack.c.b16 %v741, %v733
    %v1166 = vpack.c.b16 %v742, %v734
    %v1167 = vpack.c.b16 %v743, %v735
    %v1168 = vpack.c.b16 %v744, %v736
    %v1169 = vpack.c.b16 %v745, %v737
    %v1170 = vpack.c.b16 %v746, %v738
    %v1171 = vpack.c.b16 %v747, %v739
    %v1172 = vpack.c.b16 %v756, %v748
    %v1173 = vpack.c.b16 %v757, %v749
    %v1174 = vpack.c.b16 %v758, %v750
    %v1175 = vpack.c.b16 %v759, %v751
    %v1176 = vpack.c.b16 %v760, %v752
    %v1177 = vpack.c.b16 %v761, %v753
    %v1178 = vpack.c.b16 %v762, %v754
    %v1179 = vpack.c.b16 %v763, %v755
    %v1180 = vpack.c.b16 %v772, %v764
    %v1181 = vpack.c.b16 %v773, %v765
    %v1182 = vpack.c.b16 %v774, %v766
    %v1183 = vpack.c.b16 %v775, %v767
    %v1184 = vpack.c.b16 %v776, %v768
    %v1185 = vpack.c.b16 %v777, %v769
    %v1186 = vpack.c.b16 %v778, %v770
    %v1187 = vpack.c.b16 %v779, %v771
    %v1188 = vpack.c.b16 %v788, %v780
    %v1189 = vpack.c.b16 %v789, %v781
    %v1190 = vpack.c.b16 %v790, %v782
    %v1191 = vpack.c.b16 %v791, %v783
    %v1192 = vpack.c.b16 %v792, %v784
    %v1193 = vpack.c.b16 %v793, %v785
    %v1194 = vpack.c.b16 %v794, %v786
    %v1195 = vpack.c.b16 %v795, %v787
    %v1196 = vpack.c.b16 %v804, %v796
    %v1197 = vpack.c.b16 %v805, %v797
    %v1198 = vpack.c.b16 %v806, %v798
    %v1199 = vpack.c.b16 %v807, %v799
    %v1200 = vpack.c.b16 %v808, %v800
    %v1201 = vpack.c.b16 %v809, %v801
    %v1202 = vpack.c.b16 %v810, %v802
    %v1203 = vpack.c.b16 %v811, %v803
    %v1204 = vpack.c.b16 %v820, %v812
    %v1205 = vpack.c.b16 %v821, %v813
    %v1206 = vpack.c.b16 %v822, %v814
    %v1207 = vpack.c.b16 %v823, %v815
    %v1208 = vpack.c.b16 %v824, %v816
    %v1209 = vpack.c.b16 %v825, %v817
    %v1210 = vpack.c.b16 %v826, %v818
    %v1211 = vpack.c.b16 %v827, %v819
    %v1212 = vpack.c.b16 %v836, %v828
    %v1213 = vpack.c.b16 %v837, %v829
    %v1214 = vpack.c.b16 %v838, %v830
    %v1215 = vpack.c.b16 %v839, %v831
    %v1216 = vpack.c.b16 %v840, %v832
    %v1217 = vpack.c.b16 %v841, %v833
    %v1218 = vpack.c.b16 %v842, %v834
    %v1219 = vpack.c.b16 %v843, %v835
    %v1220 = vpack.c.b16 %v852, %v844
    %v1221 = vpack.c.b16 %v853, %v845
    %v1222 = vpack.c.b16 %v854, %v846
    %v1223 = vpack.c.b16 %v855, %v847
    %v1224 = vpack.c.b16 %v856, %v848
    %v1225 = vpack.c.b16 %v857, %v849
    %v1226 = vpack.c.b16 %v858, %v850
    %v1227 = vpack.c.b16 %v859, %v851
    %v1228 = vpack.c.b16 %v868, %v860
    %v1229 = vpack.c.b16 %v869, %v861
    %v1230 = vpack.c.b16 %v870, %v862
    %v1231 = vpack.c.b16 %v871, %v863
    %v1232 = vpack.c.b16 %v872, %v864
    %v1233 = vpack.c.b16 %v873, %v865
    %v1234 = vpack.c.b16 %v874, %v866
    %v1235 = vpack.c.b16 %v875, %v867
    %v1236 = vpack.c.b16 %v884, %v876
    %v1237 = vpack.c.b16 %v885, %v877
    %v1238 = vpack.c.b16 %v886, %v878
    %v1239 = vpack.c.b16 %v887, %v879
    %v1240 = vpack.c.b16 %v888, %v880
    %v1241 = vpack.c.b16 %v889, %v881
    %v1242 = vpack.c.b16 %v890, %v882
    %v1243 = vpack.c.b16 %v891, %v883
    %v1244 = vpack.c.b16 %v900, %v892
    %v1245 = vpack.c.b16 %v901, %v893
    %v1246 = vpack.c.b16 %v902, %v894
    %v1247 = vpack.c.b16 %v903, %v895
    %v1248 = vpack.c.b16 %v904, %v896
    %v1249 = vpack.c.b16 %v905, %v897
    %v1250 = vpack.c.b16 %v906, %v898
    %v1251 = vpack.c.b16 %v907, %v899
    %v1252 = vpack.c.b16 %v916, %v908
    %v1253 = vpack.c.b16 %v917, %v909
    %v1254 = vpack.c.b16 %v918, %v910
    %v1255 = vpack.c.b16 %v919, %v911
    %v1256 = vpack.c.b16 %v920, %v912
    %v1257 = vpack.c.b16 %v921, %v913
    %v1258 = vpack.c.b16 %v922, %v914
    %v1259 = vpack.c.b16 %v923, %v915
    %v1260 = vpack.c.b16 %v932, %v924
    %v1261 = vpack.c.b16 %v933, %v925
    %v1262 = vpack.c.b16 %v934, %v926
    %v1263 = vpack.c.b16 %v935, %v927
    %v1264 = vpack.c.b16 %v936, %v928
    %v1265 = vpack.c.b16 %v937, %v929
    %v1266 = vpack.c.b16 %v938, %v930
    %v1267 = vpack.c.b16 %v939, %v931
    %v1268 = vpack.c.b16 %v948, %v940
    %v1269 = vpack.c.b16 %v949, %v941
    %v1270 = vpack.c.b16 %v950, %v942
    %v1271 = vpack.c.b16 %v951, %v943
    %v1272 = vpack.c.b16 %v952, %v944
    %v1273 = vpack.c.b16 %v953, %v945
    %v1274 = vpack.c.b16 %v954, %v946
    %v1275 = vpack.c.b16 %v955, %v947
    %v1276 = vpack.c.b16 %v964, %v956
    %v1277 = vpack.c.b16 %v965, %v957
    %v1278 = vpack.c.b16 %v966, %v958
    %v1279 = vpack.c.b16 %v967, %v959
    %v1280 = vpack.c.b16 %v968, %v960
    %v1281 = vpack.c.b16 %v969, %v961
    %v1282 = vpack.c.b16 %v970, %v962
    %v1283 = vpack.c.b16 %v971, %v963
    %v1284 = vpack.c.b16 %v980, %v972
    %v1285 = vpack.c.b16 %v981, %v973
    %v1286 = vpack.c.b16 %v982, %v974
    %v1287 = vpack.c.b16 %v983, %v975
    %v1288 = vpack.c.b16 %v984, %v976
    %v1289 = vpack.c.b16 %v985, %v977
    %v1290 = vpack.c.b16 %v986, %v978
    %v1291 = vpack.c.b16 %v987, %v979
    %v1292 = vpack.c.b16 %v996, %v988
    %v1293 = vpack.c.b16 %v997, %v989
    %v1294 = vpack.c.b16 %v998, %v990
    %v1295 = vpack.c.b16 %v999, %v991
    %v1296 = vpack.c.b16 %v1000, %v992
    %v1297 = vpack.c.b16 %v1001, %v993
    %v1298 = vpack.c.b16 %v1002, %v994
    %v1299 = vpack.c.b16 %v1003, %v995
    %v1300 = vpack.c.b16 %v1012, %v1004
    %v1301 = vpack.c.b16 %v1013, %v1005
    %v1302 = vpack.c.b16 %v1014, %v1006
    %v1303 = vpack.c.b16 %v1015, %v1007
    %v1304 = vpack.c.b16 %v1016, %v1008
    %v1305 = vpack.c.b16 %v1017, %v1009
    %v1306 = vpack.c.b16 %v1018, %v1010
    %v1307 = vpack.c.b16 %v1019, %v1011
    %v1308 = vpack.c.b16 %v1028, %v1020
    %v1309 = vpack.c.b16 %v1029, %v1021
    %v1310 = vpack.c.b16 %v1030, %v1022
    %v1311 = vpack.c.b16 %v1031, %v1023
    %v1312 = vpack.c.b16 %v1032, %v1024
    %v1313 = vpack.c.b16 %v1033, %v1025
    %v1314 = vpack.c.b16 %v1034, %v1026
    %v1315 = vpack.c.b16 %v1035, %v1027
    %v1316 = vpack.c.b16 %v1044, %v1036
    %v1317 = vpack.c.b16 %v1045, %v1037
    %v1318 = vpack.c.b16 %v1046, %v1038
    %v1319 = vpack.c.b16 %v1047, %v1039
    %v1320 = vpack.c.b16 %v1048, %v1040
    %v1321 = vpack.c.b16 %v1049, %v1041
    %v1322 = vpack.c.b16 %v1050, %v1042
    %v1323 = vpack.c.b16 %v1051, %v1043
    %v1324 = vpack.c.b16 %v1060, %v1052
    %v1325 = vpack.c.b16 %v1061, %v1053
    %v1326 = vpack.c.b16 %v1062, %v1054
    %v1327 = vpack.c.b16 %v1063, %v1055
    %v1328 = vpack.c.b16 %v1064, %v1056
    %v1329 = vpack.c.b16 %v1065, %v1057
    %v1330 = vpack.c.b16 %v1066, %v1058
    %v1331 = vpack.c.b16 %v1067, %v1059
    %v1332 = vpack.c.b16 %v1076, %v1068
    %v1333 = vpack.c.b16 %v1077, %v1069
    %v1334 = vpack.c.b16 %v1078, %v1070
    %v1335 = vpack.c.b16 %v1079, %v1071
    %v1336 = vpack.c.b16 %v1080, %v1072
    %v1337 = vpack.c.b16 %v1081, %v1073
    %v1338 = vpack.c.b16 %v1082, %v1074
    %v1339 = vpack.c.b16 %v1083, %v1075
    %1596 = vmatprep.subr.bf16.mxu0 %v1085
    %1597 = vmatpush1.bf16.msra.mxu0 %v1084
    %1598 = vmatprep.subr.bf16.mxu0 %v1093
    %1599 = vmatpush1.bf16.msra.mxu0 %v1092
    %1600 = vmatprep.subr.bf16.mxu0 %v1101
    %1601 = vmatpush1.bf16.msra.mxu0 %v1100
    %1602 = vmatprep.subr.bf16.mxu0 %v1109
    %1603 = vmatpush1.bf16.msra.mxu0 %v1108
    %1604 = vmatprep.subr.bf16.mxu0 %v1117
    %1605 = vmatpush1.bf16.msra.mxu0 %v1116
    %1606 = vmatprep.subr.bf16.mxu0 %v1125
    %1607 = vmatpush1.bf16.msra.mxu0 %v1124
    %1608 = vmatprep.subr.bf16.mxu0 %v1133
    %1609 = vmatpush1.bf16.msra.mxu0 %v1132
    %1610 = vmatprep.subr.bf16.mxu0 %v1141
    %1611 = vmatpush1.bf16.msra.mxu0 %v1140
    %1612 = vmatprep.subr.bf16.mxu0 %v1149
    %1613 = vmatpush1.bf16.msra.mxu0 %v1148
    %1614 = vmatprep.subr.bf16.mxu0 %v1157
    %1615 = vmatpush1.bf16.msra.mxu0 %v1156
    %1616 = vmatprep.subr.bf16.mxu0 %v1165
    %1617 = vmatpush1.bf16.msra.mxu0 %v1164
    %1618 = vmatprep.subr.bf16.mxu0 %v1173
    %1619 = vmatpush1.bf16.msra.mxu0 %v1172
    %1620 = vmatprep.subr.bf16.mxu0 %v1181
    %1621 = vmatpush1.bf16.msra.mxu0 %v1180
    %1622 = vmatprep.subr.bf16.mxu0 %v1189
    %1623 = vmatpush1.bf16.msra.mxu0 %v1188
    %1624 = vmatprep.subr.bf16.mxu0 %v1197
    %1625 = vmatpush1.bf16.msra.mxu0 %v1196
    %1626 = vmatprep.subr.bf16.mxu0 %v1205
    %1627 = vmatpush1.bf16.msra.mxu0 %v1204
    %1628 = vmatprep.mubr.bf16.mxu0 %v309
    %1629 = vmatmul.mubr.bf16.gmra.mrb[0].mxu0 %v302
    %v1630 = vpop.f32.mrb[0].mxu0
    %v1631 = vadd.f32 0.0, %v1630
    %v1632 = vpop.f32.mrb[0].mxu0
    %v1633 = vadd.f32 0.0, %v1632
    %v1634 = vpop.f32.mrb[0].mxu0
    %v1635 = vpop.f32.mrb[0].mxu0
    %1636 = vdwg.mxu0
    %1637 = vmatprep.subr.bf16.mxu0 %v1213
    %1638 = vmatpush1.bf16.msra.mxu0 %v1212
    %1639 = vmatprep.subr.bf16.mxu0 %v1221
    %1640 = vmatpush1.bf16.msra.mxu0 %v1220
    %1641 = vmatprep.subr.bf16.mxu0 %v1229
    %1642 = vmatpush1.bf16.msra.mxu0 %v1228
    %1643 = vmatprep.subr.bf16.mxu0 %v1237
    %1644 = vmatpush1.bf16.msra.mxu0 %v1236
    %1645 = vmatprep.subr.bf16.mxu0 %v1245
    %1646 = vmatpush1.bf16.msra.mxu0 %v1244
    %1647 = vmatprep.subr.bf16.mxu0 %v1253
    %1648 = vmatpush1.bf16.msra.mxu0 %v1252
    %1649 = vmatprep.subr.bf16.mxu0 %v1261
    %1650 = vmatpush1.bf16.msra.mxu0 %v1260
    %1651 = vmatprep.subr.bf16.mxu0 %v1269
    %1652 = vmatpush1.bf16.msra.mxu0 %v1268
    %1653 = vmatprep.subr.bf16.mxu0 %v1277
    %1654 = vmatpush1.bf16.msra.mxu0 %v1276
    %1655 = vmatprep.subr.bf16.mxu0 %v1285
    %1656 = vmatpush1.bf16.msra.mxu0 %v1284
    %1657 = vmatprep.subr.bf16.mxu0 %v1293
    %1658 = vmatpush1.bf16.msra.mxu0 %v1292
    %1659 = vmatprep.subr.bf16.mxu0 %v1301
    %1660 = vmatpush1.bf16.msra.mxu0 %v1300
    %1661 = vmatprep.subr.bf16.mxu0 %v1309
    %1662 = vmatpush1.bf16.msra.mxu0 %v1308
    %1663 = vmatprep.subr.bf16.mxu0 %v1317
    %1664 = vmatpush1.bf16.msra.mxu0 %v1316
    %1665 = vmatprep.subr.bf16.mxu0 %v1325
    %1666 = vmatpush1.bf16.msra.mxu0 %v1324
    %1667 = vmatprep.subr.bf16.mxu0 %v1333
    %1668 = vmatpush1.bf16.msra.mxu0 %v1332
    %1669 = vmatprep.mubr.bf16.mxu0 %v311
    %1670 = vmatmul.mubr.bf16.gmra.mrb[0].mxu0 %v310
    %v1671 = vpop.f32.mrb[0].mxu0
    %v1672 = vadd.f32 %v1631, %v1671
    %v1673 = vpop.f32.mrb[0].mxu0
    %v1674 = vadd.f32 %v1633, %v1673
    %v1675 = vpop.f32.mrb[0].mxu0
    %v1676 = vpop.f32.mrb[0].mxu0
    %1677 = vdwg.mxu0
    %1678 = vmatprep.subr.bf16.mxu0 %v1087
    %1679 = vmatpush1.bf16.msra.mxu0 %v1086
    %1680 = vmatprep.subr.bf16.mxu0 %v1095
    %1681 = vmatpush1.bf16.msra.mxu0 %v1094
    %1682 = vmatprep.subr.bf16.mxu0 %v1103
    %1683 = vmatpush1.bf16.msra.mxu0 %v1102
    %1684 = vmatprep.subr.bf16.mxu0 %v1111
    %1685 = vmatpush1.bf16.msra.mxu0 %v1110
    %1686 = vmatprep.subr.bf16.mxu0 %v1119
    %1687 = vmatpush1.bf16.msra.mxu0 %v1118
    %1688 = vmatprep.subr.bf16.mxu0 %v1127
    %1689 = vmatpush1.bf16.msra.mxu0 %v1126
    %1690 = vmatprep.subr.bf16.mxu0 %v1135
    %1691 = vmatpush1.bf16.msra.mxu0 %v1134
    %1692 = vmatprep.subr.bf16.mxu0 %v1143
    %1693 = vmatpush1.bf16.msra.mxu0 %v1142
    %1694 = vmatprep.subr.bf16.mxu0 %v1151
    %1695 = vmatpush1.bf16.msra.mxu0 %v1150
    %1696 = vmatprep.subr.bf16.mxu0 %v1159
    %1697 = vmatpush1.bf16.msra.mxu0 %v1158
    %1698 = vmatprep.subr.bf16.mxu0 %v1167
    %1699 = vmatpush1.bf16.msra.mxu0 %v1166
    %1700 = vmatprep.subr.bf16.mxu0 %v1175
    %1701 = vmatpush1.bf16.msra.mxu0 %v1174
    %1702 = vmatprep.subr.bf16.mxu0 %v1183
    %1703 = vmatpush1.bf16.msra.mxu0 %v1182
    %1704 = vmatprep.subr.bf16.mxu0 %v1191
    %1705 = vmatpush1.bf16.msra.mxu0 %v1190
    %1706 = vmatprep.subr.bf16.mxu0 %v1199
    %1707 = vmatpush1.bf16.msra.mxu0 %v1198
    %1708 = vmatprep.subr.bf16.mxu0 %v1207
    %1709 = vmatpush1.bf16.msra.mxu0 %v1206
    %1710 = vmatprep.mubr.bf16.mxu0 %v309
    %1711 = vmatmul.mubr.bf16.gmra.mrb[0].mxu0 %v302
    %v1712 = vpop.f32.mrb[0].mxu0
    %v1713 = vadd.f32 0.0, %v1712
    %v1714 = vpop.f32.mrb[0].mxu0
    %v1715 = vadd.f32 0.0, %v1714
    %v1716 = vpop.f32.mrb[0].mxu0
    %v1717 = vpop.f32.mrb[0].mxu0
    %1718 = vdwg.mxu0
    %1719 = vmatprep.subr.bf16.mxu0 %v1215
    %1720 = vmatpush1.bf16.msra.mxu0 %v1214
    %1721 = vmatprep.subr.bf16.mxu0 %v1223
    %1722 = vmatpush1.bf16.msra.mxu0 %v1222
    %1723 = vmatprep.subr.bf16.mxu0 %v1231
    %1724 = vmatpush1.bf16.msra.mxu0 %v1230
    %1725 = vmatprep.subr.bf16.mxu0 %v1239
    %1726 = vmatpush1.bf16.msra.mxu0 %v1238
    %1727 = vmatprep.subr.bf16.mxu0 %v1247
    %1728 = vmatpush1.bf16.msra.mxu0 %v1246
    %1729 = vmatprep.subr.bf16.mxu0 %v1255
    %1730 = vmatpush1.bf16.msra.mxu0 %v1254
    %1731 = vmatprep.subr.bf16.mxu0 %v1263
    %1732 = vmatpush1.bf16.msra.mxu0 %v1262
    %1733 = vmatprep.subr.bf16.mxu0 %v1271
    %1734 = vmatpush1.bf16.msra.mxu0 %v1270
    %1735 = vmatprep.subr.bf16.mxu0 %v1279
    %1736 = vmatpush1.bf16.msra.mxu0 %v1278
    %1737 = vmatprep.subr.bf16.mxu0 %v1287
    %1738 = vmatpush1.bf16.msra.mxu0 %v1286
    %1739 = vmatprep.subr.bf16.mxu0 %v1295
    %1740 = vmatpush1.bf16.msra.mxu0 %v1294
    %1741 = vmatprep.subr.bf16.mxu0 %v1303
    %1742 = vmatpush1.bf16.msra.mxu0 %v1302
    %1743 = vmatprep.subr.bf16.mxu0 %v1311
    %1744 = vmatpush1.bf16.msra.mxu0 %v1310
    %1745 = vmatprep.subr.bf16.mxu0 %v1319
    %1746 = vmatpush1.bf16.msra.mxu0 %v1318
    %1747 = vmatprep.subr.bf16.mxu0 %v1327
    %1748 = vmatpush1.bf16.msra.mxu0 %v1326
    %1749 = vmatprep.subr.bf16.mxu0 %v1335
    %1750 = vmatpush1.bf16.msra.mxu0 %v1334
    %1751 = vmatprep.mubr.bf16.mxu0 %v311
    %1752 = vmatmul.mubr.bf16.gmra.mrb[0].mxu0 %v310
    %v1753 = vpop.f32.mrb[0].mxu0
    %v1754 = vadd.f32 %v1713, %v1753
    %v1755 = vpop.f32.mrb[0].mxu0
    %v1756 = vadd.f32 %v1715, %v1755
    %v1757 = vpop.f32.mrb[0].mxu0
    %v1758 = vpop.f32.mrb[0].mxu0
    %1759 = vdwg.mxu0
    %1760 = vmatprep.subr.bf16.mxu0 %v1089
    %1761 = vmatpush1.bf16.msra.mxu0 %v1088
    %1762 = vmatprep.subr.bf16.mxu0 %v1097
    %1763 = vmatpush1.bf16.msra.mxu0 %v1096
    %1764 = vmatprep.subr.bf16.mxu0 %v1105
    %1765 = vmatpush1.bf16.msra.mxu0 %v1104
    %1766 = vmatprep.subr.bf16.mxu0 %v1113
    %1767 = vmatpush1.bf16.msra.mxu0 %v1112
    %1768 = vmatprep.subr.bf16.mxu0 %v1121
    %1769 = vmatpush1.bf16.msra.mxu0 %v1120
    %1770 = vmatprep.subr.bf16.mxu0 %v1129
    %1771 = vmatpush1.bf16.msra.mxu0 %v1128
    %1772 = vmatprep.subr.bf16.mxu0 %v1137
    %1773 = vmatpush1.bf16.msra.mxu0 %v1136
    %1774 = vmatprep.subr.bf16.mxu0 %v1145
    %1775 = vmatpush1.bf16.msra.mxu0 %v1144
    %1776 = vmatprep.subr.bf16.mxu0 %v1153
    %1777 = vmatpush1.bf16.msra.mxu0 %v1152
    %1778 = vmatprep.subr.bf16.mxu0 %v1161
    %1779 = vmatpush1.bf16.msra.mxu0 %v1160
    %1780 = vmatprep.subr.bf16.mxu0 %v1169
    %1781 = vmatpush1.bf16.msra.mxu0 %v1168
    %1782 = vmatprep.subr.bf16.mxu0 %v1177
    %1783 = vmatpush1.bf16.msra.mxu0 %v1176
    %1784 = vmatprep.subr.bf16.mxu0 %v1185
    %1785 = vmatpush1.bf16.msra.mxu0 %v1184
    %1786 = vmatprep.subr.bf16.mxu0 %v1193
    %1787 = vmatpush1.bf16.msra.mxu0 %v1192
    %1788 = vmatprep.subr.bf16.mxu0 %v1201
    %1789 = vmatpush1.bf16.msra.mxu0 %v1200
    %1790 = vmatprep.subr.bf16.mxu0 %v1209
    %1791 = vmatpush1.bf16.msra.mxu0 %v1208
    %1792 = vmatprep.mubr.bf16.mxu0 %v309
    %1793 = vmatmul.mubr.bf16.gmra.mrb[0].mxu0 %v302
    %v1794 = vpop.f32.mrb[0].mxu0
    %v1795 = vadd.f32 0.0, %v1794
    %v1796 = vpop.f32.mrb[0].mxu0
    %v1797 = vadd.f32 0.0, %v1796
    %v1798 = vpop.f32.mrb[0].mxu0
    %v1799 = vpop.f32.mrb[0].mxu0
    %1800 = vdwg.mxu0
    %1801 = vmatprep.subr.bf16.mxu0 %v1217
    %1802 = vmatpush1.bf16.msra.mxu0 %v1216
    %1803 = vmatprep.subr.bf16.mxu0 %v1225
    %1804 = vmatpush1.bf16.msra.mxu0 %v1224
    %1805 = vmatprep.subr.bf16.mxu0 %v1233
    %1806 = vmatpush1.bf16.msra.mxu0 %v1232
    %1807 = vmatprep.subr.bf16.mxu0 %v1241
    %1808 = vmatpush1.bf16.msra.mxu0 %v1240
    %1809 = vmatprep.subr.bf16.mxu0 %v1249
    %1810 = vmatpush1.bf16.msra.mxu0 %v1248
    %1811 = vmatprep.subr.bf16.mxu0 %v1257
    %1812 = vmatpush1.bf16.msra.mxu0 %v1256
    %1813 = vmatprep.subr.bf16.mxu0 %v1265
    %1814 = vmatpush1.bf16.msra.mxu0 %v1264
    %1815 = vmatprep.subr.bf16.mxu0 %v1273
    %1816 = vmatpush1.bf16.msra.mxu0 %v1272
    %1817 = vmatprep.subr.bf16.mxu0 %v1281
    %1818 = vmatpush1.bf16.msra.mxu0 %v1280
    %1819 = vmatprep.subr.bf16.mxu0 %v1289
    %1820 = vmatpush1.bf16.msra.mxu0 %v1288
    %1821 = vmatprep.subr.bf16.mxu0 %v1297
    %1822 = vmatpush1.bf16.msra.mxu0 %v1296
    %1823 = vmatprep.subr.bf16.mxu0 %v1305
    %1824 = vmatpush1.bf16.msra.mxu0 %v1304
    %1825 = vmatprep.subr.bf16.mxu0 %v1313
    %1826 = vmatpush1.bf16.msra.mxu0 %v1312
    %1827 = vmatprep.subr.bf16.mxu0 %v1321
    %1828 = vmatpush1.bf16.msra.mxu0 %v1320
    %1829 = vmatprep.subr.bf16.mxu0 %v1329
    %1830 = vmatpush1.bf16.msra.mxu0 %v1328
    %1831 = vmatprep.subr.bf16.mxu0 %v1337
    %1832 = vmatpush1.bf16.msra.mxu0 %v1336
    %1833 = vmatprep.mubr.bf16.mxu0 %v311
    %1834 = vmatmul.mubr.bf16.gmra.mrb[0].mxu0 %v310
    %v1835 = vpop.f32.mrb[0].mxu0
    %v1836 = vadd.f32 %v1795, %v1835
    %v1837 = vpop.f32.mrb[0].mxu0
    %v1838 = vadd.f32 %v1797, %v1837
    %v1839 = vpop.f32.mrb[0].mxu0
    %v1840 = vpop.f32.mrb[0].mxu0
    %1841 = vdwg.mxu0
    %1842 = vmatprep.subr.bf16.mxu0 %v1091
    %1843 = vmatpush1.bf16.msra.mxu0 %v1090
    %1844 = vmatprep.subr.bf16.mxu0 %v1099
    %1845 = vmatpush1.bf16.msra.mxu0 %v1098
    %1846 = vmatprep.subr.bf16.mxu0 %v1107
    %1847 = vmatpush1.bf16.msra.mxu0 %v1106
    %1848 = vmatprep.subr.bf16.mxu0 %v1115
    %1849 = vmatpush1.bf16.msra.mxu0 %v1114
    %1850 = vmatprep.subr.bf16.mxu0 %v1123
    %1851 = vmatpush1.bf16.msra.mxu0 %v1122
    %1852 = vmatprep.subr.bf16.mxu0 %v1131
    %1853 = vmatpush1.bf16.msra.mxu0 %v1130
    %1854 = vmatprep.subr.bf16.mxu0 %v1139
    %1855 = vmatpush1.bf16.msra.mxu0 %v1138
    %1856 = vmatprep.subr.bf16.mxu0 %v1147
    %1857 = vmatpush1.bf16.msra.mxu0 %v1146
    %1858 = vmatprep.subr.bf16.mxu0 %v1155
    %1859 = vmatpush1.bf16.msra.mxu0 %v1154
    %1860 = vmatprep.subr.bf16.mxu0 %v1163
    %1861 = vmatpush1.bf16.msra.mxu0 %v1162
    %1862 = vmatprep.subr.bf16.mxu0 %v1171
    %1863 = vmatpush1.bf16.msra.mxu0 %v1170
    %1864 = vmatprep.subr.bf16.mxu0 %v1179
    %1865 = vmatpush1.bf16.msra.mxu0 %v1178
    %1866 = vmatprep.subr.bf16.mxu0 %v1187
    %1867 = vmatpush1.bf16.msra.mxu0 %v1186
    %1868 = vmatprep.subr.bf16.mxu0 %v1195
    %1869 = vmatpush1.bf16.msra.mxu0 %v1194
    %1870 = vmatprep.subr.bf16.mxu0 %v1203
    %1871 = vmatpush1.bf16.msra.mxu0 %v1202
    %1872 = vmatprep.subr.bf16.mxu0 %v1211
    %1873 = vmatpush1.bf16.msra.mxu0 %v1210
    %1874 = vmatprep.mubr.bf16.mxu0 %v309
    %1875 = vmatmul.mubr.bf16.gmra.mrb[0].mxu0 %v302
    %v1876 = vpop.f32.mrb[0].mxu0
    %v1877 = vadd.f32 0.0, %v1876
    %v1878 = vpop.f32.mrb[0].mxu0
    %v1879 = vadd.f32 0.0, %v1878
    %v1880 = vpop.f32.mrb[0].mxu0
    %v1881 = vpop.f32.mrb[0].mxu0
    %1882 = vdwg.mxu0
    %1883 = vmatprep.subr.bf16.mxu0 %v1219
    %1884 = vmatpush1.bf16.msra.mxu0 %v1218
    %1885 = vmatprep.subr.bf16.mxu0 %v1227
    %1886 = vmatpush1.bf16.msra.mxu0 %v1226
    %1887 = vmatprep.subr.bf16.mxu0 %v1235
    %1888 = vmatpush1.bf16.msra.mxu0 %v1234
    %1889 = vmatprep.subr.bf16.mxu0 %v1243
    %1890 = vmatpush1.bf16.msra.mxu0 %v1242
    %1891 = vmatprep.subr.bf16.mxu0 %v1251
    %1892 = vmatpush1.bf16.msra.mxu0 %v1250
    %1893 = vmatprep.subr.bf16.mxu0 %v1259
    %1894 = vmatpush1.bf16.msra.mxu0 %v1258
    %1895 = vmatprep.subr.bf16.mxu0 %v1267
    %1896 = vmatpush1.bf16.msra.mxu0 %v1266
    %1897 = vmatprep.subr.bf16.mxu0 %v1275
    %1898 = vmatpush1.bf16.msra.mxu0 %v1274
    %1899 = vmatprep.subr.bf16.mxu0 %v1283
    %1900 = vmatpush1.bf16.msra.mxu0 %v1282
    %1901 = vmatprep.subr.bf16.mxu0 %v1291
    %1902 = vmatpush1.bf16.msra.mxu0 %v1290
    %1903 = vmatprep.subr.bf16.mxu0 %v1299
    %1904 = vmatpush1.bf16.msra.mxu0 %v1298
    %1905 = vmatprep.subr.bf16.mxu0 %v1307
    %1906 = vmatpush1.bf16.msra.mxu0 %v1306
    %1907 = vmatprep.subr.bf16.mxu0 %v1315
    %1908 = vmatpush1.bf16.msra.mxu0 %v1314
    %1909 = vmatprep.subr.bf16.mxu0 %v1323
    %1910 = vmatpush1.bf16.msra.mxu0 %v1322
    %1911 = vmatprep.subr.bf16.mxu0 %v1331
    %1912 = vmatpush1.bf16.msra.mxu0 %v1330
    %1913 = vmatprep.subr.bf16.mxu0 %v1339
    %1914 = vmatpush1.bf16.msra.mxu0 %v1338
    %1915 = vmatprep.mubr.bf16.mxu0 %v311
    %1916 = vmatmul.mubr.bf16.gmra.mrb[0].mxu0 %v310
    %v1917 = vpop.f32.mrb[0].mxu0
    %v1918 = vadd.f32 %v1877, %v1917
    %v1919 = vpop.f32.mrb[0].mxu0
    %v1920 = vadd.f32 %v1879, %v1919
    %v1921 = vpop.f32.mrb[0].mxu0
    %v1922 = vpop.f32.mrb[0].mxu0
    %1923 = vdwg.mxu0
    %v1932 = vcombine.low %v1672, %v1674
    %v1933 = vcombine.low %v1754, %v1756
    %v1935 = vunpack.c.l.s4 1983009808
    %v1936 = vunpack.c.0.s8 %v1935
    %v1937 = vlaneseq
    %v1938 = vshrl.u32 %v1937, 7
    %v1939 = vsub.s32 %v1936, %v1938
    %v1940 = vrot.slane %v1932, %v1939
    %v1942 = vunpack.c.l.s4 1983009808
    %v1943 = vunpack.c.0.s8 %v1942
    %v1944 = vlaneseq
    %v1945 = vshrl.u32 %v1944, 7
    %v1946 = vsub.s32 %v1943, %v1945
    %v1947 = vrot.slane %v1933, %v1946
    %v1948 = vcombine.low %v1940, %v1947
    %v1949 = vcombine.low %v1836, %v1838
    %v1950 = vcombine.low %v1918, %v1920
    %v1952 = vunpack.c.l.s4 1983009808
    %v1953 = vunpack.c.0.s8 %v1952
    %v1954 = vlaneseq
    %v1955 = vshrl.u32 %v1954, 7
    %v1956 = vsub.s32 %v1953, %v1955
    %v1957 = vrot.slane %v1949, %v1956
    %v1959 = vunpack.c.l.s4 1983009808
    %v1960 = vunpack.c.0.s8 %v1959
    %v1961 = vlaneseq
    %v1962 = vshrl.u32 %v1961, 7
    %v1963 = vsub.s32 %v1960, %v1962
    %v1964 = vrot.slane %v1950, %v1963
    %v1965 = vcombine.low %v1957, %v1964
    %v1968 = vadd.f32 %v28, %v1948
    %v1969 = vadd.f32 %v29, %v1965
    %1970 = vst [vmem:[#allocation2] sm:$0xff] %v1968
    %1971 = vst [vmem:[#allocation2 + $0x8] sm:$0xff] %v1969
    // Predicated region
    $region26: #{ddqn_forward.7} parent=1 // pred_check
      %p1972 = pneg %p22
    $region27: #{ddqn_forward.7} parent=1 // pred_check_branch
      %1974 = sbr.rel (%p1972) target = $region29
    $region28: #{ddqn_forward.7} parent=1 // pred_region
      %v1975 = vld [vmem:[#allocation2] sm:$0xff]
      %v1976 = vld [vmem:[#allocation2 + $0x8] sm:$0xff]
      %v1977 = vld [vmem:[%s2] sm:$0xff]
      %v1979 = vlaneseq
      %v1980 = vshrl.u32 %v1979, 7
      %v1981 = vsub.s32 0, %v1980
      %v1982 = vrot.slane %v1977, %v1981
      %v1983 = vlaneseq
      %v1984 = vshrl.u32 %v1983, 7
      %v1985 = vsub.s32 1, %v1984
      %v1986 = vrot.slane %v1977, %v1985
      %v1987 = vlaneseq
      %v1988 = vshrl.u32 %v1987, 7
      %v1989 = vsub.s32 2, %v1988
      %v1990 = vrot.slane %v1977, %v1989
      %v1991 = vlaneseq
      %v1992 = vshrl.u32 %v1991, 7
      %v1993 = vsub.s32 3, %v1992
      %v1994 = vrot.slane %v1977, %v1993
      %v1995 = vlaneseq
      %v1996 = vshrl.u32 %v1995, 7
      %v1997 = vsub.s32 4, %v1996
      %v1998 = vrot.slane %v1977, %v1997
      %v1999 = vlaneseq
      %v2000 = vshrl.u32 %v1999, 7
      %v2001 = vsub.s32 5, %v2000
      %v2002 = vrot.slane %v1977, %v2001
      %v2003 = vlaneseq
      %v2004 = vshrl.u32 %v2003, 7
      %v2005 = vsub.s32 6, %v2004
      %v2006 = vrot.slane %v1977, %v2005
      %v2007 = vlaneseq
      %v2008 = vshrl.u32 %v2007, 7
      %v2009 = vsub.s32 7, %v2008
      %v2010 = vrot.slane %v1977, %v2009
      %v2011 = vcombine.low %v1982, %v1986
      %v2012 = vcombine.low %v1990, %v1994
      %v2014 = vunpack.c.l.s4 1983009808
      %v2015 = vunpack.c.0.s8 %v2014
      %v2016 = vlaneseq
      %v2017 = vshrl.u32 %v2016, 7
      %v2018 = vsub.s32 %v2015, %v2017
      %v2019 = vrot.slane %v2011, %v2018
      %v2021 = vunpack.c.l.s4 1983009808
      %v2022 = vunpack.c.0.s8 %v2021
      %v2023 = vlaneseq
      %v2024 = vshrl.u32 %v2023, 7
      %v2025 = vsub.s32 %v2022, %v2024
      %v2026 = vrot.slane %v2012, %v2025
      %v2027 = vcombine.low %v2019, %v2026
      %v2028 = vcombine.low %v1998, %v2002
      %v2029 = vcombine.low %v2006, %v2010
      %v2031 = vunpack.c.l.s4 1983009808
      %v2032 = vunpack.c.0.s8 %v2031
      %v2033 = vlaneseq
      %v2034 = vshrl.u32 %v2033, 7
      %v2035 = vsub.s32 %v2032, %v2034
      %v2036 = vrot.slane %v2028, %v2035
      %v2038 = vunpack.c.l.s4 1983009808
      %v2039 = vunpack.c.0.s8 %v2038
      %v2040 = vlaneseq
      %v2041 = vshrl.u32 %v2040, 7
      %v2042 = vsub.s32 %v2039, %v2041
      %v2043 = vrot.slane %v2029, %v2042
      %v2044 = vcombine.low %v2036, %v2043
      %v2047 = vadd.f32 %v1975, %v2027
      %v2048 = vadd.f32 %v1976, %v2044
      %v2049 = vmax.f32 %v2047, 0.0
      %v2050 = vmax.f32 %v2048, 0.0
      %v2053 = vcombine.high %v2049, %v2049
      %v2055 = vunpack.c.l.s4 1983009808
      %v2056 = vunpack.c.0.s8 %v2055
      %v2057 = vlaneseq
      %v2058 = vshrl.u32 %v2057, 7
      %v2059 = vsub.s32 %v2056, %v2058
      %v2060 = vrot.slane %v2049, %v2059
      %v2062 = vunpack.c.l.s4 1983009808
      %v2063 = vunpack.c.0.s8 %v2062
      %v2064 = vlaneseq
      %v2065 = vshrl.u32 %v2064, 7
      %v2066 = vsub.s32 %v2063, %v2065
      %v2067 = vrot.slane %v2053, %v2066
      %v2068 = vcombine.high %v2060, %v2060
      %v2069 = vcombine.high %v2067, %v2067
      %v2070 = vcombine.high %v2050, %v2050
      %v2072 = vunpack.c.l.s4 1983009808
      %v2073 = vunpack.c.0.s8 %v2072
      %v2074 = vlaneseq
      %v2075 = vshrl.u32 %v2074, 7
      %v2076 = vsub.s32 %v2073, %v2075
      %v2077 = vrot.slane %v2050, %v2076
      %v2079 = vunpack.c.l.s4 1983009808
      %v2080 = vunpack.c.0.s8 %v2079
      %v2081 = vlaneseq
      %v2082 = vshrl.u32 %v2081, 7
      %v2083 = vsub.s32 %v2080, %v2082
      %v2084 = vrot.slane %v2070, %v2083
      %v2085 = vcombine.high %v2077, %v2077
      %v2086 = vcombine.high %v2084, %v2084
      %v2095 = vpack.c.bf16 %v2060, %v2060
      %v2096 = vpack.c.bf16 %v2068, %v2068
      %v2097 = vpack.c.bf16 %v2067, %v2067
      %v2098 = vpack.c.bf16 %v2069, %v2069
      %v2099 = vpack.c.bf16 %v2077, %v2077
      %v2100 = vpack.c.bf16 %v2085, %v2085
      %v2101 = vpack.c.bf16 %v2084, %v2084
      %v2102 = vpack.c.bf16 %v2086, %v2086
      %v2103 = vld [vmem:[%s3] sm:$0xf]
      %v2104 = vld [vmem:[%s3 + $0x4] sm:$0xf]
      %v2105 = vld [vmem:[%s3 + $0x8] sm:$0xf]
      %v2106 = vld [vmem:[%s3 + $0xc] sm:$0xf]
      %v2107 = vld [vmem:[%s3 + $0x10] sm:$0xf]
      %v2108 = vld [vmem:[%s3 + $0x14] sm:$0xf]
      %v2109 = vld [vmem:[%s3 + $0x18] sm:$0xf]
      %v2110 = vld [vmem:[%s3 + $0x1c] sm:$0xf]
      %v2111 = vld [vmem:[%s3 + $0x20] sm:$0xf]
      %v2112 = vld [vmem:[%s3 + $0x24] sm:$0xf]
      %v2113 = vld [vmem:[%s3 + $0x28] sm:$0xf]
      %v2114 = vld [vmem:[%s3 + $0x2c] sm:$0xf]
      %v2115 = vld [vmem:[%s3 + $0x30] sm:$0xf]
      %v2116 = vld [vmem:[%s3 + $0x34] sm:$0xf]
      %v2117 = vld [vmem:[%s3 + $0x38] sm:$0xf]
      %v2118 = vld [vmem:[%s3 + $0x3c] sm:$0xf]
      %v2119 = vld [vmem:[%s3 + $0x40] sm:$0xf]
      %v2120 = vld [vmem:[%s3 + $0x44] sm:$0xf]
      %v2121 = vld [vmem:[%s3 + $0x48] sm:$0xf]
      %v2122 = vld [vmem:[%s3 + $0x4c] sm:$0xf]
      %v2123 = vld [vmem:[%s3 + $0x50] sm:$0xf]
      %v2124 = vld [vmem:[%s3 + $0x54] sm:$0xf]
      %v2125 = vld [vmem:[%s3 + $0x58] sm:$0xf]
      %v2126 = vld [vmem:[%s3 + $0x5c] sm:$0xf]
      %v2127 = vld [vmem:[%s3 + $0x60] sm:$0xf]
      %v2128 = vld [vmem:[%s3 + $0x64] sm:$0xf]
      %v2129 = vld [vmem:[%s3 + $0x68] sm:$0xf]
      %v2130 = vld [vmem:[%s3 + $0x6c] sm:$0xf]
      %v2131 = vld [vmem:[%s3 + $0x70] sm:$0xf]
      %v2132 = vld [vmem:[%s3 + $0x74] sm:$0xf]
      %v2133 = vld [vmem:[%s3 + $0x78] sm:$0xf]
      %v2134 = vld [vmem:[%s3 + $0x7c] sm:$0xf]
      %v2135 = vld [vmem:[%s3 + $0x80] sm:$0xf]
      %v2136 = vld [vmem:[%s3 + $0x84] sm:$0xf]
      %v2137 = vld [vmem:[%s3 + $0x88] sm:$0xf]
      %v2138 = vld [vmem:[%s3 + $0x8c] sm:$0xf]
      %v2139 = vld [vmem:[%s3 + $0x90] sm:$0xf]
      %v2140 = vld [vmem:[%s3 + $0x94] sm:$0xf]
      %v2141 = vld [vmem:[%s3 + $0x98] sm:$0xf]
      %v2142 = vld [vmem:[%s3 + $0x9c] sm:$0xf]
      %v2143 = vld [vmem:[%s3 + $0xa0] sm:$0xf]
      %v2144 = vld [vmem:[%s3 + $0xa4] sm:$0xf]
      %v2145 = vld [vmem:[%s3 + $0xa8] sm:$0xf]
      %v2146 = vld [vmem:[%s3 + $0xac] sm:$0xf]
      %v2147 = vld [vmem:[%s3 + $0xb0] sm:$0xf]
      %v2148 = vld [vmem:[%s3 + $0xb4] sm:$0xf]
      %v2149 = vld [vmem:[%s3 + $0xb8] sm:$0xf]
      %v2150 = vld [vmem:[%s3 + $0xbc] sm:$0xf]
      %v2151 = vld [vmem:[%s3 + $0xc0] sm:$0xf]
      %v2152 = vld [vmem:[%s3 + $0xc4] sm:$0xf]
      %v2153 = vld [vmem:[%s3 + $0xc8] sm:$0xf]
      %v2154 = vld [vmem:[%s3 + $0xcc] sm:$0xf]
      %v2155 = vld [vmem:[%s3 + $0xd0] sm:$0xf]
      %v2156 = vld [vmem:[%s3 + $0xd4] sm:$0xf]
      %v2157 = vld [vmem:[%s3 + $0xd8] sm:$0xf]
      %v2158 = vld [vmem:[%s3 + $0xdc] sm:$0xf]
      %v2159 = vld [vmem:[%s3 + $0xe0] sm:$0xf]
      %v2160 = vld [vmem:[%s3 + $0xe4] sm:$0xf]
      %v2161 = vld [vmem:[%s3 + $0xe8] sm:$0xf]
      %v2162 = vld [vmem:[%s3 + $0xec] sm:$0xf]
      %v2163 = vld [vmem:[%s3 + $0xf0] sm:$0xf]
      %v2164 = vld [vmem:[%s3 + $0xf4] sm:$0xf]
      %v2165 = vld [vmem:[%s3 + $0xf8] sm:$0xf]
      %v2166 = vld [vmem:[%s3 + $0xfc] sm:$0xf]
      %v2167 = vld [vmem:[%s3 + $0x100] sm:$0xf]
      %v2168 = vld [vmem:[%s3 + $0x104] sm:$0xf]
      %v2169 = vld [vmem:[%s3 + $0x108] sm:$0xf]
      %v2170 = vld [vmem:[%s3 + $0x10c] sm:$0xf]
      %v2171 = vld [vmem:[%s3 + $0x110] sm:$0xf]
      %v2172 = vld [vmem:[%s3 + $0x114] sm:$0xf]
      %v2173 = vld [vmem:[%s3 + $0x118] sm:$0xf]
      %v2174 = vld [vmem:[%s3 + $0x11c] sm:$0xf]
      %v2175 = vld [vmem:[%s3 + $0x120] sm:$0xf]
      %v2176 = vld [vmem:[%s3 + $0x124] sm:$0xf]
      %v2177 = vld [vmem:[%s3 + $0x128] sm:$0xf]
      %v2178 = vld [vmem:[%s3 + $0x12c] sm:$0xf]
      %v2179 = vld [vmem:[%s3 + $0x130] sm:$0xf]
      %v2180 = vld [vmem:[%s3 + $0x134] sm:$0xf]
      %v2181 = vld [vmem:[%s3 + $0x138] sm:$0xf]
      %v2182 = vld [vmem:[%s3 + $0x13c] sm:$0xf]
      %v2183 = vld [vmem:[%s3 + $0x140] sm:$0xf]
      %v2184 = vld [vmem:[%s3 + $0x144] sm:$0xf]
      %v2185 = vld [vmem:[%s3 + $0x148] sm:$0xf]
      %v2186 = vld [vmem:[%s3 + $0x14c] sm:$0xf]
      %v2187 = vld [vmem:[%s3 + $0x150] sm:$0xf]
      %v2188 = vld [vmem:[%s3 + $0x154] sm:$0xf]
      %v2189 = vld [vmem:[%s3 + $0x158] sm:$0xf]
      %v2190 = vld [vmem:[%s3 + $0x15c] sm:$0xf]
      %v2191 = vld [vmem:[%s3 + $0x160] sm:$0xf]
      %v2192 = vld [vmem:[%s3 + $0x164] sm:$0xf]
      %v2193 = vld [vmem:[%s3 + $0x168] sm:$0xf]
      %v2194 = vld [vmem:[%s3 + $0x16c] sm:$0xf]
      %v2195 = vld [vmem:[%s3 + $0x170] sm:$0xf]
      %v2196 = vld [vmem:[%s3 + $0x174] sm:$0xf]
      %v2197 = vld [vmem:[%s3 + $0x178] sm:$0xf]
      %v2198 = vld [vmem:[%s3 + $0x17c] sm:$0xf]
      %v2199 = vld [vmem:[%s3 + $0x180] sm:$0xf]
      %v2200 = vld [vmem:[%s3 + $0x184] sm:$0xf]
      %v2201 = vld [vmem:[%s3 + $0x188] sm:$0xf]
      %v2202 = vld [vmem:[%s3 + $0x18c] sm:$0xf]
      %v2203 = vld [vmem:[%s3 + $0x190] sm:$0xf]
      %v2204 = vld [vmem:[%s3 + $0x194] sm:$0xf]
      %v2205 = vld [vmem:[%s3 + $0x198] sm:$0xf]
      %v2206 = vld [vmem:[%s3 + $0x19c] sm:$0xf]
      %v2207 = vld [vmem:[%s3 + $0x1a0] sm:$0xf]
      %v2208 = vld [vmem:[%s3 + $0x1a4] sm:$0xf]
      %v2209 = vld [vmem:[%s3 + $0x1a8] sm:$0xf]
      %v2210 = vld [vmem:[%s3 + $0x1ac] sm:$0xf]
      %v2211 = vld [vmem:[%s3 + $0x1b0] sm:$0xf]
      %v2212 = vld [vmem:[%s3 + $0x1b4] sm:$0xf]
      %v2213 = vld [vmem:[%s3 + $0x1b8] sm:$0xf]
      %v2214 = vld [vmem:[%s3 + $0x1bc] sm:$0xf]
      %v2215 = vld [vmem:[%s3 + $0x1c0] sm:$0xf]
      %v2216 = vld [vmem:[%s3 + $0x1c4] sm:$0xf]
      %v2217 = vld [vmem:[%s3 + $0x1c8] sm:$0xf]
      %v2218 = vld [vmem:[%s3 + $0x1cc] sm:$0xf]
      %v2219 = vld [vmem:[%s3 + $0x1d0] sm:$0xf]
      %v2220 = vld [vmem:[%s3 + $0x1d4] sm:$0xf]
      %v2221 = vld [vmem:[%s3 + $0x1d8] sm:$0xf]
      %v2222 = vld [vmem:[%s3 + $0x1dc] sm:$0xf]
      %v2223 = vld [vmem:[%s3 + $0x1e0] sm:$0xf]
      %v2224 = vld [vmem:[%s3 + $0x1e4] sm:$0xf]
      %v2225 = vld [vmem:[%s3 + $0x1e8] sm:$0xf]
      %v2226 = vld [vmem:[%s3 + $0x1ec] sm:$0xf]
      %v2227 = vld [vmem:[%s3 + $0x1f0] sm:$0xf]
      %v2228 = vld [vmem:[%s3 + $0x1f4] sm:$0xf]
      %v2229 = vld [vmem:[%s3 + $0x1f8] sm:$0xf]
      %v2230 = vld [vmem:[%s3 + $0x1fc] sm:$0xf]
      %v2231 = vld [vmem:[%s4] sm:$0x1]
      %v2233 = vlaneseq
      %v2234 = vshrl.u32 %v2233, 7
      %v2235 = vsub.s32 0, %v2234
      %v2236 = vrot.slane %v2231, %v2235
      %v2366 = vunpack.c.l.b16 %v2103
      %v2367 = vunpack.c.l.b16 %v2104
      %v2368 = vunpack.c.l.b16 %v2105
      %v2369 = vunpack.c.l.b16 %v2106
      %v2370 = vunpack.c.l.b16 %v2107
      %v2371 = vunpack.c.l.b16 %v2108
      %v2372 = vunpack.c.l.b16 %v2109
      %v2373 = vunpack.c.l.b16 %v2110
      %v2374 = vunpack.c.l.b16 %v2111
      %v2375 = vunpack.c.l.b16 %v2112
      %v2376 = vunpack.c.l.b16 %v2113
      %v2377 = vunpack.c.l.b16 %v2114
      %v2378 = vunpack.c.l.b16 %v2115
      %v2379 = vunpack.c.l.b16 %v2116
      %v2380 = vunpack.c.l.b16 %v2117
      %v2381 = vunpack.c.l.b16 %v2118
      %v2382 = vunpack.c.l.b16 %v2119
      %v2383 = vunpack.c.l.b16 %v2120
      %v2384 = vunpack.c.l.b16 %v2121
      %v2385 = vunpack.c.l.b16 %v2122
      %v2386 = vunpack.c.l.b16 %v2123
      %v2387 = vunpack.c.l.b16 %v2124
      %v2388 = vunpack.c.l.b16 %v2125
      %v2389 = vunpack.c.l.b16 %v2126
      %v2390 = vunpack.c.l.b16 %v2127
      %v2391 = vunpack.c.l.b16 %v2128
      %v2392 = vunpack.c.l.b16 %v2129
      %v2393 = vunpack.c.l.b16 %v2130
      %v2394 = vunpack.c.l.b16 %v2131
      %v2395 = vunpack.c.l.b16 %v2132
      %v2396 = vunpack.c.l.b16 %v2133
      %v2397 = vunpack.c.l.b16 %v2134
      %v2398 = vunpack.c.l.b16 %v2135
      %v2399 = vunpack.c.l.b16 %v2136
      %v2400 = vunpack.c.l.b16 %v2137
      %v2401 = vunpack.c.l.b16 %v2138
      %v2402 = vunpack.c.l.b16 %v2139
      %v2403 = vunpack.c.l.b16 %v2140
      %v2404 = vunpack.c.l.b16 %v2141
      %v2405 = vunpack.c.l.b16 %v2142
      %v2406 = vunpack.c.l.b16 %v2143
      %v2407 = vunpack.c.l.b16 %v2144
      %v2408 = vunpack.c.l.b16 %v2145
      %v2409 = vunpack.c.l.b16 %v2146
      %v2410 = vunpack.c.l.b16 %v2147
      %v2411 = vunpack.c.l.b16 %v2148
      %v2412 = vunpack.c.l.b16 %v2149
      %v2413 = vunpack.c.l.b16 %v2150
      %v2414 = vunpack.c.l.b16 %v2151
      %v2415 = vunpack.c.l.b16 %v2152
      %v2416 = vunpack.c.l.b16 %v2153
      %v2417 = vunpack.c.l.b16 %v2154
      %v2418 = vunpack.c.l.b16 %v2155
      %v2419 = vunpack.c.l.b16 %v2156
      %v2420 = vunpack.c.l.b16 %v2157
      %v2421 = vunpack.c.l.b16 %v2158
      %v2422 = vunpack.c.l.b16 %v2159
      %v2423 = vunpack.c.l.b16 %v2160
      %v2424 = vunpack.c.l.b16 %v2161
      %v2425 = vunpack.c.l.b16 %v2162
      %v2426 = vunpack.c.l.b16 %v2163
      %v2427 = vunpack.c.l.b16 %v2164
      %v2428 = vunpack.c.l.b16 %v2165
      %v2429 = vunpack.c.l.b16 %v2166
      %v2430 = vunpack.c.l.b16 %v2167
      %v2431 = vunpack.c.l.b16 %v2168
      %v2432 = vunpack.c.l.b16 %v2169
      %v2433 = vunpack.c.l.b16 %v2170
      %v2434 = vunpack.c.l.b16 %v2171
      %v2435 = vunpack.c.l.b16 %v2172
      %v2436 = vunpack.c.l.b16 %v2173
      %v2437 = vunpack.c.l.b16 %v2174
      %v2438 = vunpack.c.l.b16 %v2175
      %v2439 = vunpack.c.l.b16 %v2176
      %v2440 = vunpack.c.l.b16 %v2177
      %v2441 = vunpack.c.l.b16 %v2178
      %v2442 = vunpack.c.l.b16 %v2179
      %v2443 = vunpack.c.l.b16 %v2180
      %v2444 = vunpack.c.l.b16 %v2181
      %v2445 = vunpack.c.l.b16 %v2182
      %v2446 = vunpack.c.l.b16 %v2183
      %v2447 = vunpack.c.l.b16 %v2184
      %v2448 = vunpack.c.l.b16 %v2185
      %v2449 = vunpack.c.l.b16 %v2186
      %v2450 = vunpack.c.l.b16 %v2187
      %v2451 = vunpack.c.l.b16 %v2188
      %v2452 = vunpack.c.l.b16 %v2189
      %v2453 = vunpack.c.l.b16 %v2190
      %v2454 = vunpack.c.l.b16 %v2191
      %v2455 = vunpack.c.l.b16 %v2192
      %v2456 = vunpack.c.l.b16 %v2193
      %v2457 = vunpack.c.l.b16 %v2194
      %v2458 = vunpack.c.l.b16 %v2195
      %v2459 = vunpack.c.l.b16 %v2196
      %v2460 = vunpack.c.l.b16 %v2197
      %v2461 = vunpack.c.l.b16 %v2198
      %v2462 = vunpack.c.l.b16 %v2199
      %v2463 = vunpack.c.l.b16 %v2200
      %v2464 = vunpack.c.l.b16 %v2201
      %v2465 = vunpack.c.l.b16 %v2202
      %v2466 = vunpack.c.l.b16 %v2203
      %v2467 = vunpack.c.l.b16 %v2204
      %v2468 = vunpack.c.l.b16 %v2205
      %v2469 = vunpack.c.l.b16 %v2206
      %v2470 = vunpack.c.l.b16 %v2207
      %v2471 = vunpack.c.l.b16 %v2208
      %v2472 = vunpack.c.l.b16 %v2209
      %v2473 = vunpack.c.l.b16 %v2210
      %v2474 = vunpack.c.l.b16 %v2211
      %v2475 = vunpack.c.l.b16 %v2212
      %v2476 = vunpack.c.l.b16 %v2213
      %v2477 = vunpack.c.l.b16 %v2214
      %v2478 = vunpack.c.l.b16 %v2215
      %v2479 = vunpack.c.l.b16 %v2216
      %v2480 = vunpack.c.l.b16 %v2217
      %v2481 = vunpack.c.l.b16 %v2218
      %v2482 = vunpack.c.l.b16 %v2219
      %v2483 = vunpack.c.l.b16 %v2220
      %v2484 = vunpack.c.l.b16 %v2221
      %v2485 = vunpack.c.l.b16 %v2222
      %v2486 = vunpack.c.l.b16 %v2223
      %v2487 = vunpack.c.l.b16 %v2224
      %v2488 = vunpack.c.l.b16 %v2225
      %v2489 = vunpack.c.l.b16 %v2226
      %v2490 = vunpack.c.l.b16 %v2227
      %v2491 = vunpack.c.l.b16 %v2228
      %v2492 = vunpack.c.l.b16 %v2229
      %v2493 = vunpack.c.l.b16 %v2230
      %v2494 = vpack.c.b16 %v2367, %v2366
      %v2495 = vpack.c.b16 %v2369, %v2368
      %v2496 = vpack.c.b16 %v2371, %v2370
      %v2497 = vpack.c.b16 %v2373, %v2372
      %v2498 = vpack.c.b16 %v2375, %v2374
      %v2499 = vpack.c.b16 %v2377, %v2376
      %v2500 = vpack.c.b16 %v2379, %v2378
      %v2501 = vpack.c.b16 %v2381, %v2380
      %v2502 = vpack.c.b16 %v2383, %v2382
      %v2503 = vpack.c.b16 %v2385, %v2384
      %v2504 = vpack.c.b16 %v2387, %v2386
      %v2505 = vpack.c.b16 %v2389, %v2388
      %v2506 = vpack.c.b16 %v2391, %v2390
      %v2507 = vpack.c.b16 %v2393, %v2392
      %v2508 = vpack.c.b16 %v2395, %v2394
      %v2509 = vpack.c.b16 %v2397, %v2396
      %v2510 = vpack.c.b16 %v2399, %v2398
      %v2511 = vpack.c.b16 %v2401, %v2400
      %v2512 = vpack.c.b16 %v2403, %v2402
      %v2513 = vpack.c.b16 %v2405, %v2404
      %v2514 = vpack.c.b16 %v2407, %v2406
      %v2515 = vpack.c.b16 %v2409, %v2408
      %v2516 = vpack.c.b16 %v2411, %v2410
      %v2517 = vpack.c.b16 %v2413, %v2412
      %v2518 = vpack.c.b16 %v2415, %v2414
      %v2519 = vpack.c.b16 %v2417, %v2416
      %v2520 = vpack.c.b16 %v2419, %v2418
      %v2521 = vpack.c.b16 %v2421, %v2420
      %v2522 = vpack.c.b16 %v2423, %v2422
      %v2523 = vpack.c.b16 %v2425, %v2424
      %v2524 = vpack.c.b16 %v2427, %v2426
      %v2525 = vpack.c.b16 %v2429, %v2428
      %v2526 = vpack.c.b16 %v2431, %v2430
      %v2527 = vpack.c.b16 %v2433, %v2432
      %v2528 = vpack.c.b16 %v2435, %v2434
      %v2529 = vpack.c.b16 %v2437, %v2436
      %v2530 = vpack.c.b16 %v2439, %v2438
      %v2531 = vpack.c.b16 %v2441, %v2440
      %v2532 = vpack.c.b16 %v2443, %v2442
      %v2533 = vpack.c.b16 %v2445, %v2444
      %v2534 = vpack.c.b16 %v2447, %v2446
      %v2535 = vpack.c.b16 %v2449, %v2448
      %v2536 = vpack.c.b16 %v2451, %v2450
      %v2537 = vpack.c.b16 %v2453, %v2452
      %v2538 = vpack.c.b16 %v2455, %v2454
      %v2539 = vpack.c.b16 %v2457, %v2456
      %v2540 = vpack.c.b16 %v2459, %v2458
      %v2541 = vpack.c.b16 %v2461, %v2460
      %v2542 = vpack.c.b16 %v2463, %v2462
      %v2543 = vpack.c.b16 %v2465, %v2464
      %v2544 = vpack.c.b16 %v2467, %v2466
      %v2545 = vpack.c.b16 %v2469, %v2468
      %v2546 = vpack.c.b16 %v2471, %v2470
      %v2547 = vpack.c.b16 %v2473, %v2472
      %v2548 = vpack.c.b16 %v2475, %v2474
      %v2549 = vpack.c.b16 %v2477, %v2476
      %v2550 = vpack.c.b16 %v2479, %v2478
      %v2551 = vpack.c.b16 %v2481, %v2480
      %v2552 = vpack.c.b16 %v2483, %v2482
      %v2553 = vpack.c.b16 %v2485, %v2484
      %v2554 = vpack.c.b16 %v2487, %v2486
      %v2555 = vpack.c.b16 %v2489, %v2488
      %v2556 = vpack.c.b16 %v2491, %v2490
      %v2557 = vpack.c.b16 %v2493, %v2492
      %2622 = vmatprep.subr.bf16.mxu0 0
      %2623 = vmatpush1.bf16.msra.mxu0 %v2494
      %2624 = vmatprep.subr.bf16.mxu0 0
      %2625 = vmatpush1.bf16.msra.mxu0 %v2495
      %2626 = vmatprep.subr.bf16.mxu0 0
      %2627 = vmatpush1.bf16.msra.mxu0 %v2496
      %2628 = vmatprep.subr.bf16.mxu0 0
      %2629 = vmatpush1.bf16.msra.mxu0 %v2497
      %2630 = vmatprep.subr.bf16.mxu0 0
      %2631 = vmatpush1.bf16.msra.mxu0 %v2498
      %2632 = vmatprep.subr.bf16.mxu0 0
      %2633 = vmatpush1.bf16.msra.mxu0 %v2499
      %2634 = vmatprep.subr.bf16.mxu0 0
      %2635 = vmatpush1.bf16.msra.mxu0 %v2500
      %2636 = vmatprep.subr.bf16.mxu0 0
      %2637 = vmatpush1.bf16.msra.mxu0 %v2501
      %2638 = vmatprep.subr.bf16.mxu0 0
      %2639 = vmatpush1.bf16.msra.mxu0 %v2502
      %2640 = vmatprep.subr.bf16.mxu0 0
      %2641 = vmatpush1.bf16.msra.mxu0 %v2503
      %2642 = vmatprep.subr.bf16.mxu0 0
      %2643 = vmatpush1.bf16.msra.mxu0 %v2504
      %2644 = vmatprep.subr.bf16.mxu0 0
      %2645 = vmatpush1.bf16.msra.mxu0 %v2505
      %2646 = vmatprep.subr.bf16.mxu0 0
      %2647 = vmatpush1.bf16.msra.mxu0 %v2506
      %2648 = vmatprep.subr.bf16.mxu0 0
      %2649 = vmatpush1.bf16.msra.mxu0 %v2507
      %2650 = vmatprep.subr.bf16.mxu0 0
      %2651 = vmatpush1.bf16.msra.mxu0 %v2508
      %2652 = vmatprep.subr.bf16.mxu0 0
      %2653 = vmatpush1.bf16.msra.mxu0 %v2509
      %2654 = vmatprep.mubr.bf16.mxu0 %v2096
      %2655 = vmatmul.mubr.bf16.gmra.mrb[0].mxu0 %v2095
      %v2656 = vpop.f32.mrb[0].mxu0
      %v2657 = vadd.f32 %v2236, %v2656
      %v2658 = vpop.f32.mrb[0].mxu0
      %v2659 = vpop.f32.mrb[0].mxu0
      %v2660 = vpop.f32.mrb[0].mxu0
      %2661 = vdwg.mxu0
      %2662 = vmatprep.subr.bf16.mxu0 0
      %2663 = vmatpush1.bf16.msra.mxu0 %v2510
      %2664 = vmatprep.subr.bf16.mxu0 0
      %2665 = vmatpush1.bf16.msra.mxu0 %v2511
      %2666 = vmatprep.subr.bf16.mxu0 0
      %2667 = vmatpush1.bf16.msra.mxu0 %v2512
      %2668 = vmatprep.subr.bf16.mxu0 0
      %2669 = vmatpush1.bf16.msra.mxu0 %v2513
      %2670 = vmatprep.subr.bf16.mxu0 0
      %2671 = vmatpush1.bf16.msra.mxu0 %v2514
      %2672 = vmatprep.subr.bf16.mxu0 0
      %2673 = vmatpush1.bf16.msra.mxu0 %v2515
      %2674 = vmatprep.subr.bf16.mxu0 0
      %2675 = vmatpush1.bf16.msra.mxu0 %v2516
      %2676 = vmatprep.subr.bf16.mxu0 0
      %2677 = vmatpush1.bf16.msra.mxu0 %v2517
      %2678 = vmatprep.subr.bf16.mxu0 0
      %2679 = vmatpush1.bf16.msra.mxu0 %v2518
      %2680 = vmatprep.subr.bf16.mxu0 0
      %2681 = vmatpush1.bf16.msra.mxu0 %v2519
      %2682 = vmatprep.subr.bf16.mxu0 0
      %2683 = vmatpush1.bf16.msra.mxu0 %v2520
      %2684 = vmatprep.subr.bf16.mxu0 0
      %2685 = vmatpush1.bf16.msra.mxu0 %v2521
      %2686 = vmatprep.subr.bf16.mxu0 0
      %2687 = vmatpush1.bf16.msra.mxu0 %v2522
      %2688 = vmatprep.subr.bf16.mxu0 0
      %2689 = vmatpush1.bf16.msra.mxu0 %v2523
      %2690 = vmatprep.subr.bf16.mxu0 0
      %2691 = vmatpush1.bf16.msra.mxu0 %v2524
      %2692 = vmatprep.subr.bf16.mxu0 0
      %2693 = vmatpush1.bf16.msra.mxu0 %v2525
      %2694 = vmatprep.mubr.bf16.mxu0 %v2098
      %2695 = vmatmul.mubr.bf16.gmra.mrb[0].mxu0 %v2097
      %v2696 = vpop.f32.mrb[0].mxu0
      %v2697 = vadd.f32 %v2657, %v2696
      %v2698 = vpop.f32.mrb[0].mxu0
      %v2699 = vpop.f32.mrb[0].mxu0
      %v2700 = vpop.f32.mrb[0].mxu0
      %2701 = vdwg.mxu0
      %2702 = vmatprep.subr.bf16.mxu0 0
      %2703 = vmatpush1.bf16.msra.mxu0 %v2526
      %2704 = vmatprep.subr.bf16.mxu0 0
      %2705 = vmatpush1.bf16.msra.mxu0 %v2527
      %2706 = vmatprep.subr.bf16.mxu0 0
      %2707 = vmatpush1.bf16.msra.mxu0 %v2528
      %2708 = vmatprep.subr.bf16.mxu0 0
      %2709 = vmatpush1.bf16.msra.mxu0 %v2529
      %2710 = vmatprep.subr.bf16.mxu0 0
      %2711 = vmatpush1.bf16.msra.mxu0 %v2530
      %2712 = vmatprep.subr.bf16.mxu0 0
      %2713 = vmatpush1.bf16.msra.mxu0 %v2531
      %2714 = vmatprep.subr.bf16.mxu0 0
      %2715 = vmatpush1.bf16.msra.mxu0 %v2532
      %2716 = vmatprep.subr.bf16.mxu0 0
      %2717 = vmatpush1.bf16.msra.mxu0 %v2533
      %2718 = vmatprep.subr.bf16.mxu0 0
      %2719 = vmatpush1.bf16.msra.mxu0 %v2534
      %2720 = vmatprep.subr.bf16.mxu0 0
      %2721 = vmatpush1.bf16.msra.mxu0 %v2535
      %2722 = vmatprep.subr.bf16.mxu0 0
      %2723 = vmatpush1.bf16.msra.mxu0 %v2536
      %2724 = vmatprep.subr.bf16.mxu0 0
      %2725 = vmatpush1.bf16.msra.mxu0 %v2537
      %2726 = vmatprep.subr.bf16.mxu0 0
      %2727 = vmatpush1.bf16.msra.mxu0 %v2538
      %2728 = vmatprep.subr.bf16.mxu0 0
      %2729 = vmatpush1.bf16.msra.mxu0 %v2539
      %2730 = vmatprep.subr.bf16.mxu0 0
      %2731 = vmatpush1.bf16.msra.mxu0 %v2540
      %2732 = vmatprep.subr.bf16.mxu0 0
      %2733 = vmatpush1.bf16.msra.mxu0 %v2541
      %2734 = vmatprep.mubr.bf16.mxu0 %v2100
      %2735 = vmatmul.mubr.bf16.gmra.mrb[0].mxu0 %v2099
      %v2736 = vpop.f32.mrb[0].mxu0
      %v2737 = vadd.f32 %v2697, %v2736
      %v2738 = vpop.f32.mrb[0].mxu0
      %v2739 = vpop.f32.mrb[0].mxu0
      %v2740 = vpop.f32.mrb[0].mxu0
      %2741 = vdwg.mxu0
      %2742 = vmatprep.subr.bf16.mxu0 0
      %2743 = vmatpush1.bf16.msra.mxu0 %v2542
      %2744 = vmatprep.subr.bf16.mxu0 0
      %2745 = vmatpush1.bf16.msra.mxu0 %v2543
      %2746 = vmatprep.subr.bf16.mxu0 0
      %2747 = vmatpush1.bf16.msra.mxu0 %v2544
      %2748 = vmatprep.subr.bf16.mxu0 0
      %2749 = vmatpush1.bf16.msra.mxu0 %v2545
      %2750 = vmatprep.subr.bf16.mxu0 0
      %2751 = vmatpush1.bf16.msra.mxu0 %v2546
      %2752 = vmatprep.subr.bf16.mxu0 0
      %2753 = vmatpush1.bf16.msra.mxu0 %v2547
      %2754 = vmatprep.subr.bf16.mxu0 0
      %2755 = vmatpush1.bf16.msra.mxu0 %v2548
      %2756 = vmatprep.subr.bf16.mxu0 0
      %2757 = vmatpush1.bf16.msra.mxu0 %v2549
      %2758 = vmatprep.subr.bf16.mxu0 0
      %2759 = vmatpush1.bf16.msra.mxu0 %v2550
      %2760 = vmatprep.subr.bf16.mxu0 0
      %2761 = vmatpush1.bf16.msra.mxu0 %v2551
      %2762 = vmatprep.subr.bf16.mxu0 0
      %2763 = vmatpush1.bf16.msra.mxu0 %v2552
      %2764 = vmatprep.subr.bf16.mxu0 0
      %2765 = vmatpush1.bf16.msra.mxu0 %v2553
      %2766 = vmatprep.subr.bf16.mxu0 0
      %2767 = vmatpush1.bf16.msra.mxu0 %v2554
      %2768 = vmatprep.subr.bf16.mxu0 0
      %2769 = vmatpush1.bf16.msra.mxu0 %v2555
      %2770 = vmatprep.subr.bf16.mxu0 0
      %2771 = vmatpush1.bf16.msra.mxu0 %v2556
      %2772 = vmatprep.subr.bf16.mxu0 0
      %2773 = vmatpush1.bf16.msra.mxu0 %v2557
      %2774 = vmatprep.mubr.bf16.mxu0 %v2102
      %2775 = vmatmul.mubr.bf16.gmra.mrb[0].mxu0 %v2101
      %v2776 = vpop.f32.mrb[0].mxu0
      %v2777 = vadd.f32 %v2737, %v2776
      %v2778 = vpop.f32.mrb[0].mxu0
      %v2779 = vpop.f32.mrb[0].mxu0
      %v2780 = vpop.f32.mrb[0].mxu0
      %2781 = vdwg.mxu0
      %2783 = vrot.lane.b32.xlu0 %v2777, 127
      %v2784 = vpop.permute.xlu0 %2783
      %vm2786 = vcmask 41984
      %v2787 = vsel %vm2786, %v2784, 0.0
      %2788 = vadd.xlane.f32.xlu0 %v2787
      %v2789 = vpop.xlane.xlu0 %2788
      %v2790 = vrcp.pop 6.0
      %v2791 = vmul.f32 %v2789, %v2790
      %v2792 = vsub.f32 %v2777, %v2791
      %2793 = vset.pattern.permute.xlu0 0
      %2794 = vperm.xlu0 %2793, %v2777
      %v2795 = vpop.permute.xlu0 %2794
      %v2797 = vadd.f32 %v2795, %v2792
      %2799 = vrot.lane.b32.xlu0 %v2797, 127
      %v2800 = vpop.permute.xlu0 %2799
      %2802 = vst.msk [vmem:[#allocation3] sm:$0x3] %vm2786, %v2800
    $region29: #{ddqn_forward.7} parent=1 // pred_fallthru
      _
    // Predicated region
    $region30: #{ddqn_forward.7} parent=1 // pred_check
      _
    $region31: #{ddqn_forward.7} parent=1 // pred_check_branch
      %2804 = sbr.rel (0) target = $region33
    $region32: #{ddqn_forward.7} parent=1 // pred_region
      %s2806 = ssub.s32 32, 32
      %2807 = vsyncadd [#allocation4], %s2806
      %s2809 = sshll.u32 [#allocation3], 4
      %s2810 = int_to_ptr.vmem [resolvable:$true] %s2809
      %2812 = dma.vmem_to_hbm [thread:$0]  %s2810, 32, %s5, [#allocation4]
    $region33: #{ddqn_forward.7} parent=1 // pred_fallthru
      _
    // Predicated region
    $region34: #{ddqn_forward.7} parent=1 // pred_check
      _
    $region35: #{ddqn_forward.7} parent=1 // pred_check_branch
      %2814 = sbr.rel (0) target = $region37
    $region36: #{ddqn_forward.7} parent=1 // pred_region
      %2815 = dma.done [#allocation4], 32
    $region37: #{ddqn_forward.7} parent=1 // pred_fallthru
      _
    %2816 = vsyncpa [#allocation4], 1

</llo_original>
